<compile_context>
chip_gen: v7x
topology: tpu7x:2x2x1
jax: 0.10.0
libtpu: 0.0.40
codegen_flags: <defaults>
</compile_context>

<pallas_src>
import jax
import jax.numpy as jnp
import numpy as np
from jax import lax
from jax.experimental import pallas as pl
from jax.experimental.pallas import tpu as pltpu

LANE = 128        # f32 lane width of a vreg
SUBLANE = 8       # f32 sublane count of a vreg
BATCH_ALIGN = 16  # bf16 sublane packing for the embedding block


def _round_up(x, m):
    return (x + m - 1) // m * m


def _largest_divisor_leq(n, target):
    for d in range(min(target, n), 0, -1):
        if n % d == 0:
            return d
    return 1


def _bilstm_pool_kernel(emb_ref, lens_ref, wihf_ref, wihb_ref, whhf_ref,
                        whhb_ref, biasf_ref, biasb_ref, out_ref,
                        gf_ref, gb_ref, hf_ref, cf_ref, hb_ref, cb_ref,
                        mxf_ref, mxb_ref):
    """One batch tile of the bidirectional LSTM + temporal max-pool.

    emb_ref  : [T, Bt, Ep]     bf16  time-major embeddings (zero padded)
    lens_ref : [Bt, 1]         f32   valid lengths
    wihf/b   : [Ep, 4*Hp]      bf16  input-projection weights, gate order (i,f,g,o)
    whhf/b   : [Hp, 4*Hp]      bf16  recurrent weights
    biasf/b  : [1, 4*Hp]       f32   b_ih + b_hh
    out_ref  : [Bt, 2*Hp]      f32   [max_t h_fwd | max_t h_bwd]
    gf/gb    : [TC, Bt, 4*Hp]  f32   chunked hoisted input projection (+bias)
    hf/cf/hb/cb/mxf/mxb : [Bt, Hp] f32 state / running max per direction
    """
    T, Bt, Ep = emb_ref.shape
    Hp = whhf_ref.shape[0]
    G4 = 4 * Hp
    TC = gf_ref.shape[0]
    n_seg = T // TC

    # Resident values: loaded once, reused every chunk/step.
    wih_f = wihf_ref[...]
    wih_b = wihb_ref[...]
    whh_f = whhf_ref[...]
    whh_b = whhb_ref[...]
    bias_f = biasf_ref[...]
    bias_b = biasb_ref[...]
    lens = lens_ref[...]                                   # [Bt, 1] f32

    hf_ref[...] = jnp.zeros(hf_ref.shape, hf_ref.dtype)
    cf_ref[...] = jnp.zeros(cf_ref.shape, cf_ref.dtype)
    hb_ref[...] = jnp.zeros(hb_ref.shape, hb_ref.dtype)
    cb_ref[...] = jnp.zeros(cb_ref.shape, cb_ref.dtype)
    mxf_ref[...] = jnp.full(mxf_ref.shape, -jnp.inf, mxf_ref.dtype)
    mxb_ref[...] = jnp.full(mxb_ref.shape, -jnp.inf, mxb_ref.dtype)

    def gate_math(gates, c_prev):
        i_g = jax.nn.sigmoid(gates[:, 0 * Hp:1 * Hp])
        f_g = jax.nn.sigmoid(gates[:, 1 * Hp:2 * Hp])
        g_g = jnp.tanh(gates[:, 2 * Hp:3 * Hp])
        o_g = jax.nn.sigmoid(gates[:, 3 * Hp:4 * Hp])
        c_new = f_g * c_prev + i_g * g_g
        h_new = o_g * jnp.tanh(c_new)
        return h_new, c_new

    # ---- mirrored front/back time chunks: bounded scratch, same total GEMM ----
    for c in range(n_seg):
        t0 = c * TC                 # first fwd timestep of this segment
        tb0 = T - (c + 1) * TC      # first (ascending) bwd timestep of this segment

        # Hoisted input projection for this chunk (fwd half uses only W_ih_f,
        # bwd half only W_ih_b); bias folded in here, never a full-slab pass.
        xf = emb_ref[pl.ds(t0, TC)].reshape(TC * Bt, Ep)
        gf_ref[...] = (jnp.dot(xf, wih_f, preferred_element_type=jnp.float32)
                       + bias_f).reshape(TC, Bt, G4)
        xb = emb_ref[pl.ds(tb0, TC)].reshape(TC * Bt, Ep)
        gb_ref[...] = (jnp.dot(xb, wih_b, preferred_element_type=jnp.float32)
                       + bias_b).reshape(TC, Bt, G4)

        def step(s, carry):
            tf = jnp.asarray(t0 + s, jnp.float32)            # fwd time
            tbf = jnp.asarray(T - 1 - t0 - s, jnp.float32)    # bwd time

            # ---- forward direction: [Bt,Hp] @ [Hp,4Hp], no dead columns ----
            hh_f = jnp.dot(hf_ref[...].astype(jnp.bfloat16), whh_f,
                           preferred_element_type=jnp.float32)
            h_new_f, c_new_f = gate_math(gf_ref[s] + hh_f, cf_ref[...])
            mask_f = tf < lens                                # [Bt,1] bool
            cf_ref[...] = jnp.where(mask_f, c_new_f, cf_ref[...])
            hf_ref[...] = jnp.where(mask_f, h_new_f, hf_ref[...])
            # padded timesteps contribute exactly 0 (== pad_packed_sequence)
            mxf_ref[...] = jnp.maximum(mxf_ref[...],
                                       jnp.where(mask_f, h_new_f, 0.0))

            # ---- backward direction ----
            hh_b = jnp.dot(hb_ref[...].astype(jnp.bfloat16), whh_b,
                           preferred_element_type=jnp.float32)
            h_new_b, c_new_b = gate_math(gb_ref[TC - 1 - s] + hh_b, cb_ref[...])
            mask_b = tbf < lens
            cb_ref[...] = jnp.where(mask_b, c_new_b, cb_ref[...])
            hb_ref[...] = jnp.where(mask_b, h_new_b, hb_ref[...])
            mxb_ref[...] = jnp.maximum(mxb_ref[...],
                                       jnp.where(mask_b, h_new_b, 0.0))
            return carry

        # partial unroll: cross-step LLO visibility without vreg-pressure blowup
        lax.fori_loop(0, TC, step, 0, unroll=min(TC, 8))

    # lane-dense output: two full 128-multiple-wide slice stores, no concatenate
    out_ref[:, :Hp] = mxf_ref[...]
    out_ref[:, Hp:] = mxb_ref[...]


# --------------------------------------------------------------------------- #
# Parameters (PyTorch nn.LSTM layout) and kernel-side packing
# --------------------------------------------------------------------------- #
def init_params(key, E, H):
    """PyTorch nn.LSTM-style parameters: uniform(-1/sqrt(H), 1/sqrt(H))."""
    bound = 1.0 / np.sqrt(H)
    keys = jax.random.split(key, 8)

    def u(k, shape):
        return jax.random.uniform(k, shape, jnp.float32, -bound, bound)

    return dict(
        w_ih_f=u(keys[0], (4 * H, E)), w_hh_f=u(keys[1], (4 * H, H)),
        b_ih_f=u(keys[2], (4 * H,)),   b_hh_f=u(keys[3], (4 * H,)),
        w_ih_b=u(keys[4], (4 * H, E)), w_hh_b=u(keys[5], (4 * H, H)),
        b_ih_b=u(keys[6], (4 * H,)),   b_hh_b=u(keys[7], (4 * H,)),
    )


def _pad_gate_cols(w, H, Hp):
    """[rows, 4H] -> [rows, 4Hp] keeping gate order (i,f,g,o); zero padded."""
    rows = w.shape[0]
    w = w.reshape(rows, 4, H)
    w = jnp.pad(w, ((0, 0), (0, 0), (0, Hp - H)))
    return w.reshape(rows, 4 * Hp)


def prepare_kernel_params(params, E, H, Ep, Hp):
    """Pre-transpose / pad each direction into the kernel's weight layout."""
    def prep_dir(w_ih, w_hh, b_ih, b_hh):
        wih = _pad_gate_cols(w_ih.T, H, Hp)                       # [E, 4Hp]
        wih = jnp.pad(wih, ((0, Ep - E), (0, 0))).astype(jnp.bfloat16)
        whh = _pad_gate_cols(w_hh.T, H, Hp)                       # [H, 4Hp]
        whh = jnp.pad(whh, ((0, Hp - H), (0, 0))).astype(jnp.bfloat16)
        b = _pad_gate_cols((b_ih + b_hh)[None, :], H, Hp).astype(jnp.float32)
        return wih, whh, b

    wih_f, whh_f, b_f = prep_dir(params["w_ih_f"], params["w_hh_f"],
                                 params["b_ih_f"], params["b_hh_f"])
    wih_b, whh_b, b_b = prep_dir(params["w_ih_b"], params["w_hh_b"],
                                 params["b_ih_b"], params["b_hh_b"])
    return dict(wih_f=wih_f, whh_f=whh_f, bias_f=b_f,
                wih_b=wih_b, whh_b=whh_b, bias_b=b_b)


# --------------------------------------------------------------------------- #
# Forward wrapper
# --------------------------------------------------------------------------- #
def pool_bilstm_forward(x_idx, x_len, emb_table, params, *,
                        b_tile=None, t_chunk=16):
    """x_idx: [B, T] int indices, x_len: [B] lengths. Returns [B, 2H]."""
    B, T = x_idx.shape
    _, E = emb_table.shape
    H = params["w_hh_f"].shape[1]

    Hp = _round_up(H, LANE)
    Ep = _round_up(E, LANE)

    # Batch tile: fill the MXU M dimension at production batch sizes, stay small
    # for tiny batches.  (On v7x prefer configs with n_btiles >= 2 so the
    # "parallel" grid axis feeds both TensorCores.)
    if b_tile is None:
        b_tile = min(128, _round_up(B, BATCH_ALIGN))
    Bt = _round_up(max(b_tile, BATCH_ALIGN), BATCH_ALIGN)
    Bp = _round_up(max(B, Bt), Bt)
    n_btiles = Bp // Bt

    # Time chunk for the hoisted input GEMM (bounds gate scratch independent of T).
    TC = _largest_divisor_leq(T, max(1, min(t_chunk, T)))

    kp = prepare_kernel_params(params, E, H, Ep, Hp)

    # Embedding gather directly in time-major order and in bf16 (halves the DMA
    # bytes of the largest streamed input; only the tiny [B,T] index array is
    # transposed, never the embedded [B,T,E] slab).
    emb_pad = jnp.pad(emb_table.astype(jnp.float32),
                      ((0, 0), (0, Ep - E))).astype(jnp.bfloat16)
    emb_tm = jnp.take(emb_pad, x_idx.astype(jnp.int32).T, axis=0)   # [T, B, Ep]
    emb_tm = jnp.pad(emb_tm, ((0, 0), (0, Bp - B), (0, 0)))         # [T, Bp, Ep]

    lens = jnp.pad(x_len.astype(jnp.float32), (0, Bp - B)).reshape(Bp, 1)

    # Explicit scoped-VMEM budget (defaults are 16/32 MiB and would choke at
    # production Bt/T); capped at 48 MiB so it is safe on v7x's 64 MiB VMEM.
    need = (2 * T * Bt * Ep * 2                       # emb block (bf16, double buffered)
            + 2 * 2 * Ep * 4 * Hp * 2                 # wih_f + wih_b (bf16)
            + 2 * 2 * Hp * 4 * Hp * 2                 # whh_f + whh_b (bf16)
            + 2 * 2 * 4 * Hp * 4                      # biases
            + 2 * Bt * LANE * 4                       # lens (lane padded)
            + 2 * Bt * 2 * Hp * 4                     # out block
            + 2 * TC * Bt * 4 * Hp * 4                # gf + gb chunk scratch
            + 6 * Bt * Hp * 4)                        # h/c/max, both directions
    vmem_limit = int(min(48 << 20, max(need + (4 << 20), 12 << 20)))

    grid_spec = pltpu.PrefetchScalarGridSpec(
        num_scalar_prefetch=0,
        grid=(n_btiles,),
        in_specs=[
            pl.BlockSpec((T, Bt, Ep), lambda b: (0, b, 0)),       # emb (batch tiled, bf16)
            pl.BlockSpec((Bt, 1), lambda b: (b, 0)),              # lengths
            pl.BlockSpec((Ep, 4 * Hp), lambda b: (0, 0)),         # W_ih_fwd (resident)
            pl.BlockSpec((Ep, 4 * Hp), lambda b: (0, 0)),         # W_ih_bwd (resident)
            pl.BlockSpec((Hp, 4 * Hp), lambda b: (0, 0)),         # W_hh_fwd (resident)
            pl.BlockSpec((Hp, 4 * Hp), lambda b: (0, 0)),         # W_hh_bwd (resident)
            pl.BlockSpec((1, 4 * Hp), lambda b: (0, 0)),          # bias_fwd (resident)
            pl.BlockSpec((1, 4 * Hp), lambda b: (0, 0)),          # bias_bwd (resident)
        ],
        out_specs=pl.BlockSpec((Bt, 2 * Hp), lambda b: (b, 0)),
        scratch_shapes=[
            pltpu.VMEM((TC, Bt, 4 * Hp), jnp.float32),   # gf: fwd input gates (chunk)
            pltpu.VMEM((TC, Bt, 4 * Hp), jnp.float32),   # gb: bwd input gates (chunk)
            pltpu.VMEM((Bt, Hp), jnp.float32),           # h_fwd
            pltpu.VMEM((Bt, Hp), jnp.float32),           # c_fwd
            pltpu.VMEM((Bt, Hp), jnp.float32),           # h_bwd
            pltpu.VMEM((Bt, Hp), jnp.float32),           # c_bwd
            pltpu.VMEM((Bt, Hp), jnp.float32),           # running max fwd
            pltpu.VMEM((Bt, Hp), jnp.float32),           # running max bwd
        ],
    )

    out_pad = pl.pallas_call(
        _bilstm_pool_kernel,
        out_shape=jax.ShapeDtypeStruct((Bp, 2 * Hp), jnp.float32),
        grid_spec=grid_spec,
        compiler_params=pltpu.CompilerParams(
            dimension_semantics=("parallel",),           # megacore-shard batch tiles
            vmem_limit_bytes=vmem_limit),
    )(emb_tm, lens, kp["wih_f"], kp["wih_b"], kp["whh_f"], kp["whh_b"],
      kp["bias_f"], kp["bias_b"])

    # un-pad: [Bp, 2Hp] -> [B, 2H]
    return jnp.concatenate([out_pad[:B, :H], out_pad[:B, Hp:Hp + H]], axis=-1)


# --------------------------------------------------------------------------- #
# Pure-JAX reference with identical semantics (bf16 MXU operands, f32 accumulate)
# --------------------------------------------------------------------------- #
def ref_forward(x_idx, x_len, emb_table, params):
    B, T = x_idx.shape
    H = params["w_hh_f"].shape[1]
    emb = jnp.take(emb_table.astype(jnp.float32), x_idx.astype(jnp.int32), axis=0)
    lens = x_len.astype(jnp.int32)

    def make_cell(wih_t, whh_t, bias):
        wih_t = wih_t.astype(jnp.bfloat16)
        whh_t = whh_t.astype(jnp.bfloat16)

        def cell(x_t, h, c):
            gates = (jnp.dot(x_t.astype(jnp.bfloat16), wih_t,
                             preferred_element_type=jnp.float32)
                     + jnp.dot(h.astype(jnp.bfloat16), whh_t,
                               preferred_element_type=jnp.float32)
                     + bias)
            i = jax.nn.sigmoid(gates[:, :H])
            f = jax.nn.sigmoid(gates[:, H:2 * H])
            g = jnp.tanh(gates[:, 2 * H:3 * H])
            o = jax.nn.sigmoid(gates[:, 3 * H:])
            c_new = f * c + i * g
            return o * jnp.tanh(c_new), c_new
        return cell

    cell_f = make_cell(params["w_ih_f"].T, params["w_hh_f"].T,
                       (params["b_ih_f"] + params["b_hh_f"])[None, :])
    cell_b = make_cell(params["w_ih_b"].T, params["w_hh_b"].T,
                       (params["b_ih_b"] + params["b_hh_b"])[None, :])

    h = jnp.zeros((B, H), jnp.float32)
    c = jnp.zeros((B, H), jnp.float32)
    outs_f = []
    for t in range(T):
        h, c = cell_f(emb[:, t], h, c)
        outs_f.append(jnp.where((t < lens)[:, None], h, 0.0))

    h = jnp.zeros((B, H), jnp.float32)
    c = jnp.zeros((B, H), jnp.float32)
    outs_b = [None] * T
    for t in range(T - 1, -1, -1):
        mask = (t < lens)[:, None]
        h_new, c_new = cell_b(emb[:, t], h, c)
        h = jnp.where(mask, h_new, h)
        c = jnp.where(mask, c_new, c)
        outs_b[t] = jnp.where(mask, h, 0.0)

    out_seq = jnp.concatenate([jnp.stack(outs_f, 1), jnp.stack(outs_b, 1)], axis=-1)
    return jnp.max(out_seq, axis=1)


if __name__ == "__main__":
    key = jax.random.PRNGKey(0)
    vocab_size, B, T, E, H = 50, 2, 8, 32, 32

    k_emb, k_x, k_p = jax.random.split(key, 3)
    emb_table = jax.random.normal(k_emb, (vocab_size, E), jnp.float32)   # frozen embedding
    x_idx = jax.random.randint(k_x, (B, T), 0, vocab_size, jnp.int32)
    x_len = jnp.array([8, 5], jnp.int32)                                 # per-sequence valid lengths
    params = init_params(k_p, E, H)

    out = jax.block_until_ready(pool_bilstm_forward(x_idx, x_len, emb_table, params))
    ref = jax.block_until_ready(ref_forward(x_idx, x_len, emb_table, params))

    assert out.shape == (B, 2 * H), out.shape
    if not np.allclose(np.asarray(out), np.asarray(ref), atol=5e-3, rtol=5e-3):
        err = float(np.max(np.abs(np.asarray(out) - np.asarray(ref))))
        raise AssertionError(f"Pallas kernel does not match JAX reference (max err {err})")
    print("KERNEL_OK")
</pallas_src>

<mosaic_0001>
module attributes {stable_mosaic.version = 11 : i64} {
  func.func @_bilstm_pool_kernel(%arg0: i32, %arg1: memref<8x16x128xbf16, #tpu.memory_space<vmem>>, %arg2: memref<16x1xf32, #tpu.memory_space<vmem>>, %arg3: memref<128x512xbf16, #tpu.memory_space<vmem>>, %arg4: memref<128x512xbf16, #tpu.memory_space<vmem>>, %arg5: memref<128x512xbf16, #tpu.memory_space<vmem>>, %arg6: memref<128x512xbf16, #tpu.memory_space<vmem>>, %arg7: memref<1x512xf32, #tpu.memory_space<vmem>>, %arg8: memref<1x512xf32, #tpu.memory_space<vmem>>, %arg9: memref<16x256xf32, #tpu.memory_space<vmem>>, %arg10: memref<8x16x512xf32, #tpu.memory_space<vmem>>, %arg11: memref<8x16x512xf32, #tpu.memory_space<vmem>>, %arg12: memref<16x128xf32, #tpu.memory_space<vmem>>, %arg13: memref<16x128xf32, #tpu.memory_space<vmem>>, %arg14: memref<16x128xf32, #tpu.memory_space<vmem>>, %arg15: memref<16x128xf32, #tpu.memory_space<vmem>>, %arg16: memref<16x128xf32, #tpu.memory_space<vmem>>, %arg17: memref<16x128xf32, #tpu.memory_space<vmem>>) attributes {dimension_semantics = [#tpu.dimension_semantics<parallel>], iteration_bounds = array<i64: 1>, scalar_prefetch = 0 : i64, scratch_operands = 8 : i64, tpu.core_type = #tpu.core_type<tc>, window_params = [{transform_indices = @transform_0, window_bounds = array<i64: 8, 16, 128>}, {transform_indices = @transform_1, window_bounds = array<i64: 16, 1>}, {pipeline_mode = #tpu.pipeline_mode<synchronous>, transform_indices = @transform_2, window_bounds = array<i64: 128, 512>}, {pipeline_mode = #tpu.pipeline_mode<synchronous>, transform_indices = @transform_3, window_bounds = array<i64: 128, 512>}, {pipeline_mode = #tpu.pipeline_mode<synchronous>, transform_indices = @transform_4, window_bounds = array<i64: 128, 512>}, {pipeline_mode = #tpu.pipeline_mode<synchronous>, transform_indices = @transform_5, window_bounds = array<i64: 128, 512>}, {pipeline_mode = #tpu.pipeline_mode<synchronous>, transform_indices = @transform_6, window_bounds = array<i64: 1, 512>}, {pipeline_mode = #tpu.pipeline_mode<synchronous>, transform_indices = @transform_7, window_bounds = array<i64: 1, 512>}, {transform_indices = @transform_8, window_bounds = array<i64: 16, 256>}]} {
    %c0 = arith.constant 0 : index
    %c0_0 = arith.constant 0 : index
    %0 = vector.load %arg3[%c0, %c0_0] : memref<128x512xbf16, #tpu.memory_space<vmem>>, vector<128x512xbf16>
    %c0_1 = arith.constant 0 : index
    %c0_2 = arith.constant 0 : index
    %1 = vector.load %arg4[%c0_1, %c0_2] : memref<128x512xbf16, #tpu.memory_space<vmem>>, vector<128x512xbf16>
    %c0_3 = arith.constant 0 : index
    %c0_4 = arith.constant 0 : index
    %2 = vector.load %arg5[%c0_3, %c0_4] : memref<128x512xbf16, #tpu.memory_space<vmem>>, vector<128x512xbf16>
    %c0_5 = arith.constant 0 : index
    %c0_6 = arith.constant 0 : index
    %3 = vector.load %arg6[%c0_5, %c0_6] : memref<128x512xbf16, #tpu.memory_space<vmem>>, vector<128x512xbf16>
    %c0_7 = arith.constant 0 : index
    %c0_8 = arith.constant 0 : index
    %4 = vector.load %arg7[%c0_7, %c0_8] : memref<1x512xf32, #tpu.memory_space<vmem>>, vector<1x512xf32>
    %c0_9 = arith.constant 0 : index
    %c0_10 = arith.constant 0 : index
    %5 = vector.load %arg8[%c0_9, %c0_10] : memref<1x512xf32, #tpu.memory_space<vmem>>, vector<1x512xf32>
    %c0_11 = arith.constant 0 : index
    %c0_12 = arith.constant 0 : index
    %6 = vector.load %arg2[%c0_11, %c0_12] : memref<16x1xf32, #tpu.memory_space<vmem>>, vector<16x1xf32>
    %cst = arith.constant 0.000000e+00 : f32
    %7 = vector.broadcast %cst : f32 to vector<16x128xf32>
    %c0_13 = arith.constant 0 : index
    %c0_14 = arith.constant 0 : index
    %8 = vector.load %arg12[%c0_13, %c0_14] : memref<16x128xf32, #tpu.memory_space<vmem>>, vector<16x128xf32>
    tpu.vector_store %arg12[%c0_13, %c0_14], %7 {strides = array<i32>} : memref<16x128xf32, #tpu.memory_space<vmem>>, vector<16x128xf32>,
    %cst_15 = arith.constant 0.000000e+00 : f32
    %9 = vector.broadcast %cst_15 : f32 to vector<16x128xf32>
    %c0_16 = arith.constant 0 : index
    %c0_17 = arith.constant 0 : index
    %10 = vector.load %arg13[%c0_16, %c0_17] : memref<16x128xf32, #tpu.memory_space<vmem>>, vector<16x128xf32>
    tpu.vector_store %arg13[%c0_16, %c0_17], %9 {strides = array<i32>} : memref<16x128xf32, #tpu.memory_space<vmem>>, vector<16x128xf32>,
    %cst_18 = arith.constant 0.000000e+00 : f32
    %11 = vector.broadcast %cst_18 : f32 to vector<16x128xf32>
    %c0_19 = arith.constant 0 : index
    %c0_20 = arith.constant 0 : index
    %12 = vector.load %arg14[%c0_19, %c0_20] : memref<16x128xf32, #tpu.memory_space<vmem>>, vector<16x128xf32>
    tpu.vector_store %arg14[%c0_19, %c0_20], %11 {strides = array<i32>} : memref<16x128xf32, #tpu.memory_space<vmem>>, vector<16x128xf32>,
    %cst_21 = arith.constant 0.000000e+00 : f32
    %13 = vector.broadcast %cst_21 : f32 to vector<16x128xf32>
    %c0_22 = arith.constant 0 : index
    %c0_23 = arith.constant 0 : index
    %14 = vector.load %arg15[%c0_22, %c0_23] : memref<16x128xf32, #tpu.memory_space<vmem>>, vector<16x128xf32>
    tpu.vector_store %arg15[%c0_22, %c0_23], %13 {strides = array<i32>} : memref<16x128xf32, #tpu.memory_space<vmem>>, vector<16x128xf32>,
    %cst_24 = arith.constant 0xFF800000 : f32
    %15 = vector.broadcast %cst_24 : f32 to vector<16x128xf32>
    %c0_25 = arith.constant 0 : index
    %c0_26 = arith.constant 0 : index
    %16 = vector.load %arg16[%c0_25, %c0_26] : memref<16x128xf32, #tpu.memory_space<vmem>>, vector<16x128xf32>
    tpu.vector_store %arg16[%c0_25, %c0_26], %15 {strides = array<i32>} : memref<16x128xf32, #tpu.memory_space<vmem>>, vector<16x128xf32>,
    %cst_27 = arith.constant 0xFF800000 : f32
    %17 = vector.broadcast %cst_27 : f32 to vector<16x128xf32>
    %c0_28 = arith.constant 0 : index
    %c0_29 = arith.constant 0 : index
    %18 = vector.load %arg17[%c0_28, %c0_29] : memref<16x128xf32, #tpu.memory_space<vmem>>, vector<16x128xf32>
    tpu.vector_store %arg17[%c0_28, %c0_29], %17 {strides = array<i32>} : memref<16x128xf32, #tpu.memory_space<vmem>>, vector<16x128xf32>,
    %c0_30 = arith.constant 0 : index
    %c0_31 = arith.constant 0 : index
    %c0_32 = arith.constant 0 : index
    %19 = vector.load %arg1[%c0_30, %c0_31, %c0_32] : memref<8x16x128xbf16, #tpu.memory_space<vmem>>, vector<8x16x128xbf16>
    %20 = vector.shape_cast %19 : vector<8x16x128xbf16> to vector<128x128xbf16>
    %cst_33 = arith.constant dense<0.000000e+00> : vector<128x512xf32>
    %21 = tpu.matmul %20, %0, %cst_33 {dimension_numbers = #tpu.dot_dimension_numbers<[1], [0], [0], [1], [0, 0, 1, 1], [], []>} : vector<128x128xbf16>, vector<128x512xbf16>, vector<128x512xf32> -> vector<128x512xf32>
    %22 = vector.broadcast %4 : vector<1x512xf32> to vector<128x512xf32>
    %23 = arith.addf %21, %22 : vector<128x512xf32>
    %24 = vector.shape_cast %23 : vector<128x512xf32> to vector<8x16x512xf32>
    %c0_34 = arith.constant 0 : index
    %c0_35 = arith.constant 0 : index
    %c0_36 = arith.constant 0 : index
    %25 = vector.load %arg10[%c0_34, %c0_35, %c0_36] : memref<8x16x512xf32, #tpu.memory_space<vmem>>, vector<8x16x512xf32>
    tpu.vector_store %arg10[%c0_34, %c0_35, %c0_36], %24 {strides = array<i32>} : memref<8x16x512xf32, #tpu.memory_space<vmem>>, vector<8x16x512xf32>,
    %c0_37 = arith.constant 0 : index
    %c0_38 = arith.constant 0 : index
    %c0_39 = arith.constant 0 : index
    %26 = vector.load %arg1[%c0_37, %c0_38, %c0_39] : memref<8x16x128xbf16, #tpu.memory_space<vmem>>, vector<8x16x128xbf16>
    %27 = vector.shape_cast %26 : vector<8x16x128xbf16> to vector<128x128xbf16>
    %cst_40 = arith.constant dense<0.000000e+00> : vector<128x512xf32>
    %28 = tpu.matmul %27, %1, %cst_40 {dimension_numbers = #tpu.dot_dimension_numbers<[1], [0], [0], [1], [0, 0, 1, 1], [], []>} : vector<128x128xbf16>, vector<128x512xbf16>, vector<128x512xf32> -> vector<128x512xf32>
    %29 = vector.broadcast %5 : vector<1x512xf32> to vector<128x512xf32>
    %30 = arith.addf %28, %29 : vector<128x512xf32>
    %31 = vector.shape_cast %30 : vector<128x512xf32> to vector<8x16x512xf32>
    %c0_41 = arith.constant 0 : index
    %c0_42 = arith.constant 0 : index
    %c0_43 = arith.constant 0 : index
    %32 = vector.load %arg11[%c0_41, %c0_42, %c0_43] : memref<8x16x512xf32, #tpu.memory_space<vmem>>, vector<8x16x512xf32>
    tpu.vector_store %arg11[%c0_41, %c0_42, %c0_43], %31 {strides = array<i32>} : memref<8x16x512xf32, #tpu.memory_space<vmem>>, vector<8x16x512xf32>,
    %c0_i32 = arith.constant 0 : i32
    %c0_i32_44 = arith.constant 0 : i32
    %33 = arith.addi %c0_i32_44, %c0_i32 : i32
    %34 = arith.sitofp %33 : i32 to f32
    %c7_i32 = arith.constant 7 : i32
    %35 = arith.subi %c7_i32, %c0_i32 : i32
    %36 = arith.sitofp %35 : i32 to f32
    %c0_45 = arith.constant 0 : index
    %c0_46 = arith.constant 0 : index
    %37 = vector.load %arg12[%c0_45, %c0_46] : memref<16x128xf32, #tpu.memory_space<vmem>>, vector<16x128xf32>
    %38 = arith.truncf %37 : vector<16x128xf32> to vector<16x128xbf16>
    %cst_47 = arith.constant dense<0.000000e+00> : vector<16x512xf32>
    %39 = tpu.matmul %38, %2, %cst_47 {dimension_numbers = #tpu.dot_dimension_numbers<[1], [0], [0], [1], [0, 0, 1, 1], [], []>} : vector<16x128xbf16>, vector<128x512xbf16>, vector<16x512xf32> -> vector<16x512xf32>
    %40 = arith.index_cast %c0_i32 : i32 to index
    %c0_48 = arith.constant 0 : index
    %c0_49 = arith.constant 0 : index
    %41 = vector.load %arg10[%40, %c0_48, %c0_49] : memref<8x16x512xf32, #tpu.memory_space<vmem>>, vector<1x16x512xf32>
    %42 = vector.shape_cast %41 : vector<1x16x512xf32> to vector<16x512xf32>
    %43 = arith.addf %42, %39 : vector<16x512xf32>
    %c0_50 = arith.constant 0 : index
    %c0_51 = arith.constant 0 : index
    %44 = vector.load %arg13[%c0_50, %c0_51] : memref<16x128xf32, #tpu.memory_space<vmem>>, vector<16x128xf32>
    %45 = vector.extract_strided_slice %43 {offsets = [0, 0], sizes = [16, 128], strides = [1, 1]} : vector<16x512xf32> to vector<16x128xf32>
    %46 = arith.negf %45 : vector<16x128xf32>
    %47 = math.exp %46 : vector<16x128xf32>
    %cst_52 = arith.constant 1.000000e+00 : f32
    %48 = vector.broadcast %cst_52 : f32 to vector<16x128xf32>
    %49 = arith.addf %48, %47 : vector<16x128xf32>
    %50 = arith.divf %48, %49 : vector<16x128xf32>
    %51 = vector.extract_strided_slice %43 {offsets = [0, 128], sizes = [16, 128], strides = [1, 1]} : vector<16x512xf32> to vector<16x128xf32>
    %52 = arith.negf %51 : vector<16x128xf32>
    %53 = math.exp %52 : vector<16x128xf32>
    %cst_53 = arith.constant 1.000000e+00 : f32
    %54 = vector.broadcast %cst_53 : f32 to vector<16x128xf32>
    %55 = arith.addf %54, %53 : vector<16x128xf32>
    %56 = arith.divf %54, %55 : vector<16x128xf32>
    %57 = vector.extract_strided_slice %43 {offsets = [0, 256], sizes = [16, 128], strides = [1, 1]} : vector<16x512xf32> to vector<16x128xf32>
    %58 = math.tanh %57 : vector<16x128xf32>
    %59 = vector.extract_strided_slice %43 {offsets = [0, 384], sizes = [16, 128], strides = [1, 1]} : vector<16x512xf32> to vector<16x128xf32>
    %60 = arith.negf %59 : vector<16x128xf32>
    %61 = math.exp %60 : vector<16x128xf32>
    %cst_54 = arith.constant 1.000000e+00 : f32
    %62 = vector.broadcast %cst_54 : f32 to vector<16x128xf32>
    %63 = arith.addf %62, %61 : vector<16x128xf32>
    %64 = arith.divf %62, %63 : vector<16x128xf32>
    %65 = arith.mulf %56, %44 : vector<16x128xf32>
    %66 = arith.mulf %50, %58 : vector<16x128xf32>
    %67 = arith.addf %65, %66 : vector<16x128xf32>
    %68 = math.tanh %67 : vector<16x128xf32>
    %69 = arith.mulf %64, %68 : vector<16x128xf32>
    %70 = vector.broadcast %34 : f32 to vector<16x1xf32>
    %71 = arith.cmpf olt, %70, %6 : vector<16x1xf32>
    %c0_55 = arith.constant 0 : index
    %c0_56 = arith.constant 0 : index
    %72 = vector.load %arg13[%c0_55, %c0_56] : memref<16x128xf32, #tpu.memory_space<vmem>>, vector<16x128xf32>
    %73 = vector.shape_cast %71 : vector<16x1xi1> to vector<16x1xi1>
    %74 = vector.broadcast %73 : vector<16x1xi1> to vector<16x128xi1>
    %75 = arith.select %74, %67, %72 : vector<16x128xi1>, vector<16x128xf32>
    %c0_57 = arith.constant 0 : index
    %c0_58 = arith.constant 0 : index
    %76 = vector.load %arg13[%c0_57, %c0_58] : memref<16x128xf32, #tpu.memory_space<vmem>>, vector<16x128xf32>
    tpu.vector_store %arg13[%c0_57, %c0_58], %75 {strides = array<i32>} : memref<16x128xf32, #tpu.memory_space<vmem>>, vector<16x128xf32>,
    %c0_59 = arith.constant 0 : index
    %c0_60 = arith.constant 0 : index
    %77 = vector.load %arg12[%c0_59, %c0_60] : memref<16x128xf32, #tpu.memory_space<vmem>>, vector<16x128xf32>
    %78 = vector.shape_cast %71 : vector<16x1xi1> to vector<16x1xi1>
    %79 = vector.broadcast %78 : vector<16x1xi1> to vector<16x128xi1>
    %80 = arith.select %79, %69, %77 : vector<16x128xi1>, vector<16x128xf32>
    %c0_61 = arith.constant 0 : index
    %c0_62 = arith.constant 0 : index
    %81 = vector.load %arg12[%c0_61, %c0_62] : memref<16x128xf32, #tpu.memory_space<vmem>>, vector<16x128xf32>
    tpu.vector_store %arg12[%c0_61, %c0_62], %80 {strides = array<i32>} : memref<16x128xf32, #tpu.memory_space<vmem>>, vector<16x128xf32>,
    %c0_63 = arith.constant 0 : index
    %c0_64 = arith.constant 0 : index
    %82 = vector.load %arg16[%c0_63, %c0_64] : memref<16x128xf32, #tpu.memory_space<vmem>>, vector<16x128xf32>
    %cst_65 = arith.constant 0.000000e+00 : f32
    %83 = vector.shape_cast %71 : vector<16x1xi1> to vector<16x1xi1>
    %84 = vector.broadcast %83 : vector<16x1xi1> to vector<16x128xi1>
    %85 = vector.broadcast %cst_65 : f32 to vector<16x128xf32>
    %86 = arith.select %84, %69, %85 : vector<16x128xi1>, vector<16x128xf32>
    %87 = arith.maximumf %82, %86 : vector<16x128xf32>
    %c0_66 = arith.constant 0 : index
    %c0_67 = arith.constant 0 : index
    %88 = vector.load %arg16[%c0_66, %c0_67] : memref<16x128xf32, #tpu.memory_space<vmem>>, vector<16x128xf32>
    tpu.vector_store %arg16[%c0_66, %c0_67], %87 {strides = array<i32>} : memref<16x128xf32, #tpu.memory_space<vmem>>, vector<16x128xf32>,
    %c0_68 = arith.constant 0 : index
    %c0_69 = arith.constant 0 : index
    %89 = vector.load %arg14[%c0_68, %c0_69] : memref<16x128xf32, #tpu.memory_space<vmem>>, vector<16x128xf32>
    %90 = arith.truncf %89 : vector<16x128xf32> to vector<16x128xbf16>
    %cst_70 = arith.constant dense<0.000000e+00> : vector<16x512xf32>
    %91 = tpu.matmul %90, %3, %cst_70 {dimension_numbers = #tpu.dot_dimension_numbers<[1], [0], [0], [1], [0, 0, 1, 1], [], []>} : vector<16x128xbf16>, vector<128x512xbf16>, vector<16x512xf32> -> vector<16x512xf32>
    %c7_i32_71 = arith.constant 7 : i32
    %92 = arith.subi %c7_i32_71, %c0_i32 : i32
    %93 = arith.index_cast %92 : i32 to index
    %c0_72 = arith.constant 0 : index
    %c0_73 = arith.constant 0 : index
    %94 = vector.load %arg11[%93, %c0_72, %c0_73] : memref<8x16x512xf32, #tpu.memory_space<vmem>>, vector<1x16x512xf32>
    %95 = vector.shape_cast %94 : vector<1x16x512xf32> to vector<16x512xf32>
    %96 = arith.addf %95, %91 : vector<16x512xf32>
    %c0_74 = arith.constant 0 : index
    %c0_75 = arith.constant 0 : index
    %97 = vector.load %arg15[%c0_74, %c0_75] : memref<16x128xf32, #tpu.memory_space<vmem>>, vector<16x128xf32>
    %98 = vector.extract_strided_slice %96 {offsets = [0, 0], sizes = [16, 128], strides = [1, 1]} : vector<16x512xf32> to vector<16x128xf32>
    %99 = arith.negf %98 : vector<16x128xf32>
    %100 = math.exp %99 : vector<16x128xf32>
    %cst_76 = arith.constant 1.000000e+00 : f32
    %101 = vector.broadcast %cst_76 : f32 to vector<16x128xf32>
    %102 = arith.addf %101, %100 : vector<16x128xf32>
    %103 = arith.divf %101, %102 : vector<16x128xf32>
    %104 = vector.extract_strided_slice %96 {offsets = [0, 128], sizes = [16, 128], strides = [1, 1]} : vector<16x512xf32> to vector<16x128xf32>
    %105 = arith.negf %104 : vector<16x128xf32>
    %106 = math.exp %105 : vector<16x128xf32>
    %cst_77 = arith.constant 1.000000e+00 : f32
    %107 = vector.broadcast %cst_77 : f32 to vector<16x128xf32>
    %108 = arith.addf %107, %106 : vector<16x128xf32>
    %109 = arith.divf %107, %108 : vector<16x128xf32>
    %110 = vector.extract_strided_slice %96 {offsets = [0, 256], sizes = [16, 128], strides = [1, 1]} : vector<16x512xf32> to vector<16x128xf32>
    %111 = math.tanh %110 : vector<16x128xf32>
    %112 = vector.extract_strided_slice %96 {offsets = [0, 384], sizes = [16, 128], strides = [1, 1]} : vector<16x512xf32> to vector<16x128xf32>
    %113 = arith.negf %112 : vector<16x128xf32>
    %114 = math.exp %113 : vector<16x128xf32>
    %cst_78 = arith.constant 1.000000e+00 : f32
    %115 = vector.broadcast %cst_78 : f32 to vector<16x128xf32>
    %116 = arith.addf %115, %114 : vector<16x128xf32>
    %117 = arith.divf %115, %116 : vector<16x128xf32>
    %118 = arith.mulf %109, %97 : vector<16x128xf32>
    %119 = arith.mulf %103, %111 : vector<16x128xf32>
    %120 = arith.addf %118, %119 : vector<16x128xf32>
    %121 = math.tanh %120 : vector<16x128xf32>
    %122 = arith.mulf %117, %121 : vector<16x128xf32>
    %123 = vector.broadcast %36 : f32 to vector<16x1xf32>
    %124 = arith.cmpf olt, %123, %6 : vector<16x1xf32>
    %c0_79 = arith.constant 0 : index
    %c0_80 = arith.constant 0 : index
    %125 = vector.load %arg15[%c0_79, %c0_80] : memref<16x128xf32, #tpu.memory_space<vmem>>, vector<16x128xf32>
    %126 = vector.shape_cast %124 : vector<16x1xi1> to vector<16x1xi1>
    %127 = vector.broadcast %126 : vector<16x1xi1> to vector<16x128xi1>
    %128 = arith.select %127, %120, %125 : vector<16x128xi1>, vector<16x128xf32>
    %c0_81 = arith.constant 0 : index
    %c0_82 = arith.constant 0 : index
    %129 = vector.load %arg15[%c0_81, %c0_82] : memref<16x128xf32, #tpu.memory_space<vmem>>, vector<16x128xf32>
    tpu.vector_store %arg15[%c0_81, %c0_82], %128 {strides = array<i32>} : memref<16x128xf32, #tpu.memory_space<vmem>>, vector<16x128xf32>,
    %c0_83 = arith.constant 0 : index
    %c0_84 = arith.constant 0 : index
    %130 = vector.load %arg14[%c0_83, %c0_84] : memref<16x128xf32, #tpu.memory_space<vmem>>, vector<16x128xf32>
    %131 = vector.shape_cast %124 : vector<16x1xi1> to vector<16x1xi1>
    %132 = vector.broadcast %131 : vector<16x1xi1> to vector<16x128xi1>
    %133 = arith.select %132, %122, %130 : vector<16x128xi1>, vector<16x128xf32>
    %c0_85 = arith.constant 0 : index
    %c0_86 = arith.constant 0 : index
    %134 = vector.load %arg14[%c0_85, %c0_86] : memref<16x128xf32, #tpu.memory_space<vmem>>, vector<16x128xf32>
    tpu.vector_store %arg14[%c0_85, %c0_86], %133 {strides = array<i32>} : memref<16x128xf32, #tpu.memory_space<vmem>>, vector<16x128xf32>,
    %c0_87 = arith.constant 0 : index
    %c0_88 = arith.constant 0 : index
    %135 = vector.load %arg17[%c0_87, %c0_88] : memref<16x128xf32, #tpu.memory_space<vmem>>, vector<16x128xf32>
    %cst_89 = arith.constant 0.000000e+00 : f32
    %136 = vector.shape_cast %124 : vector<16x1xi1> to vector<16x1xi1>
    %137 = vector.broadcast %136 : vector<16x1xi1> to vector<16x128xi1>
    %138 = vector.broadcast %cst_89 : f32 to vector<16x128xf32>
    %139 = arith.select %137, %122, %138 : vector<16x128xi1>, vector<16x128xf32>
    %140 = arith.maximumf %135, %139 : vector<16x128xf32>
    %c0_90 = arith.constant 0 : index
    %c0_91 = arith.constant 0 : index
    %141 = vector.load %arg17[%c0_90, %c0_91] : memref<16x128xf32, #tpu.memory_space<vmem>>, vector<16x128xf32>
    tpu.vector_store %arg17[%c0_90, %c0_91], %140 {strides = array<i32>} : memref<16x128xf32, #tpu.memory_space<vmem>>, vector<16x128xf32>,
    %c1_i32 = arith.constant 1 : i32
    %c0_i32_92 = arith.constant 0 : i32
    %142 = arith.addi %c0_i32_92, %c1_i32 : i32
    %143 = arith.sitofp %142 : i32 to f32
    %c7_i32_93 = arith.constant 7 : i32
    %144 = arith.subi %c7_i32_93, %c1_i32 : i32
    %145 = arith.sitofp %144 : i32 to f32
    %c0_94 = arith.constant 0 : index
    %c0_95 = arith.constant 0 : index
    %146 = vector.load %arg12[%c0_94, %c0_95] : memref<16x128xf32, #tpu.memory_space<vmem>>, vector<16x128xf32>
    %147 = arith.truncf %146 : vector<16x128xf32> to vector<16x128xbf16>
    %cst_96 = arith.constant dense<0.000000e+00> : vector<16x512xf32>
    %148 = tpu.matmul %147, %2, %cst_96 {dimension_numbers = #tpu.dot_dimension_numbers<[1], [0], [0], [1], [0, 0, 1, 1], [], []>} : vector<16x128xbf16>, vector<128x512xbf16>, vector<16x512xf32> -> vector<16x512xf32>
    %149 = arith.index_cast %c1_i32 : i32 to index
    %c0_97 = arith.constant 0 : index
    %c0_98 = arith.constant 0 : index
    %150 = vector.load %arg10[%149, %c0_97, %c0_98] : memref<8x16x512xf32, #tpu.memory_space<vmem>>, vector<1x16x512xf32>
    %151 = vector.shape_cast %150 : vector<1x16x512xf32> to vector<16x512xf32>
    %152 = arith.addf %151, %148 : vector<16x512xf32>
    %c0_99 = arith.constant 0 : index
    %c0_100 = arith.constant 0 : index
    %153 = vector.load %arg13[%c0_99, %c0_100] : memref<16x128xf32, #tpu.memory_space<vmem>>, vector<16x128xf32>
    %154 = vector.extract_strided_slice %152 {offsets = [0, 0], sizes = [16, 128], strides = [1, 1]} : vector<16x512xf32> to vector<16x128xf32>
    %155 = arith.negf %154 : vector<16x128xf32>
    %156 = math.exp %155 : vector<16x128xf32>
    %cst_101 = arith.constant 1.000000e+00 : f32
    %157 = vector.broadcast %cst_101 : f32 to vector<16x128xf32>
    %158 = arith.addf %157, %156 : vector<16x128xf32>
    %159 = arith.divf %157, %158 : vector<16x128xf32>
    %160 = vector.extract_strided_slice %152 {offsets = [0, 128], sizes = [16, 128], strides = [1, 1]} : vector<16x512xf32> to vector<16x128xf32>
    %161 = arith.negf %160 : vector<16x128xf32>
    %162 = math.exp %161 : vector<16x128xf32>
    %cst_102 = arith.constant 1.000000e+00 : f32
    %163 = vector.broadcast %cst_102 : f32 to vector<16x128xf32>
    %164 = arith.addf %163, %162 : vector<16x128xf32>
    %165 = arith.divf %163, %164 : vector<16x128xf32>
    %166 = vector.extract_strided_slice %152 {offsets = [0, 256], sizes = [16, 128], strides = [1, 1]} : vector<16x512xf32> to vector<16x128xf32>
    %167 = math.tanh %166 : vector<16x128xf32>
    %168 = vector.extract_strided_slice %152 {offsets = [0, 384], sizes = [16, 128], strides = [1, 1]} : vector<16x512xf32> to vector<16x128xf32>
    %169 = arith.negf %168 : vector<16x128xf32>
    %170 = math.exp %169 : vector<16x128xf32>
    %cst_103 = arith.constant 1.000000e+00 : f32
    %171 = vector.broadcast %cst_103 : f32 to vector<16x128xf32>
    %172 = arith.addf %171, %170 : vector<16x128xf32>
    %173 = arith.divf %171, %172 : vector<16x128xf32>
    %174 = arith.mulf %165, %153 : vector<16x128xf32>
    %175 = arith.mulf %159, %167 : vector<16x128xf32>
    %176 = arith.addf %174, %175 : vector<16x128xf32>
    %177 = math.tanh %176 : vector<16x128xf32>
    %178 = arith.mulf %173, %177 : vector<16x128xf32>
    %179 = vector.broadcast %143 : f32 to vector<16x1xf32>
    %180 = arith.cmpf olt, %179, %6 : vector<16x1xf32>
    %c0_104 = arith.constant 0 : index
    %c0_105 = arith.constant 0 : index
    %181 = vector.load %arg13[%c0_104, %c0_105] : memref<16x128xf32, #tpu.memory_space<vmem>>, vector<16x128xf32>
    %182 = vector.shape_cast %180 : vector<16x1xi1> to vector<16x1xi1>
    %183 = vector.broadcast %182 : vector<16x1xi1> to vector<16x128xi1>
    %184 = arith.select %183, %176, %181 : vector<16x128xi1>, vector<16x128xf32>
    %c0_106 = arith.constant 0 : index
    %c0_107 = arith.constant 0 : index
    %185 = vector.load %arg13[%c0_106, %c0_107] : memref<16x128xf32, #tpu.memory_space<vmem>>, vector<16x128xf32>
    tpu.vector_store %arg13[%c0_106, %c0_107], %184 {strides = array<i32>} : memref<16x128xf32, #tpu.memory_space<vmem>>, vector<16x128xf32>,
    %c0_108 = arith.constant 0 : index
    %c0_109 = arith.constant 0 : index
    %186 = vector.load %arg12[%c0_108, %c0_109] : memref<16x128xf32, #tpu.memory_space<vmem>>, vector<16x128xf32>
    %187 = vector.shape_cast %180 : vector<16x1xi1> to vector<16x1xi1>
    %188 = vector.broadcast %187 : vector<16x1xi1> to vector<16x128xi1>
    %189 = arith.select %188, %178, %186 : vector<16x128xi1>, vector<16x128xf32>
    %c0_110 = arith.constant 0 : index
    %c0_111 = arith.constant 0 : index
    %190 = vector.load %arg12[%c0_110, %c0_111] : memref<16x128xf32, #tpu.memory_space<vmem>>, vector<16x128xf32>
    tpu.vector_store %arg12[%c0_110, %c0_111], %189 {strides = array<i32>} : memref<16x128xf32, #tpu.memory_space<vmem>>, vector<16x128xf32>,
    %c0_112 = arith.constant 0 : index
    %c0_113 = arith.constant 0 : index
    %191 = vector.load %arg16[%c0_112, %c0_113] : memref<16x128xf32, #tpu.memory_space<vmem>>, vector<16x128xf32>
    %cst_114 = arith.constant 0.000000e+00 : f32
    %192 = vector.shape_cast %180 : vector<16x1xi1> to vector<16x1xi1>
    %193 = vector.broadcast %192 : vector<16x1xi1> to vector<16x128xi1>
    %194 = vector.broadcast %cst_114 : f32 to vector<16x128xf32>
    %195 = arith.select %193, %178, %194 : vector<16x128xi1>, vector<16x128xf32>
    %196 = arith.maximumf %191, %195 : vector<16x128xf32>
    %c0_115 = arith.constant 0 : index
    %c0_116 = arith.constant 0 : index
    %197 = vector.load %arg16[%c0_115, %c0_116] : memref<16x128xf32, #tpu.memory_space<vmem>>, vector<16x128xf32>
    tpu.vector_store %arg16[%c0_115, %c0_116], %196 {strides = array<i32>} : memref<16x128xf32, #tpu.memory_space<vmem>>, vector<16x128xf32>,
    %c0_117 = arith.constant 0 : index
    %c0_118 = arith.constant 0 : index
    %198 = vector.load %arg14[%c0_117, %c0_118] : memref<16x128xf32, #tpu.memory_space<vmem>>, vector<16x128xf32>
    %199 = arith.truncf %198 : vector<16x128xf32> to vector<16x128xbf16>
    %cst_119 = arith.constant dense<0.000000e+00> : vector<16x512xf32>
    %200 = tpu.matmul %199, %3, %cst_119 {dimension_numbers = #tpu.dot_dimension_numbers<[1], [0], [0], [1], [0, 0, 1, 1], [], []>} : vector<16x128xbf16>, vector<128x512xbf16>, vector<16x512xf32> -> vector<16x512xf32>
    %c7_i32_120 = arith.constant 7 : i32
    %201 = arith.subi %c7_i32_120, %c1_i32 : i32
    %202 = arith.index_cast %201 : i32 to index
    %c0_121 = arith.constant 0 : index
    %c0_122 = arith.constant 0 : index
    %203 = vector.load %arg11[%202, %c0_121, %c0_122] : memref<8x16x512xf32, #tpu.memory_space<vmem>>, vector<1x16x512xf32>
    %204 = vector.shape_cast %203 : vector<1x16x512xf32> to vector<16x512xf32>
    %205 = arith.addf %204, %200 : vector<16x512xf32>
    %c0_123 = arith.constant 0 : index
    %c0_124 = arith.constant 0 : index
    %206 = vector.load %arg15[%c0_123, %c0_124] : memref<16x128xf32, #tpu.memory_space<vmem>>, vector<16x128xf32>
    %207 = vector.extract_strided_slice %205 {offsets = [0, 0], sizes = [16, 128], strides = [1, 1]} : vector<16x512xf32> to vector<16x128xf32>
    %208 = arith.negf %207 : vector<16x128xf32>
    %209 = math.exp %208 : vector<16x128xf32>
    %cst_125 = arith.constant 1.000000e+00 : f32
    %210 = vector.broadcast %cst_125 : f32 to vector<16x128xf32>
    %211 = arith.addf %210, %209 : vector<16x128xf32>
    %212 = arith.divf %210, %211 : vector<16x128xf32>
    %213 = vector.extract_strided_slice %205 {offsets = [0, 128], sizes = [16, 128], strides = [1, 1]} : vector<16x512xf32> to vector<16x128xf32>
    %214 = arith.negf %213 : vector<16x128xf32>
    %215 = math.exp %214 : vector<16x128xf32>
    %cst_126 = arith.constant 1.000000e+00 : f32
    %216 = vector.broadcast %cst_126 : f32 to vector<16x128xf32>
    %217 = arith.addf %216, %215 : vector<16x128xf32>
    %218 = arith.divf %216, %217 : vector<16x128xf32>
    %219 = vector.extract_strided_slice %205 {offsets = [0, 256], sizes = [16, 128], strides = [1, 1]} : vector<16x512xf32> to vector<16x128xf32>
    %220 = math.tanh %219 : vector<16x128xf32>
    %221 = vector.extract_strided_slice %205 {offsets = [0, 384], sizes = [16, 128], strides = [1, 1]} : vector<16x512xf32> to vector<16x128xf32>
    %222 = arith.negf %221 : vector<16x128xf32>
    %223 = math.exp %222 : vector<16x128xf32>
    %cst_127 = arith.constant 1.000000e+00 : f32
    %224 = vector.broadcast %cst_127 : f32 to vector<16x128xf32>
    %225 = arith.addf %224, %223 : vector<16x128xf32>
    %226 = arith.divf %224, %225 : vector<16x128xf32>
    %227 = arith.mulf %218, %206 : vector<16x128xf32>
    %228 = arith.mulf %212, %220 : vector<16x128xf32>
    %229 = arith.addf %227, %228 : vector<16x128xf32>
    %230 = math.tanh %229 : vector<16x128xf32>
    %231 = arith.mulf %226, %230 : vector<16x128xf32>
    %232 = vector.broadcast %145 : f32 to vector<16x1xf32>
    %233 = arith.cmpf olt, %232, %6 : vector<16x1xf32>
    %c0_128 = arith.constant 0 : index
    %c0_129 = arith.constant 0 : index
    %234 = vector.load %arg15[%c0_128, %c0_129] : memref<16x128xf32, #tpu.memory_space<vmem>>, vector<16x128xf32>
    %235 = vector.shape_cast %233 : vector<16x1xi1> to vector<16x1xi1>
    %236 = vector.broadcast %235 : vector<16x1xi1> to vector<16x128xi1>
    %237 = arith.select %236, %229, %234 : vector<16x128xi1>, vector<16x128xf32>
    %c0_130 = arith.constant 0 : index
    %c0_131 = arith.constant 0 : index
    %238 = vector.load %arg15[%c0_130, %c0_131] : memref<16x128xf32, #tpu.memory_space<vmem>>, vector<16x128xf32>
    tpu.vector_store %arg15[%c0_130, %c0_131], %237 {strides = array<i32>} : memref<16x128xf32, #tpu.memory_space<vmem>>, vector<16x128xf32>,
    %c0_132 = arith.constant 0 : index
    %c0_133 = arith.constant 0 : index
    %239 = vector.load %arg14[%c0_132, %c0_133] : memref<16x128xf32, #tpu.memory_space<vmem>>, vector<16x128xf32>
    %240 = vector.shape_cast %233 : vector<16x1xi1> to vector<16x1xi1>
    %241 = vector.broadcast %240 : vector<16x1xi1> to vector<16x128xi1>
    %242 = arith.select %241, %231, %239 : vector<16x128xi1>, vector<16x128xf32>
    %c0_134 = arith.constant 0 : index
    %c0_135 = arith.constant 0 : index
    %243 = vector.load %arg14[%c0_134, %c0_135] : memref<16x128xf32, #tpu.memory_space<vmem>>, vector<16x128xf32>
    tpu.vector_store %arg14[%c0_134, %c0_135], %242 {strides = array<i32>} : memref<16x128xf32, #tpu.memory_space<vmem>>, vector<16x128xf32>,
    %c0_136 = arith.constant 0 : index
    %c0_137 = arith.constant 0 : index
    %244 = vector.load %arg17[%c0_136, %c0_137] : memref<16x128xf32, #tpu.memory_space<vmem>>, vector<16x128xf32>
    %cst_138 = arith.constant 0.000000e+00 : f32
    %245 = vector.shape_cast %233 : vector<16x1xi1> to vector<16x1xi1>
    %246 = vector.broadcast %245 : vector<16x1xi1> to vector<16x128xi1>
    %247 = vector.broadcast %cst_138 : f32 to vector<16x128xf32>
    %248 = arith.select %246, %231, %247 : vector<16x128xi1>, vector<16x128xf32>
    %249 = arith.maximumf %244, %248 : vector<16x128xf32>
    %c0_139 = arith.constant 0 : index
    %c0_140 = arith.constant 0 : index
    %250 = vector.load %arg17[%c0_139, %c0_140] : memref<16x128xf32, #tpu.memory_space<vmem>>, vector<16x128xf32>
    tpu.vector_store %arg17[%c0_139, %c0_140], %249 {strides = array<i32>} : memref<16x128xf32, #tpu.memory_space<vmem>>, vector<16x128xf32>,
    %c2_i32 = arith.constant 2 : i32
    %c0_i32_141 = arith.constant 0 : i32
    %251 = arith.addi %c0_i32_141, %c2_i32 : i32
    %252 = arith.sitofp %251 : i32 to f32
    %c7_i32_142 = arith.constant 7 : i32
    %253 = arith.subi %c7_i32_142, %c2_i32 : i32
    %254 = arith.sitofp %253 : i32 to f32
    %c0_143 = arith.constant 0 : index
    %c0_144 = arith.constant 0 : index
    %255 = vector.load %arg12[%c0_143, %c0_144] : memref<16x128xf32, #tpu.memory_space<vmem>>, vector<16x128xf32>
    %256 = arith.truncf %255 : vector<16x128xf32> to vector<16x128xbf16>
    %cst_145 = arith.constant dense<0.000000e+00> : vector<16x512xf32>
    %257 = tpu.matmul %256, %2, %cst_145 {dimension_numbers = #tpu.dot_dimension_numbers<[1], [0], [0], [1], [0, 0, 1, 1], [], []>} : vector<16x128xbf16>, vector<128x512xbf16>, vector<16x512xf32> -> vector<16x512xf32>
    %258 = arith.index_cast %c2_i32 : i32 to index
    %c0_146 = arith.constant 0 : index
    %c0_147 = arith.constant 0 : index
    %259 = vector.load %arg10[%258, %c0_146, %c0_147] : memref<8x16x512xf32, #tpu.memory_space<vmem>>, vector<1x16x512xf32>
    %260 = vector.shape_cast %259 : vector<1x16x512xf32> to vector<16x512xf32>
    %261 = arith.addf %260, %257 : vector<16x512xf32>
    %c0_148 = arith.constant 0 : index
    %c0_149 = arith.constant 0 : index
    %262 = vector.load %arg13[%c0_148, %c0_149] : memref<16x128xf32, #tpu.memory_space<vmem>>, vector<16x128xf32>
    %263 = vector.extract_strided_slice %261 {offsets = [0, 0], sizes = [16, 128], strides = [1, 1]} : vector<16x512xf32> to vector<16x128xf32>
    %264 = arith.negf %263 : vector<16x128xf32>
    %265 = math.exp %264 : vector<16x128xf32>
    %cst_150 = arith.constant 1.000000e+00 : f32
    %266 = vector.broadcast %cst_150 : f32 to vector<16x128xf32>
    %267 = arith.addf %266, %265 : vector<16x128xf32>
    %268 = arith.divf %266, %267 : vector<16x128xf32>
    %269 = vector.extract_strided_slice %261 {offsets = [0, 128], sizes = [16, 128], strides = [1, 1]} : vector<16x512xf32> to vector<16x128xf32>
    %270 = arith.negf %269 : vector<16x128xf32>
    %271 = math.exp %270 : vector<16x128xf32>
    %cst_151 = arith.constant 1.000000e+00 : f32
    %272 = vector.broadcast %cst_151 : f32 to vector<16x128xf32>
    %273 = arith.addf %272, %271 : vector<16x128xf32>
    %274 = arith.divf %272, %273 : vector<16x128xf32>
    %275 = vector.extract_strided_slice %261 {offsets = [0, 256], sizes = [16, 128], strides = [1, 1]} : vector<16x512xf32> to vector<16x128xf32>
    %276 = math.tanh %275 : vector<16x128xf32>
    %277 = vector.extract_strided_slice %261 {offsets = [0, 384], sizes = [16, 128], strides = [1, 1]} : vector<16x512xf32> to vector<16x128xf32>
    %278 = arith.negf %277 : vector<16x128xf32>
    %279 = math.exp %278 : vector<16x128xf32>
    %cst_152 = arith.constant 1.000000e+00 : f32
    %280 = vector.broadcast %cst_152 : f32 to vector<16x128xf32>
    %281 = arith.addf %280, %279 : vector<16x128xf32>
    %282 = arith.divf %280, %281 : vector<16x128xf32>
    %283 = arith.mulf %274, %262 : vector<16x128xf32>
    %284 = arith.mulf %268, %276 : vector<16x128xf32>
    %285 = arith.addf %283, %284 : vector<16x128xf32>
    %286 = math.tanh %285 : vector<16x128xf32>
    %287 = arith.mulf %282, %286 : vector<16x128xf32>
    %288 = vector.broadcast %252 : f32 to vector<16x1xf32>
    %289 = arith.cmpf olt, %288, %6 : vector<16x1xf32>
    %c0_153 = arith.constant 0 : index
    %c0_154 = arith.constant 0 : index
    %290 = vector.load %arg13[%c0_153, %c0_154] : memref<16x128xf32, #tpu.memory_space<vmem>>, vector<16x128xf32>
    %291 = vector.shape_cast %289 : vector<16x1xi1> to vector<16x1xi1>
    %292 = vector.broadcast %291 : vector<16x1xi1> to vector<16x128xi1>
    %293 = arith.select %292, %285, %290 : vector<16x128xi1>, vector<16x128xf32>
    %c0_155 = arith.constant 0 : index
    %c0_156 = arith.constant 0 : index
    %294 = vector.load %arg13[%c0_155, %c0_156] : memref<16x128xf32, #tpu.memory_space<vmem>>, vector<16x128xf32>
    tpu.vector_store %arg13[%c0_155, %c0_156], %293 {strides = array<i32>} : memref<16x128xf32, #tpu.memory_space<vmem>>, vector<16x128xf32>,
    %c0_157 = arith.constant 0 : index
    %c0_158 = arith.constant 0 : index
    %295 = vector.load %arg12[%c0_157, %c0_158] : memref<16x128xf32, #tpu.memory_space<vmem>>, vector<16x128xf32>
    %296 = vector.shape_cast %289 : vector<16x1xi1> to vector<16x1xi1>
    %297 = vector.broadcast %296 : vector<16x1xi1> to vector<16x128xi1>
    %298 = arith.select %297, %287, %295 : vector<16x128xi1>, vector<16x128xf32>
    %c0_159 = arith.constant 0 : index
    %c0_160 = arith.constant 0 : index
    %299 = vector.load %arg12[%c0_159, %c0_160] : memref<16x128xf32, #tpu.memory_space<vmem>>, vector<16x128xf32>
    tpu.vector_store %arg12[%c0_159, %c0_160], %298 {strides = array<i32>} : memref<16x128xf32, #tpu.memory_space<vmem>>, vector<16x128xf32>,
    %c0_161 = arith.constant 0 : index
    %c0_162 = arith.constant 0 : index
    %300 = vector.load %arg16[%c0_161, %c0_162] : memref<16x128xf32, #tpu.memory_space<vmem>>, vector<16x128xf32>
    %cst_163 = arith.constant 0.000000e+00 : f32
    %301 = vector.shape_cast %289 : vector<16x1xi1> to vector<16x1xi1>
    %302 = vector.broadcast %301 : vector<16x1xi1> to vector<16x128xi1>
    %303 = vector.broadcast %cst_163 : f32 to vector<16x128xf32>
    %304 = arith.select %302, %287, %303 : vector<16x128xi1>, vector<16x128xf32>
    %305 = arith.maximumf %300, %304 : vector<16x128xf32>
    %c0_164 = arith.constant 0 : index
    %c0_165 = arith.constant 0 : index
    %306 = vector.load %arg16[%c0_164, %c0_165] : memref<16x128xf32, #tpu.memory_space<vmem>>, vector<16x128xf32>
    tpu.vector_store %arg16[%c0_164, %c0_165], %305 {strides = array<i32>} : memref<16x128xf32, #tpu.memory_space<vmem>>, vector<16x128xf32>,
    %c0_166 = arith.constant 0 : index
    %c0_167 = arith.constant 0 : index
    %307 = vector.load %arg14[%c0_166, %c0_167] : memref<16x128xf32, #tpu.memory_space<vmem>>, vector<16x128xf32>
    %308 = arith.truncf %307 : vector<16x128xf32> to vector<16x128xbf16>
    %cst_168 = arith.constant dense<0.000000e+00> : vector<16x512xf32>
    %309 = tpu.matmul %308, %3, %cst_168 {dimension_numbers = #tpu.dot_dimension_numbers<[1], [0], [0], [1], [0, 0, 1, 1], [], []>} : vector<16x128xbf16>, vector<128x512xbf16>, vector<16x512xf32> -> vector<16x512xf32>
    %c7_i32_169 = arith.constant 7 : i32
    %310 = arith.subi %c7_i32_169, %c2_i32 : i32
    %311 = arith.index_cast %310 : i32 to index
    %c0_170 = arith.constant 0 : index
    %c0_171 = arith.constant 0 : index
    %312 = vector.load %arg11[%311, %c0_170, %c0_171] : memref<8x16x512xf32, #tpu.memory_space<vmem>>, vector<1x16x512xf32>
    %313 = vector.shape_cast %312 : vector<1x16x512xf32> to vector<16x512xf32>
    %314 = arith.addf %313, %309 : vector<16x512xf32>
    %c0_172 = arith.constant 0 : index
    %c0_173 = arith.constant 0 : index
    %315 = vector.load %arg15[%c0_172, %c0_173] : memref<16x128xf32, #tpu.memory_space<vmem>>, vector<16x128xf32>
    %316 = vector.extract_strided_slice %314 {offsets = [0, 0], sizes = [16, 128], strides = [1, 1]} : vector<16x512xf32> to vector<16x128xf32>
    %317 = arith.negf %316 : vector<16x128xf32>
    %318 = math.exp %317 : vector<16x128xf32>
    %cst_174 = arith.constant 1.000000e+00 : f32
    %319 = vector.broadcast %cst_174 : f32 to vector<16x128xf32>
    %320 = arith.addf %319, %318 : vector<16x128xf32>
    %321 = arith.divf %319, %320 : vector<16x128xf32>
    %322 = vector.extract_strided_slice %314 {offsets = [0, 128], sizes = [16, 128], strides = [1, 1]} : vector<16x512xf32> to vector<16x128xf32>
    %323 = arith.negf %322 : vector<16x128xf32>
    %324 = math.exp %323 : vector<16x128xf32>
    %cst_175 = arith.constant 1.000000e+00 : f32
    %325 = vector.broadcast %cst_175 : f32 to vector<16x128xf32>
    %326 = arith.addf %325, %324 : vector<16x128xf32>
    %327 = arith.divf %325, %326 : vector<16x128xf32>
    %328 = vector.extract_strided_slice %314 {offsets = [0, 256], sizes = [16, 128], strides = [1, 1]} : vector<16x512xf32> to vector<16x128xf32>
    %329 = math.tanh %328 : vector<16x128xf32>
    %330 = vector.extract_strided_slice %314 {offsets = [0, 384], sizes = [16, 128], strides = [1, 1]} : vector<16x512xf32> to vector<16x128xf32>
    %331 = arith.negf %330 : vector<16x128xf32>
    %332 = math.exp %331 : vector<16x128xf32>
    %cst_176 = arith.constant 1.000000e+00 : f32
    %333 = vector.broadcast %cst_176 : f32 to vector<16x128xf32>
    %334 = arith.addf %333, %332 : vector<16x128xf32>
    %335 = arith.divf %333, %334 : vector<16x128xf32>
    %336 = arith.mulf %327, %315 : vector<16x128xf32>
    %337 = arith.mulf %321, %329 : vector<16x128xf32>
    %338 = arith.addf %336, %337 : vector<16x128xf32>
    %339 = math.tanh %338 : vector<16x128xf32>
    %340 = arith.mulf %335, %339 : vector<16x128xf32>
    %341 = vector.broadcast %254 : f32 to vector<16x1xf32>
    %342 = arith.cmpf olt, %341, %6 : vector<16x1xf32>
    %c0_177 = arith.constant 0 : index
    %c0_178 = arith.constant 0 : index
    %343 = vector.load %arg15[%c0_177, %c0_178] : memref<16x128xf32, #tpu.memory_space<vmem>>, vector<16x128xf32>
    %344 = vector.shape_cast %342 : vector<16x1xi1> to vector<16x1xi1>
    %345 = vector.broadcast %344 : vector<16x1xi1> to vector<16x128xi1>
    %346 = arith.select %345, %338, %343 : vector<16x128xi1>, vector<16x128xf32>
    %c0_179 = arith.constant 0 : index
    %c0_180 = arith.constant 0 : index
    %347 = vector.load %arg15[%c0_179, %c0_180] : memref<16x128xf32, #tpu.memory_space<vmem>>, vector<16x128xf32>
    tpu.vector_store %arg15[%c0_179, %c0_180], %346 {strides = array<i32>} : memref<16x128xf32, #tpu.memory_space<vmem>>, vector<16x128xf32>,
    %c0_181 = arith.constant 0 : index
    %c0_182 = arith.constant 0 : index
    %348 = vector.load %arg14[%c0_181, %c0_182] : memref<16x128xf32, #tpu.memory_space<vmem>>, vector<16x128xf32>
    %349 = vector.shape_cast %342 : vector<16x1xi1> to vector<16x1xi1>
    %350 = vector.broadcast %349 : vector<16x1xi1> to vector<16x128xi1>
    %351 = arith.select %350, %340, %348 : vector<16x128xi1>, vector<16x128xf32>
    %c0_183 = arith.constant 0 : index
    %c0_184 = arith.constant 0 : index
    %352 = vector.load %arg14[%c0_183, %c0_184] : memref<16x128xf32, #tpu.memory_space<vmem>>, vector<16x128xf32>
    tpu.vector_store %arg14[%c0_183, %c0_184], %351 {strides = array<i32>} : memref<16x128xf32, #tpu.memory_space<vmem>>, vector<16x128xf32>,
    %c0_185 = arith.constant 0 : index
    %c0_186 = arith.constant 0 : index
    %353 = vector.load %arg17[%c0_185, %c0_186] : memref<16x128xf32, #tpu.memory_space<vmem>>, vector<16x128xf32>
    %cst_187 = arith.constant 0.000000e+00 : f32
    %354 = vector.shape_cast %342 : vector<16x1xi1> to vector<16x1xi1>
    %355 = vector.broadcast %354 : vector<16x1xi1> to vector<16x128xi1>
    %356 = vector.broadcast %cst_187 : f32 to vector<16x128xf32>
    %357 = arith.select %355, %340, %356 : vector<16x128xi1>, vector<16x128xf32>
    %358 = arith.maximumf %353, %357 : vector<16x128xf32>
    %c0_188 = arith.constant 0 : index
    %c0_189 = arith.constant 0 : index
    %359 = vector.load %arg17[%c0_188, %c0_189] : memref<16x128xf32, #tpu.memory_space<vmem>>, vector<16x128xf32>
    tpu.vector_store %arg17[%c0_188, %c0_189], %358 {strides = array<i32>} : memref<16x128xf32, #tpu.memory_space<vmem>>, vector<16x128xf32>,
    %c3_i32 = arith.constant 3 : i32
    %c0_i32_190 = arith.constant 0 : i32
    %360 = arith.addi %c0_i32_190, %c3_i32 : i32
    %361 = arith.sitofp %360 : i32 to f32
    %c7_i32_191 = arith.constant 7 : i32
    %362 = arith.subi %c7_i32_191, %c3_i32 : i32
    %363 = arith.sitofp %362 : i32 to f32
    %c0_192 = arith.constant 0 : index
    %c0_193 = arith.constant 0 : index
    %364 = vector.load %arg12[%c0_192, %c0_193] : memref<16x128xf32, #tpu.memory_space<vmem>>, vector<16x128xf32>
    %365 = arith.truncf %364 : vector<16x128xf32> to vector<16x128xbf16>
    %cst_194 = arith.constant dense<0.000000e+00> : vector<16x512xf32>
    %366 = tpu.matmul %365, %2, %cst_194 {dimension_numbers = #tpu.dot_dimension_numbers<[1], [0], [0], [1], [0, 0, 1, 1], [], []>} : vector<16x128xbf16>, vector<128x512xbf16>, vector<16x512xf32> -> vector<16x512xf32>
    %367 = arith.index_cast %c3_i32 : i32 to index
    %c0_195 = arith.constant 0 : index
    %c0_196 = arith.constant 0 : index
    %368 = vector.load %arg10[%367, %c0_195, %c0_196] : memref<8x16x512xf32, #tpu.memory_space<vmem>>, vector<1x16x512xf32>
    %369 = vector.shape_cast %368 : vector<1x16x512xf32> to vector<16x512xf32>
    %370 = arith.addf %369, %366 : vector<16x512xf32>
    %c0_197 = arith.constant 0 : index
    %c0_198 = arith.constant 0 : index
    %371 = vector.load %arg13[%c0_197, %c0_198] : memref<16x128xf32, #tpu.memory_space<vmem>>, vector<16x128xf32>
    %372 = vector.extract_strided_slice %370 {offsets = [0, 0], sizes = [16, 128], strides = [1, 1]} : vector<16x512xf32> to vector<16x128xf32>
    %373 = arith.negf %372 : vector<16x128xf32>
    %374 = math.exp %373 : vector<16x128xf32>
    %cst_199 = arith.constant 1.000000e+00 : f32
    %375 = vector.broadcast %cst_199 : f32 to vector<16x128xf32>
    %376 = arith.addf %375, %374 : vector<16x128xf32>
    %377 = arith.divf %375, %376 : vector<16x128xf32>
    %378 = vector.extract_strided_slice %370 {offsets = [0, 128], sizes = [16, 128], strides = [1, 1]} : vector<16x512xf32> to vector<16x128xf32>
    %379 = arith.negf %378 : vector<16x128xf32>
    %380 = math.exp %379 : vector<16x128xf32>
    %cst_200 = arith.constant 1.000000e+00 : f32
    %381 = vector.broadcast %cst_200 : f32 to vector<16x128xf32>
    %382 = arith.addf %381, %380 : vector<16x128xf32>
    %383 = arith.divf %381, %382 : vector<16x128xf32>
    %384 = vector.extract_strided_slice %370 {offsets = [0, 256], sizes = [16, 128], strides = [1, 1]} : vector<16x512xf32> to vector<16x128xf32>
    %385 = math.tanh %384 : vector<16x128xf32>
    %386 = vector.extract_strided_slice %370 {offsets = [0, 384], sizes = [16, 128], strides = [1, 1]} : vector<16x512xf32> to vector<16x128xf32>
    %387 = arith.negf %386 : vector<16x128xf32>
    %388 = math.exp %387 : vector<16x128xf32>
    %cst_201 = arith.constant 1.000000e+00 : f32
    %389 = vector.broadcast %cst_201 : f32 to vector<16x128xf32>
    %390 = arith.addf %389, %388 : vector<16x128xf32>
    %391 = arith.divf %389, %390 : vector<16x128xf32>
    %392 = arith.mulf %383, %371 : vector<16x128xf32>
    %393 = arith.mulf %377, %385 : vector<16x128xf32>
    %394 = arith.addf %392, %393 : vector<16x128xf32>
    %395 = math.tanh %394 : vector<16x128xf32>
    %396 = arith.mulf %391, %395 : vector<16x128xf32>
    %397 = vector.broadcast %361 : f32 to vector<16x1xf32>
    %398 = arith.cmpf olt, %397, %6 : vector<16x1xf32>
    %c0_202 = arith.constant 0 : index
    %c0_203 = arith.constant 0 : index
    %399 = vector.load %arg13[%c0_202, %c0_203] : memref<16x128xf32, #tpu.memory_space<vmem>>, vector<16x128xf32>
    %400 = vector.shape_cast %398 : vector<16x1xi1> to vector<16x1xi1>
    %401 = vector.broadcast %400 : vector<16x1xi1> to vector<16x128xi1>
    %402 = arith.select %401, %394, %399 : vector<16x128xi1>, vector<16x128xf32>
    %c0_204 = arith.constant 0 : index
    %c0_205 = arith.constant 0 : index
    %403 = vector.load %arg13[%c0_204, %c0_205] : memref<16x128xf32, #tpu.memory_space<vmem>>, vector<16x128xf32>
    tpu.vector_store %arg13[%c0_204, %c0_205], %402 {strides = array<i32>} : memref<16x128xf32, #tpu.memory_space<vmem>>, vector<16x128xf32>,
    %c0_206 = arith.constant 0 : index
    %c0_207 = arith.constant 0 : index
    %404 = vector.load %arg12[%c0_206, %c0_207] : memref<16x128xf32, #tpu.memory_space<vmem>>, vector<16x128xf32>
    %405 = vector.shape_cast %398 : vector<16x1xi1> to vector<16x1xi1>
    %406 = vector.broadcast %405 : vector<16x1xi1> to vector<16x128xi1>
    %407 = arith.select %406, %396, %404 : vector<16x128xi1>, vector<16x128xf32>
    %c0_208 = arith.constant 0 : index
    %c0_209 = arith.constant 0 : index
    %408 = vector.load %arg12[%c0_208, %c0_209] : memref<16x128xf32, #tpu.memory_space<vmem>>, vector<16x128xf32>
    tpu.vector_store %arg12[%c0_208, %c0_209], %407 {strides = array<i32>} : memref<16x128xf32, #tpu.memory_space<vmem>>, vector<16x128xf32>,
    %c0_210 = arith.constant 0 : index
    %c0_211 = arith.constant 0 : index
    %409 = vector.load %arg16[%c0_210, %c0_211] : memref<16x128xf32, #tpu.memory_space<vmem>>, vector<16x128xf32>
    %cst_212 = arith.constant 0.000000e+00 : f32
    %410 = vector.shape_cast %398 : vector<16x1xi1> to vector<16x1xi1>
    %411 = vector.broadcast %410 : vector<16x1xi1> to vector<16x128xi1>
    %412 = vector.broadcast %cst_212 : f32 to vector<16x128xf32>
    %413 = arith.select %411, %396, %412 : vector<16x128xi1>, vector<16x128xf32>
    %414 = arith.maximumf %409, %413 : vector<16x128xf32>
    %c0_213 = arith.constant 0 : index
    %c0_214 = arith.constant 0 : index
    %415 = vector.load %arg16[%c0_213, %c0_214] : memref<16x128xf32, #tpu.memory_space<vmem>>, vector<16x128xf32>
    tpu.vector_store %arg16[%c0_213, %c0_214], %414 {strides = array<i32>} : memref<16x128xf32, #tpu.memory_space<vmem>>, vector<16x128xf32>,
    %c0_215 = arith.constant 0 : index
    %c0_216 = arith.constant 0 : index
    %416 = vector.load %arg14[%c0_215, %c0_216] : memref<16x128xf32, #tpu.memory_space<vmem>>, vector<16x128xf32>
    %417 = arith.truncf %416 : vector<16x128xf32> to vector<16x128xbf16>
    %cst_217 = arith.constant dense<0.000000e+00> : vector<16x512xf32>
    %418 = tpu.matmul %417, %3, %cst_217 {dimension_numbers = #tpu.dot_dimension_numbers<[1], [0], [0], [1], [0, 0, 1, 1], [], []>} : vector<16x128xbf16>, vector<128x512xbf16>, vector<16x512xf32> -> vector<16x512xf32>
    %c7_i32_218 = arith.constant 7 : i32
    %419 = arith.subi %c7_i32_218, %c3_i32 : i32
    %420 = arith.index_cast %419 : i32 to index
    %c0_219 = arith.constant 0 : index
    %c0_220 = arith.constant 0 : index
    %421 = vector.load %arg11[%420, %c0_219, %c0_220] : memref<8x16x512xf32, #tpu.memory_space<vmem>>, vector<1x16x512xf32>
    %422 = vector.shape_cast %421 : vector<1x16x512xf32> to vector<16x512xf32>
    %423 = arith.addf %422, %418 : vector<16x512xf32>
    %c0_221 = arith.constant 0 : index
    %c0_222 = arith.constant 0 : index
    %424 = vector.load %arg15[%c0_221, %c0_222] : memref<16x128xf32, #tpu.memory_space<vmem>>, vector<16x128xf32>
    %425 = vector.extract_strided_slice %423 {offsets = [0, 0], sizes = [16, 128], strides = [1, 1]} : vector<16x512xf32> to vector<16x128xf32>
    %426 = arith.negf %425 : vector<16x128xf32>
    %427 = math.exp %426 : vector<16x128xf32>
    %cst_223 = arith.constant 1.000000e+00 : f32
    %428 = vector.broadcast %cst_223 : f32 to vector<16x128xf32>
    %429 = arith.addf %428, %427 : vector<16x128xf32>
    %430 = arith.divf %428, %429 : vector<16x128xf32>
    %431 = vector.extract_strided_slice %423 {offsets = [0, 128], sizes = [16, 128], strides = [1, 1]} : vector<16x512xf32> to vector<16x128xf32>
    %432 = arith.negf %431 : vector<16x128xf32>
    %433 = math.exp %432 : vector<16x128xf32>
    %cst_224 = arith.constant 1.000000e+00 : f32
    %434 = vector.broadcast %cst_224 : f32 to vector<16x128xf32>
    %435 = arith.addf %434, %433 : vector<16x128xf32>
    %436 = arith.divf %434, %435 : vector<16x128xf32>
    %437 = vector.extract_strided_slice %423 {offsets = [0, 256], sizes = [16, 128], strides = [1, 1]} : vector<16x512xf32> to vector<16x128xf32>
    %438 = math.tanh %437 : vector<16x128xf32>
    %439 = vector.extract_strided_slice %423 {offsets = [0, 384], sizes = [16, 128], strides = [1, 1]} : vector<16x512xf32> to vector<16x128xf32>
    %440 = arith.negf %439 : vector<16x128xf32>
    %441 = math.exp %440 : vector<16x128xf32>
    %cst_225 = arith.constant 1.000000e+00 : f32
    %442 = vector.broadcast %cst_225 : f32 to vector<16x128xf32>
    %443 = arith.addf %442, %441 : vector<16x128xf32>
    %444 = arith.divf %442, %443 : vector<16x128xf32>
    %445 = arith.mulf %436, %424 : vector<16x128xf32>
    %446 = arith.mulf %430, %438 : vector<16x128xf32>
    %447 = arith.addf %445, %446 : vector<16x128xf32>
    %448 = math.tanh %447 : vector<16x128xf32>
    %449 = arith.mulf %444, %448 : vector<16x128xf32>
    %450 = vector.broadcast %363 : f32 to vector<16x1xf32>
    %451 = arith.cmpf olt, %450, %6 : vector<16x1xf32>
    %c0_226 = arith.constant 0 : index
    %c0_227 = arith.constant 0 : index
    %452 = vector.load %arg15[%c0_226, %c0_227] : memref<16x128xf32, #tpu.memory_space<vmem>>, vector<16x128xf32>
    %453 = vector.shape_cast %451 : vector<16x1xi1> to vector<16x1xi1>
    %454 = vector.broadcast %453 : vector<16x1xi1> to vector<16x128xi1>
    %455 = arith.select %454, %447, %452 : vector<16x128xi1>, vector<16x128xf32>
    %c0_228 = arith.constant 0 : index
    %c0_229 = arith.constant 0 : index
    %456 = vector.load %arg15[%c0_228, %c0_229] : memref<16x128xf32, #tpu.memory_space<vmem>>, vector<16x128xf32>
    tpu.vector_store %arg15[%c0_228, %c0_229], %455 {strides = array<i32>} : memref<16x128xf32, #tpu.memory_space<vmem>>, vector<16x128xf32>,
    %c0_230 = arith.constant 0 : index
    %c0_231 = arith.constant 0 : index
    %457 = vector.load %arg14[%c0_230, %c0_231] : memref<16x128xf32, #tpu.memory_space<vmem>>, vector<16x128xf32>
    %458 = vector.shape_cast %451 : vector<16x1xi1> to vector<16x1xi1>
    %459 = vector.broadcast %458 : vector<16x1xi1> to vector<16x128xi1>
    %460 = arith.select %459, %449, %457 : vector<16x128xi1>, vector<16x128xf32>
    %c0_232 = arith.constant 0 : index
    %c0_233 = arith.constant 0 : index
    %461 = vector.load %arg14[%c0_232, %c0_233] : memref<16x128xf32, #tpu.memory_space<vmem>>, vector<16x128xf32>
    tpu.vector_store %arg14[%c0_232, %c0_233], %460 {strides = array<i32>} : memref<16x128xf32, #tpu.memory_space<vmem>>, vector<16x128xf32>,
    %c0_234 = arith.constant 0 : index
    %c0_235 = arith.constant 0 : index
    %462 = vector.load %arg17[%c0_234, %c0_235] : memref<16x128xf32, #tpu.memory_space<vmem>>, vector<16x128xf32>
    %cst_236 = arith.constant 0.000000e+00 : f32
    %463 = vector.shape_cast %451 : vector<16x1xi1> to vector<16x1xi1>
    %464 = vector.broadcast %463 : vector<16x1xi1> to vector<16x128xi1>
    %465 = vector.broadcast %cst_236 : f32 to vector<16x128xf32>
    %466 = arith.select %464, %449, %465 : vector<16x128xi1>, vector<16x128xf32>
    %467 = arith.maximumf %462, %466 : vector<16x128xf32>
    %c0_237 = arith.constant 0 : index
    %c0_238 = arith.constant 0 : index
    %468 = vector.load %arg17[%c0_237, %c0_238] : memref<16x128xf32, #tpu.memory_space<vmem>>, vector<16x128xf32>
    tpu.vector_store %arg17[%c0_237, %c0_238], %467 {strides = array<i32>} : memref<16x128xf32, #tpu.memory_space<vmem>>, vector<16x128xf32>,
    %c4_i32 = arith.constant 4 : i32
    %c0_i32_239 = arith.constant 0 : i32
    %469 = arith.addi %c0_i32_239, %c4_i32 : i32
    %470 = arith.sitofp %469 : i32 to f32
    %c7_i32_240 = arith.constant 7 : i32
    %471 = arith.subi %c7_i32_240, %c4_i32 : i32
    %472 = arith.sitofp %471 : i32 to f32
    %c0_241 = arith.constant 0 : index
    %c0_242 = arith.constant 0 : index
    %473 = vector.load %arg12[%c0_241, %c0_242] : memref<16x128xf32, #tpu.memory_space<vmem>>, vector<16x128xf32>
    %474 = arith.truncf %473 : vector<16x128xf32> to vector<16x128xbf16>
    %cst_243 = arith.constant dense<0.000000e+00> : vector<16x512xf32>
    %475 = tpu.matmul %474, %2, %cst_243 {dimension_numbers = #tpu.dot_dimension_numbers<[1], [0], [0], [1], [0, 0, 1, 1], [], []>} : vector<16x128xbf16>, vector<128x512xbf16>, vector<16x512xf32> -> vector<16x512xf32>
    %476 = arith.index_cast %c4_i32 : i32 to index
    %c0_244 = arith.constant 0 : index
    %c0_245 = arith.constant 0 : index
    %477 = vector.load %arg10[%476, %c0_244, %c0_245] : memref<8x16x512xf32, #tpu.memory_space<vmem>>, vector<1x16x512xf32>
    %478 = vector.shape_cast %477 : vector<1x16x512xf32> to vector<16x512xf32>
    %479 = arith.addf %478, %475 : vector<16x512xf32>
    %c0_246 = arith.constant 0 : index
    %c0_247 = arith.constant 0 : index
    %480 = vector.load %arg13[%c0_246, %c0_247] : memref<16x128xf32, #tpu.memory_space<vmem>>, vector<16x128xf32>
    %481 = vector.extract_strided_slice %479 {offsets = [0, 0], sizes = [16, 128], strides = [1, 1]} : vector<16x512xf32> to vector<16x128xf32>
    %482 = arith.negf %481 : vector<16x128xf32>
    %483 = math.exp %482 : vector<16x128xf32>
    %cst_248 = arith.constant 1.000000e+00 : f32
    %484 = vector.broadcast %cst_248 : f32 to vector<16x128xf32>
    %485 = arith.addf %484, %483 : vector<16x128xf32>
    %486 = arith.divf %484, %485 : vector<16x128xf32>
    %487 = vector.extract_strided_slice %479 {offsets = [0, 128], sizes = [16, 128], strides = [1, 1]} : vector<16x512xf32> to vector<16x128xf32>
    %488 = arith.negf %487 : vector<16x128xf32>
    %489 = math.exp %488 : vector<16x128xf32>
    %cst_249 = arith.constant 1.000000e+00 : f32
    %490 = vector.broadcast %cst_249 : f32 to vector<16x128xf32>
    %491 = arith.addf %490, %489 : vector<16x128xf32>
    %492 = arith.divf %490, %491 : vector<16x128xf32>
    %493 = vector.extract_strided_slice %479 {offsets = [0, 256], sizes = [16, 128], strides = [1, 1]} : vector<16x512xf32> to vector<16x128xf32>
    %494 = math.tanh %493 : vector<16x128xf32>
    %495 = vector.extract_strided_slice %479 {offsets = [0, 384], sizes = [16, 128], strides = [1, 1]} : vector<16x512xf32> to vector<16x128xf32>
    %496 = arith.negf %495 : vector<16x128xf32>
    %497 = math.exp %496 : vector<16x128xf32>
    %cst_250 = arith.constant 1.000000e+00 : f32
    %498 = vector.broadcast %cst_250 : f32 to vector<16x128xf32>
    %499 = arith.addf %498, %497 : vector<16x128xf32>
    %500 = arith.divf %498, %499 : vector<16x128xf32>
    %501 = arith.mulf %492, %480 : vector<16x128xf32>
    %502 = arith.mulf %486, %494 : vector<16x128xf32>
    %503 = arith.addf %501, %502 : vector<16x128xf32>
    %504 = math.tanh %503 : vector<16x128xf32>
    %505 = arith.mulf %500, %504 : vector<16x128xf32>
    %506 = vector.broadcast %470 : f32 to vector<16x1xf32>
    %507 = arith.cmpf olt, %506, %6 : vector<16x1xf32>
    %c0_251 = arith.constant 0 : index
    %c0_252 = arith.constant 0 : index
    %508 = vector.load %arg13[%c0_251, %c0_252] : memref<16x128xf32, #tpu.memory_space<vmem>>, vector<16x128xf32>
    %509 = vector.shape_cast %507 : vector<16x1xi1> to vector<16x1xi1>
    %510 = vector.broadcast %509 : vector<16x1xi1> to vector<16x128xi1>
    %511 = arith.select %510, %503, %508 : vector<16x128xi1>, vector<16x128xf32>
    %c0_253 = arith.constant 0 : index
    %c0_254 = arith.constant 0 : index
    %512 = vector.load %arg13[%c0_253, %c0_254] : memref<16x128xf32, #tpu.memory_space<vmem>>, vector<16x128xf32>
    tpu.vector_store %arg13[%c0_253, %c0_254], %511 {strides = array<i32>} : memref<16x128xf32, #tpu.memory_space<vmem>>, vector<16x128xf32>,
    %c0_255 = arith.constant 0 : index
    %c0_256 = arith.constant 0 : index
    %513 = vector.load %arg12[%c0_255, %c0_256] : memref<16x128xf32, #tpu.memory_space<vmem>>, vector<16x128xf32>
    %514 = vector.shape_cast %507 : vector<16x1xi1> to vector<16x1xi1>
    %515 = vector.broadcast %514 : vector<16x1xi1> to vector<16x128xi1>
    %516 = arith.select %515, %505, %513 : vector<16x128xi1>, vector<16x128xf32>
    %c0_257 = arith.constant 0 : index
    %c0_258 = arith.constant 0 : index
    %517 = vector.load %arg12[%c0_257, %c0_258] : memref<16x128xf32, #tpu.memory_space<vmem>>, vector<16x128xf32>
    tpu.vector_store %arg12[%c0_257, %c0_258], %516 {strides = array<i32>} : memref<16x128xf32, #tpu.memory_space<vmem>>, vector<16x128xf32>,
    %c0_259 = arith.constant 0 : index
    %c0_260 = arith.constant 0 : index
    %518 = vector.load %arg16[%c0_259, %c0_260] : memref<16x128xf32, #tpu.memory_space<vmem>>, vector<16x128xf32>
    %cst_261 = arith.constant 0.000000e+00 : f32
    %519 = vector.shape_cast %507 : vector<16x1xi1> to vector<16x1xi1>
    %520 = vector.broadcast %519 : vector<16x1xi1> to vector<16x128xi1>
    %521 = vector.broadcast %cst_261 : f32 to vector<16x128xf32>
    %522 = arith.select %520, %505, %521 : vector<16x128xi1>, vector<16x128xf32>
    %523 = arith.maximumf %518, %522 : vector<16x128xf32>
    %c0_262 = arith.constant 0 : index
    %c0_263 = arith.constant 0 : index
    %524 = vector.load %arg16[%c0_262, %c0_263] : memref<16x128xf32, #tpu.memory_space<vmem>>, vector<16x128xf32>
    tpu.vector_store %arg16[%c0_262, %c0_263], %523 {strides = array<i32>} : memref<16x128xf32, #tpu.memory_space<vmem>>, vector<16x128xf32>,
    %c0_264 = arith.constant 0 : index
    %c0_265 = arith.constant 0 : index
    %525 = vector.load %arg14[%c0_264, %c0_265] : memref<16x128xf32, #tpu.memory_space<vmem>>, vector<16x128xf32>
    %526 = arith.truncf %525 : vector<16x128xf32> to vector<16x128xbf16>
    %cst_266 = arith.constant dense<0.000000e+00> : vector<16x512xf32>
    %527 = tpu.matmul %526, %3, %cst_266 {dimension_numbers = #tpu.dot_dimension_numbers<[1], [0], [0], [1], [0, 0, 1, 1], [], []>} : vector<16x128xbf16>, vector<128x512xbf16>, vector<16x512xf32> -> vector<16x512xf32>
    %c7_i32_267 = arith.constant 7 : i32
    %528 = arith.subi %c7_i32_267, %c4_i32 : i32
    %529 = arith.index_cast %528 : i32 to index
    %c0_268 = arith.constant 0 : index
    %c0_269 = arith.constant 0 : index
    %530 = vector.load %arg11[%529, %c0_268, %c0_269] : memref<8x16x512xf32, #tpu.memory_space<vmem>>, vector<1x16x512xf32>
    %531 = vector.shape_cast %530 : vector<1x16x512xf32> to vector<16x512xf32>
    %532 = arith.addf %531, %527 : vector<16x512xf32>
    %c0_270 = arith.constant 0 : index
    %c0_271 = arith.constant 0 : index
    %533 = vector.load %arg15[%c0_270, %c0_271] : memref<16x128xf32, #tpu.memory_space<vmem>>, vector<16x128xf32>
    %534 = vector.extract_strided_slice %532 {offsets = [0, 0], sizes = [16, 128], strides = [1, 1]} : vector<16x512xf32> to vector<16x128xf32>
    %535 = arith.negf %534 : vector<16x128xf32>
    %536 = math.exp %535 : vector<16x128xf32>
    %cst_272 = arith.constant 1.000000e+00 : f32
    %537 = vector.broadcast %cst_272 : f32 to vector<16x128xf32>
    %538 = arith.addf %537, %536 : vector<16x128xf32>
    %539 = arith.divf %537, %538 : vector<16x128xf32>
    %540 = vector.extract_strided_slice %532 {offsets = [0, 128], sizes = [16, 128], strides = [1, 1]} : vector<16x512xf32> to vector<16x128xf32>
    %541 = arith.negf %540 : vector<16x128xf32>
    %542 = math.exp %541 : vector<16x128xf32>
    %cst_273 = arith.constant 1.000000e+00 : f32
    %543 = vector.broadcast %cst_273 : f32 to vector<16x128xf32>
    %544 = arith.addf %543, %542 : vector<16x128xf32>
    %545 = arith.divf %543, %544 : vector<16x128xf32>
    %546 = vector.extract_strided_slice %532 {offsets = [0, 256], sizes = [16, 128], strides = [1, 1]} : vector<16x512xf32> to vector<16x128xf32>
    %547 = math.tanh %546 : vector<16x128xf32>
    %548 = vector.extract_strided_slice %532 {offsets = [0, 384], sizes = [16, 128], strides = [1, 1]} : vector<16x512xf32> to vector<16x128xf32>
    %549 = arith.negf %548 : vector<16x128xf32>
    %550 = math.exp %549 : vector<16x128xf32>
    %cst_274 = arith.constant 1.000000e+00 : f32
    %551 = vector.broadcast %cst_274 : f32 to vector<16x128xf32>
    %552 = arith.addf %551, %550 : vector<16x128xf32>
    %553 = arith.divf %551, %552 : vector<16x128xf32>
    %554 = arith.mulf %545, %533 : vector<16x128xf32>
    %555 = arith.mulf %539, %547 : vector<16x128xf32>
    %556 = arith.addf %554, %555 : vector<16x128xf32>
    %557 = math.tanh %556 : vector<16x128xf32>
    %558 = arith.mulf %553, %557 : vector<16x128xf32>
    %559 = vector.broadcast %472 : f32 to vector<16x1xf32>
    %560 = arith.cmpf olt, %559, %6 : vector<16x1xf32>
    %c0_275 = arith.constant 0 : index
    %c0_276 = arith.constant 0 : index
    %561 = vector.load %arg15[%c0_275, %c0_276] : memref<16x128xf32, #tpu.memory_space<vmem>>, vector<16x128xf32>
    %562 = vector.shape_cast %560 : vector<16x1xi1> to vector<16x1xi1>
    %563 = vector.broadcast %562 : vector<16x1xi1> to vector<16x128xi1>
    %564 = arith.select %563, %556, %561 : vector<16x128xi1>, vector<16x128xf32>
    %c0_277 = arith.constant 0 : index
    %c0_278 = arith.constant 0 : index
    %565 = vector.load %arg15[%c0_277, %c0_278] : memref<16x128xf32, #tpu.memory_space<vmem>>, vector<16x128xf32>
    tpu.vector_store %arg15[%c0_277, %c0_278], %564 {strides = array<i32>} : memref<16x128xf32, #tpu.memory_space<vmem>>, vector<16x128xf32>,
    %c0_279 = arith.constant 0 : index
    %c0_280 = arith.constant 0 : index
    %566 = vector.load %arg14[%c0_279, %c0_280] : memref<16x128xf32, #tpu.memory_space<vmem>>, vector<16x128xf32>
    %567 = vector.shape_cast %560 : vector<16x1xi1> to vector<16x1xi1>
    %568 = vector.broadcast %567 : vector<16x1xi1> to vector<16x128xi1>
    %569 = arith.select %568, %558, %566 : vector<16x128xi1>, vector<16x128xf32>
    %c0_281 = arith.constant 0 : index
    %c0_282 = arith.constant 0 : index
    %570 = vector.load %arg14[%c0_281, %c0_282] : memref<16x128xf32, #tpu.memory_space<vmem>>, vector<16x128xf32>
    tpu.vector_store %arg14[%c0_281, %c0_282], %569 {strides = array<i32>} : memref<16x128xf32, #tpu.memory_space<vmem>>, vector<16x128xf32>,
    %c0_283 = arith.constant 0 : index
    %c0_284 = arith.constant 0 : index
    %571 = vector.load %arg17[%c0_283, %c0_284] : memref<16x128xf32, #tpu.memory_space<vmem>>, vector<16x128xf32>
    %cst_285 = arith.constant 0.000000e+00 : f32
    %572 = vector.shape_cast %560 : vector<16x1xi1> to vector<16x1xi1>
    %573 = vector.broadcast %572 : vector<16x1xi1> to vector<16x128xi1>
    %574 = vector.broadcast %cst_285 : f32 to vector<16x128xf32>
    %575 = arith.select %573, %558, %574 : vector<16x128xi1>, vector<16x128xf32>
    %576 = arith.maximumf %571, %575 : vector<16x128xf32>
    %c0_286 = arith.constant 0 : index
    %c0_287 = arith.constant 0 : index
    %577 = vector.load %arg17[%c0_286, %c0_287] : memref<16x128xf32, #tpu.memory_space<vmem>>, vector<16x128xf32>
    tpu.vector_store %arg17[%c0_286, %c0_287], %576 {strides = array<i32>} : memref<16x128xf32, #tpu.memory_space<vmem>>, vector<16x128xf32>,
    %c5_i32 = arith.constant 5 : i32
    %c0_i32_288 = arith.constant 0 : i32
    %578 = arith.addi %c0_i32_288, %c5_i32 : i32
    %579 = arith.sitofp %578 : i32 to f32
    %c7_i32_289 = arith.constant 7 : i32
    %580 = arith.subi %c7_i32_289, %c5_i32 : i32
    %581 = arith.sitofp %580 : i32 to f32
    %c0_290 = arith.constant 0 : index
    %c0_291 = arith.constant 0 : index
    %582 = vector.load %arg12[%c0_290, %c0_291] : memref<16x128xf32, #tpu.memory_space<vmem>>, vector<16x128xf32>
    %583 = arith.truncf %582 : vector<16x128xf32> to vector<16x128xbf16>
    %cst_292 = arith.constant dense<0.000000e+00> : vector<16x512xf32>
    %584 = tpu.matmul %583, %2, %cst_292 {dimension_numbers = #tpu.dot_dimension_numbers<[1], [0], [0], [1], [0, 0, 1, 1], [], []>} : vector<16x128xbf16>, vector<128x512xbf16>, vector<16x512xf32> -> vector<16x512xf32>
    %585 = arith.index_cast %c5_i32 : i32 to index
    %c0_293 = arith.constant 0 : index
    %c0_294 = arith.constant 0 : index
    %586 = vector.load %arg10[%585, %c0_293, %c0_294] : memref<8x16x512xf32, #tpu.memory_space<vmem>>, vector<1x16x512xf32>
    %587 = vector.shape_cast %586 : vector<1x16x512xf32> to vector<16x512xf32>
    %588 = arith.addf %587, %584 : vector<16x512xf32>
    %c0_295 = arith.constant 0 : index
    %c0_296 = arith.constant 0 : index
    %589 = vector.load %arg13[%c0_295, %c0_296] : memref<16x128xf32, #tpu.memory_space<vmem>>, vector<16x128xf32>
    %590 = vector.extract_strided_slice %588 {offsets = [0, 0], sizes = [16, 128], strides = [1, 1]} : vector<16x512xf32> to vector<16x128xf32>
    %591 = arith.negf %590 : vector<16x128xf32>
    %592 = math.exp %591 : vector<16x128xf32>
    %cst_297 = arith.constant 1.000000e+00 : f32
    %593 = vector.broadcast %cst_297 : f32 to vector<16x128xf32>
    %594 = arith.addf %593, %592 : vector<16x128xf32>
    %595 = arith.divf %593, %594 : vector<16x128xf32>
    %596 = vector.extract_strided_slice %588 {offsets = [0, 128], sizes = [16, 128], strides = [1, 1]} : vector<16x512xf32> to vector<16x128xf32>
    %597 = arith.negf %596 : vector<16x128xf32>
    %598 = math.exp %597 : vector<16x128xf32>
    %cst_298 = arith.constant 1.000000e+00 : f32
    %599 = vector.broadcast %cst_298 : f32 to vector<16x128xf32>
    %600 = arith.addf %599, %598 : vector<16x128xf32>
    %601 = arith.divf %599, %600 : vector<16x128xf32>
    %602 = vector.extract_strided_slice %588 {offsets = [0, 256], sizes = [16, 128], strides = [1, 1]} : vector<16x512xf32> to vector<16x128xf32>
    %603 = math.tanh %602 : vector<16x128xf32>
    %604 = vector.extract_strided_slice %588 {offsets = [0, 384], sizes = [16, 128], strides = [1, 1]} : vector<16x512xf32> to vector<16x128xf32>
    %605 = arith.negf %604 : vector<16x128xf32>
    %606 = math.exp %605 : vector<16x128xf32>
    %cst_299 = arith.constant 1.000000e+00 : f32
    %607 = vector.broadcast %cst_299 : f32 to vector<16x128xf32>
    %608 = arith.addf %607, %606 : vector<16x128xf32>
    %609 = arith.divf %607, %608 : vector<16x128xf32>
    %610 = arith.mulf %601, %589 : vector<16x128xf32>
    %611 = arith.mulf %595, %603 : vector<16x128xf32>
    %612 = arith.addf %610, %611 : vector<16x128xf32>
    %613 = math.tanh %612 : vector<16x128xf32>
    %614 = arith.mulf %609, %613 : vector<16x128xf32>
    %615 = vector.broadcast %579 : f32 to vector<16x1xf32>
    %616 = arith.cmpf olt, %615, %6 : vector<16x1xf32>
    %c0_300 = arith.constant 0 : index
    %c0_301 = arith.constant 0 : index
    %617 = vector.load %arg13[%c0_300, %c0_301] : memref<16x128xf32, #tpu.memory_space<vmem>>, vector<16x128xf32>
    %618 = vector.shape_cast %616 : vector<16x1xi1> to vector<16x1xi1>
    %619 = vector.broadcast %618 : vector<16x1xi1> to vector<16x128xi1>
    %620 = arith.select %619, %612, %617 : vector<16x128xi1>, vector<16x128xf32>
    %c0_302 = arith.constant 0 : index
    %c0_303 = arith.constant 0 : index
    %621 = vector.load %arg13[%c0_302, %c0_303] : memref<16x128xf32, #tpu.memory_space<vmem>>, vector<16x128xf32>
    tpu.vector_store %arg13[%c0_302, %c0_303], %620 {strides = array<i32>} : memref<16x128xf32, #tpu.memory_space<vmem>>, vector<16x128xf32>,
    %c0_304 = arith.constant 0 : index
    %c0_305 = arith.constant 0 : index
    %622 = vector.load %arg12[%c0_304, %c0_305] : memref<16x128xf32, #tpu.memory_space<vmem>>, vector<16x128xf32>
    %623 = vector.shape_cast %616 : vector<16x1xi1> to vector<16x1xi1>
    %624 = vector.broadcast %623 : vector<16x1xi1> to vector<16x128xi1>
    %625 = arith.select %624, %614, %622 : vector<16x128xi1>, vector<16x128xf32>
    %c0_306 = arith.constant 0 : index
    %c0_307 = arith.constant 0 : index
    %626 = vector.load %arg12[%c0_306, %c0_307] : memref<16x128xf32, #tpu.memory_space<vmem>>, vector<16x128xf32>
    tpu.vector_store %arg12[%c0_306, %c0_307], %625 {strides = array<i32>} : memref<16x128xf32, #tpu.memory_space<vmem>>, vector<16x128xf32>,
    %c0_308 = arith.constant 0 : index
    %c0_309 = arith.constant 0 : index
    %627 = vector.load %arg16[%c0_308, %c0_309] : memref<16x128xf32, #tpu.memory_space<vmem>>, vector<16x128xf32>
    %cst_310 = arith.constant 0.000000e+00 : f32
    %628 = vector.shape_cast %616 : vector<16x1xi1> to vector<16x1xi1>
    %629 = vector.broadcast %628 : vector<16x1xi1> to vector<16x128xi1>
    %630 = vector.broadcast %cst_310 : f32 to vector<16x128xf32>
    %631 = arith.select %629, %614, %630 : vector<16x128xi1>, vector<16x128xf32>
    %632 = arith.maximumf %627, %631 : vector<16x128xf32>
    %c0_311 = arith.constant 0 : index
    %c0_312 = arith.constant 0 : index
    %633 = vector.load %arg16[%c0_311, %c0_312] : memref<16x128xf32, #tpu.memory_space<vmem>>, vector<16x128xf32>
    tpu.vector_store %arg16[%c0_311, %c0_312], %632 {strides = array<i32>} : memref<16x128xf32, #tpu.memory_space<vmem>>, vector<16x128xf32>,
    %c0_313 = arith.constant 0 : index
    %c0_314 = arith.constant 0 : index
    %634 = vector.load %arg14[%c0_313, %c0_314] : memref<16x128xf32, #tpu.memory_space<vmem>>, vector<16x128xf32>
    %635 = arith.truncf %634 : vector<16x128xf32> to vector<16x128xbf16>
    %cst_315 = arith.constant dense<0.000000e+00> : vector<16x512xf32>
    %636 = tpu.matmul %635, %3, %cst_315 {dimension_numbers = #tpu.dot_dimension_numbers<[1], [0], [0], [1], [0, 0, 1, 1], [], []>} : vector<16x128xbf16>, vector<128x512xbf16>, vector<16x512xf32> -> vector<16x512xf32>
    %c7_i32_316 = arith.constant 7 : i32
    %637 = arith.subi %c7_i32_316, %c5_i32 : i32
    %638 = arith.index_cast %637 : i32 to index
    %c0_317 = arith.constant 0 : index
    %c0_318 = arith.constant 0 : index
    %639 = vector.load %arg11[%638, %c0_317, %c0_318] : memref<8x16x512xf32, #tpu.memory_space<vmem>>, vector<1x16x512xf32>
    %640 = vector.shape_cast %639 : vector<1x16x512xf32> to vector<16x512xf32>
    %641 = arith.addf %640, %636 : vector<16x512xf32>
    %c0_319 = arith.constant 0 : index
    %c0_320 = arith.constant 0 : index
    %642 = vector.load %arg15[%c0_319, %c0_320] : memref<16x128xf32, #tpu.memory_space<vmem>>, vector<16x128xf32>
    %643 = vector.extract_strided_slice %641 {offsets = [0, 0], sizes = [16, 128], strides = [1, 1]} : vector<16x512xf32> to vector<16x128xf32>
    %644 = arith.negf %643 : vector<16x128xf32>
    %645 = math.exp %644 : vector<16x128xf32>
    %cst_321 = arith.constant 1.000000e+00 : f32
    %646 = vector.broadcast %cst_321 : f32 to vector<16x128xf32>
    %647 = arith.addf %646, %645 : vector<16x128xf32>
    %648 = arith.divf %646, %647 : vector<16x128xf32>
    %649 = vector.extract_strided_slice %641 {offsets = [0, 128], sizes = [16, 128], strides = [1, 1]} : vector<16x512xf32> to vector<16x128xf32>
    %650 = arith.negf %649 : vector<16x128xf32>
    %651 = math.exp %650 : vector<16x128xf32>
    %cst_322 = arith.constant 1.000000e+00 : f32
    %652 = vector.broadcast %cst_322 : f32 to vector<16x128xf32>
    %653 = arith.addf %652, %651 : vector<16x128xf32>
    %654 = arith.divf %652, %653 : vector<16x128xf32>
    %655 = vector.extract_strided_slice %641 {offsets = [0, 256], sizes = [16, 128], strides = [1, 1]} : vector<16x512xf32> to vector<16x128xf32>
    %656 = math.tanh %655 : vector<16x128xf32>
    %657 = vector.extract_strided_slice %641 {offsets = [0, 384], sizes = [16, 128], strides = [1, 1]} : vector<16x512xf32> to vector<16x128xf32>
    %658 = arith.negf %657 : vector<16x128xf32>
    %659 = math.exp %658 : vector<16x128xf32>
    %cst_323 = arith.constant 1.000000e+00 : f32
    %660 = vector.broadcast %cst_323 : f32 to vector<16x128xf32>
    %661 = arith.addf %660, %659 : vector<16x128xf32>
    %662 = arith.divf %660, %661 : vector<16x128xf32>
    %663 = arith.mulf %654, %642 : vector<16x128xf32>
    %664 = arith.mulf %648, %656 : vector<16x128xf32>
    %665 = arith.addf %663, %664 : vector<16x128xf32>
    %666 = math.tanh %665 : vector<16x128xf32>
    %667 = arith.mulf %662, %666 : vector<16x128xf32>
    %668 = vector.broadcast %581 : f32 to vector<16x1xf32>
    %669 = arith.cmpf olt, %668, %6 : vector<16x1xf32>
    %c0_324 = arith.constant 0 : index
    %c0_325 = arith.constant 0 : index
    %670 = vector.load %arg15[%c0_324, %c0_325] : memref<16x128xf32, #tpu.memory_space<vmem>>, vector<16x128xf32>
    %671 = vector.shape_cast %669 : vector<16x1xi1> to vector<16x1xi1>
    %672 = vector.broadcast %671 : vector<16x1xi1> to vector<16x128xi1>
    %673 = arith.select %672, %665, %670 : vector<16x128xi1>, vector<16x128xf32>
    %c0_326 = arith.constant 0 : index
    %c0_327 = arith.constant 0 : index
    %674 = vector.load %arg15[%c0_326, %c0_327] : memref<16x128xf32, #tpu.memory_space<vmem>>, vector<16x128xf32>
    tpu.vector_store %arg15[%c0_326, %c0_327], %673 {strides = array<i32>} : memref<16x128xf32, #tpu.memory_space<vmem>>, vector<16x128xf32>,
    %c0_328 = arith.constant 0 : index
    %c0_329 = arith.constant 0 : index
    %675 = vector.load %arg14[%c0_328, %c0_329] : memref<16x128xf32, #tpu.memory_space<vmem>>, vector<16x128xf32>
    %676 = vector.shape_cast %669 : vector<16x1xi1> to vector<16x1xi1>
    %677 = vector.broadcast %676 : vector<16x1xi1> to vector<16x128xi1>
    %678 = arith.select %677, %667, %675 : vector<16x128xi1>, vector<16x128xf32>
    %c0_330 = arith.constant 0 : index
    %c0_331 = arith.constant 0 : index
    %679 = vector.load %arg14[%c0_330, %c0_331] : memref<16x128xf32, #tpu.memory_space<vmem>>, vector<16x128xf32>
    tpu.vector_store %arg14[%c0_330, %c0_331], %678 {strides = array<i32>} : memref<16x128xf32, #tpu.memory_space<vmem>>, vector<16x128xf32>,
    %c0_332 = arith.constant 0 : index
    %c0_333 = arith.constant 0 : index
    %680 = vector.load %arg17[%c0_332, %c0_333] : memref<16x128xf32, #tpu.memory_space<vmem>>, vector<16x128xf32>
    %cst_334 = arith.constant 0.000000e+00 : f32
    %681 = vector.shape_cast %669 : vector<16x1xi1> to vector<16x1xi1>
    %682 = vector.broadcast %681 : vector<16x1xi1> to vector<16x128xi1>
    %683 = vector.broadcast %cst_334 : f32 to vector<16x128xf32>
    %684 = arith.select %682, %667, %683 : vector<16x128xi1>, vector<16x128xf32>
    %685 = arith.maximumf %680, %684 : vector<16x128xf32>
    %c0_335 = arith.constant 0 : index
    %c0_336 = arith.constant 0 : index
    %686 = vector.load %arg17[%c0_335, %c0_336] : memref<16x128xf32, #tpu.memory_space<vmem>>, vector<16x128xf32>
    tpu.vector_store %arg17[%c0_335, %c0_336], %685 {strides = array<i32>} : memref<16x128xf32, #tpu.memory_space<vmem>>, vector<16x128xf32>,
    %c6_i32 = arith.constant 6 : i32
    %c0_i32_337 = arith.constant 0 : i32
    %687 = arith.addi %c0_i32_337, %c6_i32 : i32
    %688 = arith.sitofp %687 : i32 to f32
    %c7_i32_338 = arith.constant 7 : i32
    %689 = arith.subi %c7_i32_338, %c6_i32 : i32
    %690 = arith.sitofp %689 : i32 to f32
    %c0_339 = arith.constant 0 : index
    %c0_340 = arith.constant 0 : index
    %691 = vector.load %arg12[%c0_339, %c0_340] : memref<16x128xf32, #tpu.memory_space<vmem>>, vector<16x128xf32>
    %692 = arith.truncf %691 : vector<16x128xf32> to vector<16x128xbf16>
    %cst_341 = arith.constant dense<0.000000e+00> : vector<16x512xf32>
    %693 = tpu.matmul %692, %2, %cst_341 {dimension_numbers = #tpu.dot_dimension_numbers<[1], [0], [0], [1], [0, 0, 1, 1], [], []>} : vector<16x128xbf16>, vector<128x512xbf16>, vector<16x512xf32> -> vector<16x512xf32>
    %694 = arith.index_cast %c6_i32 : i32 to index
    %c0_342 = arith.constant 0 : index
    %c0_343 = arith.constant 0 : index
    %695 = vector.load %arg10[%694, %c0_342, %c0_343] : memref<8x16x512xf32, #tpu.memory_space<vmem>>, vector<1x16x512xf32>
    %696 = vector.shape_cast %695 : vector<1x16x512xf32> to vector<16x512xf32>
    %697 = arith.addf %696, %693 : vector<16x512xf32>
    %c0_344 = arith.constant 0 : index
    %c0_345 = arith.constant 0 : index
    %698 = vector.load %arg13[%c0_344, %c0_345] : memref<16x128xf32, #tpu.memory_space<vmem>>, vector<16x128xf32>
    %699 = vector.extract_strided_slice %697 {offsets = [0, 0], sizes = [16, 128], strides = [1, 1]} : vector<16x512xf32> to vector<16x128xf32>
    %700 = arith.negf %699 : vector<16x128xf32>
    %701 = math.exp %700 : vector<16x128xf32>
    %cst_346 = arith.constant 1.000000e+00 : f32
    %702 = vector.broadcast %cst_346 : f32 to vector<16x128xf32>
    %703 = arith.addf %702, %701 : vector<16x128xf32>
    %704 = arith.divf %702, %703 : vector<16x128xf32>
    %705 = vector.extract_strided_slice %697 {offsets = [0, 128], sizes = [16, 128], strides = [1, 1]} : vector<16x512xf32> to vector<16x128xf32>
    %706 = arith.negf %705 : vector<16x128xf32>
    %707 = math.exp %706 : vector<16x128xf32>
    %cst_347 = arith.constant 1.000000e+00 : f32
    %708 = vector.broadcast %cst_347 : f32 to vector<16x128xf32>
    %709 = arith.addf %708, %707 : vector<16x128xf32>
    %710 = arith.divf %708, %709 : vector<16x128xf32>
    %711 = vector.extract_strided_slice %697 {offsets = [0, 256], sizes = [16, 128], strides = [1, 1]} : vector<16x512xf32> to vector<16x128xf32>
    %712 = math.tanh %711 : vector<16x128xf32>
    %713 = vector.extract_strided_slice %697 {offsets = [0, 384], sizes = [16, 128], strides = [1, 1]} : vector<16x512xf32> to vector<16x128xf32>
    %714 = arith.negf %713 : vector<16x128xf32>
    %715 = math.exp %714 : vector<16x128xf32>
    %cst_348 = arith.constant 1.000000e+00 : f32
    %716 = vector.broadcast %cst_348 : f32 to vector<16x128xf32>
    %717 = arith.addf %716, %715 : vector<16x128xf32>
    %718 = arith.divf %716, %717 : vector<16x128xf32>
    %719 = arith.mulf %710, %698 : vector<16x128xf32>
    %720 = arith.mulf %704, %712 : vector<16x128xf32>
    %721 = arith.addf %719, %720 : vector<16x128xf32>
    %722 = math.tanh %721 : vector<16x128xf32>
    %723 = arith.mulf %718, %722 : vector<16x128xf32>
    %724 = vector.broadcast %688 : f32 to vector<16x1xf32>
    %725 = arith.cmpf olt, %724, %6 : vector<16x1xf32>
    %c0_349 = arith.constant 0 : index
    %c0_350 = arith.constant 0 : index
    %726 = vector.load %arg13[%c0_349, %c0_350] : memref<16x128xf32, #tpu.memory_space<vmem>>, vector<16x128xf32>
    %727 = vector.shape_cast %725 : vector<16x1xi1> to vector<16x1xi1>
    %728 = vector.broadcast %727 : vector<16x1xi1> to vector<16x128xi1>
    %729 = arith.select %728, %721, %726 : vector<16x128xi1>, vector<16x128xf32>
    %c0_351 = arith.constant 0 : index
    %c0_352 = arith.constant 0 : index
    %730 = vector.load %arg13[%c0_351, %c0_352] : memref<16x128xf32, #tpu.memory_space<vmem>>, vector<16x128xf32>
    tpu.vector_store %arg13[%c0_351, %c0_352], %729 {strides = array<i32>} : memref<16x128xf32, #tpu.memory_space<vmem>>, vector<16x128xf32>,
    %c0_353 = arith.constant 0 : index
    %c0_354 = arith.constant 0 : index
    %731 = vector.load %arg12[%c0_353, %c0_354] : memref<16x128xf32, #tpu.memory_space<vmem>>, vector<16x128xf32>
    %732 = vector.shape_cast %725 : vector<16x1xi1> to vector<16x1xi1>
    %733 = vector.broadcast %732 : vector<16x1xi1> to vector<16x128xi1>
    %734 = arith.select %733, %723, %731 : vector<16x128xi1>, vector<16x128xf32>
    %c0_355 = arith.constant 0 : index
    %c0_356 = arith.constant 0 : index
    %735 = vector.load %arg12[%c0_355, %c0_356] : memref<16x128xf32, #tpu.memory_space<vmem>>, vector<16x128xf32>
    tpu.vector_store %arg12[%c0_355, %c0_356], %734 {strides = array<i32>} : memref<16x128xf32, #tpu.memory_space<vmem>>, vector<16x128xf32>,
    %c0_357 = arith.constant 0 : index
    %c0_358 = arith.constant 0 : index
    %736 = vector.load %arg16[%c0_357, %c0_358] : memref<16x128xf32, #tpu.memory_space<vmem>>, vector<16x128xf32>
    %cst_359 = arith.constant 0.000000e+00 : f32
    %737 = vector.shape_cast %725 : vector<16x1xi1> to vector<16x1xi1>
    %738 = vector.broadcast %737 : vector<16x1xi1> to vector<16x128xi1>
    %739 = vector.broadcast %cst_359 : f32 to vector<16x128xf32>
    %740 = arith.select %738, %723, %739 : vector<16x128xi1>, vector<16x128xf32>
    %741 = arith.maximumf %736, %740 : vector<16x128xf32>
    %c0_360 = arith.constant 0 : index
    %c0_361 = arith.constant 0 : index
    %742 = vector.load %arg16[%c0_360, %c0_361] : memref<16x128xf32, #tpu.memory_space<vmem>>, vector<16x128xf32>
    tpu.vector_store %arg16[%c0_360, %c0_361], %741 {strides = array<i32>} : memref<16x128xf32, #tpu.memory_space<vmem>>, vector<16x128xf32>,
    %c0_362 = arith.constant 0 : index
    %c0_363 = arith.constant 0 : index
    %743 = vector.load %arg14[%c0_362, %c0_363] : memref<16x128xf32, #tpu.memory_space<vmem>>, vector<16x128xf32>
    %744 = arith.truncf %743 : vector<16x128xf32> to vector<16x128xbf16>
    %cst_364 = arith.constant dense<0.000000e+00> : vector<16x512xf32>
    %745 = tpu.matmul %744, %3, %cst_364 {dimension_numbers = #tpu.dot_dimension_numbers<[1], [0], [0], [1], [0, 0, 1, 1], [], []>} : vector<16x128xbf16>, vector<128x512xbf16>, vector<16x512xf32> -> vector<16x512xf32>
    %c7_i32_365 = arith.constant 7 : i32
    %746 = arith.subi %c7_i32_365, %c6_i32 : i32
    %747 = arith.index_cast %746 : i32 to index
    %c0_366 = arith.constant 0 : index
    %c0_367 = arith.constant 0 : index
    %748 = vector.load %arg11[%747, %c0_366, %c0_367] : memref<8x16x512xf32, #tpu.memory_space<vmem>>, vector<1x16x512xf32>
    %749 = vector.shape_cast %748 : vector<1x16x512xf32> to vector<16x512xf32>
    %750 = arith.addf %749, %745 : vector<16x512xf32>
    %c0_368 = arith.constant 0 : index
    %c0_369 = arith.constant 0 : index
    %751 = vector.load %arg15[%c0_368, %c0_369] : memref<16x128xf32, #tpu.memory_space<vmem>>, vector<16x128xf32>
    %752 = vector.extract_strided_slice %750 {offsets = [0, 0], sizes = [16, 128], strides = [1, 1]} : vector<16x512xf32> to vector<16x128xf32>
    %753 = arith.negf %752 : vector<16x128xf32>
    %754 = math.exp %753 : vector<16x128xf32>
    %cst_370 = arith.constant 1.000000e+00 : f32
    %755 = vector.broadcast %cst_370 : f32 to vector<16x128xf32>
    %756 = arith.addf %755, %754 : vector<16x128xf32>
    %757 = arith.divf %755, %756 : vector<16x128xf32>
    %758 = vector.extract_strided_slice %750 {offsets = [0, 128], sizes = [16, 128], strides = [1, 1]} : vector<16x512xf32> to vector<16x128xf32>
    %759 = arith.negf %758 : vector<16x128xf32>
    %760 = math.exp %759 : vector<16x128xf32>
    %cst_371 = arith.constant 1.000000e+00 : f32
    %761 = vector.broadcast %cst_371 : f32 to vector<16x128xf32>
    %762 = arith.addf %761, %760 : vector<16x128xf32>
    %763 = arith.divf %761, %762 : vector<16x128xf32>
    %764 = vector.extract_strided_slice %750 {offsets = [0, 256], sizes = [16, 128], strides = [1, 1]} : vector<16x512xf32> to vector<16x128xf32>
    %765 = math.tanh %764 : vector<16x128xf32>
    %766 = vector.extract_strided_slice %750 {offsets = [0, 384], sizes = [16, 128], strides = [1, 1]} : vector<16x512xf32> to vector<16x128xf32>
    %767 = arith.negf %766 : vector<16x128xf32>
    %768 = math.exp %767 : vector<16x128xf32>
    %cst_372 = arith.constant 1.000000e+00 : f32
    %769 = vector.broadcast %cst_372 : f32 to vector<16x128xf32>
    %770 = arith.addf %769, %768 : vector<16x128xf32>
    %771 = arith.divf %769, %770 : vector<16x128xf32>
    %772 = arith.mulf %763, %751 : vector<16x128xf32>
    %773 = arith.mulf %757, %765 : vector<16x128xf32>
    %774 = arith.addf %772, %773 : vector<16x128xf32>
    %775 = math.tanh %774 : vector<16x128xf32>
    %776 = arith.mulf %771, %775 : vector<16x128xf32>
    %777 = vector.broadcast %690 : f32 to vector<16x1xf32>
    %778 = arith.cmpf olt, %777, %6 : vector<16x1xf32>
    %c0_373 = arith.constant 0 : index
    %c0_374 = arith.constant 0 : index
    %779 = vector.load %arg15[%c0_373, %c0_374] : memref<16x128xf32, #tpu.memory_space<vmem>>, vector<16x128xf32>
    %780 = vector.shape_cast %778 : vector<16x1xi1> to vector<16x1xi1>
    %781 = vector.broadcast %780 : vector<16x1xi1> to vector<16x128xi1>
    %782 = arith.select %781, %774, %779 : vector<16x128xi1>, vector<16x128xf32>
    %c0_375 = arith.constant 0 : index
    %c0_376 = arith.constant 0 : index
    %783 = vector.load %arg15[%c0_375, %c0_376] : memref<16x128xf32, #tpu.memory_space<vmem>>, vector<16x128xf32>
    tpu.vector_store %arg15[%c0_375, %c0_376], %782 {strides = array<i32>} : memref<16x128xf32, #tpu.memory_space<vmem>>, vector<16x128xf32>,
    %c0_377 = arith.constant 0 : index
    %c0_378 = arith.constant 0 : index
    %784 = vector.load %arg14[%c0_377, %c0_378] : memref<16x128xf32, #tpu.memory_space<vmem>>, vector<16x128xf32>
    %785 = vector.shape_cast %778 : vector<16x1xi1> to vector<16x1xi1>
    %786 = vector.broadcast %785 : vector<16x1xi1> to vector<16x128xi1>
    %787 = arith.select %786, %776, %784 : vector<16x128xi1>, vector<16x128xf32>
    %c0_379 = arith.constant 0 : index
    %c0_380 = arith.constant 0 : index
    %788 = vector.load %arg14[%c0_379, %c0_380] : memref<16x128xf32, #tpu.memory_space<vmem>>, vector<16x128xf32>
    tpu.vector_store %arg14[%c0_379, %c0_380], %787 {strides = array<i32>} : memref<16x128xf32, #tpu.memory_space<vmem>>, vector<16x128xf32>,
    %c0_381 = arith.constant 0 : index
    %c0_382 = arith.constant 0 : index
    %789 = vector.load %arg17[%c0_381, %c0_382] : memref<16x128xf32, #tpu.memory_space<vmem>>, vector<16x128xf32>
    %cst_383 = arith.constant 0.000000e+00 : f32
    %790 = vector.shape_cast %778 : vector<16x1xi1> to vector<16x1xi1>
    %791 = vector.broadcast %790 : vector<16x1xi1> to vector<16x128xi1>
    %792 = vector.broadcast %cst_383 : f32 to vector<16x128xf32>
    %793 = arith.select %791, %776, %792 : vector<16x128xi1>, vector<16x128xf32>
    %794 = arith.maximumf %789, %793 : vector<16x128xf32>
    %c0_384 = arith.constant 0 : index
    %c0_385 = arith.constant 0 : index
    %795 = vector.load %arg17[%c0_384, %c0_385] : memref<16x128xf32, #tpu.memory_space<vmem>>, vector<16x128xf32>
    tpu.vector_store %arg17[%c0_384, %c0_385], %794 {strides = array<i32>} : memref<16x128xf32, #tpu.memory_space<vmem>>, vector<16x128xf32>,
    %c7_i32_386 = arith.constant 7 : i32
    %c0_i32_387 = arith.constant 0 : i32
    %796 = arith.addi %c0_i32_387, %c7_i32_386 : i32
    %797 = arith.sitofp %796 : i32 to f32
    %c7_i32_388 = arith.constant 7 : i32
    %798 = arith.subi %c7_i32_388, %c7_i32_386 : i32
    %799 = arith.sitofp %798 : i32 to f32
    %c0_389 = arith.constant 0 : index
    %c0_390 = arith.constant 0 : index
    %800 = vector.load %arg12[%c0_389, %c0_390] : memref<16x128xf32, #tpu.memory_space<vmem>>, vector<16x128xf32>
    %801 = arith.truncf %800 : vector<16x128xf32> to vector<16x128xbf16>
    %cst_391 = arith.constant dense<0.000000e+00> : vector<16x512xf32>
    %802 = tpu.matmul %801, %2, %cst_391 {dimension_numbers = #tpu.dot_dimension_numbers<[1], [0], [0], [1], [0, 0, 1, 1], [], []>} : vector<16x128xbf16>, vector<128x512xbf16>, vector<16x512xf32> -> vector<16x512xf32>
    %803 = arith.index_cast %c7_i32_386 : i32 to index
    %c0_392 = arith.constant 0 : index
    %c0_393 = arith.constant 0 : index
    %804 = vector.load %arg10[%803, %c0_392, %c0_393] : memref<8x16x512xf32, #tpu.memory_space<vmem>>, vector<1x16x512xf32>
    %805 = vector.shape_cast %804 : vector<1x16x512xf32> to vector<16x512xf32>
    %806 = arith.addf %805, %802 : vector<16x512xf32>
    %c0_394 = arith.constant 0 : index
    %c0_395 = arith.constant 0 : index
    %807 = vector.load %arg13[%c0_394, %c0_395] : memref<16x128xf32, #tpu.memory_space<vmem>>, vector<16x128xf32>
    %808 = vector.extract_strided_slice %806 {offsets = [0, 0], sizes = [16, 128], strides = [1, 1]} : vector<16x512xf32> to vector<16x128xf32>
    %809 = arith.negf %808 : vector<16x128xf32>
    %810 = math.exp %809 : vector<16x128xf32>
    %cst_396 = arith.constant 1.000000e+00 : f32
    %811 = vector.broadcast %cst_396 : f32 to vector<16x128xf32>
    %812 = arith.addf %811, %810 : vector<16x128xf32>
    %813 = arith.divf %811, %812 : vector<16x128xf32>
    %814 = vector.extract_strided_slice %806 {offsets = [0, 128], sizes = [16, 128], strides = [1, 1]} : vector<16x512xf32> to vector<16x128xf32>
    %815 = arith.negf %814 : vector<16x128xf32>
    %816 = math.exp %815 : vector<16x128xf32>
    %cst_397 = arith.constant 1.000000e+00 : f32
    %817 = vector.broadcast %cst_397 : f32 to vector<16x128xf32>
    %818 = arith.addf %817, %816 : vector<16x128xf32>
    %819 = arith.divf %817, %818 : vector<16x128xf32>
    %820 = vector.extract_strided_slice %806 {offsets = [0, 256], sizes = [16, 128], strides = [1, 1]} : vector<16x512xf32> to vector<16x128xf32>
    %821 = math.tanh %820 : vector<16x128xf32>
    %822 = vector.extract_strided_slice %806 {offsets = [0, 384], sizes = [16, 128], strides = [1, 1]} : vector<16x512xf32> to vector<16x128xf32>
    %823 = arith.negf %822 : vector<16x128xf32>
    %824 = math.exp %823 : vector<16x128xf32>
    %cst_398 = arith.constant 1.000000e+00 : f32
    %825 = vector.broadcast %cst_398 : f32 to vector<16x128xf32>
    %826 = arith.addf %825, %824 : vector<16x128xf32>
    %827 = arith.divf %825, %826 : vector<16x128xf32>
    %828 = arith.mulf %819, %807 : vector<16x128xf32>
    %829 = arith.mulf %813, %821 : vector<16x128xf32>
    %830 = arith.addf %828, %829 : vector<16x128xf32>
    %831 = math.tanh %830 : vector<16x128xf32>
    %832 = arith.mulf %827, %831 : vector<16x128xf32>
    %833 = vector.broadcast %797 : f32 to vector<16x1xf32>
    %834 = arith.cmpf olt, %833, %6 : vector<16x1xf32>
    %c0_399 = arith.constant 0 : index
    %c0_400 = arith.constant 0 : index
    %835 = vector.load %arg13[%c0_399, %c0_400] : memref<16x128xf32, #tpu.memory_space<vmem>>, vector<16x128xf32>
    %836 = vector.shape_cast %834 : vector<16x1xi1> to vector<16x1xi1>
    %837 = vector.broadcast %836 : vector<16x1xi1> to vector<16x128xi1>
    %838 = arith.select %837, %830, %835 : vector<16x128xi1>, vector<16x128xf32>
    %c0_401 = arith.constant 0 : index
    %c0_402 = arith.constant 0 : index
    %839 = vector.load %arg13[%c0_401, %c0_402] : memref<16x128xf32, #tpu.memory_space<vmem>>, vector<16x128xf32>
    tpu.vector_store %arg13[%c0_401, %c0_402], %838 {strides = array<i32>} : memref<16x128xf32, #tpu.memory_space<vmem>>, vector<16x128xf32>,
    %c0_403 = arith.constant 0 : index
    %c0_404 = arith.constant 0 : index
    %840 = vector.load %arg12[%c0_403, %c0_404] : memref<16x128xf32, #tpu.memory_space<vmem>>, vector<16x128xf32>
    %841 = vector.shape_cast %834 : vector<16x1xi1> to vector<16x1xi1>
    %842 = vector.broadcast %841 : vector<16x1xi1> to vector<16x128xi1>
    %843 = arith.select %842, %832, %840 : vector<16x128xi1>, vector<16x128xf32>
    %c0_405 = arith.constant 0 : index
    %c0_406 = arith.constant 0 : index
    %844 = vector.load %arg12[%c0_405, %c0_406] : memref<16x128xf32, #tpu.memory_space<vmem>>, vector<16x128xf32>
    tpu.vector_store %arg12[%c0_405, %c0_406], %843 {strides = array<i32>} : memref<16x128xf32, #tpu.memory_space<vmem>>, vector<16x128xf32>,
    %c0_407 = arith.constant 0 : index
    %c0_408 = arith.constant 0 : index
    %845 = vector.load %arg16[%c0_407, %c0_408] : memref<16x128xf32, #tpu.memory_space<vmem>>, vector<16x128xf32>
    %cst_409 = arith.constant 0.000000e+00 : f32
    %846 = vector.shape_cast %834 : vector<16x1xi1> to vector<16x1xi1>
    %847 = vector.broadcast %846 : vector<16x1xi1> to vector<16x128xi1>
    %848 = vector.broadcast %cst_409 : f32 to vector<16x128xf32>
    %849 = arith.select %847, %832, %848 : vector<16x128xi1>, vector<16x128xf32>
    %850 = arith.maximumf %845, %849 : vector<16x128xf32>
    %c0_410 = arith.constant 0 : index
    %c0_411 = arith.constant 0 : index
    %851 = vector.load %arg16[%c0_410, %c0_411] : memref<16x128xf32, #tpu.memory_space<vmem>>, vector<16x128xf32>
    tpu.vector_store %arg16[%c0_410, %c0_411], %850 {strides = array<i32>} : memref<16x128xf32, #tpu.memory_space<vmem>>, vector<16x128xf32>,
    %c0_412 = arith.constant 0 : index
    %c0_413 = arith.constant 0 : index
    %852 = vector.load %arg14[%c0_412, %c0_413] : memref<16x128xf32, #tpu.memory_space<vmem>>, vector<16x128xf32>
    %853 = arith.truncf %852 : vector<16x128xf32> to vector<16x128xbf16>
    %cst_414 = arith.constant dense<0.000000e+00> : vector<16x512xf32>
    %854 = tpu.matmul %853, %3, %cst_414 {dimension_numbers = #tpu.dot_dimension_numbers<[1], [0], [0], [1], [0, 0, 1, 1], [], []>} : vector<16x128xbf16>, vector<128x512xbf16>, vector<16x512xf32> -> vector<16x512xf32>
    %c7_i32_415 = arith.constant 7 : i32
    %855 = arith.subi %c7_i32_415, %c7_i32_386 : i32
    %856 = arith.index_cast %855 : i32 to index
    %c0_416 = arith.constant 0 : index
    %c0_417 = arith.constant 0 : index
    %857 = vector.load %arg11[%856, %c0_416, %c0_417] : memref<8x16x512xf32, #tpu.memory_space<vmem>>, vector<1x16x512xf32>
    %858 = vector.shape_cast %857 : vector<1x16x512xf32> to vector<16x512xf32>
    %859 = arith.addf %858, %854 : vector<16x512xf32>
    %c0_418 = arith.constant 0 : index
    %c0_419 = arith.constant 0 : index
    %860 = vector.load %arg15[%c0_418, %c0_419] : memref<16x128xf32, #tpu.memory_space<vmem>>, vector<16x128xf32>
    %861 = vector.extract_strided_slice %859 {offsets = [0, 0], sizes = [16, 128], strides = [1, 1]} : vector<16x512xf32> to vector<16x128xf32>
    %862 = arith.negf %861 : vector<16x128xf32>
    %863 = math.exp %862 : vector<16x128xf32>
    %cst_420 = arith.constant 1.000000e+00 : f32
    %864 = vector.broadcast %cst_420 : f32 to vector<16x128xf32>
    %865 = arith.addf %864, %863 : vector<16x128xf32>
    %866 = arith.divf %864, %865 : vector<16x128xf32>
    %867 = vector.extract_strided_slice %859 {offsets = [0, 128], sizes = [16, 128], strides = [1, 1]} : vector<16x512xf32> to vector<16x128xf32>
    %868 = arith.negf %867 : vector<16x128xf32>
    %869 = math.exp %868 : vector<16x128xf32>
    %cst_421 = arith.constant 1.000000e+00 : f32
    %870 = vector.broadcast %cst_421 : f32 to vector<16x128xf32>
    %871 = arith.addf %870, %869 : vector<16x128xf32>
    %872 = arith.divf %870, %871 : vector<16x128xf32>
    %873 = vector.extract_strided_slice %859 {offsets = [0, 256], sizes = [16, 128], strides = [1, 1]} : vector<16x512xf32> to vector<16x128xf32>
    %874 = math.tanh %873 : vector<16x128xf32>
    %875 = vector.extract_strided_slice %859 {offsets = [0, 384], sizes = [16, 128], strides = [1, 1]} : vector<16x512xf32> to vector<16x128xf32>
    %876 = arith.negf %875 : vector<16x128xf32>
    %877 = math.exp %876 : vector<16x128xf32>
    %cst_422 = arith.constant 1.000000e+00 : f32
    %878 = vector.broadcast %cst_422 : f32 to vector<16x128xf32>
    %879 = arith.addf %878, %877 : vector<16x128xf32>
    %880 = arith.divf %878, %879 : vector<16x128xf32>
    %881 = arith.mulf %872, %860 : vector<16x128xf32>
    %882 = arith.mulf %866, %874 : vector<16x128xf32>
    %883 = arith.addf %881, %882 : vector<16x128xf32>
    %884 = math.tanh %883 : vector<16x128xf32>
    %885 = arith.mulf %880, %884 : vector<16x128xf32>
    %886 = vector.broadcast %799 : f32 to vector<16x1xf32>
    %887 = arith.cmpf olt, %886, %6 : vector<16x1xf32>
    %c0_423 = arith.constant 0 : index
    %c0_424 = arith.constant 0 : index
    %888 = vector.load %arg15[%c0_423, %c0_424] : memref<16x128xf32, #tpu.memory_space<vmem>>, vector<16x128xf32>
    %889 = vector.shape_cast %887 : vector<16x1xi1> to vector<16x1xi1>
    %890 = vector.broadcast %889 : vector<16x1xi1> to vector<16x128xi1>
    %891 = arith.select %890, %883, %888 : vector<16x128xi1>, vector<16x128xf32>
    %c0_425 = arith.constant 0 : index
    %c0_426 = arith.constant 0 : index
    %892 = vector.load %arg15[%c0_425, %c0_426] : memref<16x128xf32, #tpu.memory_space<vmem>>, vector<16x128xf32>
    tpu.vector_store %arg15[%c0_425, %c0_426], %891 {strides = array<i32>} : memref<16x128xf32, #tpu.memory_space<vmem>>, vector<16x128xf32>,
    %c0_427 = arith.constant 0 : index
    %c0_428 = arith.constant 0 : index
    %893 = vector.load %arg14[%c0_427, %c0_428] : memref<16x128xf32, #tpu.memory_space<vmem>>, vector<16x128xf32>
    %894 = vector.shape_cast %887 : vector<16x1xi1> to vector<16x1xi1>
    %895 = vector.broadcast %894 : vector<16x1xi1> to vector<16x128xi1>
    %896 = arith.select %895, %885, %893 : vector<16x128xi1>, vector<16x128xf32>
    %c0_429 = arith.constant 0 : index
    %c0_430 = arith.constant 0 : index
    %897 = vector.load %arg14[%c0_429, %c0_430] : memref<16x128xf32, #tpu.memory_space<vmem>>, vector<16x128xf32>
    tpu.vector_store %arg14[%c0_429, %c0_430], %896 {strides = array<i32>} : memref<16x128xf32, #tpu.memory_space<vmem>>, vector<16x128xf32>,
    %c0_431 = arith.constant 0 : index
    %c0_432 = arith.constant 0 : index
    %898 = vector.load %arg17[%c0_431, %c0_432] : memref<16x128xf32, #tpu.memory_space<vmem>>, vector<16x128xf32>
    %cst_433 = arith.constant 0.000000e+00 : f32
    %899 = vector.shape_cast %887 : vector<16x1xi1> to vector<16x1xi1>
    %900 = vector.broadcast %899 : vector<16x1xi1> to vector<16x128xi1>
    %901 = vector.broadcast %cst_433 : f32 to vector<16x128xf32>
    %902 = arith.select %900, %885, %901 : vector<16x128xi1>, vector<16x128xf32>
    %903 = arith.maximumf %898, %902 : vector<16x128xf32>
    %c0_434 = arith.constant 0 : index
    %c0_435 = arith.constant 0 : index
    %904 = vector.load %arg17[%c0_434, %c0_435] : memref<16x128xf32, #tpu.memory_space<vmem>>, vector<16x128xf32>
    tpu.vector_store %arg17[%c0_434, %c0_435], %903 {strides = array<i32>} : memref<16x128xf32, #tpu.memory_space<vmem>>, vector<16x128xf32>,
    %c8_i32 = arith.constant 8 : i32
    %c0_436 = arith.constant 0 : index
    %c0_437 = arith.constant 0 : index
    %905 = vector.load %arg16[%c0_436, %c0_437] : memref<16x128xf32, #tpu.memory_space<vmem>>, vector<16x128xf32>
    %c0_438 = arith.constant 0 : index
    %c0_439 = arith.constant 0 : index
    %906 = vector.load %arg9[%c0_438, %c0_439] : memref<16x256xf32, #tpu.memory_space<vmem>>, vector<16x128xf32>
    tpu.vector_store %arg9[%c0_438, %c0_439], %905 {strides = array<i32>} : memref<16x256xf32, #tpu.memory_space<vmem>>, vector<16x128xf32>,
    %c0_440 = arith.constant 0 : index
    %c0_441 = arith.constant 0 : index
    %907 = vector.load %arg17[%c0_440, %c0_441] : memref<16x128xf32, #tpu.memory_space<vmem>>, vector<16x128xf32>
    %c0_442 = arith.constant 0 : index
    %c128 = arith.constant 128 : index
    %908 = vector.load %arg9[%c0_442, %c128] : memref<16x256xf32, #tpu.memory_space<vmem>>, vector<16x128xf32>
    tpu.vector_store %arg9[%c0_442, %c128], %907 {strides = array<i32>} : memref<16x256xf32, #tpu.memory_space<vmem>>, vector<16x128xf32>,
    return
  }
  func.func @transform_0(%arg0: i32) -> (i32, i32, i32) {
    %c0_i32 = arith.constant 0 : i32
    %c0_i32_0 = arith.constant 0 : i32
    %c0_i32_1 = arith.constant 0 : i32
    return %c0_i32, %arg0, %c0_i32_0 : i32, i32, i32
  }
  func.func @transform_1(%arg0: i32) -> (i32, i32) {
    %c0_i32 = arith.constant 0 : i32
    %c0_i32_0 = arith.constant 0 : i32
    return %arg0, %c0_i32 : i32, i32
  }
  func.func @transform_2(%arg0: i32) -> (i32, i32) {
    %c0_i32 = arith.constant 0 : i32
    %c0_i32_0 = arith.constant 0 : i32
    %c0_i32_1 = arith.constant 0 : i32
    return %c0_i32, %c0_i32_0 : i32, i32
  }
  func.func @transform_3(%arg0: i32) -> (i32, i32) {
    %c0_i32 = arith.constant 0 : i32
    %c0_i32_0 = arith.constant 0 : i32
    %c0_i32_1 = arith.constant 0 : i32
    return %c0_i32, %c0_i32_0 : i32, i32
  }
  func.func @transform_4(%arg0: i32) -> (i32, i32) {
    %c0_i32 = arith.constant 0 : i32
    %c0_i32_0 = arith.constant 0 : i32
    %c0_i32_1 = arith.constant 0 : i32
    return %c0_i32, %c0_i32_0 : i32, i32
  }
  func.func @transform_5(%arg0: i32) -> (i32, i32) {
    %c0_i32 = arith.constant 0 : i32
    %c0_i32_0 = arith.constant 0 : i32
    %c0_i32_1 = arith.constant 0 : i32
    return %c0_i32, %c0_i32_0 : i32, i32
  }
  func.func @transform_6(%arg0: i32) -> (i32, i32) {
    %c0_i32 = arith.constant 0 : i32
    %c0_i32_0 = arith.constant 0 : i32
    %c0_i32_1 = arith.constant 0 : i32
    return %c0_i32, %c0_i32_0 : i32, i32
  }
  func.func @transform_7(%arg0: i32) -> (i32, i32) {
    %c0_i32 = arith.constant 0 : i32
    %c0_i32_0 = arith.constant 0 : i32
    %c0_i32_1 = arith.constant 0 : i32
    return %c0_i32, %c0_i32_0 : i32, i32
  }
  func.func @transform_8(%arg0: i32) -> (i32, i32) {
    %c0_i32 = arith.constant 0 : i32
    %c0_i32_0 = arith.constant 0 : i32
    return %arg0, %c0_i32 : i32, i32
  }
}

</mosaic_0001>

<llo_original>
// kernel: tpu_custom_call.1
$region0: #{tpu_custom_call.1}
  #allocation0 [shape = 'u32[]', space=smem, size = 0x4, offset = 0x4, fixed_abs, tag = 'smem constant byte address 0x4 - core index']
  #allocation1 [shape = 'u32[144,128]{1,0:T(1,128)}', space=vmem, size = 0x12000, scoped, tag = 'internal scratch']
  #allocation2 [shape = 'f32[8,16,512]{2,1,0:T(8,128)}', space=vmem, size = 0x40000, scoped, tag = 'scratch operand']
  #allocation3 [shape = 'f32[8,16,512]{2,1,0:T(8,128)}', space=vmem, size = 0x40000, scoped, tag = 'scratch operand']
  #allocation4 [shape = 'f32[16,128]{1,0:T(8,128)}', space=vmem, size = 0x2000, scoped, tag = 'scratch operand']
  #allocation5 [shape = 'f32[16,128]{1,0:T(8,128)}', space=vmem, size = 0x2000, scoped, tag = 'scratch operand']
  #allocation6 [shape = 'f32[16,128]{1,0:T(8,128)}', space=vmem, size = 0x2000, scoped, tag = 'scratch operand']
  #allocation7 [shape = 'f32[16,128]{1,0:T(8,128)}', space=vmem, size = 0x2000, scoped, tag = 'scratch operand']
  #allocation8 [shape = 'f32[16,128]{1,0:T(8,128)}', space=vmem, size = 0x2000, scoped, tag = 'scratch operand']
  #allocation9 [shape = 'f32[16,128]{1,0:T(8,128)}', space=vmem, size = 0x2000, scoped, tag = 'scratch operand']
  %s0 = inlined_call_operand.hbm [shape: bf16[8,16,128], index: 0, kind: input, shape index: {}]
  %s1 = inlined_call_operand.vmem [shape: f32[16,1], index: 1, kind: input, shape index: {}]
  %s2 = inlined_call_operand.hbm [shape: bf16[128,512], index: 2, kind: input, shape index: {}]
  %s3 = inlined_call_operand.hbm [shape: bf16[128,512], index: 3, kind: input, shape index: {}]
  %s4 = inlined_call_operand.hbm [shape: bf16[128,512], index: 4, kind: input, shape index: {}]
  %s5 = inlined_call_operand.hbm [shape: bf16[128,512], index: 5, kind: input, shape index: {}]
  %s6 = inlined_call_operand.vmem [shape: f32[1,512], index: 6, kind: input, shape index: {}]
  %s7 = inlined_call_operand.vmem [shape: f32[1,512], index: 7, kind: input, shape index: {}]
  %s8 = inlined_call_operand.hbm [shape: f32[16,256], index: 8, kind: output, shape index: {}]
  %s9 = sld [smem:[#allocation0]]
  $region62: #{tpu_custom_call.1} parent=0
    _
  %s11 = ssub.s32 1, %s9
  %s12 = scalar_select 0, %s11, %s9
  $region1: #{tpu_custom_call.1} parent=0
    #allocation10 [shape = 'u8[32768]{0}', space=vmem, size = 0x8000, scoped, tag = 'input window, operand 0, single buffered']
    #allocation11 [shape = 's32[1]{0}', space=sflag, size = 0x4, scoped, tag = 'scoped memory for tpu_custom_call.1']
    #allocation12 [shape = 's32[1]{0}', space=sflag, size = 0x4, scoped, tag = 'scoped memory for tpu_custom_call.1']
    #allocation13 [shape = 'u8[131072]{0}', space=vmem, size = 0x20000, scoped, tag = 'input window, operand 2, single buffered']
    #allocation14 [shape = 's32[1]{0}', space=sflag, size = 0x4, scoped, tag = 'scoped memory for tpu_custom_call.1']
    #allocation15 [shape = 'u8[131072]{0}', space=vmem, size = 0x20000, scoped, tag = 'input window, operand 3, single buffered']
    #allocation16 [shape = 'u8[131072]{0}', space=vmem, size = 0x20000, scoped, tag = 'input window, operand 4, single buffered']
    #allocation17 [shape = 's32[1]{0}', space=sflag, size = 0x4, scoped, tag = 'scoped memory for tpu_custom_call.1']
    #allocation18 [shape = 'u8[131072]{0}', space=vmem, size = 0x20000, scoped, tag = 'input window, operand 5, single buffered']
    #allocation19 [shape = 'u8[16384]{0}', space=vmem, size = 0x4000, scoped, tag = 'output window, operand 0, single buffered']
    %13 = vsyncpa [#allocation11], 0
    %14 = vsyncpa [#allocation14], 0
    %15 = vsyncpa [#allocation17], 0
    %16 = vsyncpa [#allocation12], 0
    // Predicated region
    $region2: #{tpu_custom_call.1} parent=1 // pred_check
      _
    $region3: #{tpu_custom_call.1} parent=1 // pred_check_branch
      %18 = sbr.rel (0) target = $region5
    $region4: #{tpu_custom_call.1} parent=1 // pred_region
      %s20 = ssub.s32 1024, 1024
      %21 = vsyncadd [#allocation11], %s20
      %s22 = sshll.u32 [#allocation10], 4
      %s23 = int_to_ptr.vmem [resolvable:$true] %s22
      %28 = dma.hbm_to_vmem [thread:$0]  %s0, 1024, %s23, [#allocation11], 64, 64, 4
    $region5: #{tpu_custom_call.1} parent=1 // pred_fallthru
      _
    // Predicated region
    $region6: #{tpu_custom_call.1} parent=1 // pred_check
      _
    $region7: #{tpu_custom_call.1} parent=1 // pred_check_branch
      %30 = sbr.rel (0) target = $region9
    $region8: #{tpu_custom_call.1} parent=1 // pred_region
      _
    $region9: #{tpu_custom_call.1} parent=1 // pred_fallthru
      _
    // Predicated region
    $region10: #{tpu_custom_call.1} parent=1 // pred_check
      _
    $region11: #{tpu_custom_call.1} parent=1 // pred_check_branch
      %32 = sbr.rel (0) target = $region13
    $region12: #{tpu_custom_call.1} parent=1 // pred_region
      %s34 = ssub.s32 4096, 4096
      %35 = vsyncadd [#allocation14], %s34
      %s36 = sshll.u32 [#allocation13], 4
      %s37 = int_to_ptr.vmem [resolvable:$true] %s36
      %42 = dma.hbm_to_vmem [thread:$0]  %s2, 4096, %s37, [#allocation14], 256, 256, 16
    $region13: #{tpu_custom_call.1} parent=1 // pred_fallthru
      _
    // Predicated region
    $region14: #{tpu_custom_call.1} parent=1 // pred_check
      _
    $region15: #{tpu_custom_call.1} parent=1 // pred_check_branch
      %44 = sbr.rel (0) target = $region17
    $region16: #{tpu_custom_call.1} parent=1 // pred_region
      %s46 = ssub.s32 4096, 4096
      %47 = vsyncadd [#allocation14], %s46
      %s48 = sshll.u32 [#allocation15], 4
      %s49 = int_to_ptr.vmem [resolvable:$true] %s48
      %54 = dma.hbm_to_vmem [thread:$0]  %s3, 4096, %s49, [#allocation14], 256, 256, 16
    $region17: #{tpu_custom_call.1} parent=1 // pred_fallthru
      _
    // Predicated region
    $region18: #{tpu_custom_call.1} parent=1 // pred_check
      _
    $region19: #{tpu_custom_call.1} parent=1 // pred_check_branch
      %56 = sbr.rel (0) target = $region21
    $region20: #{tpu_custom_call.1} parent=1 // pred_region
      %s58 = ssub.s32 4096, 4096
      %59 = vsyncadd [#allocation17], %s58
      %s60 = sshll.u32 [#allocation16], 4
      %s61 = int_to_ptr.vmem [resolvable:$true] %s60
      %66 = dma.hbm_to_vmem [thread:$0]  %s4, 4096, %s61, [#allocation17], 256, 256, 16
    $region21: #{tpu_custom_call.1} parent=1 // pred_fallthru
      _
    // Predicated region
    $region22: #{tpu_custom_call.1} parent=1 // pred_check
      _
    $region23: #{tpu_custom_call.1} parent=1 // pred_check_branch
      %68 = sbr.rel (0) target = $region25
    $region24: #{tpu_custom_call.1} parent=1 // pred_region
      %s70 = ssub.s32 4096, 4096
      %71 = vsyncadd [#allocation17], %s70
      %s72 = sshll.u32 [#allocation18], 4
      %s73 = int_to_ptr.vmem [resolvable:$true] %s72
      %78 = dma.hbm_to_vmem [thread:$0]  %s5, 4096, %s73, [#allocation17], 256, 256, 16
    $region25: #{tpu_custom_call.1} parent=1 // pred_fallthru
      _
    // Predicated region
    $region26: #{tpu_custom_call.1} parent=1 // pred_check
      _
    $region27: #{tpu_custom_call.1} parent=1 // pred_check_branch
      %80 = sbr.rel (0) target = $region29
    $region28: #{tpu_custom_call.1} parent=1 // pred_region
      _
    $region29: #{tpu_custom_call.1} parent=1 // pred_fallthru
      _
    // Predicated region
    $region30: #{tpu_custom_call.1} parent=1 // pred_check
      _
    $region31: #{tpu_custom_call.1} parent=1 // pred_check_branch
      %82 = sbr.rel (0) target = $region33
    $region32: #{tpu_custom_call.1} parent=1 // pred_region
      _
    $region33: #{tpu_custom_call.1} parent=1 // pred_fallthru
      _
    // Predicated region
    $region34: #{tpu_custom_call.1} parent=1 // pred_check
      _
    $region35: #{tpu_custom_call.1} parent=1 // pred_check_branch
      %84 = sbr.rel (0) target = $region37
    $region36: #{tpu_custom_call.1} parent=1 // pred_region
      %85 = dma.done [#allocation11], 1024
    $region37: #{tpu_custom_call.1} parent=1 // pred_fallthru
      _
    // Predicated region
    $region38: #{tpu_custom_call.1} parent=1 // pred_check
      _
    $region39: #{tpu_custom_call.1} parent=1 // pred_check_branch
      %87 = sbr.rel (0) target = $region41
    $region40: #{tpu_custom_call.1} parent=1 // pred_region
      %88 = dma.done [#allocation14], 4096
    $region41: #{tpu_custom_call.1} parent=1 // pred_fallthru
      _
    // Predicated region
    $region42: #{tpu_custom_call.1} parent=1 // pred_check
      _
    $region43: #{tpu_custom_call.1} parent=1 // pred_check_branch
      %90 = sbr.rel (0) target = $region45
    $region44: #{tpu_custom_call.1} parent=1 // pred_region
      %91 = dma.done [#allocation14], 4096
    $region45: #{tpu_custom_call.1} parent=1 // pred_fallthru
      _
    // Predicated region
    $region46: #{tpu_custom_call.1} parent=1 // pred_check
      _
    $region47: #{tpu_custom_call.1} parent=1 // pred_check_branch
      %93 = sbr.rel (0) target = $region49
    $region48: #{tpu_custom_call.1} parent=1 // pred_region
      %94 = dma.done [#allocation17], 4096
    $region49: #{tpu_custom_call.1} parent=1 // pred_fallthru
      _
    // Predicated region
    $region50: #{tpu_custom_call.1} parent=1 // pred_check
      _
    $region51: #{tpu_custom_call.1} parent=1 // pred_check_branch
      %96 = sbr.rel (0) target = $region53
    $region52: #{tpu_custom_call.1} parent=1 // pred_region
      %97 = dma.done [#allocation17], 4096
    $region53: #{tpu_custom_call.1} parent=1 // pred_fallthru
      _
    %v99 = vld [vmem:[#allocation13] sm:$0xff]
    %v100 = vld [vmem:[#allocation13 + $0x8] sm:$0xff]
    %v101 = vld [vmem:[#allocation13 + $0x10] sm:$0xff]
    %v102 = vld [vmem:[#allocation13 + $0x18] sm:$0xff]
    %v103 = vld [vmem:[#allocation13 + $0x20] sm:$0xff]
    %v104 = vld [vmem:[#allocation13 + $0x28] sm:$0xff]
    %v105 = vld [vmem:[#allocation13 + $0x30] sm:$0xff]
    %v106 = vld [vmem:[#allocation13 + $0x38] sm:$0xff]
    %v107 = vld [vmem:[#allocation13 + $0x40] sm:$0xff]
    %v108 = vld [vmem:[#allocation13 + $0x48] sm:$0xff]
    %v109 = vld [vmem:[#allocation13 + $0x50] sm:$0xff]
    %v110 = vld [vmem:[#allocation13 + $0x58] sm:$0xff]
    %v111 = vld [vmem:[#allocation13 + $0x60] sm:$0xff]
    %v112 = vld [vmem:[#allocation13 + $0x68] sm:$0xff]
    %v113 = vld [vmem:[#allocation13 + $0x70] sm:$0xff]
    %v114 = vld [vmem:[#allocation13 + $0x78] sm:$0xff]
    %v115 = vld [vmem:[#allocation13 + $0x80] sm:$0xff]
    %v116 = vld [vmem:[#allocation13 + $0x88] sm:$0xff]
    %v117 = vld [vmem:[#allocation13 + $0x90] sm:$0xff]
    %v118 = vld [vmem:[#allocation13 + $0x98] sm:$0xff]
    %v119 = vld [vmem:[#allocation13 + $0xa0] sm:$0xff]
    %v120 = vld [vmem:[#allocation13 + $0xa8] sm:$0xff]
    %v121 = vld [vmem:[#allocation13 + $0xb0] sm:$0xff]
    %v122 = vld [vmem:[#allocation13 + $0xb8] sm:$0xff]
    %v123 = vld [vmem:[#allocation13 + $0xc0] sm:$0xff]
    %v124 = vld [vmem:[#allocation13 + $0xc8] sm:$0xff]
    %v125 = vld [vmem:[#allocation13 + $0xd0] sm:$0xff]
    %v126 = vld [vmem:[#allocation13 + $0xd8] sm:$0xff]
    %v127 = vld [vmem:[#allocation13 + $0xe0] sm:$0xff]
    %v128 = vld [vmem:[#allocation13 + $0xe8] sm:$0xff]
    %v129 = vld [vmem:[#allocation13 + $0xf0] sm:$0xff]
    %v130 = vld [vmem:[#allocation13 + $0xf8] sm:$0xff]
    %v131 = vld [vmem:[#allocation15] sm:$0xff]
    %v132 = vld [vmem:[#allocation15 + $0x8] sm:$0xff]
    %v133 = vld [vmem:[#allocation15 + $0x10] sm:$0xff]
    %v134 = vld [vmem:[#allocation15 + $0x18] sm:$0xff]
    %v135 = vld [vmem:[#allocation15 + $0x20] sm:$0xff]
    %v136 = vld [vmem:[#allocation15 + $0x28] sm:$0xff]
    %v137 = vld [vmem:[#allocation15 + $0x30] sm:$0xff]
    %v138 = vld [vmem:[#allocation15 + $0x38] sm:$0xff]
    %v139 = vld [vmem:[#allocation15 + $0x40] sm:$0xff]
    %v140 = vld [vmem:[#allocation15 + $0x48] sm:$0xff]
    %v141 = vld [vmem:[#allocation15 + $0x50] sm:$0xff]
    %v142 = vld [vmem:[#allocation15 + $0x58] sm:$0xff]
    %v143 = vld [vmem:[#allocation15 + $0x60] sm:$0xff]
    %v144 = vld [vmem:[#allocation15 + $0x68] sm:$0xff]
    %v145 = vld [vmem:[#allocation15 + $0x70] sm:$0xff]
    %v146 = vld [vmem:[#allocation15 + $0x78] sm:$0xff]
    %v147 = vld [vmem:[#allocation15 + $0x80] sm:$0xff]
    %v148 = vld [vmem:[#allocation15 + $0x88] sm:$0xff]
    %v149 = vld [vmem:[#allocation15 + $0x90] sm:$0xff]
    %v150 = vld [vmem:[#allocation15 + $0x98] sm:$0xff]
    %v151 = vld [vmem:[#allocation15 + $0xa0] sm:$0xff]
    %v152 = vld [vmem:[#allocation15 + $0xa8] sm:$0xff]
    %v153 = vld [vmem:[#allocation15 + $0xb0] sm:$0xff]
    %v154 = vld [vmem:[#allocation15 + $0xb8] sm:$0xff]
    %v155 = vld [vmem:[#allocation15 + $0xc0] sm:$0xff]
    %v156 = vld [vmem:[#allocation15 + $0xc8] sm:$0xff]
    %v157 = vld [vmem:[#allocation15 + $0xd0] sm:$0xff]
    %v158 = vld [vmem:[#allocation15 + $0xd8] sm:$0xff]
    %v159 = vld [vmem:[#allocation15 + $0xe0] sm:$0xff]
    %v160 = vld [vmem:[#allocation15 + $0xe8] sm:$0xff]
    %v161 = vld [vmem:[#allocation15 + $0xf0] sm:$0xff]
    %v162 = vld [vmem:[#allocation15 + $0xf8] sm:$0xff]
    %v163 = vld [vmem:[#allocation16] sm:$0xff]
    %v164 = vld [vmem:[#allocation16 + $0x8] sm:$0xff]
    %v165 = vld [vmem:[#allocation16 + $0x10] sm:$0xff]
    %v166 = vld [vmem:[#allocation16 + $0x18] sm:$0xff]
    %v167 = vld [vmem:[#allocation16 + $0x20] sm:$0xff]
    %v168 = vld [vmem:[#allocation16 + $0x28] sm:$0xff]
    %v169 = vld [vmem:[#allocation16 + $0x30] sm:$0xff]
    %v170 = vld [vmem:[#allocation16 + $0x38] sm:$0xff]
    %v171 = vld [vmem:[#allocation16 + $0x40] sm:$0xff]
    %v172 = vld [vmem:[#allocation16 + $0x48] sm:$0xff]
    %v173 = vld [vmem:[#allocation16 + $0x50] sm:$0xff]
    %v174 = vld [vmem:[#allocation16 + $0x58] sm:$0xff]
    %v175 = vld [vmem:[#allocation16 + $0x60] sm:$0xff]
    %v176 = vld [vmem:[#allocation16 + $0x68] sm:$0xff]
    %v177 = vld [vmem:[#allocation16 + $0x70] sm:$0xff]
    %v178 = vld [vmem:[#allocation16 + $0x78] sm:$0xff]
    %v179 = vld [vmem:[#allocation16 + $0x80] sm:$0xff]
    %v180 = vld [vmem:[#allocation16 + $0x88] sm:$0xff]
    %v181 = vld [vmem:[#allocation16 + $0x90] sm:$0xff]
    %v182 = vld [vmem:[#allocation16 + $0x98] sm:$0xff]
    %v183 = vld [vmem:[#allocation16 + $0xa0] sm:$0xff]
    %v184 = vld [vmem:[#allocation16 + $0xa8] sm:$0xff]
    %v185 = vld [vmem:[#allocation16 + $0xb0] sm:$0xff]
    %v186 = vld [vmem:[#allocation16 + $0xb8] sm:$0xff]
    %v187 = vld [vmem:[#allocation16 + $0xc0] sm:$0xff]
    %v188 = vld [vmem:[#allocation16 + $0xc8] sm:$0xff]
    %v189 = vld [vmem:[#allocation16 + $0xd0] sm:$0xff]
    %v190 = vld [vmem:[#allocation16 + $0xd8] sm:$0xff]
    %v191 = vld [vmem:[#allocation16 + $0xe0] sm:$0xff]
    %v192 = vld [vmem:[#allocation16 + $0xe8] sm:$0xff]
    %v193 = vld [vmem:[#allocation16 + $0xf0] sm:$0xff]
    %v194 = vld [vmem:[#allocation16 + $0xf8] sm:$0xff]
    %v195 = vld [vmem:[#allocation18] sm:$0xff]
    %v196 = vld [vmem:[#allocation18 + $0x8] sm:$0xff]
    %v197 = vld [vmem:[#allocation18 + $0x10] sm:$0xff]
    %v198 = vld [vmem:[#allocation18 + $0x18] sm:$0xff]
    %v199 = vld [vmem:[#allocation18 + $0x20] sm:$0xff]
    %v200 = vld [vmem:[#allocation18 + $0x28] sm:$0xff]
    %v201 = vld [vmem:[#allocation18 + $0x30] sm:$0xff]
    %v202 = vld [vmem:[#allocation18 + $0x38] sm:$0xff]
    %v203 = vld [vmem:[#allocation18 + $0x40] sm:$0xff]
    %v204 = vld [vmem:[#allocation18 + $0x48] sm:$0xff]
    %v205 = vld [vmem:[#allocation18 + $0x50] sm:$0xff]
    %v206 = vld [vmem:[#allocation18 + $0x58] sm:$0xff]
    %v207 = vld [vmem:[#allocation18 + $0x60] sm:$0xff]
    %v208 = vld [vmem:[#allocation18 + $0x68] sm:$0xff]
    %v209 = vld [vmem:[#allocation18 + $0x70] sm:$0xff]
    %v210 = vld [vmem:[#allocation18 + $0x78] sm:$0xff]
    %v211 = vld [vmem:[#allocation18 + $0x80] sm:$0xff]
    %v212 = vld [vmem:[#allocation18 + $0x88] sm:$0xff]
    %v213 = vld [vmem:[#allocation18 + $0x90] sm:$0xff]
    %v214 = vld [vmem:[#allocation18 + $0x98] sm:$0xff]
    %v215 = vld [vmem:[#allocation18 + $0xa0] sm:$0xff]
    %v216 = vld [vmem:[#allocation18 + $0xa8] sm:$0xff]
    %v217 = vld [vmem:[#allocation18 + $0xb0] sm:$0xff]
    %v218 = vld [vmem:[#allocation18 + $0xb8] sm:$0xff]
    %v219 = vld [vmem:[#allocation18 + $0xc0] sm:$0xff]
    %v220 = vld [vmem:[#allocation18 + $0xc8] sm:$0xff]
    %v221 = vld [vmem:[#allocation18 + $0xd0] sm:$0xff]
    %v222 = vld [vmem:[#allocation18 + $0xd8] sm:$0xff]
    %v223 = vld [vmem:[#allocation18 + $0xe0] sm:$0xff]
    %v224 = vld [vmem:[#allocation18 + $0xe8] sm:$0xff]
    %v225 = vld [vmem:[#allocation18 + $0xf0] sm:$0xff]
    %v226 = vld [vmem:[#allocation18 + $0xf8] sm:$0xff]
    %v227 = vld [vmem:[%s6] sm:$0xf]
    %v228 = vld [vmem:[%s7] sm:$0xf]
    %v229 = vld [vmem:[%s1] sm:$0xff]
    %v230 = vld [vmem:[%s1 + $0x8] sm:$0xff]
    %231 = vst [vmem:[#allocation4] sm:$0xff] 0.0
    %232 = vst [vmem:[#allocation4 + $0x8] sm:$0xff] 0.0
    %233 = vst [vmem:[#allocation5] sm:$0xff] 0.0
    %234 = vst [vmem:[#allocation5 + $0x8] sm:$0xff] 0.0
    %235 = vst [vmem:[#allocation6] sm:$0xff] 0.0
    %236 = vst [vmem:[#allocation6 + $0x8] sm:$0xff] 0.0
    %237 = vst [vmem:[#allocation7] sm:$0xff] 0.0
    %238 = vst [vmem:[#allocation7 + $0x8] sm:$0xff] 0.0
    %239 = vst [vmem:[#allocation8] sm:$0xff] -inf
    %240 = vst [vmem:[#allocation8 + $0x8] sm:$0xff] -inf
    %241 = vst [vmem:[#allocation9] sm:$0xff] -inf
    %242 = vst [vmem:[#allocation9 + $0x8] sm:$0xff] -inf
    %v243 = vld [vmem:[#allocation10] sm:$0xf]
    %v244 = vld [vmem:[#allocation10 + $0x4] sm:$0xf]
    %v245 = vld [vmem:[#allocation10 + $0x8] sm:$0xf]
    %v246 = vld [vmem:[#allocation10 + $0xc] sm:$0xf]
    %v247 = vld [vmem:[#allocation10 + $0x10] sm:$0xf]
    %v248 = vld [vmem:[#allocation10 + $0x14] sm:$0xf]
    %v249 = vld [vmem:[#allocation10 + $0x18] sm:$0xf]
    %v250 = vld [vmem:[#allocation10 + $0x1c] sm:$0xf]
    %v251 = vld [vmem:[#allocation10 + $0x20] sm:$0xf]
    %v252 = vld [vmem:[#allocation10 + $0x24] sm:$0xf]
    %v253 = vld [vmem:[#allocation10 + $0x28] sm:$0xf]
    %v254 = vld [vmem:[#allocation10 + $0x2c] sm:$0xf]
    %v255 = vld [vmem:[#allocation10 + $0x30] sm:$0xf]
    %v256 = vld [vmem:[#allocation10 + $0x34] sm:$0xf]
    %v257 = vld [vmem:[#allocation10 + $0x38] sm:$0xf]
    %v258 = vld [vmem:[#allocation10 + $0x3c] sm:$0xf]
    %v260 = vlaneseq
    %v261 = vshrl.u32 %v260, 7
    %v262 = vsub.s32 0, %v261
    %v263 = vrot.slane %v227, %v262
    %v264 = vlaneseq
    %v265 = vshrl.u32 %v264, 7
    %v266 = vsub.s32 1, %v265
    %v267 = vrot.slane %v227, %v266
    %v268 = vlaneseq
    %v269 = vshrl.u32 %v268, 7
    %v270 = vsub.s32 2, %v269
    %v271 = vrot.slane %v227, %v270
    %v272 = vlaneseq
    %v273 = vshrl.u32 %v272, 7
    %v274 = vsub.s32 3, %v273
    %v275 = vrot.slane %v227, %v274
    %v296 = vunpack.c.l.b16 %v243
    %v297 = vunpack.c.l.b16 %v244
    %v298 = vunpack.c.l.b16 %v245
    %v299 = vunpack.c.l.b16 %v246
    %v300 = vunpack.c.l.b16 %v247
    %v301 = vunpack.c.l.b16 %v248
    %v302 = vunpack.c.l.b16 %v249
    %v303 = vunpack.c.l.b16 %v250
    %v304 = vunpack.c.l.b16 %v251
    %v305 = vunpack.c.l.b16 %v252
    %v306 = vunpack.c.l.b16 %v253
    %v307 = vunpack.c.l.b16 %v254
    %v308 = vunpack.c.l.b16 %v255
    %v309 = vunpack.c.l.b16 %v256
    %v310 = vunpack.c.l.b16 %v257
    %v311 = vunpack.c.l.b16 %v258
    %v312 = vpack.c.b16 %v297, %v296
    %v313 = vpack.c.b16 %v299, %v298
    %v314 = vpack.c.b16 %v301, %v300
    %v315 = vpack.c.b16 %v303, %v302
    %v316 = vpack.c.b16 %v305, %v304
    %v317 = vpack.c.b16 %v307, %v306
    %v318 = vpack.c.b16 %v309, %v308
    %v319 = vpack.c.b16 %v311, %v310
    %v360 = vunpack.c.l.b16 %v99
    %v361 = vunpack.c.h.b16 %v99
    %v362 = vunpack.c.l.b16 %v100
    %v363 = vunpack.c.h.b16 %v100
    %v364 = vunpack.c.l.b16 %v101
    %v365 = vunpack.c.h.b16 %v101
    %v366 = vunpack.c.l.b16 %v102
    %v367 = vunpack.c.h.b16 %v102
    %v368 = vunpack.c.l.b16 %v103
    %v369 = vunpack.c.h.b16 %v103
    %v370 = vunpack.c.l.b16 %v104
    %v371 = vunpack.c.h.b16 %v104
    %v372 = vunpack.c.l.b16 %v105
    %v373 = vunpack.c.h.b16 %v105
    %v374 = vunpack.c.l.b16 %v106
    %v375 = vunpack.c.h.b16 %v106
    %v376 = vunpack.c.l.b16 %v107
    %v377 = vunpack.c.h.b16 %v107
    %v378 = vunpack.c.l.b16 %v108
    %v379 = vunpack.c.h.b16 %v108
    %v380 = vunpack.c.l.b16 %v109
    %v381 = vunpack.c.h.b16 %v109
    %v382 = vunpack.c.l.b16 %v110
    %v383 = vunpack.c.h.b16 %v110
    %v384 = vunpack.c.l.b16 %v111
    %v385 = vunpack.c.h.b16 %v111
    %v386 = vunpack.c.l.b16 %v112
    %v387 = vunpack.c.h.b16 %v112
    %v388 = vunpack.c.l.b16 %v113
    %v389 = vunpack.c.h.b16 %v113
    %v390 = vunpack.c.l.b16 %v114
    %v391 = vunpack.c.h.b16 %v114
    %v392 = vunpack.c.l.b16 %v115
    %v393 = vunpack.c.h.b16 %v115
    %v394 = vunpack.c.l.b16 %v116
    %v395 = vunpack.c.h.b16 %v116
    %v396 = vunpack.c.l.b16 %v117
    %v397 = vunpack.c.h.b16 %v117
    %v398 = vunpack.c.l.b16 %v118
    %v399 = vunpack.c.h.b16 %v118
    %v400 = vunpack.c.l.b16 %v119
    %v401 = vunpack.c.h.b16 %v119
    %v402 = vunpack.c.l.b16 %v120
    %v403 = vunpack.c.h.b16 %v120
    %v404 = vunpack.c.l.b16 %v121
    %v405 = vunpack.c.h.b16 %v121
    %v406 = vunpack.c.l.b16 %v122
    %v407 = vunpack.c.h.b16 %v122
    %v408 = vunpack.c.l.b16 %v123
    %v409 = vunpack.c.h.b16 %v123
    %v410 = vunpack.c.l.b16 %v124
    %v411 = vunpack.c.h.b16 %v124
    %v412 = vunpack.c.l.b16 %v125
    %v413 = vunpack.c.h.b16 %v125
    %v414 = vunpack.c.l.b16 %v126
    %v415 = vunpack.c.h.b16 %v126
    %v416 = vunpack.c.l.b16 %v127
    %v417 = vunpack.c.h.b16 %v127
    %v418 = vunpack.c.l.b16 %v128
    %v419 = vunpack.c.h.b16 %v128
    %v420 = vunpack.c.l.b16 %v129
    %v421 = vunpack.c.h.b16 %v129
    %v422 = vunpack.c.l.b16 %v130
    %v423 = vunpack.c.h.b16 %v130
    %v424 = vpack.c.b16 %v364, %v360
    %v425 = vpack.c.b16 %v365, %v361
    %v426 = vpack.c.b16 %v366, %v362
    %v427 = vpack.c.b16 %v367, %v363
    %v428 = vpack.c.b16 %v372, %v368
    %v429 = vpack.c.b16 %v373, %v369
    %v430 = vpack.c.b16 %v374, %v370
    %v431 = vpack.c.b16 %v375, %v371
    %v432 = vpack.c.b16 %v380, %v376
    %v433 = vpack.c.b16 %v381, %v377
    %v434 = vpack.c.b16 %v382, %v378
    %v435 = vpack.c.b16 %v383, %v379
    %v436 = vpack.c.b16 %v388, %v384
    %v437 = vpack.c.b16 %v389, %v385
    %v438 = vpack.c.b16 %v390, %v386
    %v439 = vpack.c.b16 %v391, %v387
    %v440 = vpack.c.b16 %v396, %v392
    %v441 = vpack.c.b16 %v397, %v393
    %v442 = vpack.c.b16 %v398, %v394
    %v443 = vpack.c.b16 %v399, %v395
    %v444 = vpack.c.b16 %v404, %v400
    %v445 = vpack.c.b16 %v405, %v401
    %v446 = vpack.c.b16 %v406, %v402
    %v447 = vpack.c.b16 %v407, %v403
    %v448 = vpack.c.b16 %v412, %v408
    %v449 = vpack.c.b16 %v413, %v409
    %v450 = vpack.c.b16 %v414, %v410
    %v451 = vpack.c.b16 %v415, %v411
    %v452 = vpack.c.b16 %v420, %v416
    %v453 = vpack.c.b16 %v421, %v417
    %v454 = vpack.c.b16 %v422, %v418
    %v455 = vpack.c.b16 %v423, %v419
    %488 = vmatprep.subr.bf16.mxu0 %v425
    %489 = vmatpush1.bf16.msra.mxu0 %v424
    %490 = vmatprep.subr.bf16.mxu0 %v429
    %491 = vmatpush1.bf16.msra.mxu0 %v428
    %492 = vmatprep.subr.bf16.mxu0 %v433
    %493 = vmatpush1.bf16.msra.mxu0 %v432
    %494 = vmatprep.subr.bf16.mxu0 %v437
    %495 = vmatpush1.bf16.msra.mxu0 %v436
    %496 = vmatprep.subr.bf16.mxu0 %v441
    %497 = vmatpush1.bf16.msra.mxu0 %v440
    %498 = vmatprep.subr.bf16.mxu0 %v445
    %499 = vmatpush1.bf16.msra.mxu0 %v444
    %500 = vmatprep.subr.bf16.mxu0 %v449
    %501 = vmatpush1.bf16.msra.mxu0 %v448
    %502 = vmatprep.subr.bf16.mxu0 %v453
    %503 = vmatpush1.bf16.msra.mxu0 %v452
    %504 = vmatprep.subr.bf16.mxu0 0
    %505 = vmatpush1.bf16.msra.mxu0 0
    %506 = vmatprep.subr.bf16.mxu0 0
    %507 = vmatpush1.bf16.msra.mxu0 0
    %508 = vmatprep.subr.bf16.mxu0 0
    %509 = vmatpush1.bf16.msra.mxu0 0
    %510 = vmatprep.subr.bf16.mxu0 0
    %511 = vmatpush1.bf16.msra.mxu0 0
    %512 = vmatprep.subr.bf16.mxu0 0
    %513 = vmatpush1.bf16.msra.mxu0 0
    %514 = vmatprep.subr.bf16.mxu0 0
    %515 = vmatpush1.bf16.msra.mxu0 0
    %516 = vmatprep.subr.bf16.mxu0 0
    %517 = vmatpush1.bf16.msra.mxu0 0
    %518 = vmatprep.subr.bf16.mxu0 0
    %519 = vmatpush1.bf16.msra.mxu0 0
    %520 = vmatprep.mubr.bf16.mxu0 0
    %521 = vmatmul.mubr.bf16.gmra.mrb[0].mxu0 %v312
    %v522 = vpop.f32.mrb[0].mxu0
    %v523 = vadd.f32 %v263, %v522
    %v524 = vpop.f32.mrb[0].mxu0
    %v525 = vadd.f32 %v267, %v524
    %v526 = vpop.f32.mrb[0].mxu0
    %v527 = vadd.f32 %v263, %v526
    %v528 = vpop.f32.mrb[0].mxu0
    %v529 = vadd.f32 %v267, %v528
    %530 = vmatprep.mubr.bf16.mxu0 0
    %531 = vmatmul.mubr.bf16.gmra.mrb[0].mxu0 %v313
    %v532 = vpop.f32.mrb[0].mxu0
    %v533 = vadd.f32 %v263, %v532
    %v534 = vpop.f32.mrb[0].mxu0
    %v535 = vadd.f32 %v267, %v534
    %v536 = vpop.f32.mrb[0].mxu0
    %v537 = vadd.f32 %v263, %v536
    %v538 = vpop.f32.mrb[0].mxu0
    %v539 = vadd.f32 %v267, %v538
    %540 = vmatprep.mubr.bf16.mxu0 0
    %541 = vmatmul.mubr.bf16.gmra.mrb[0].mxu0 %v314
    %v542 = vpop.f32.mrb[0].mxu0
    %v543 = vadd.f32 %v263, %v542
    %v544 = vpop.f32.mrb[0].mxu0
    %v545 = vadd.f32 %v267, %v544
    %v546 = vpop.f32.mrb[0].mxu0
    %v547 = vadd.f32 %v263, %v546
    %v548 = vpop.f32.mrb[0].mxu0
    %v549 = vadd.f32 %v267, %v548
    %550 = vmatprep.mubr.bf16.mxu0 0
    %551 = vmatmul.mubr.bf16.gmra.mrb[0].mxu0 %v315
    %v552 = vpop.f32.mrb[0].mxu0
    %v553 = vadd.f32 %v263, %v552
    %v554 = vpop.f32.mrb[0].mxu0
    %v555 = vadd.f32 %v267, %v554
    %v556 = vpop.f32.mrb[0].mxu0
    %v557 = vadd.f32 %v263, %v556
    %v558 = vpop.f32.mrb[0].mxu0
    %v559 = vadd.f32 %v267, %v558
    %560 = vmatprep.mubr.bf16.mxu0 0
    %561 = vmatmul.mubr.bf16.gmra.mrb[0].mxu0 %v316
    %v562 = vpop.f32.mrb[0].mxu0
    %v563 = vadd.f32 %v263, %v562
    %v564 = vpop.f32.mrb[0].mxu0
    %v565 = vadd.f32 %v267, %v564
    %v566 = vpop.f32.mrb[0].mxu0
    %v567 = vadd.f32 %v263, %v566
    %v568 = vpop.f32.mrb[0].mxu0
    %v569 = vadd.f32 %v267, %v568
    %570 = vmatprep.mubr.bf16.mxu0 0
    %571 = vmatmul.mubr.bf16.gmra.mrb[0].mxu0 %v317
    %v572 = vpop.f32.mrb[0].mxu0
    %v573 = vadd.f32 %v263, %v572
    %v574 = vpop.f32.mrb[0].mxu0
    %v575 = vadd.f32 %v267, %v574
    %v576 = vpop.f32.mrb[0].mxu0
    %v577 = vadd.f32 %v263, %v576
    %v578 = vpop.f32.mrb[0].mxu0
    %v579 = vadd.f32 %v267, %v578
    %580 = vmatprep.mubr.bf16.mxu0 0
    %581 = vmatmul.mubr.bf16.gmra.mrb[0].mxu0 %v318
    %v582 = vpop.f32.mrb[0].mxu0
    %v583 = vadd.f32 %v263, %v582
    %v584 = vpop.f32.mrb[0].mxu0
    %v585 = vadd.f32 %v267, %v584
    %v586 = vpop.f32.mrb[0].mxu0
    %v587 = vadd.f32 %v263, %v586
    %v588 = vpop.f32.mrb[0].mxu0
    %v589 = vadd.f32 %v267, %v588
    %590 = vmatprep.mubr.bf16.mxu0 0
    %591 = vmatmul.mubr.bf16.gmra.mrb[0].mxu0 %v319
    %v592 = vpop.f32.mrb[0].mxu0
    %v593 = vadd.f32 %v263, %v592
    %v594 = vpop.f32.mrb[0].mxu0
    %v595 = vadd.f32 %v267, %v594
    %v596 = vpop.f32.mrb[0].mxu0
    %v597 = vadd.f32 %v263, %v596
    %v598 = vpop.f32.mrb[0].mxu0
    %v599 = vadd.f32 %v267, %v598
    %600 = vdwg.mxu0
    %601 = vmatprep.subr.bf16.mxu0 %v427
    %602 = vmatpush1.bf16.msra.mxu0 %v426
    %603 = vmatprep.subr.bf16.mxu0 %v431
    %604 = vmatpush1.bf16.msra.mxu0 %v430
    %605 = vmatprep.subr.bf16.mxu0 %v435
    %606 = vmatpush1.bf16.msra.mxu0 %v434
    %607 = vmatprep.subr.bf16.mxu0 %v439
    %608 = vmatpush1.bf16.msra.mxu0 %v438
    %609 = vmatprep.subr.bf16.mxu0 %v443
    %610 = vmatpush1.bf16.msra.mxu0 %v442
    %611 = vmatprep.subr.bf16.mxu0 %v447
    %612 = vmatpush1.bf16.msra.mxu0 %v446
    %613 = vmatprep.subr.bf16.mxu0 %v451
    %614 = vmatpush1.bf16.msra.mxu0 %v450
    %615 = vmatprep.subr.bf16.mxu0 %v455
    %616 = vmatpush1.bf16.msra.mxu0 %v454
    %617 = vmatprep.subr.bf16.mxu0 0
    %618 = vmatpush1.bf16.msra.mxu0 0
    %619 = vmatprep.subr.bf16.mxu0 0
    %620 = vmatpush1.bf16.msra.mxu0 0
    %621 = vmatprep.subr.bf16.mxu0 0
    %622 = vmatpush1.bf16.msra.mxu0 0
    %623 = vmatprep.subr.bf16.mxu0 0
    %624 = vmatpush1.bf16.msra.mxu0 0
    %625 = vmatprep.subr.bf16.mxu0 0
    %626 = vmatpush1.bf16.msra.mxu0 0
    %627 = vmatprep.subr.bf16.mxu0 0
    %628 = vmatpush1.bf16.msra.mxu0 0
    %629 = vmatprep.subr.bf16.mxu0 0
    %630 = vmatpush1.bf16.msra.mxu0 0
    %631 = vmatprep.subr.bf16.mxu0 0
    %632 = vmatpush1.bf16.msra.mxu0 0
    %633 = vmatprep.mubr.bf16.mxu0 0
    %634 = vmatmul.mubr.bf16.gmra.mrb[0].mxu0 %v312
    %v635 = vpop.f32.mrb[0].mxu0
    %v636 = vadd.f32 %v271, %v635
    %v637 = vpop.f32.mrb[0].mxu0
    %v638 = vadd.f32 %v275, %v637
    %v639 = vpop.f32.mrb[0].mxu0
    %v640 = vadd.f32 %v271, %v639
    %v641 = vpop.f32.mrb[0].mxu0
    %v642 = vadd.f32 %v275, %v641
    %643 = vmatprep.mubr.bf16.mxu0 0
    %644 = vmatmul.mubr.bf16.gmra.mrb[0].mxu0 %v313
    %v645 = vpop.f32.mrb[0].mxu0
    %v646 = vadd.f32 %v271, %v645
    %v647 = vpop.f32.mrb[0].mxu0
    %v648 = vadd.f32 %v275, %v647
    %v649 = vpop.f32.mrb[0].mxu0
    %v650 = vadd.f32 %v271, %v649
    %v651 = vpop.f32.mrb[0].mxu0
    %v652 = vadd.f32 %v275, %v651
    %653 = vmatprep.mubr.bf16.mxu0 0
    %654 = vmatmul.mubr.bf16.gmra.mrb[0].mxu0 %v314
    %v655 = vpop.f32.mrb[0].mxu0
    %v656 = vadd.f32 %v271, %v655
    %v657 = vpop.f32.mrb[0].mxu0
    %v658 = vadd.f32 %v275, %v657
    %v659 = vpop.f32.mrb[0].mxu0
    %v660 = vadd.f32 %v271, %v659
    %v661 = vpop.f32.mrb[0].mxu0
    %v662 = vadd.f32 %v275, %v661
    %663 = vmatprep.mubr.bf16.mxu0 0
    %664 = vmatmul.mubr.bf16.gmra.mrb[0].mxu0 %v315
    %v665 = vpop.f32.mrb[0].mxu0
    %v666 = vadd.f32 %v271, %v665
    %v667 = vpop.f32.mrb[0].mxu0
    %v668 = vadd.f32 %v275, %v667
    %v669 = vpop.f32.mrb[0].mxu0
    %v670 = vadd.f32 %v271, %v669
    %v671 = vpop.f32.mrb[0].mxu0
    %v672 = vadd.f32 %v275, %v671
    %673 = vmatprep.mubr.bf16.mxu0 0
    %674 = vmatmul.mubr.bf16.gmra.mrb[0].mxu0 %v316
    %v675 = vpop.f32.mrb[0].mxu0
    %v676 = vadd.f32 %v271, %v675
    %v677 = vpop.f32.mrb[0].mxu0
    %v678 = vadd.f32 %v275, %v677
    %v679 = vpop.f32.mrb[0].mxu0
    %v680 = vadd.f32 %v271, %v679
    %v681 = vpop.f32.mrb[0].mxu0
    %v682 = vadd.f32 %v275, %v681
    %683 = vmatprep.mubr.bf16.mxu0 0
    %684 = vmatmul.mubr.bf16.gmra.mrb[0].mxu0 %v317
    %v685 = vpop.f32.mrb[0].mxu0
    %v686 = vadd.f32 %v271, %v685
    %v687 = vpop.f32.mrb[0].mxu0
    %v688 = vadd.f32 %v275, %v687
    %v689 = vpop.f32.mrb[0].mxu0
    %v690 = vadd.f32 %v271, %v689
    %v691 = vpop.f32.mrb[0].mxu0
    %v692 = vadd.f32 %v275, %v691
    %693 = vmatprep.mubr.bf16.mxu0 0
    %694 = vmatmul.mubr.bf16.gmra.mrb[0].mxu0 %v318
    %v695 = vpop.f32.mrb[0].mxu0
    %v696 = vadd.f32 %v271, %v695
    %v697 = vpop.f32.mrb[0].mxu0
    %v698 = vadd.f32 %v275, %v697
    %v699 = vpop.f32.mrb[0].mxu0
    %v700 = vadd.f32 %v271, %v699
    %v701 = vpop.f32.mrb[0].mxu0
    %v702 = vadd.f32 %v275, %v701
    %703 = vmatprep.mubr.bf16.mxu0 0
    %704 = vmatmul.mubr.bf16.gmra.mrb[0].mxu0 %v319
    %v705 = vpop.f32.mrb[0].mxu0
    %v706 = vadd.f32 %v271, %v705
    %v707 = vpop.f32.mrb[0].mxu0
    %v708 = vadd.f32 %v275, %v707
    %v709 = vpop.f32.mrb[0].mxu0
    %v710 = vadd.f32 %v271, %v709
    %v711 = vpop.f32.mrb[0].mxu0
    %v712 = vadd.f32 %v275, %v711
    %713 = vdwg.mxu0
    %714 = vst [vmem:[#allocation2] sm:$0xff] %v523
    %715 = vst [vmem:[#allocation2 + $0x8] sm:$0xff] %v525
    %716 = vst [vmem:[#allocation2 + $0x10] sm:$0xff] %v636
    %717 = vst [vmem:[#allocation2 + $0x18] sm:$0xff] %v638
    %718 = vst [vmem:[#allocation2 + $0x20] sm:$0xff] %v527
    %719 = vst [vmem:[#allocation2 + $0x28] sm:$0xff] %v529
    %720 = vst [vmem:[#allocation2 + $0x30] sm:$0xff] %v640
    %721 = vst [vmem:[#allocation2 + $0x38] sm:$0xff] %v642
    %722 = vst [vmem:[#allocation2 + $0x40] sm:$0xff] %v533
    %723 = vst [vmem:[#allocation2 + $0x48] sm:$0xff] %v535
    %724 = vst [vmem:[#allocation2 + $0x50] sm:$0xff] %v646
    %725 = vst [vmem:[#allocation2 + $0x58] sm:$0xff] %v648
    %726 = vst [vmem:[#allocation2 + $0x60] sm:$0xff] %v537
    %727 = vst [vmem:[#allocation2 + $0x68] sm:$0xff] %v539
    %728 = vst [vmem:[#allocation2 + $0x70] sm:$0xff] %v650
    %729 = vst [vmem:[#allocation2 + $0x78] sm:$0xff] %v652
    %730 = vst [vmem:[#allocation2 + $0x80] sm:$0xff] %v543
    %731 = vst [vmem:[#allocation2 + $0x88] sm:$0xff] %v545
    %732 = vst [vmem:[#allocation2 + $0x90] sm:$0xff] %v656
    %733 = vst [vmem:[#allocation2 + $0x98] sm:$0xff] %v658
    %734 = vst [vmem:[#allocation2 + $0xa0] sm:$0xff] %v547
    %735 = vst [vmem:[#allocation2 + $0xa8] sm:$0xff] %v549
    %736 = vst [vmem:[#allocation2 + $0xb0] sm:$0xff] %v660
    %737 = vst [vmem:[#allocation2 + $0xb8] sm:$0xff] %v662
    %738 = vst [vmem:[#allocation2 + $0xc0] sm:$0xff] %v553
    %739 = vst [vmem:[#allocation2 + $0xc8] sm:$0xff] %v555
    %740 = vst [vmem:[#allocation2 + $0xd0] sm:$0xff] %v666
    %741 = vst [vmem:[#allocation2 + $0xd8] sm:$0xff] %v668
    %742 = vst [vmem:[#allocation2 + $0xe0] sm:$0xff] %v557
    %743 = vst [vmem:[#allocation2 + $0xe8] sm:$0xff] %v559
    %744 = vst [vmem:[#allocation2 + $0xf0] sm:$0xff] %v670
    %745 = vst [vmem:[#allocation2 + $0xf8] sm:$0xff] %v672
    %746 = vst [vmem:[#allocation2 + $0x100] sm:$0xff] %v563
    %747 = vst [vmem:[#allocation2 + $0x108] sm:$0xff] %v565
    %748 = vst [vmem:[#allocation2 + $0x110] sm:$0xff] %v676
    %749 = vst [vmem:[#allocation2 + $0x118] sm:$0xff] %v678
    %750 = vst [vmem:[#allocation2 + $0x120] sm:$0xff] %v567
    %751 = vst [vmem:[#allocation2 + $0x128] sm:$0xff] %v569
    %752 = vst [vmem:[#allocation2 + $0x130] sm:$0xff] %v680
    %753 = vst [vmem:[#allocation2 + $0x138] sm:$0xff] %v682
    %754 = vst [vmem:[#allocation2 + $0x140] sm:$0xff] %v573
    %755 = vst [vmem:[#allocation2 + $0x148] sm:$0xff] %v575
    %756 = vst [vmem:[#allocation2 + $0x150] sm:$0xff] %v686
    %757 = vst [vmem:[#allocation2 + $0x158] sm:$0xff] %v688
    %758 = vst [vmem:[#allocation2 + $0x160] sm:$0xff] %v577
    %759 = vst [vmem:[#allocation2 + $0x168] sm:$0xff] %v579
    %760 = vst [vmem:[#allocation2 + $0x170] sm:$0xff] %v690
    %761 = vst [vmem:[#allocation2 + $0x178] sm:$0xff] %v692
    %762 = vst [vmem:[#allocation2 + $0x180] sm:$0xff] %v583
    %763 = vst [vmem:[#allocation2 + $0x188] sm:$0xff] %v585
    %764 = vst [vmem:[#allocation2 + $0x190] sm:$0xff] %v696
    %765 = vst [vmem:[#allocation2 + $0x198] sm:$0xff] %v698
    %766 = vst [vmem:[#allocation2 + $0x1a0] sm:$0xff] %v587
    %767 = vst [vmem:[#allocation2 + $0x1a8] sm:$0xff] %v589
    %768 = vst [vmem:[#allocation2 + $0x1b0] sm:$0xff] %v700
    %769 = vst [vmem:[#allocation2 + $0x1b8] sm:$0xff] %v702
    %770 = vst [vmem:[#allocation2 + $0x1c0] sm:$0xff] %v593
    %771 = vst [vmem:[#allocation2 + $0x1c8] sm:$0xff] %v595
    %772 = vst [vmem:[#allocation2 + $0x1d0] sm:$0xff] %v706
    %773 = vst [vmem:[#allocation2 + $0x1d8] sm:$0xff] %v708
    %774 = vst [vmem:[#allocation2 + $0x1e0] sm:$0xff] %v597
    %775 = vst [vmem:[#allocation2 + $0x1e8] sm:$0xff] %v599
    %776 = vst [vmem:[#allocation2 + $0x1f0] sm:$0xff] %v710
    %777 = vst [vmem:[#allocation2 + $0x1f8] sm:$0xff] %v712
    %v778 = vld [vmem:[#allocation10] sm:$0xf]
    %v779 = vld [vmem:[#allocation10 + $0x4] sm:$0xf]
    %v780 = vld [vmem:[#allocation10 + $0x8] sm:$0xf]
    %v781 = vld [vmem:[#allocation10 + $0xc] sm:$0xf]
    %v782 = vld [vmem:[#allocation10 + $0x10] sm:$0xf]
    %v783 = vld [vmem:[#allocation10 + $0x14] sm:$0xf]
    %v784 = vld [vmem:[#allocation10 + $0x18] sm:$0xf]
    %v785 = vld [vmem:[#allocation10 + $0x1c] sm:$0xf]
    %v786 = vld [vmem:[#allocation10 + $0x20] sm:$0xf]
    %v787 = vld [vmem:[#allocation10 + $0x24] sm:$0xf]
    %v788 = vld [vmem:[#allocation10 + $0x28] sm:$0xf]
    %v789 = vld [vmem:[#allocation10 + $0x2c] sm:$0xf]
    %v790 = vld [vmem:[#allocation10 + $0x30] sm:$0xf]
    %v791 = vld [vmem:[#allocation10 + $0x34] sm:$0xf]
    %v792 = vld [vmem:[#allocation10 + $0x38] sm:$0xf]
    %v793 = vld [vmem:[#allocation10 + $0x3c] sm:$0xf]
    %v795 = vlaneseq
    %v796 = vshrl.u32 %v795, 7
    %v797 = vsub.s32 0, %v796
    %v798 = vrot.slane %v228, %v797
    %v799 = vlaneseq
    %v800 = vshrl.u32 %v799, 7
    %v801 = vsub.s32 1, %v800
    %v802 = vrot.slane %v228, %v801
    %v803 = vlaneseq
    %v804 = vshrl.u32 %v803, 7
    %v805 = vsub.s32 2, %v804
    %v806 = vrot.slane %v228, %v805
    %v807 = vlaneseq
    %v808 = vshrl.u32 %v807, 7
    %v809 = vsub.s32 3, %v808
    %v810 = vrot.slane %v228, %v809
    %v831 = vunpack.c.l.b16 %v778
    %v832 = vunpack.c.l.b16 %v779
    %v833 = vunpack.c.l.b16 %v780
    %v834 = vunpack.c.l.b16 %v781
    %v835 = vunpack.c.l.b16 %v782
    %v836 = vunpack.c.l.b16 %v783
    %v837 = vunpack.c.l.b16 %v784
    %v838 = vunpack.c.l.b16 %v785
    %v839 = vunpack.c.l.b16 %v786
    %v840 = vunpack.c.l.b16 %v787
    %v841 = vunpack.c.l.b16 %v788
    %v842 = vunpack.c.l.b16 %v789
    %v843 = vunpack.c.l.b16 %v790
    %v844 = vunpack.c.l.b16 %v791
    %v845 = vunpack.c.l.b16 %v792
    %v846 = vunpack.c.l.b16 %v793
    %v847 = vpack.c.b16 %v832, %v831
    %v848 = vpack.c.b16 %v834, %v833
    %v849 = vpack.c.b16 %v836, %v835
    %v850 = vpack.c.b16 %v838, %v837
    %v851 = vpack.c.b16 %v840, %v839
    %v852 = vpack.c.b16 %v842, %v841
    %v853 = vpack.c.b16 %v844, %v843
    %v854 = vpack.c.b16 %v846, %v845
    %v895 = vunpack.c.l.b16 %v131
    %v896 = vunpack.c.h.b16 %v131
    %v897 = vunpack.c.l.b16 %v132
    %v898 = vunpack.c.h.b16 %v132
    %v899 = vunpack.c.l.b16 %v133
    %v900 = vunpack.c.h.b16 %v133
    %v901 = vunpack.c.l.b16 %v134
    %v902 = vunpack.c.h.b16 %v134
    %v903 = vunpack.c.l.b16 %v135
    %v904 = vunpack.c.h.b16 %v135
    %v905 = vunpack.c.l.b16 %v136
    %v906 = vunpack.c.h.b16 %v136
    %v907 = vunpack.c.l.b16 %v137
    %v908 = vunpack.c.h.b16 %v137
    %v909 = vunpack.c.l.b16 %v138
    %v910 = vunpack.c.h.b16 %v138
    %v911 = vunpack.c.l.b16 %v139
    %v912 = vunpack.c.h.b16 %v139
    %v913 = vunpack.c.l.b16 %v140
    %v914 = vunpack.c.h.b16 %v140
    %v915 = vunpack.c.l.b16 %v141
    %v916 = vunpack.c.h.b16 %v141
    %v917 = vunpack.c.l.b16 %v142
    %v918 = vunpack.c.h.b16 %v142
    %v919 = vunpack.c.l.b16 %v143
    %v920 = vunpack.c.h.b16 %v143
    %v921 = vunpack.c.l.b16 %v144
    %v922 = vunpack.c.h.b16 %v144
    %v923 = vunpack.c.l.b16 %v145
    %v924 = vunpack.c.h.b16 %v145
    %v925 = vunpack.c.l.b16 %v146
    %v926 = vunpack.c.h.b16 %v146
    %v927 = vunpack.c.l.b16 %v147
    %v928 = vunpack.c.h.b16 %v147
    %v929 = vunpack.c.l.b16 %v148
    %v930 = vunpack.c.h.b16 %v148
    %v931 = vunpack.c.l.b16 %v149
    %v932 = vunpack.c.h.b16 %v149
    %v933 = vunpack.c.l.b16 %v150
    %v934 = vunpack.c.h.b16 %v150
    %v935 = vunpack.c.l.b16 %v151
    %v936 = vunpack.c.h.b16 %v151
    %v937 = vunpack.c.l.b16 %v152
    %v938 = vunpack.c.h.b16 %v152
    %v939 = vunpack.c.l.b16 %v153
    %v940 = vunpack.c.h.b16 %v153
    %v941 = vunpack.c.l.b16 %v154
    %v942 = vunpack.c.h.b16 %v154
    %v943 = vunpack.c.l.b16 %v155
    %v944 = vunpack.c.h.b16 %v155
    %v945 = vunpack.c.l.b16 %v156
    %v946 = vunpack.c.h.b16 %v156
    %v947 = vunpack.c.l.b16 %v157
    %v948 = vunpack.c.h.b16 %v157
    %v949 = vunpack.c.l.b16 %v158
    %v950 = vunpack.c.h.b16 %v158
    %v951 = vunpack.c.l.b16 %v159
    %v952 = vunpack.c.h.b16 %v159
    %v953 = vunpack.c.l.b16 %v160
    %v954 = vunpack.c.h.b16 %v160
    %v955 = vunpack.c.l.b16 %v161
    %v956 = vunpack.c.h.b16 %v161
    %v957 = vunpack.c.l.b16 %v162
    %v958 = vunpack.c.h.b16 %v162
    %v959 = vpack.c.b16 %v899, %v895
    %v960 = vpack.c.b16 %v900, %v896
    %v961 = vpack.c.b16 %v901, %v897
    %v962 = vpack.c.b16 %v902, %v898
    %v963 = vpack.c.b16 %v907, %v903
    %v964 = vpack.c.b16 %v908, %v904
    %v965 = vpack.c.b16 %v909, %v905
    %v966 = vpack.c.b16 %v910, %v906
    %v967 = vpack.c.b16 %v915, %v911
    %v968 = vpack.c.b16 %v916, %v912
    %v969 = vpack.c.b16 %v917, %v913
    %v970 = vpack.c.b16 %v918, %v914
    %v971 = vpack.c.b16 %v923, %v919
    %v972 = vpack.c.b16 %v924, %v920
    %v973 = vpack.c.b16 %v925, %v921
    %v974 = vpack.c.b16 %v926, %v922
    %v975 = vpack.c.b16 %v931, %v927
    %v976 = vpack.c.b16 %v932, %v928
    %v977 = vpack.c.b16 %v933, %v929
    %v978 = vpack.c.b16 %v934, %v930
    %v979 = vpack.c.b16 %v939, %v935
    %v980 = vpack.c.b16 %v940, %v936
    %v981 = vpack.c.b16 %v941, %v937
    %v982 = vpack.c.b16 %v942, %v938
    %v983 = vpack.c.b16 %v947, %v943
    %v984 = vpack.c.b16 %v948, %v944
    %v985 = vpack.c.b16 %v949, %v945
    %v986 = vpack.c.b16 %v950, %v946
    %v987 = vpack.c.b16 %v955, %v951
    %v988 = vpack.c.b16 %v956, %v952
    %v989 = vpack.c.b16 %v957, %v953
    %v990 = vpack.c.b16 %v958, %v954
    %1023 = vmatprep.subr.bf16.mxu0 %v960
    %1024 = vmatpush1.bf16.msra.mxu0 %v959
    %1025 = vmatprep.subr.bf16.mxu0 %v964
    %1026 = vmatpush1.bf16.msra.mxu0 %v963
    %1027 = vmatprep.subr.bf16.mxu0 %v968
    %1028 = vmatpush1.bf16.msra.mxu0 %v967
    %1029 = vmatprep.subr.bf16.mxu0 %v972
    %1030 = vmatpush1.bf16.msra.mxu0 %v971
    %1031 = vmatprep.subr.bf16.mxu0 %v976
    %1032 = vmatpush1.bf16.msra.mxu0 %v975
    %1033 = vmatprep.subr.bf16.mxu0 %v980
    %1034 = vmatpush1.bf16.msra.mxu0 %v979
    %1035 = vmatprep.subr.bf16.mxu0 %v984
    %1036 = vmatpush1.bf16.msra.mxu0 %v983
    %1037 = vmatprep.subr.bf16.mxu0 %v988
    %1038 = vmatpush1.bf16.msra.mxu0 %v987
    %1039 = vmatprep.subr.bf16.mxu0 0
    %1040 = vmatpush1.bf16.msra.mxu0 0
    %1041 = vmatprep.subr.bf16.mxu0 0
    %1042 = vmatpush1.bf16.msra.mxu0 0
    %1043 = vmatprep.subr.bf16.mxu0 0
    %1044 = vmatpush1.bf16.msra.mxu0 0
    %1045 = vmatprep.subr.bf16.mxu0 0
    %1046 = vmatpush1.bf16.msra.mxu0 0
    %1047 = vmatprep.subr.bf16.mxu0 0
    %1048 = vmatpush1.bf16.msra.mxu0 0
    %1049 = vmatprep.subr.bf16.mxu0 0
    %1050 = vmatpush1.bf16.msra.mxu0 0
    %1051 = vmatprep.subr.bf16.mxu0 0
    %1052 = vmatpush1.bf16.msra.mxu0 0
    %1053 = vmatprep.subr.bf16.mxu0 0
    %1054 = vmatpush1.bf16.msra.mxu0 0
    %1055 = vmatprep.mubr.bf16.mxu0 0
    %1056 = vmatmul.mubr.bf16.gmra.mrb[0].mxu0 %v847
    %v1057 = vpop.f32.mrb[0].mxu0
    %v1058 = vadd.f32 %v798, %v1057
    %v1059 = vpop.f32.mrb[0].mxu0
    %v1060 = vadd.f32 %v802, %v1059
    %v1061 = vpop.f32.mrb[0].mxu0
    %v1062 = vadd.f32 %v798, %v1061
    %v1063 = vpop.f32.mrb[0].mxu0
    %v1064 = vadd.f32 %v802, %v1063
    %1065 = vmatprep.mubr.bf16.mxu0 0
    %1066 = vmatmul.mubr.bf16.gmra.mrb[0].mxu0 %v848
    %v1067 = vpop.f32.mrb[0].mxu0
    %v1068 = vadd.f32 %v798, %v1067
    %v1069 = vpop.f32.mrb[0].mxu0
    %v1070 = vadd.f32 %v802, %v1069
    %v1071 = vpop.f32.mrb[0].mxu0
    %v1072 = vadd.f32 %v798, %v1071
    %v1073 = vpop.f32.mrb[0].mxu0
    %v1074 = vadd.f32 %v802, %v1073
    %1075 = vmatprep.mubr.bf16.mxu0 0
    %1076 = vmatmul.mubr.bf16.gmra.mrb[0].mxu0 %v849
    %v1077 = vpop.f32.mrb[0].mxu0
    %v1078 = vadd.f32 %v798, %v1077
    %v1079 = vpop.f32.mrb[0].mxu0
    %v1080 = vadd.f32 %v802, %v1079
    %v1081 = vpop.f32.mrb[0].mxu0
    %v1082 = vadd.f32 %v798, %v1081
    %v1083 = vpop.f32.mrb[0].mxu0
    %v1084 = vadd.f32 %v802, %v1083
    %1085 = vmatprep.mubr.bf16.mxu0 0
    %1086 = vmatmul.mubr.bf16.gmra.mrb[0].mxu0 %v850
    %v1087 = vpop.f32.mrb[0].mxu0
    %v1088 = vadd.f32 %v798, %v1087
    %v1089 = vpop.f32.mrb[0].mxu0
    %v1090 = vadd.f32 %v802, %v1089
    %v1091 = vpop.f32.mrb[0].mxu0
    %v1092 = vadd.f32 %v798, %v1091
    %v1093 = vpop.f32.mrb[0].mxu0
    %v1094 = vadd.f32 %v802, %v1093
    %1095 = vmatprep.mubr.bf16.mxu0 0
    %1096 = vmatmul.mubr.bf16.gmra.mrb[0].mxu0 %v851
    %v1097 = vpop.f32.mrb[0].mxu0
    %v1098 = vadd.f32 %v798, %v1097
    %v1099 = vpop.f32.mrb[0].mxu0
    %v1100 = vadd.f32 %v802, %v1099
    %v1101 = vpop.f32.mrb[0].mxu0
    %v1102 = vadd.f32 %v798, %v1101
    %v1103 = vpop.f32.mrb[0].mxu0
    %v1104 = vadd.f32 %v802, %v1103
    %1105 = vmatprep.mubr.bf16.mxu0 0
    %1106 = vmatmul.mubr.bf16.gmra.mrb[0].mxu0 %v852
    %v1107 = vpop.f32.mrb[0].mxu0
    %v1108 = vadd.f32 %v798, %v1107
    %v1109 = vpop.f32.mrb[0].mxu0
    %v1110 = vadd.f32 %v802, %v1109
    %v1111 = vpop.f32.mrb[0].mxu0
    %v1112 = vadd.f32 %v798, %v1111
    %v1113 = vpop.f32.mrb[0].mxu0
    %v1114 = vadd.f32 %v802, %v1113
    %1115 = vmatprep.mubr.bf16.mxu0 0
    %1116 = vmatmul.mubr.bf16.gmra.mrb[0].mxu0 %v853
    %v1117 = vpop.f32.mrb[0].mxu0
    %v1118 = vadd.f32 %v798, %v1117
    %v1119 = vpop.f32.mrb[0].mxu0
    %v1120 = vadd.f32 %v802, %v1119
    %v1121 = vpop.f32.mrb[0].mxu0
    %v1122 = vadd.f32 %v798, %v1121
    %v1123 = vpop.f32.mrb[0].mxu0
    %v1124 = vadd.f32 %v802, %v1123
    %1125 = vmatprep.mubr.bf16.mxu0 0
    %1126 = vmatmul.mubr.bf16.gmra.mrb[0].mxu0 %v854
    %v1127 = vpop.f32.mrb[0].mxu0
    %v1128 = vadd.f32 %v798, %v1127
    %v1129 = vpop.f32.mrb[0].mxu0
    %v1130 = vadd.f32 %v802, %v1129
    %v1131 = vpop.f32.mrb[0].mxu0
    %v1132 = vadd.f32 %v798, %v1131
    %v1133 = vpop.f32.mrb[0].mxu0
    %v1134 = vadd.f32 %v802, %v1133
    %1135 = vdwg.mxu0
    %1136 = vmatprep.subr.bf16.mxu0 %v962
    %1137 = vmatpush1.bf16.msra.mxu0 %v961
    %1138 = vmatprep.subr.bf16.mxu0 %v966
    %1139 = vmatpush1.bf16.msra.mxu0 %v965
    %1140 = vmatprep.subr.bf16.mxu0 %v970
    %1141 = vmatpush1.bf16.msra.mxu0 %v969
    %1142 = vmatprep.subr.bf16.mxu0 %v974
    %1143 = vmatpush1.bf16.msra.mxu0 %v973
    %1144 = vmatprep.subr.bf16.mxu0 %v978
    %1145 = vmatpush1.bf16.msra.mxu0 %v977
    %1146 = vmatprep.subr.bf16.mxu0 %v982
    %1147 = vmatpush1.bf16.msra.mxu0 %v981
    %1148 = vmatprep.subr.bf16.mxu0 %v986
    %1149 = vmatpush1.bf16.msra.mxu0 %v985
    %1150 = vmatprep.subr.bf16.mxu0 %v990
    %1151 = vmatpush1.bf16.msra.mxu0 %v989
    %1152 = vmatprep.subr.bf16.mxu0 0
    %1153 = vmatpush1.bf16.msra.mxu0 0
    %1154 = vmatprep.subr.bf16.mxu0 0
    %1155 = vmatpush1.bf16.msra.mxu0 0
    %1156 = vmatprep.subr.bf16.mxu0 0
    %1157 = vmatpush1.bf16.msra.mxu0 0
    %1158 = vmatprep.subr.bf16.mxu0 0
    %1159 = vmatpush1.bf16.msra.mxu0 0
    %1160 = vmatprep.subr.bf16.mxu0 0
    %1161 = vmatpush1.bf16.msra.mxu0 0
    %1162 = vmatprep.subr.bf16.mxu0 0
    %1163 = vmatpush1.bf16.msra.mxu0 0
    %1164 = vmatprep.subr.bf16.mxu0 0
    %1165 = vmatpush1.bf16.msra.mxu0 0
    %1166 = vmatprep.subr.bf16.mxu0 0
    %1167 = vmatpush1.bf16.msra.mxu0 0
    %1168 = vmatprep.mubr.bf16.mxu0 0
    %1169 = vmatmul.mubr.bf16.gmra.mrb[0].mxu0 %v847
    %v1170 = vpop.f32.mrb[0].mxu0
    %v1171 = vadd.f32 %v806, %v1170
    %v1172 = vpop.f32.mrb[0].mxu0
    %v1173 = vadd.f32 %v810, %v1172
    %v1174 = vpop.f32.mrb[0].mxu0
    %v1175 = vadd.f32 %v806, %v1174
    %v1176 = vpop.f32.mrb[0].mxu0
    %v1177 = vadd.f32 %v810, %v1176
    %1178 = vmatprep.mubr.bf16.mxu0 0
    %1179 = vmatmul.mubr.bf16.gmra.mrb[0].mxu0 %v848
    %v1180 = vpop.f32.mrb[0].mxu0
    %v1181 = vadd.f32 %v806, %v1180
    %v1182 = vpop.f32.mrb[0].mxu0
    %v1183 = vadd.f32 %v810, %v1182
    %v1184 = vpop.f32.mrb[0].mxu0
    %v1185 = vadd.f32 %v806, %v1184
    %v1186 = vpop.f32.mrb[0].mxu0
    %v1187 = vadd.f32 %v810, %v1186
    %1188 = vmatprep.mubr.bf16.mxu0 0
    %1189 = vmatmul.mubr.bf16.gmra.mrb[0].mxu0 %v849
    %v1190 = vpop.f32.mrb[0].mxu0
    %v1191 = vadd.f32 %v806, %v1190
    %v1192 = vpop.f32.mrb[0].mxu0
    %v1193 = vadd.f32 %v810, %v1192
    %v1194 = vpop.f32.mrb[0].mxu0
    %v1195 = vadd.f32 %v806, %v1194
    %v1196 = vpop.f32.mrb[0].mxu0
    %v1197 = vadd.f32 %v810, %v1196
    %1198 = vmatprep.mubr.bf16.mxu0 0
    %1199 = vmatmul.mubr.bf16.gmra.mrb[0].mxu0 %v850
    %v1200 = vpop.f32.mrb[0].mxu0
    %v1201 = vadd.f32 %v806, %v1200
    %v1202 = vpop.f32.mrb[0].mxu0
    %v1203 = vadd.f32 %v810, %v1202
    %v1204 = vpop.f32.mrb[0].mxu0
    %v1205 = vadd.f32 %v806, %v1204
    %v1206 = vpop.f32.mrb[0].mxu0
    %v1207 = vadd.f32 %v810, %v1206
    %1208 = vmatprep.mubr.bf16.mxu0 0
    %1209 = vmatmul.mubr.bf16.gmra.mrb[0].mxu0 %v851
    %v1210 = vpop.f32.mrb[0].mxu0
    %v1211 = vadd.f32 %v806, %v1210
    %v1212 = vpop.f32.mrb[0].mxu0
    %v1213 = vadd.f32 %v810, %v1212
    %v1214 = vpop.f32.mrb[0].mxu0
    %v1215 = vadd.f32 %v806, %v1214
    %v1216 = vpop.f32.mrb[0].mxu0
    %v1217 = vadd.f32 %v810, %v1216
    %1218 = vmatprep.mubr.bf16.mxu0 0
    %1219 = vmatmul.mubr.bf16.gmra.mrb[0].mxu0 %v852
    %v1220 = vpop.f32.mrb[0].mxu0
    %v1221 = vadd.f32 %v806, %v1220
    %v1222 = vpop.f32.mrb[0].mxu0
    %v1223 = vadd.f32 %v810, %v1222
    %v1224 = vpop.f32.mrb[0].mxu0
    %v1225 = vadd.f32 %v806, %v1224
    %v1226 = vpop.f32.mrb[0].mxu0
    %v1227 = vadd.f32 %v810, %v1226
    %1228 = vmatprep.mubr.bf16.mxu0 0
    %1229 = vmatmul.mubr.bf16.gmra.mrb[0].mxu0 %v853
    %v1230 = vpop.f32.mrb[0].mxu0
    %v1231 = vadd.f32 %v806, %v1230
    %v1232 = vpop.f32.mrb[0].mxu0
    %v1233 = vadd.f32 %v810, %v1232
    %v1234 = vpop.f32.mrb[0].mxu0
    %v1235 = vadd.f32 %v806, %v1234
    %v1236 = vpop.f32.mrb[0].mxu0
    %v1237 = vadd.f32 %v810, %v1236
    %1238 = vmatprep.mubr.bf16.mxu0 0
    %1239 = vmatmul.mubr.bf16.gmra.mrb[0].mxu0 %v854
    %v1240 = vpop.f32.mrb[0].mxu0
    %v1241 = vadd.f32 %v806, %v1240
    %v1242 = vpop.f32.mrb[0].mxu0
    %v1243 = vadd.f32 %v810, %v1242
    %v1244 = vpop.f32.mrb[0].mxu0
    %v1245 = vadd.f32 %v806, %v1244
    %v1246 = vpop.f32.mrb[0].mxu0
    %v1247 = vadd.f32 %v810, %v1246
    %1248 = vdwg.mxu0
    %1249 = vst [vmem:[#allocation3] sm:$0xff] %v1058
    %1250 = vst [vmem:[#allocation3 + $0x8] sm:$0xff] %v1060
    %1251 = vst [vmem:[#allocation3 + $0x10] sm:$0xff] %v1171
    %1252 = vst [vmem:[#allocation3 + $0x18] sm:$0xff] %v1173
    %1253 = vst [vmem:[#allocation3 + $0x20] sm:$0xff] %v1062
    %1254 = vst [vmem:[#allocation3 + $0x28] sm:$0xff] %v1064
    %1255 = vst [vmem:[#allocation3 + $0x30] sm:$0xff] %v1175
    %1256 = vst [vmem:[#allocation3 + $0x38] sm:$0xff] %v1177
    %1257 = vst [vmem:[#allocation3 + $0x40] sm:$0xff] %v1068
    %1258 = vst [vmem:[#allocation3 + $0x48] sm:$0xff] %v1070
    %1259 = vst [vmem:[#allocation3 + $0x50] sm:$0xff] %v1181
    %1260 = vst [vmem:[#allocation3 + $0x58] sm:$0xff] %v1183
    %1261 = vst [vmem:[#allocation3 + $0x60] sm:$0xff] %v1072
    %1262 = vst [vmem:[#allocation3 + $0x68] sm:$0xff] %v1074
    %1263 = vst [vmem:[#allocation3 + $0x70] sm:$0xff] %v1185
    %1264 = vst [vmem:[#allocation3 + $0x78] sm:$0xff] %v1187
    %1265 = vst [vmem:[#allocation3 + $0x80] sm:$0xff] %v1078
    %1266 = vst [vmem:[#allocation3 + $0x88] sm:$0xff] %v1080
    %1267 = vst [vmem:[#allocation3 + $0x90] sm:$0xff] %v1191
    %1268 = vst [vmem:[#allocation3 + $0x98] sm:$0xff] %v1193
    %1269 = vst [vmem:[#allocation3 + $0xa0] sm:$0xff] %v1082
    %1270 = vst [vmem:[#allocation3 + $0xa8] sm:$0xff] %v1084
    %1271 = vst [vmem:[#allocation3 + $0xb0] sm:$0xff] %v1195
    %1272 = vst [vmem:[#allocation3 + $0xb8] sm:$0xff] %v1197
    %1273 = vst [vmem:[#allocation3 + $0xc0] sm:$0xff] %v1088
    %1274 = vst [vmem:[#allocation3 + $0xc8] sm:$0xff] %v1090
    %1275 = vst [vmem:[#allocation3 + $0xd0] sm:$0xff] %v1201
    %1276 = vst [vmem:[#allocation3 + $0xd8] sm:$0xff] %v1203
    %1277 = vst [vmem:[#allocation3 + $0xe0] sm:$0xff] %v1092
    %1278 = vst [vmem:[#allocation3 + $0xe8] sm:$0xff] %v1094
    %1279 = vst [vmem:[#allocation3 + $0xf0] sm:$0xff] %v1205
    %1280 = vst [vmem:[#allocation3 + $0xf8] sm:$0xff] %v1207
    %1281 = vst [vmem:[#allocation3 + $0x100] sm:$0xff] %v1098
    %1282 = vst [vmem:[#allocation3 + $0x108] sm:$0xff] %v1100
    %1283 = vst [vmem:[#allocation3 + $0x110] sm:$0xff] %v1211
    %1284 = vst [vmem:[#allocation3 + $0x118] sm:$0xff] %v1213
    %1285 = vst [vmem:[#allocation3 + $0x120] sm:$0xff] %v1102
    %1286 = vst [vmem:[#allocation3 + $0x128] sm:$0xff] %v1104
    %1287 = vst [vmem:[#allocation3 + $0x130] sm:$0xff] %v1215
    %1288 = vst [vmem:[#allocation3 + $0x138] sm:$0xff] %v1217
    %1289 = vst [vmem:[#allocation3 + $0x140] sm:$0xff] %v1108
    %1290 = vst [vmem:[#allocation3 + $0x148] sm:$0xff] %v1110
    %1291 = vst [vmem:[#allocation3 + $0x150] sm:$0xff] %v1221
    %1292 = vst [vmem:[#allocation3 + $0x158] sm:$0xff] %v1223
    %1293 = vst [vmem:[#allocation3 + $0x160] sm:$0xff] %v1112
    %1294 = vst [vmem:[#allocation3 + $0x168] sm:$0xff] %v1114
    %1295 = vst [vmem:[#allocation3 + $0x170] sm:$0xff] %v1225
    %1296 = vst [vmem:[#allocation3 + $0x178] sm:$0xff] %v1227
    %1297 = vst [vmem:[#allocation3 + $0x180] sm:$0xff] %v1118
    %1298 = vst [vmem:[#allocation3 + $0x188] sm:$0xff] %v1120
    %1299 = vst [vmem:[#allocation3 + $0x190] sm:$0xff] %v1231
    %1300 = vst [vmem:[#allocation3 + $0x198] sm:$0xff] %v1233
    %1301 = vst [vmem:[#allocation3 + $0x1a0] sm:$0xff] %v1122
    %1302 = vst [vmem:[#allocation3 + $0x1a8] sm:$0xff] %v1124
    %1303 = vst [vmem:[#allocation3 + $0x1b0] sm:$0xff] %v1235
    %1304 = vst [vmem:[#allocation3 + $0x1b8] sm:$0xff] %v1237
    %1305 = vst [vmem:[#allocation3 + $0x1c0] sm:$0xff] %v1128
    %1306 = vst [vmem:[#allocation3 + $0x1c8] sm:$0xff] %v1130
    %1307 = vst [vmem:[#allocation3 + $0x1d0] sm:$0xff] %v1241
    %1308 = vst [vmem:[#allocation3 + $0x1d8] sm:$0xff] %v1243
    %1309 = vst [vmem:[#allocation3 + $0x1e0] sm:$0xff] %v1132
    %1310 = vst [vmem:[#allocation3 + $0x1e8] sm:$0xff] %v1134
    %1311 = vst [vmem:[#allocation3 + $0x1f0] sm:$0xff] %v1245
    %1312 = vst [vmem:[#allocation3 + $0x1f8] sm:$0xff] %v1247
    %v1313 = vld [vmem:[#allocation4] sm:$0xff]
    %v1314 = vld [vmem:[#allocation4 + $0x8] sm:$0xff]
    %v1315 = vpack.c.bf16 %v1314, %v1313
    %v1348 = vunpack.c.l.b16 %v163
    %v1349 = vunpack.c.h.b16 %v163
    %v1350 = vunpack.c.l.b16 %v164
    %v1351 = vunpack.c.h.b16 %v164
    %v1352 = vunpack.c.l.b16 %v165
    %v1353 = vunpack.c.h.b16 %v165
    %v1354 = vunpack.c.l.b16 %v166
    %v1355 = vunpack.c.h.b16 %v166
    %v1356 = vunpack.c.l.b16 %v167
    %v1357 = vunpack.c.h.b16 %v167
    %v1358 = vunpack.c.l.b16 %v168
    %v1359 = vunpack.c.h.b16 %v168
    %v1360 = vunpack.c.l.b16 %v169
    %v1361 = vunpack.c.h.b16 %v169
    %v1362 = vunpack.c.l.b16 %v170
    %v1363 = vunpack.c.h.b16 %v170
    %v1364 = vunpack.c.l.b16 %v171
    %v1365 = vunpack.c.h.b16 %v171
    %v1366 = vunpack.c.l.b16 %v172
    %v1367 = vunpack.c.h.b16 %v172
    %v1368 = vunpack.c.l.b16 %v173
    %v1369 = vunpack.c.h.b16 %v173
    %v1370 = vunpack.c.l.b16 %v174
    %v1371 = vunpack.c.h.b16 %v174
    %v1372 = vunpack.c.l.b16 %v175
    %v1373 = vunpack.c.h.b16 %v175
    %v1374 = vunpack.c.l.b16 %v176
    %v1375 = vunpack.c.h.b16 %v176
    %v1376 = vunpack.c.l.b16 %v177
    %v1377 = vunpack.c.h.b16 %v177
    %v1378 = vunpack.c.l.b16 %v178
    %v1379 = vunpack.c.h.b16 %v178
    %v1380 = vunpack.c.l.b16 %v179
    %v1381 = vunpack.c.h.b16 %v179
    %v1382 = vunpack.c.l.b16 %v180
    %v1383 = vunpack.c.h.b16 %v180
    %v1384 = vunpack.c.l.b16 %v181
    %v1385 = vunpack.c.h.b16 %v181
    %v1386 = vunpack.c.l.b16 %v182
    %v1387 = vunpack.c.h.b16 %v182
    %v1388 = vunpack.c.l.b16 %v183
    %v1389 = vunpack.c.h.b16 %v183
    %v1390 = vunpack.c.l.b16 %v184
    %v1391 = vunpack.c.h.b16 %v184
    %v1392 = vunpack.c.l.b16 %v185
    %v1393 = vunpack.c.h.b16 %v185
    %v1394 = vunpack.c.l.b16 %v186
    %v1395 = vunpack.c.h.b16 %v186
    %v1396 = vunpack.c.l.b16 %v187
    %v1397 = vunpack.c.h.b16 %v187
    %v1398 = vunpack.c.l.b16 %v188
    %v1399 = vunpack.c.h.b16 %v188
    %v1400 = vunpack.c.l.b16 %v189
    %v1401 = vunpack.c.h.b16 %v189
    %v1402 = vunpack.c.l.b16 %v190
    %v1403 = vunpack.c.h.b16 %v190
    %v1404 = vunpack.c.l.b16 %v191
    %v1405 = vunpack.c.h.b16 %v191
    %v1406 = vunpack.c.l.b16 %v192
    %v1407 = vunpack.c.h.b16 %v192
    %v1408 = vunpack.c.l.b16 %v193
    %v1409 = vunpack.c.h.b16 %v193
    %v1410 = vunpack.c.l.b16 %v194
    %v1411 = vunpack.c.h.b16 %v194
    %v1412 = vpack.c.b16 %v1352, %v1348
    %v1413 = vpack.c.b16 %v1353, %v1349
    %v1414 = vpack.c.b16 %v1354, %v1350
    %v1415 = vpack.c.b16 %v1355, %v1351
    %v1416 = vpack.c.b16 %v1360, %v1356
    %v1417 = vpack.c.b16 %v1361, %v1357
    %v1418 = vpack.c.b16 %v1362, %v1358
    %v1419 = vpack.c.b16 %v1363, %v1359
    %v1420 = vpack.c.b16 %v1368, %v1364
    %v1421 = vpack.c.b16 %v1369, %v1365
    %v1422 = vpack.c.b16 %v1370, %v1366
    %v1423 = vpack.c.b16 %v1371, %v1367
    %v1424 = vpack.c.b16 %v1376, %v1372
    %v1425 = vpack.c.b16 %v1377, %v1373
    %v1426 = vpack.c.b16 %v1378, %v1374
    %v1427 = vpack.c.b16 %v1379, %v1375
    %v1428 = vpack.c.b16 %v1384, %v1380
    %v1429 = vpack.c.b16 %v1385, %v1381
    %v1430 = vpack.c.b16 %v1386, %v1382
    %v1431 = vpack.c.b16 %v1387, %v1383
    %v1432 = vpack.c.b16 %v1392, %v1388
    %v1433 = vpack.c.b16 %v1393, %v1389
    %v1434 = vpack.c.b16 %v1394, %v1390
    %v1435 = vpack.c.b16 %v1395, %v1391
    %v1436 = vpack.c.b16 %v1400, %v1396
    %v1437 = vpack.c.b16 %v1401, %v1397
    %v1438 = vpack.c.b16 %v1402, %v1398
    %v1439 = vpack.c.b16 %v1403, %v1399
    %v1440 = vpack.c.b16 %v1408, %v1404
    %v1441 = vpack.c.b16 %v1409, %v1405
    %v1442 = vpack.c.b16 %v1410, %v1406
    %v1443 = vpack.c.b16 %v1411, %v1407
    %1476 = vmatprep.subr.bf16.mxu0 %v1413
    %1477 = vmatpush1.bf16.msra.mxu0 %v1412
    %1478 = vmatprep.subr.bf16.mxu0 %v1417
    %1479 = vmatpush1.bf16.msra.mxu0 %v1416
    %1480 = vmatprep.subr.bf16.mxu0 %v1421
    %1481 = vmatpush1.bf16.msra.mxu0 %v1420
    %1482 = vmatprep.subr.bf16.mxu0 %v1425
    %1483 = vmatpush1.bf16.msra.mxu0 %v1424
    %1484 = vmatprep.subr.bf16.mxu0 %v1429
    %1485 = vmatpush1.bf16.msra.mxu0 %v1428
    %1486 = vmatprep.subr.bf16.mxu0 %v1433
    %1487 = vmatpush1.bf16.msra.mxu0 %v1432
    %1488 = vmatprep.subr.bf16.mxu0 %v1437
    %1489 = vmatpush1.bf16.msra.mxu0 %v1436
    %1490 = vmatprep.subr.bf16.mxu0 %v1441
    %1491 = vmatpush1.bf16.msra.mxu0 %v1440
    %1492 = vmatprep.subr.bf16.mxu0 0
    %1493 = vmatpush1.bf16.msra.mxu0 0
    %1494 = vmatprep.subr.bf16.mxu0 0
    %1495 = vmatpush1.bf16.msra.mxu0 0
    %1496 = vmatprep.subr.bf16.mxu0 0
    %1497 = vmatpush1.bf16.msra.mxu0 0
    %1498 = vmatprep.subr.bf16.mxu0 0
    %1499 = vmatpush1.bf16.msra.mxu0 0
    %1500 = vmatprep.subr.bf16.mxu0 0
    %1501 = vmatpush1.bf16.msra.mxu0 0
    %1502 = vmatprep.subr.bf16.mxu0 0
    %1503 = vmatpush1.bf16.msra.mxu0 0
    %1504 = vmatprep.subr.bf16.mxu0 0
    %1505 = vmatpush1.bf16.msra.mxu0 0
    %1506 = vmatprep.subr.bf16.mxu0 0
    %1507 = vmatpush1.bf16.msra.mxu0 0
    %1508 = vmatprep.mubr.bf16.mxu0 0
    %1509 = vmatmul.mubr.bf16.gmra.mrb[0].mxu0 %v1315
    %v1510 = vpop.f32.mrb[0].mxu0
    %v1511 = vadd.f32 0.0, %v1510
    %v1512 = vpop.f32.mrb[0].mxu0
    %v1513 = vadd.f32 0.0, %v1512
    %v1514 = vpop.f32.mrb[0].mxu0
    %v1515 = vadd.f32 0.0, %v1514
    %v1516 = vpop.f32.mrb[0].mxu0
    %v1517 = vadd.f32 0.0, %v1516
    %1518 = vdwg.mxu0
    %1519 = vmatprep.subr.bf16.mxu0 %v1415
    %1520 = vmatpush1.bf16.msra.mxu0 %v1414
    %1521 = vmatprep.subr.bf16.mxu0 %v1419
    %1522 = vmatpush1.bf16.msra.mxu0 %v1418
    %1523 = vmatprep.subr.bf16.mxu0 %v1423
    %1524 = vmatpush1.bf16.msra.mxu0 %v1422
    %1525 = vmatprep.subr.bf16.mxu0 %v1427
    %1526 = vmatpush1.bf16.msra.mxu0 %v1426
    %1527 = vmatprep.subr.bf16.mxu0 %v1431
    %1528 = vmatpush1.bf16.msra.mxu0 %v1430
    %1529 = vmatprep.subr.bf16.mxu0 %v1435
    %1530 = vmatpush1.bf16.msra.mxu0 %v1434
    %1531 = vmatprep.subr.bf16.mxu0 %v1439
    %1532 = vmatpush1.bf16.msra.mxu0 %v1438
    %1533 = vmatprep.subr.bf16.mxu0 %v1443
    %1534 = vmatpush1.bf16.msra.mxu0 %v1442
    %1535 = vmatprep.subr.bf16.mxu0 0
    %1536 = vmatpush1.bf16.msra.mxu0 0
    %1537 = vmatprep.subr.bf16.mxu0 0
    %1538 = vmatpush1.bf16.msra.mxu0 0
    %1539 = vmatprep.subr.bf16.mxu0 0
    %1540 = vmatpush1.bf16.msra.mxu0 0
    %1541 = vmatprep.subr.bf16.mxu0 0
    %1542 = vmatpush1.bf16.msra.mxu0 0
    %1543 = vmatprep.subr.bf16.mxu0 0
    %1544 = vmatpush1.bf16.msra.mxu0 0
    %1545 = vmatprep.subr.bf16.mxu0 0
    %1546 = vmatpush1.bf16.msra.mxu0 0
    %1547 = vmatprep.subr.bf16.mxu0 0
    %1548 = vmatpush1.bf16.msra.mxu0 0
    %1549 = vmatprep.subr.bf16.mxu0 0
    %1550 = vmatpush1.bf16.msra.mxu0 0
    %1551 = vmatprep.mubr.bf16.mxu0 0
    %1552 = vmatmul.mubr.bf16.gmra.mrb[0].mxu0 %v1315
    %v1553 = vpop.f32.mrb[0].mxu0
    %v1554 = vadd.f32 0.0, %v1553
    %v1555 = vpop.f32.mrb[0].mxu0
    %v1556 = vadd.f32 0.0, %v1555
    %v1557 = vpop.f32.mrb[0].mxu0
    %v1558 = vadd.f32 0.0, %v1557
    %v1559 = vpop.f32.mrb[0].mxu0
    %v1560 = vadd.f32 0.0, %v1559
    %1561 = vdwg.mxu0
    %v1562 = vld [vmem:[#allocation2] sm:$0xff]
    %v1563 = vld [vmem:[#allocation2 + $0x8] sm:$0xff]
    %v1564 = vld [vmem:[#allocation2 + $0x10] sm:$0xff]
    %v1565 = vld [vmem:[#allocation2 + $0x18] sm:$0xff]
    %v1566 = vld [vmem:[#allocation2 + $0x20] sm:$0xff]
    %v1567 = vld [vmem:[#allocation2 + $0x28] sm:$0xff]
    %v1568 = vld [vmem:[#allocation2 + $0x30] sm:$0xff]
    %v1569 = vld [vmem:[#allocation2 + $0x38] sm:$0xff]
    %v1570 = vadd.f32 %v1562, %v1511
    %v1571 = vadd.f32 %v1563, %v1513
    %v1572 = vadd.f32 %v1564, %v1554
    %v1573 = vadd.f32 %v1565, %v1556
    %v1574 = vadd.f32 %v1566, %v1515
    %v1575 = vadd.f32 %v1567, %v1517
    %v1576 = vadd.f32 %v1568, %v1558
    %v1577 = vadd.f32 %v1569, %v1560
    %v1578 = vld [vmem:[#allocation5] sm:$0xff]
    %v1579 = vld [vmem:[#allocation5 + $0x8] sm:$0xff]
    %v1580 = vxor.u32 %v1570, 2147483648
    %v1581 = vxor.u32 %v1574, 2147483648
    %v1582 = vmul.f32 %v1580, 1.442695
    %v1583 = vpow.pop %v1582
    %v1584 = vmul.f32 %v1581, 1.442695
    %v1585 = vpow.pop %v1584
    %v1586 = vadd.f32 %v1583, 1.0
    %v1587 = vadd.f32 %v1585, 1.0
    %v1588 = vrcp.pop %v1586
    %v1589 = vmul.f32 1.0, %v1588
    %v1590 = vrcp.pop %v1587
    %v1591 = vmul.f32 1.0, %v1590
    %v1592 = vxor.u32 %v1571, 2147483648
    %v1593 = vxor.u32 %v1575, 2147483648
    %v1594 = vmul.f32 %v1592, 1.442695
    %v1595 = vpow.pop %v1594
    %v1596 = vmul.f32 %v1593, 1.442695
    %v1597 = vpow.pop %v1596
    %v1598 = vadd.f32 %v1595, 1.0
    %v1599 = vadd.f32 %v1597, 1.0
    %v1600 = vrcp.pop %v1598
    %v1601 = vmul.f32 1.0, %v1600
    %v1602 = vrcp.pop %v1599
    %v1603 = vmul.f32 1.0, %v1602
    %v1604 = vtanh.pop %v1572
    %v1605 = vtanh.pop %v1576
    %v1606 = vxor.u32 %v1573, 2147483648
    %v1607 = vxor.u32 %v1577, 2147483648
    %v1608 = vmul.f32 %v1606, 1.442695
    %v1609 = vpow.pop %v1608
    %v1610 = vmul.f32 %v1607, 1.442695
    %v1611 = vpow.pop %v1610
    %v1612 = vadd.f32 %v1609, 1.0
    %v1613 = vadd.f32 %v1611, 1.0
    %v1614 = vrcp.pop %v1612
    %v1615 = vmul.f32 1.0, %v1614
    %v1616 = vrcp.pop %v1613
    %v1617 = vmul.f32 1.0, %v1616
    %v1618 = vmul.f32 %v1601, %v1578
    %v1619 = vmul.f32 %v1603, %v1579
    %v1620 = vmul.f32 %v1589, %v1604
    %v1621 = vmul.f32 %v1591, %v1605
    %v1622 = vadd.f32 %v1618, %v1620
    %v1623 = vadd.f32 %v1619, %v1621
    %v1624 = vtanh.pop %v1622
    %v1625 = vtanh.pop %v1623
    %v1626 = vmul.f32 %v1615, %v1624
    %v1627 = vmul.f32 %v1617, %v1625
    %vm1628 = vcmp.lt.f32.partialorder 0.0, %v229
    %vm1629 = vcmp.lt.f32.partialorder 0.0, %v230
    %v1630 = vsel %vm1628, 1, 0
    %v1631 = vsel %vm1629, 1, 0
    %1632 = vset.pattern.permute.xlu0 0
    %1633 = vperm.xlu0 %1632, %v1630
    %v1634 = vpop.permute.xlu0 %1633
    %1635 = vset.pattern.permute.xlu0 0
    %1636 = vperm.xlu0 %1635, %v1631
    %v1637 = vpop.permute.xlu0 %1636
    %vm1638 = vcmp.eq.s32.totalorder %v1634, 1
    %vm1639 = vcmp.eq.s32.totalorder %v1637, 1
    %v1640 = vsel %vm1638, %v1622, %v1578
    %v1641 = vsel %vm1639, %v1623, %v1579
    %1642 = vst [vmem:[#allocation5] sm:$0xff] %v1640
    %1643 = vst [vmem:[#allocation5 + $0x8] sm:$0xff] %v1641
    %v1644 = vld [vmem:[#allocation4] sm:$0xff]
    %v1645 = vld [vmem:[#allocation4 + $0x8] sm:$0xff]
    %v1646 = vsel %vm1638, %v1626, %v1644
    %v1647 = vsel %vm1639, %v1627, %v1645
    %1648 = vst [vmem:[#allocation4] sm:$0xff] %v1646
    %1649 = vst [vmem:[#allocation4 + $0x8] sm:$0xff] %v1647
    %v1650 = vld [vmem:[#allocation8] sm:$0xff]
    %v1651 = vld [vmem:[#allocation8 + $0x8] sm:$0xff]
    %v1652 = vsel %vm1638, %v1626, 0.0
    %v1653 = vsel %vm1639, %v1627, 0.0
    %v1654 = vmax.f32 %v1650, %v1652
    %v1655 = vmax.f32 %v1651, %v1653
    %1656 = vst [vmem:[#allocation8] sm:$0xff] %v1654
    %1657 = vst [vmem:[#allocation8 + $0x8] sm:$0xff] %v1655
    %v1658 = vld [vmem:[#allocation6] sm:$0xff]
    %v1659 = vld [vmem:[#allocation6 + $0x8] sm:$0xff]
    %v1660 = vpack.c.bf16 %v1659, %v1658
    %v1693 = vunpack.c.l.b16 %v195
    %v1694 = vunpack.c.h.b16 %v195
    %v1695 = vunpack.c.l.b16 %v196
    %v1696 = vunpack.c.h.b16 %v196
    %v1697 = vunpack.c.l.b16 %v197
    %v1698 = vunpack.c.h.b16 %v197
    %v1699 = vunpack.c.l.b16 %v198
    %v1700 = vunpack.c.h.b16 %v198
    %v1701 = vunpack.c.l.b16 %v199
    %v1702 = vunpack.c.h.b16 %v199
    %v1703 = vunpack.c.l.b16 %v200
    %v1704 = vunpack.c.h.b16 %v200
    %v1705 = vunpack.c.l.b16 %v201
    %v1706 = vunpack.c.h.b16 %v201
    %v1707 = vunpack.c.l.b16 %v202
    %v1708 = vunpack.c.h.b16 %v202
    %v1709 = vunpack.c.l.b16 %v203
    %v1710 = vunpack.c.h.b16 %v203
    %v1711 = vunpack.c.l.b16 %v204
    %v1712 = vunpack.c.h.b16 %v204
    %v1713 = vunpack.c.l.b16 %v205
    %v1714 = vunpack.c.h.b16 %v205
    %v1715 = vunpack.c.l.b16 %v206
    %v1716 = vunpack.c.h.b16 %v206
    %v1717 = vunpack.c.l.b16 %v207
    %v1718 = vunpack.c.h.b16 %v207
    %v1719 = vunpack.c.l.b16 %v208
    %v1720 = vunpack.c.h.b16 %v208
    %v1721 = vunpack.c.l.b16 %v209
    %v1722 = vunpack.c.h.b16 %v209
    %v1723 = vunpack.c.l.b16 %v210
    %v1724 = vunpack.c.h.b16 %v210
    %v1725 = vunpack.c.l.b16 %v211
    %v1726 = vunpack.c.h.b16 %v211
    %v1727 = vunpack.c.l.b16 %v212
    %v1728 = vunpack.c.h.b16 %v212
    %v1729 = vunpack.c.l.b16 %v213
    %v1730 = vunpack.c.h.b16 %v213
    %v1731 = vunpack.c.l.b16 %v214
    %v1732 = vunpack.c.h.b16 %v214
    %v1733 = vunpack.c.l.b16 %v215
    %v1734 = vunpack.c.h.b16 %v215
    %v1735 = vunpack.c.l.b16 %v216
    %v1736 = vunpack.c.h.b16 %v216
    %v1737 = vunpack.c.l.b16 %v217
    %v1738 = vunpack.c.h.b16 %v217
    %v1739 = vunpack.c.l.b16 %v218
    %v1740 = vunpack.c.h.b16 %v218
    %v1741 = vunpack.c.l.b16 %v219
    %v1742 = vunpack.c.h.b16 %v219
    %v1743 = vunpack.c.l.b16 %v220
    %v1744 = vunpack.c.h.b16 %v220
    %v1745 = vunpack.c.l.b16 %v221
    %v1746 = vunpack.c.h.b16 %v221
    %v1747 = vunpack.c.l.b16 %v222
    %v1748 = vunpack.c.h.b16 %v222
    %v1749 = vunpack.c.l.b16 %v223
    %v1750 = vunpack.c.h.b16 %v223
    %v1751 = vunpack.c.l.b16 %v224
    %v1752 = vunpack.c.h.b16 %v224
    %v1753 = vunpack.c.l.b16 %v225
    %v1754 = vunpack.c.h.b16 %v225
    %v1755 = vunpack.c.l.b16 %v226
    %v1756 = vunpack.c.h.b16 %v226
    %v1757 = vpack.c.b16 %v1697, %v1693
    %v1758 = vpack.c.b16 %v1698, %v1694
    %v1759 = vpack.c.b16 %v1699, %v1695
    %v1760 = vpack.c.b16 %v1700, %v1696
    %v1761 = vpack.c.b16 %v1705, %v1701
    %v1762 = vpack.c.b16 %v1706, %v1702
    %v1763 = vpack.c.b16 %v1707, %v1703
    %v1764 = vpack.c.b16 %v1708, %v1704
    %v1765 = vpack.c.b16 %v1713, %v1709
    %v1766 = vpack.c.b16 %v1714, %v1710
    %v1767 = vpack.c.b16 %v1715, %v1711
    %v1768 = vpack.c.b16 %v1716, %v1712
    %v1769 = vpack.c.b16 %v1721, %v1717
    %v1770 = vpack.c.b16 %v1722, %v1718
    %v1771 = vpack.c.b16 %v1723, %v1719
    %v1772 = vpack.c.b16 %v1724, %v1720
    %v1773 = vpack.c.b16 %v1729, %v1725
    %v1774 = vpack.c.b16 %v1730, %v1726
    %v1775 = vpack.c.b16 %v1731, %v1727
    %v1776 = vpack.c.b16 %v1732, %v1728
    %v1777 = vpack.c.b16 %v1737, %v1733
    %v1778 = vpack.c.b16 %v1738, %v1734
    %v1779 = vpack.c.b16 %v1739, %v1735
    %v1780 = vpack.c.b16 %v1740, %v1736
    %v1781 = vpack.c.b16 %v1745, %v1741
    %v1782 = vpack.c.b16 %v1746, %v1742
    %v1783 = vpack.c.b16 %v1747, %v1743
    %v1784 = vpack.c.b16 %v1748, %v1744
    %v1785 = vpack.c.b16 %v1753, %v1749
    %v1786 = vpack.c.b16 %v1754, %v1750
    %v1787 = vpack.c.b16 %v1755, %v1751
    %v1788 = vpack.c.b16 %v1756, %v1752
    %1821 = vmatprep.subr.bf16.mxu0 %v1758
    %1822 = vmatpush1.bf16.msra.mxu0 %v1757
    %1823 = vmatprep.subr.bf16.mxu0 %v1762
    %1824 = vmatpush1.bf16.msra.mxu0 %v1761
    %1825 = vmatprep.subr.bf16.mxu0 %v1766
    %1826 = vmatpush1.bf16.msra.mxu0 %v1765
    %1827 = vmatprep.subr.bf16.mxu0 %v1770
    %1828 = vmatpush1.bf16.msra.mxu0 %v1769
    %1829 = vmatprep.subr.bf16.mxu0 %v1774
    %1830 = vmatpush1.bf16.msra.mxu0 %v1773
    %1831 = vmatprep.subr.bf16.mxu0 %v1778
    %1832 = vmatpush1.bf16.msra.mxu0 %v1777
    %1833 = vmatprep.subr.bf16.mxu0 %v1782
    %1834 = vmatpush1.bf16.msra.mxu0 %v1781
    %1835 = vmatprep.subr.bf16.mxu0 %v1786
    %1836 = vmatpush1.bf16.msra.mxu0 %v1785
    %1837 = vmatprep.subr.bf16.mxu0 0
    %1838 = vmatpush1.bf16.msra.mxu0 0
    %1839 = vmatprep.subr.bf16.mxu0 0
    %1840 = vmatpush1.bf16.msra.mxu0 0
    %1841 = vmatprep.subr.bf16.mxu0 0
    %1842 = vmatpush1.bf16.msra.mxu0 0
    %1843 = vmatprep.subr.bf16.mxu0 0
    %1844 = vmatpush1.bf16.msra.mxu0 0
    %1845 = vmatprep.subr.bf16.mxu0 0
    %1846 = vmatpush1.bf16.msra.mxu0 0
    %1847 = vmatprep.subr.bf16.mxu0 0
    %1848 = vmatpush1.bf16.msra.mxu0 0
    %1849 = vmatprep.subr.bf16.mxu0 0
    %1850 = vmatpush1.bf16.msra.mxu0 0
    %1851 = vmatprep.subr.bf16.mxu0 0
    %1852 = vmatpush1.bf16.msra.mxu0 0
    %1853 = vmatprep.mubr.bf16.mxu0 0
    %1854 = vmatmul.mubr.bf16.gmra.mrb[0].mxu0 %v1660
    %v1855 = vpop.f32.mrb[0].mxu0
    %v1856 = vadd.f32 0.0, %v1855
    %v1857 = vpop.f32.mrb[0].mxu0
    %v1858 = vadd.f32 0.0, %v1857
    %v1859 = vpop.f32.mrb[0].mxu0
    %v1860 = vadd.f32 0.0, %v1859
    %v1861 = vpop.f32.mrb[0].mxu0
    %v1862 = vadd.f32 0.0, %v1861
    %1863 = vdwg.mxu0
    %1864 = vmatprep.subr.bf16.mxu0 %v1760
    %1865 = vmatpush1.bf16.msra.mxu0 %v1759
    %1866 = vmatprep.subr.bf16.mxu0 %v1764
    %1867 = vmatpush1.bf16.msra.mxu0 %v1763
    %1868 = vmatprep.subr.bf16.mxu0 %v1768
    %1869 = vmatpush1.bf16.msra.mxu0 %v1767
    %1870 = vmatprep.subr.bf16.mxu0 %v1772
    %1871 = vmatpush1.bf16.msra.mxu0 %v1771
    %1872 = vmatprep.subr.bf16.mxu0 %v1776
    %1873 = vmatpush1.bf16.msra.mxu0 %v1775
    %1874 = vmatprep.subr.bf16.mxu0 %v1780
    %1875 = vmatpush1.bf16.msra.mxu0 %v1779
    %1876 = vmatprep.subr.bf16.mxu0 %v1784
    %1877 = vmatpush1.bf16.msra.mxu0 %v1783
    %1878 = vmatprep.subr.bf16.mxu0 %v1788
    %1879 = vmatpush1.bf16.msra.mxu0 %v1787
    %1880 = vmatprep.subr.bf16.mxu0 0
    %1881 = vmatpush1.bf16.msra.mxu0 0
    %1882 = vmatprep.subr.bf16.mxu0 0
    %1883 = vmatpush1.bf16.msra.mxu0 0
    %1884 = vmatprep.subr.bf16.mxu0 0
    %1885 = vmatpush1.bf16.msra.mxu0 0
    %1886 = vmatprep.subr.bf16.mxu0 0
    %1887 = vmatpush1.bf16.msra.mxu0 0
    %1888 = vmatprep.subr.bf16.mxu0 0
    %1889 = vmatpush1.bf16.msra.mxu0 0
    %1890 = vmatprep.subr.bf16.mxu0 0
    %1891 = vmatpush1.bf16.msra.mxu0 0
    %1892 = vmatprep.subr.bf16.mxu0 0
    %1893 = vmatpush1.bf16.msra.mxu0 0
    %1894 = vmatprep.subr.bf16.mxu0 0
    %1895 = vmatpush1.bf16.msra.mxu0 0
    %1896 = vmatprep.mubr.bf16.mxu0 0
    %1897 = vmatmul.mubr.bf16.gmra.mrb[0].mxu0 %v1660
    %v1898 = vpop.f32.mrb[0].mxu0
    %v1899 = vadd.f32 0.0, %v1898
    %v1900 = vpop.f32.mrb[0].mxu0
    %v1901 = vadd.f32 0.0, %v1900
    %v1902 = vpop.f32.mrb[0].mxu0
    %v1903 = vadd.f32 0.0, %v1902
    %v1904 = vpop.f32.mrb[0].mxu0
    %v1905 = vadd.f32 0.0, %v1904
    %1906 = vdwg.mxu0
    %s1907 = scalar_lea.vmem [#allocation3], 448
    %v1908 = vld [vmem:[%s1907] sm:$0xff]
    %v1909 = vld [vmem:[%s1907 + $0x8] sm:$0xff]
    %v1910 = vld [vmem:[%s1907 + $0x10] sm:$0xff]
    %v1911 = vld [vmem:[%s1907 + $0x18] sm:$0xff]
    %v1912 = vld [vmem:[%s1907 + $0x20] sm:$0xff]
    %v1913 = vld [vmem:[%s1907 + $0x28] sm:$0xff]
    %v1914 = vld [vmem:[%s1907 + $0x30] sm:$0xff]
    %v1915 = vld [vmem:[%s1907 + $0x38] sm:$0xff]
    %v1916 = vadd.f32 %v1908, %v1856
    %v1917 = vadd.f32 %v1909, %v1858
    %v1918 = vadd.f32 %v1910, %v1899
    %v1919 = vadd.f32 %v1911, %v1901
    %v1920 = vadd.f32 %v1912, %v1860
    %v1921 = vadd.f32 %v1913, %v1862
    %v1922 = vadd.f32 %v1914, %v1903
    %v1923 = vadd.f32 %v1915, %v1905
    %v1924 = vld [vmem:[#allocation7] sm:$0xff]
    %v1925 = vld [vmem:[#allocation7 + $0x8] sm:$0xff]
    %v1926 = vxor.u32 %v1916, 2147483648
    %v1927 = vxor.u32 %v1920, 2147483648
    %v1928 = vmul.f32 %v1926, 1.442695
    %v1929 = vpow.pop %v1928
    %v1930 = vmul.f32 %v1927, 1.442695
    %v1931 = vpow.pop %v1930
    %v1932 = vadd.f32 %v1929, 1.0
    %v1933 = vadd.f32 %v1931, 1.0
    %v1934 = vrcp.pop %v1932
    %v1935 = vmul.f32 1.0, %v1934
    %v1936 = vrcp.pop %v1933
    %v1937 = vmul.f32 1.0, %v1936
    %v1938 = vxor.u32 %v1917, 2147483648
    %v1939 = vxor.u32 %v1921, 2147483648
    %v1940 = vmul.f32 %v1938, 1.442695
    %v1941 = vpow.pop %v1940
    %v1942 = vmul.f32 %v1939, 1.442695
    %v1943 = vpow.pop %v1942
    %v1944 = vadd.f32 %v1941, 1.0
    %v1945 = vadd.f32 %v1943, 1.0
    %v1946 = vrcp.pop %v1944
    %v1947 = vmul.f32 1.0, %v1946
    %v1948 = vrcp.pop %v1945
    %v1949 = vmul.f32 1.0, %v1948
    %v1950 = vtanh.pop %v1918
    %v1951 = vtanh.pop %v1922
    %v1952 = vxor.u32 %v1919, 2147483648
    %v1953 = vxor.u32 %v1923, 2147483648
    %v1954 = vmul.f32 %v1952, 1.442695
    %v1955 = vpow.pop %v1954
    %v1956 = vmul.f32 %v1953, 1.442695
    %v1957 = vpow.pop %v1956
    %v1958 = vadd.f32 %v1955, 1.0
    %v1959 = vadd.f32 %v1957, 1.0
    %v1960 = vrcp.pop %v1958
    %v1961 = vmul.f32 1.0, %v1960
    %v1962 = vrcp.pop %v1959
    %v1963 = vmul.f32 1.0, %v1962
    %v1964 = vmul.f32 %v1947, %v1924
    %v1965 = vmul.f32 %v1949, %v1925
    %v1966 = vmul.f32 %v1935, %v1950
    %v1967 = vmul.f32 %v1937, %v1951
    %v1968 = vadd.f32 %v1964, %v1966
    %v1969 = vadd.f32 %v1965, %v1967
    %v1970 = vtanh.pop %v1968
    %v1971 = vtanh.pop %v1969
    %v1972 = vmul.f32 %v1961, %v1970
    %v1973 = vmul.f32 %v1963, %v1971
    %vm1974 = vcmp.lt.f32.partialorder 7.0, %v229
    %vm1975 = vcmp.lt.f32.partialorder 7.0, %v230
    %v1976 = vsel %vm1974, 1, 0
    %v1977 = vsel %vm1975, 1, 0
    %1978 = vset.pattern.permute.xlu0 0
    %1979 = vperm.xlu0 %1978, %v1976
    %v1980 = vpop.permute.xlu0 %1979
    %1981 = vset.pattern.permute.xlu0 0
    %1982 = vperm.xlu0 %1981, %v1977
    %v1983 = vpop.permute.xlu0 %1982
    %vm1984 = vcmp.eq.s32.totalorder %v1980, 1
    %vm1985 = vcmp.eq.s32.totalorder %v1983, 1
    %v1986 = vsel %vm1984, %v1968, %v1924
    %v1987 = vsel %vm1985, %v1969, %v1925
    %1988 = vst [vmem:[#allocation7] sm:$0xff] %v1986
    %1989 = vst [vmem:[#allocation7 + $0x8] sm:$0xff] %v1987
    %v1990 = vld [vmem:[#allocation6] sm:$0xff]
    %v1991 = vld [vmem:[#allocation6 + $0x8] sm:$0xff]
    %v1992 = vsel %vm1984, %v1972, %v1990
    %v1993 = vsel %vm1985, %v1973, %v1991
    %1994 = vst [vmem:[#allocation6] sm:$0xff] %v1992
    %1995 = vst [vmem:[#allocation6 + $0x8] sm:$0xff] %v1993
    %v1996 = vld [vmem:[#allocation9] sm:$0xff]
    %v1997 = vld [vmem:[#allocation9 + $0x8] sm:$0xff]
    %v1998 = vsel %vm1984, %v1972, 0.0
    %v1999 = vsel %vm1985, %v1973, 0.0
    %v2000 = vmax.f32 %v1996, %v1998
    %v2001 = vmax.f32 %v1997, %v1999
    %2002 = vst [vmem:[#allocation9] sm:$0xff] %v2000
    %2003 = vst [vmem:[#allocation9 + $0x8] sm:$0xff] %v2001
    %v2004 = vld [vmem:[#allocation4] sm:$0xff]
    %v2005 = vld [vmem:[#allocation4 + $0x8] sm:$0xff]
    %v2006 = vpack.c.bf16 %v2005, %v2004
    %2007 = vmatprep.subr.bf16.mxu0 %v1413
    %2008 = vmatpush1.bf16.msra.mxu0 %v1412
    %2009 = vmatprep.subr.bf16.mxu0 %v1417
    %2010 = vmatpush1.bf16.msra.mxu0 %v1416
    %2011 = vmatprep.subr.bf16.mxu0 %v1421
    %2012 = vmatpush1.bf16.msra.mxu0 %v1420
    %2013 = vmatprep.subr.bf16.mxu0 %v1425
    %2014 = vmatpush1.bf16.msra.mxu0 %v1424
    %2015 = vmatprep.subr.bf16.mxu0 %v1429
    %2016 = vmatpush1.bf16.msra.mxu0 %v1428
    %2017 = vmatprep.subr.bf16.mxu0 %v1433
    %2018 = vmatpush1.bf16.msra.mxu0 %v1432
    %2019 = vmatprep.subr.bf16.mxu0 %v1437
    %2020 = vmatpush1.bf16.msra.mxu0 %v1436
    %2021 = vmatprep.subr.bf16.mxu0 %v1441
    %2022 = vmatpush1.bf16.msra.mxu0 %v1440
    %2023 = vmatprep.subr.bf16.mxu0 0
    %2024 = vmatpush1.bf16.msra.mxu0 0
    %2025 = vmatprep.subr.bf16.mxu0 0
    %2026 = vmatpush1.bf16.msra.mxu0 0
    %2027 = vmatprep.subr.bf16.mxu0 0
    %2028 = vmatpush1.bf16.msra.mxu0 0
    %2029 = vmatprep.subr.bf16.mxu0 0
    %2030 = vmatpush1.bf16.msra.mxu0 0
    %2031 = vmatprep.subr.bf16.mxu0 0
    %2032 = vmatpush1.bf16.msra.mxu0 0
    %2033 = vmatprep.subr.bf16.mxu0 0
    %2034 = vmatpush1.bf16.msra.mxu0 0
    %2035 = vmatprep.subr.bf16.mxu0 0
    %2036 = vmatpush1.bf16.msra.mxu0 0
    %2037 = vmatprep.subr.bf16.mxu0 0
    %2038 = vmatpush1.bf16.msra.mxu0 0
    %2039 = vmatprep.mubr.bf16.mxu0 0
    %2040 = vmatmul.mubr.bf16.gmra.mrb[0].mxu0 %v2006
    %v2041 = vpop.f32.mrb[0].mxu0
    %v2042 = vadd.f32 0.0, %v2041
    %v2043 = vpop.f32.mrb[0].mxu0
    %v2044 = vadd.f32 0.0, %v2043
    %v2045 = vpop.f32.mrb[0].mxu0
    %v2046 = vadd.f32 0.0, %v2045
    %v2047 = vpop.f32.mrb[0].mxu0
    %v2048 = vadd.f32 0.0, %v2047
    %2049 = vdwg.mxu0
    %2050 = vmatprep.subr.bf16.mxu0 %v1415
    %2051 = vmatpush1.bf16.msra.mxu0 %v1414
    %2052 = vmatprep.subr.bf16.mxu0 %v1419
    %2053 = vmatpush1.bf16.msra.mxu0 %v1418
    %2054 = vmatprep.subr.bf16.mxu0 %v1423
    %2055 = vmatpush1.bf16.msra.mxu0 %v1422
    %2056 = vmatprep.subr.bf16.mxu0 %v1427
    %2057 = vmatpush1.bf16.msra.mxu0 %v1426
    %2058 = vmatprep.subr.bf16.mxu0 %v1431
    %2059 = vmatpush1.bf16.msra.mxu0 %v1430
    %2060 = vmatprep.subr.bf16.mxu0 %v1435
    %2061 = vmatpush1.bf16.msra.mxu0 %v1434
    %2062 = vmatprep.subr.bf16.mxu0 %v1439
    %2063 = vmatpush1.bf16.msra.mxu0 %v1438
    %2064 = vmatprep.subr.bf16.mxu0 %v1443
    %2065 = vmatpush1.bf16.msra.mxu0 %v1442
    %2066 = vmatprep.subr.bf16.mxu0 0
    %2067 = vmatpush1.bf16.msra.mxu0 0
    %2068 = vmatprep.subr.bf16.mxu0 0
    %2069 = vmatpush1.bf16.msra.mxu0 0
    %2070 = vmatprep.subr.bf16.mxu0 0
    %2071 = vmatpush1.bf16.msra.mxu0 0
    %2072 = vmatprep.subr.bf16.mxu0 0
    %2073 = vmatpush1.bf16.msra.mxu0 0
    %2074 = vmatprep.subr.bf16.mxu0 0
    %2075 = vmatpush1.bf16.msra.mxu0 0
    %2076 = vmatprep.subr.bf16.mxu0 0
    %2077 = vmatpush1.bf16.msra.mxu0 0
    %2078 = vmatprep.subr.bf16.mxu0 0
    %2079 = vmatpush1.bf16.msra.mxu0 0
    %2080 = vmatprep.subr.bf16.mxu0 0
    %2081 = vmatpush1.bf16.msra.mxu0 0
    %2082 = vmatprep.mubr.bf16.mxu0 0
    %2083 = vmatmul.mubr.bf16.gmra.mrb[0].mxu0 %v2006
    %v2084 = vpop.f32.mrb[0].mxu0
    %v2085 = vadd.f32 0.0, %v2084
    %v2086 = vpop.f32.mrb[0].mxu0
    %v2087 = vadd.f32 0.0, %v2086
    %v2088 = vpop.f32.mrb[0].mxu0
    %v2089 = vadd.f32 0.0, %v2088
    %v2090 = vpop.f32.mrb[0].mxu0
    %v2091 = vadd.f32 0.0, %v2090
    %2092 = vdwg.mxu0
    %s2093 = scalar_lea.vmem [#allocation2], 64
    %v2094 = vld [vmem:[%s2093] sm:$0xff]
    %v2095 = vld [vmem:[%s2093 + $0x8] sm:$0xff]
    %v2096 = vld [vmem:[%s2093 + $0x10] sm:$0xff]
    %v2097 = vld [vmem:[%s2093 + $0x18] sm:$0xff]
    %v2098 = vld [vmem:[%s2093 + $0x20] sm:$0xff]
    %v2099 = vld [vmem:[%s2093 + $0x28] sm:$0xff]
    %v2100 = vld [vmem:[%s2093 + $0x30] sm:$0xff]
    %v2101 = vld [vmem:[%s2093 + $0x38] sm:$0xff]
    %v2102 = vadd.f32 %v2094, %v2042
    %v2103 = vadd.f32 %v2095, %v2044
    %v2104 = vadd.f32 %v2096, %v2085
    %v2105 = vadd.f32 %v2097, %v2087
    %v2106 = vadd.f32 %v2098, %v2046
    %v2107 = vadd.f32 %v2099, %v2048
    %v2108 = vadd.f32 %v2100, %v2089
    %v2109 = vadd.f32 %v2101, %v2091
    %v2110 = vld [vmem:[#allocation5] sm:$0xff]
    %v2111 = vld [vmem:[#allocation5 + $0x8] sm:$0xff]
    %v2112 = vxor.u32 %v2102, 2147483648
    %v2113 = vxor.u32 %v2106, 2147483648
    %v2114 = vmul.f32 %v2112, 1.442695
    %v2115 = vpow.pop %v2114
    %v2116 = vmul.f32 %v2113, 1.442695
    %v2117 = vpow.pop %v2116
    %v2118 = vadd.f32 %v2115, 1.0
    %v2119 = vadd.f32 %v2117, 1.0
    %v2120 = vrcp.pop %v2118
    %v2121 = vmul.f32 1.0, %v2120
    %v2122 = vrcp.pop %v2119
    %v2123 = vmul.f32 1.0, %v2122
    %v2124 = vxor.u32 %v2103, 2147483648
    %v2125 = vxor.u32 %v2107, 2147483648
    %v2126 = vmul.f32 %v2124, 1.442695
    %v2127 = vpow.pop %v2126
    %v2128 = vmul.f32 %v2125, 1.442695
    %v2129 = vpow.pop %v2128
    %v2130 = vadd.f32 %v2127, 1.0
    %v2131 = vadd.f32 %v2129, 1.0
    %v2132 = vrcp.pop %v2130
    %v2133 = vmul.f32 1.0, %v2132
    %v2134 = vrcp.pop %v2131
    %v2135 = vmul.f32 1.0, %v2134
    %v2136 = vtanh.pop %v2104
    %v2137 = vtanh.pop %v2108
    %v2138 = vxor.u32 %v2105, 2147483648
    %v2139 = vxor.u32 %v2109, 2147483648
    %v2140 = vmul.f32 %v2138, 1.442695
    %v2141 = vpow.pop %v2140
    %v2142 = vmul.f32 %v2139, 1.442695
    %v2143 = vpow.pop %v2142
    %v2144 = vadd.f32 %v2141, 1.0
    %v2145 = vadd.f32 %v2143, 1.0
    %v2146 = vrcp.pop %v2144
    %v2147 = vmul.f32 1.0, %v2146
    %v2148 = vrcp.pop %v2145
    %v2149 = vmul.f32 1.0, %v2148
    %v2150 = vmul.f32 %v2133, %v2110
    %v2151 = vmul.f32 %v2135, %v2111
    %v2152 = vmul.f32 %v2121, %v2136
    %v2153 = vmul.f32 %v2123, %v2137
    %v2154 = vadd.f32 %v2150, %v2152
    %v2155 = vadd.f32 %v2151, %v2153
    %v2156 = vtanh.pop %v2154
    %v2157 = vtanh.pop %v2155
    %v2158 = vmul.f32 %v2147, %v2156
    %v2159 = vmul.f32 %v2149, %v2157
    %vm2160 = vcmp.lt.f32.partialorder 1.0, %v229
    %vm2161 = vcmp.lt.f32.partialorder 1.0, %v230
    %v2162 = vsel %vm2160, 1, 0
    %v2163 = vsel %vm2161, 1, 0
    %2164 = vset.pattern.permute.xlu0 0
    %2165 = vperm.xlu0 %2164, %v2162
    %v2166 = vpop.permute.xlu0 %2165
    %2167 = vset.pattern.permute.xlu0 0
    %2168 = vperm.xlu0 %2167, %v2163
    %v2169 = vpop.permute.xlu0 %2168
    %vm2170 = vcmp.eq.s32.totalorder %v2166, 1
    %vm2171 = vcmp.eq.s32.totalorder %v2169, 1
    %v2172 = vsel %vm2170, %v2154, %v2110
    %v2173 = vsel %vm2171, %v2155, %v2111
    %2174 = vst [vmem:[#allocation5] sm:$0xff] %v2172
    %2175 = vst [vmem:[#allocation5 + $0x8] sm:$0xff] %v2173
    %v2176 = vld [vmem:[#allocation4] sm:$0xff]
    %v2177 = vld [vmem:[#allocation4 + $0x8] sm:$0xff]
    %v2178 = vsel %vm2170, %v2158, %v2176
    %v2179 = vsel %vm2171, %v2159, %v2177
    %2180 = vst [vmem:[#allocation4] sm:$0xff] %v2178
    %2181 = vst [vmem:[#allocation4 + $0x8] sm:$0xff] %v2179
    %v2182 = vld [vmem:[#allocation8] sm:$0xff]
    %v2183 = vld [vmem:[#allocation8 + $0x8] sm:$0xff]
    %v2184 = vsel %vm2170, %v2158, 0.0
    %v2185 = vsel %vm2171, %v2159, 0.0
    %v2186 = vmax.f32 %v2182, %v2184
    %v2187 = vmax.f32 %v2183, %v2185
    %2188 = vst [vmem:[#allocation8] sm:$0xff] %v2186
    %2189 = vst [vmem:[#allocation8 + $0x8] sm:$0xff] %v2187
    %v2190 = vld [vmem:[#allocation6] sm:$0xff]
    %v2191 = vld [vmem:[#allocation6 + $0x8] sm:$0xff]
    %v2192 = vpack.c.bf16 %v2191, %v2190
    %2193 = vmatprep.subr.bf16.mxu0 %v1758
    %2194 = vmatpush1.bf16.msra.mxu0 %v1757
    %2195 = vmatprep.subr.bf16.mxu0 %v1762
    %2196 = vmatpush1.bf16.msra.mxu0 %v1761
    %2197 = vmatprep.subr.bf16.mxu0 %v1766
    %2198 = vmatpush1.bf16.msra.mxu0 %v1765
    %2199 = vmatprep.subr.bf16.mxu0 %v1770
    %2200 = vmatpush1.bf16.msra.mxu0 %v1769
    %2201 = vmatprep.subr.bf16.mxu0 %v1774
    %2202 = vmatpush1.bf16.msra.mxu0 %v1773
    %2203 = vmatprep.subr.bf16.mxu0 %v1778
    %2204 = vmatpush1.bf16.msra.mxu0 %v1777
    %2205 = vmatprep.subr.bf16.mxu0 %v1782
    %2206 = vmatpush1.bf16.msra.mxu0 %v1781
    %2207 = vmatprep.subr.bf16.mxu0 %v1786
    %2208 = vmatpush1.bf16.msra.mxu0 %v1785
    %2209 = vmatprep.subr.bf16.mxu0 0
    %2210 = vmatpush1.bf16.msra.mxu0 0
    %2211 = vmatprep.subr.bf16.mxu0 0
    %2212 = vmatpush1.bf16.msra.mxu0 0
    %2213 = vmatprep.subr.bf16.mxu0 0
    %2214 = vmatpush1.bf16.msra.mxu0 0
    %2215 = vmatprep.subr.bf16.mxu0 0
    %2216 = vmatpush1.bf16.msra.mxu0 0
    %2217 = vmatprep.subr.bf16.mxu0 0
    %2218 = vmatpush1.bf16.msra.mxu0 0
    %2219 = vmatprep.subr.bf16.mxu0 0
    %2220 = vmatpush1.bf16.msra.mxu0 0
    %2221 = vmatprep.subr.bf16.mxu0 0
    %2222 = vmatpush1.bf16.msra.mxu0 0
    %2223 = vmatprep.subr.bf16.mxu0 0
    %2224 = vmatpush1.bf16.msra.mxu0 0
    %2225 = vmatprep.mubr.bf16.mxu0 0
    %2226 = vmatmul.mubr.bf16.gmra.mrb[0].mxu0 %v2192
    %v2227 = vpop.f32.mrb[0].mxu0
    %v2228 = vadd.f32 0.0, %v2227
    %v2229 = vpop.f32.mrb[0].mxu0
    %v2230 = vadd.f32 0.0, %v2229
    %v2231 = vpop.f32.mrb[0].mxu0
    %v2232 = vadd.f32 0.0, %v2231
    %v2233 = vpop.f32.mrb[0].mxu0
    %v2234 = vadd.f32 0.0, %v2233
    %2235 = vdwg.mxu0
    %2236 = vmatprep.subr.bf16.mxu0 %v1760
    %2237 = vmatpush1.bf16.msra.mxu0 %v1759
    %2238 = vmatprep.subr.bf16.mxu0 %v1764
    %2239 = vmatpush1.bf16.msra.mxu0 %v1763
    %2240 = vmatprep.subr.bf16.mxu0 %v1768
    %2241 = vmatpush1.bf16.msra.mxu0 %v1767
    %2242 = vmatprep.subr.bf16.mxu0 %v1772
    %2243 = vmatpush1.bf16.msra.mxu0 %v1771
    %2244 = vmatprep.subr.bf16.mxu0 %v1776
    %2245 = vmatpush1.bf16.msra.mxu0 %v1775
    %2246 = vmatprep.subr.bf16.mxu0 %v1780
    %2247 = vmatpush1.bf16.msra.mxu0 %v1779
    %2248 = vmatprep.subr.bf16.mxu0 %v1784
    %2249 = vmatpush1.bf16.msra.mxu0 %v1783
    %2250 = vmatprep.subr.bf16.mxu0 %v1788
    %2251 = vmatpush1.bf16.msra.mxu0 %v1787
    %2252 = vmatprep.subr.bf16.mxu0 0
    %2253 = vmatpush1.bf16.msra.mxu0 0
    %2254 = vmatprep.subr.bf16.mxu0 0
    %2255 = vmatpush1.bf16.msra.mxu0 0
    %2256 = vmatprep.subr.bf16.mxu0 0
    %2257 = vmatpush1.bf16.msra.mxu0 0
    %2258 = vmatprep.subr.bf16.mxu0 0
    %2259 = vmatpush1.bf16.msra.mxu0 0
    %2260 = vmatprep.subr.bf16.mxu0 0
    %2261 = vmatpush1.bf16.msra.mxu0 0
    %2262 = vmatprep.subr.bf16.mxu0 0
    %2263 = vmatpush1.bf16.msra.mxu0 0
    %2264 = vmatprep.subr.bf16.mxu0 0
    %2265 = vmatpush1.bf16.msra.mxu0 0
    %2266 = vmatprep.subr.bf16.mxu0 0
    %2267 = vmatpush1.bf16.msra.mxu0 0
    %2268 = vmatprep.mubr.bf16.mxu0 0
    %2269 = vmatmul.mubr.bf16.gmra.mrb[0].mxu0 %v2192
    %v2270 = vpop.f32.mrb[0].mxu0
    %v2271 = vadd.f32 0.0, %v2270
    %v2272 = vpop.f32.mrb[0].mxu0
    %v2273 = vadd.f32 0.0, %v2272
    %v2274 = vpop.f32.mrb[0].mxu0
    %v2275 = vadd.f32 0.0, %v2274
    %v2276 = vpop.f32.mrb[0].mxu0
    %v2277 = vadd.f32 0.0, %v2276
    %2278 = vdwg.mxu0
    %s2279 = scalar_lea.vmem [#allocation3], 384
    %v2280 = vld [vmem:[%s2279] sm:$0xff]
    %v2281 = vld [vmem:[%s2279 + $0x8] sm:$0xff]
    %v2282 = vld [vmem:[%s2279 + $0x10] sm:$0xff]
    %v2283 = vld [vmem:[%s2279 + $0x18] sm:$0xff]
    %v2284 = vld [vmem:[%s2279 + $0x20] sm:$0xff]
    %v2285 = vld [vmem:[%s2279 + $0x28] sm:$0xff]
    %v2286 = vld [vmem:[%s2279 + $0x30] sm:$0xff]
    %v2287 = vld [vmem:[%s2279 + $0x38] sm:$0xff]
    %v2288 = vadd.f32 %v2280, %v2228
    %v2289 = vadd.f32 %v2281, %v2230
    %v2290 = vadd.f32 %v2282, %v2271
    %v2291 = vadd.f32 %v2283, %v2273
    %v2292 = vadd.f32 %v2284, %v2232
    %v2293 = vadd.f32 %v2285, %v2234
    %v2294 = vadd.f32 %v2286, %v2275
    %v2295 = vadd.f32 %v2287, %v2277
    %v2296 = vld [vmem:[#allocation7] sm:$0xff]
    %v2297 = vld [vmem:[#allocation7 + $0x8] sm:$0xff]
    %v2298 = vxor.u32 %v2288, 2147483648
    %v2299 = vxor.u32 %v2292, 2147483648
    %v2300 = vmul.f32 %v2298, 1.442695
    %v2301 = vpow.pop %v2300
    %v2302 = vmul.f32 %v2299, 1.442695
    %v2303 = vpow.pop %v2302
    %v2304 = vadd.f32 %v2301, 1.0
    %v2305 = vadd.f32 %v2303, 1.0
    %v2306 = vrcp.pop %v2304
    %v2307 = vmul.f32 1.0, %v2306
    %v2308 = vrcp.pop %v2305
    %v2309 = vmul.f32 1.0, %v2308
    %v2310 = vxor.u32 %v2289, 2147483648
    %v2311 = vxor.u32 %v2293, 2147483648
    %v2312 = vmul.f32 %v2310, 1.442695
    %v2313 = vpow.pop %v2312
    %v2314 = vmul.f32 %v2311, 1.442695
    %v2315 = vpow.pop %v2314
    %v2316 = vadd.f32 %v2313, 1.0
    %v2317 = vadd.f32 %v2315, 1.0
    %v2318 = vrcp.pop %v2316
    %v2319 = vmul.f32 1.0, %v2318
    %v2320 = vrcp.pop %v2317
    %v2321 = vmul.f32 1.0, %v2320
    %v2322 = vtanh.pop %v2290
    %v2323 = vtanh.pop %v2294
    %v2324 = vxor.u32 %v2291, 2147483648
    %v2325 = vxor.u32 %v2295, 2147483648
    %v2326 = vmul.f32 %v2324, 1.442695
    %v2327 = vpow.pop %v2326
    %v2328 = vmul.f32 %v2325, 1.442695
    %v2329 = vpow.pop %v2328
    %v2330 = vadd.f32 %v2327, 1.0
    %v2331 = vadd.f32 %v2329, 1.0
    %v2332 = vrcp.pop %v2330
    %v2333 = vmul.f32 1.0, %v2332
    %v2334 = vrcp.pop %v2331
    %v2335 = vmul.f32 1.0, %v2334
    %v2336 = vmul.f32 %v2319, %v2296
    %v2337 = vmul.f32 %v2321, %v2297
    %v2338 = vmul.f32 %v2307, %v2322
    %v2339 = vmul.f32 %v2309, %v2323
    %v2340 = vadd.f32 %v2336, %v2338
    %v2341 = vadd.f32 %v2337, %v2339
    %v2342 = vtanh.pop %v2340
    %v2343 = vtanh.pop %v2341
    %v2344 = vmul.f32 %v2333, %v2342
    %v2345 = vmul.f32 %v2335, %v2343
    %vm2346 = vcmp.lt.f32.partialorder 6.0, %v229
    %vm2347 = vcmp.lt.f32.partialorder 6.0, %v230
    %v2348 = vsel %vm2346, 1, 0
    %v2349 = vsel %vm2347, 1, 0
    %2350 = vset.pattern.permute.xlu0 0
    %2351 = vperm.xlu0 %2350, %v2348
    %v2352 = vpop.permute.xlu0 %2351
    %2353 = vset.pattern.permute.xlu0 0
    %2354 = vperm.xlu0 %2353, %v2349
    %v2355 = vpop.permute.xlu0 %2354
    %vm2356 = vcmp.eq.s32.totalorder %v2352, 1
    %vm2357 = vcmp.eq.s32.totalorder %v2355, 1
    %v2358 = vsel %vm2356, %v2340, %v2296
    %v2359 = vsel %vm2357, %v2341, %v2297
    %2360 = vst [vmem:[#allocation7] sm:$0xff] %v2358
    %2361 = vst [vmem:[#allocation7 + $0x8] sm:$0xff] %v2359
    %v2362 = vld [vmem:[#allocation6] sm:$0xff]
    %v2363 = vld [vmem:[#allocation6 + $0x8] sm:$0xff]
    %v2364 = vsel %vm2356, %v2344, %v2362
    %v2365 = vsel %vm2357, %v2345, %v2363
    %2366 = vst [vmem:[#allocation6] sm:$0xff] %v2364
    %2367 = vst [vmem:[#allocation6 + $0x8] sm:$0xff] %v2365
    %v2368 = vld [vmem:[#allocation9] sm:$0xff]
    %v2369 = vld [vmem:[#allocation9 + $0x8] sm:$0xff]
    %v2370 = vsel %vm2356, %v2344, 0.0
    %v2371 = vsel %vm2357, %v2345, 0.0
    %v2372 = vmax.f32 %v2368, %v2370
    %v2373 = vmax.f32 %v2369, %v2371
    %2374 = vst [vmem:[#allocation9] sm:$0xff] %v2372
    %2375 = vst [vmem:[#allocation9 + $0x8] sm:$0xff] %v2373
    %v2376 = vld [vmem:[#allocation4] sm:$0xff]
    %v2377 = vld [vmem:[#allocation4 + $0x8] sm:$0xff]
    %v2378 = vpack.c.bf16 %v2377, %v2376
    %2379 = vmatprep.subr.bf16.mxu0 %v1413
    %2380 = vmatpush1.bf16.msra.mxu0 %v1412
    %2381 = vmatprep.subr.bf16.mxu0 %v1417
    %2382 = vmatpush1.bf16.msra.mxu0 %v1416
    %2383 = vmatprep.subr.bf16.mxu0 %v1421
    %2384 = vmatpush1.bf16.msra.mxu0 %v1420
    %2385 = vmatprep.subr.bf16.mxu0 %v1425
    %2386 = vmatpush1.bf16.msra.mxu0 %v1424
    %2387 = vmatprep.subr.bf16.mxu0 %v1429
    %2388 = vmatpush1.bf16.msra.mxu0 %v1428
    %2389 = vmatprep.subr.bf16.mxu0 %v1433
    %2390 = vmatpush1.bf16.msra.mxu0 %v1432
    %2391 = vmatprep.subr.bf16.mxu0 %v1437
    %2392 = vmatpush1.bf16.msra.mxu0 %v1436
    %2393 = vmatprep.subr.bf16.mxu0 %v1441
    %2394 = vmatpush1.bf16.msra.mxu0 %v1440
    %2395 = vmatprep.subr.bf16.mxu0 0
    %2396 = vmatpush1.bf16.msra.mxu0 0
    %2397 = vmatprep.subr.bf16.mxu0 0
    %2398 = vmatpush1.bf16.msra.mxu0 0
    %2399 = vmatprep.subr.bf16.mxu0 0
    %2400 = vmatpush1.bf16.msra.mxu0 0
    %2401 = vmatprep.subr.bf16.mxu0 0
    %2402 = vmatpush1.bf16.msra.mxu0 0
    %2403 = vmatprep.subr.bf16.mxu0 0
    %2404 = vmatpush1.bf16.msra.mxu0 0
    %2405 = vmatprep.subr.bf16.mxu0 0
    %2406 = vmatpush1.bf16.msra.mxu0 0
    %2407 = vmatprep.subr.bf16.mxu0 0
    %2408 = vmatpush1.bf16.msra.mxu0 0
    %2409 = vmatprep.subr.bf16.mxu0 0
    %2410 = vmatpush1.bf16.msra.mxu0 0
    %2411 = vmatprep.mubr.bf16.mxu0 0
    %2412 = vmatmul.mubr.bf16.gmra.mrb[0].mxu0 %v2378
    %v2413 = vpop.f32.mrb[0].mxu0
    %v2414 = vadd.f32 0.0, %v2413
    %v2415 = vpop.f32.mrb[0].mxu0
    %v2416 = vadd.f32 0.0, %v2415
    %v2417 = vpop.f32.mrb[0].mxu0
    %v2418 = vadd.f32 0.0, %v2417
    %v2419 = vpop.f32.mrb[0].mxu0
    %v2420 = vadd.f32 0.0, %v2419
    %2421 = vdwg.mxu0
    %2422 = vmatprep.subr.bf16.mxu0 %v1415
    %2423 = vmatpush1.bf16.msra.mxu0 %v1414
    %2424 = vmatprep.subr.bf16.mxu0 %v1419
    %2425 = vmatpush1.bf16.msra.mxu0 %v1418
    %2426 = vmatprep.subr.bf16.mxu0 %v1423
    %2427 = vmatpush1.bf16.msra.mxu0 %v1422
    %2428 = vmatprep.subr.bf16.mxu0 %v1427
    %2429 = vmatpush1.bf16.msra.mxu0 %v1426
    %2430 = vmatprep.subr.bf16.mxu0 %v1431
    %2431 = vmatpush1.bf16.msra.mxu0 %v1430
    %2432 = vmatprep.subr.bf16.mxu0 %v1435
    %2433 = vmatpush1.bf16.msra.mxu0 %v1434
    %2434 = vmatprep.subr.bf16.mxu0 %v1439
    %2435 = vmatpush1.bf16.msra.mxu0 %v1438
    %2436 = vmatprep.subr.bf16.mxu0 %v1443
    %2437 = vmatpush1.bf16.msra.mxu0 %v1442
    %2438 = vmatprep.subr.bf16.mxu0 0
    %2439 = vmatpush1.bf16.msra.mxu0 0
    %2440 = vmatprep.subr.bf16.mxu0 0
    %2441 = vmatpush1.bf16.msra.mxu0 0
    %2442 = vmatprep.subr.bf16.mxu0 0
    %2443 = vmatpush1.bf16.msra.mxu0 0
    %2444 = vmatprep.subr.bf16.mxu0 0
    %2445 = vmatpush1.bf16.msra.mxu0 0
    %2446 = vmatprep.subr.bf16.mxu0 0
    %2447 = vmatpush1.bf16.msra.mxu0 0
    %2448 = vmatprep.subr.bf16.mxu0 0
    %2449 = vmatpush1.bf16.msra.mxu0 0
    %2450 = vmatprep.subr.bf16.mxu0 0
    %2451 = vmatpush1.bf16.msra.mxu0 0
    %2452 = vmatprep.subr.bf16.mxu0 0
    %2453 = vmatpush1.bf16.msra.mxu0 0
    %2454 = vmatprep.mubr.bf16.mxu0 0
    %2455 = vmatmul.mubr.bf16.gmra.mrb[0].mxu0 %v2378
    %v2456 = vpop.f32.mrb[0].mxu0
    %v2457 = vadd.f32 0.0, %v2456
    %v2458 = vpop.f32.mrb[0].mxu0
    %v2459 = vadd.f32 0.0, %v2458
    %v2460 = vpop.f32.mrb[0].mxu0
    %v2461 = vadd.f32 0.0, %v2460
    %v2462 = vpop.f32.mrb[0].mxu0
    %v2463 = vadd.f32 0.0, %v2462
    %2464 = vdwg.mxu0
    %s2465 = scalar_lea.vmem [#allocation2], 128
    %v2466 = vld [vmem:[%s2465] sm:$0xff]
    %v2467 = vld [vmem:[%s2465 + $0x8] sm:$0xff]
    %v2468 = vld [vmem:[%s2465 + $0x10] sm:$0xff]
    %v2469 = vld [vmem:[%s2465 + $0x18] sm:$0xff]
    %v2470 = vld [vmem:[%s2465 + $0x20] sm:$0xff]
    %v2471 = vld [vmem:[%s2465 + $0x28] sm:$0xff]
    %v2472 = vld [vmem:[%s2465 + $0x30] sm:$0xff]
    %v2473 = vld [vmem:[%s2465 + $0x38] sm:$0xff]
    %v2474 = vadd.f32 %v2466, %v2414
    %v2475 = vadd.f32 %v2467, %v2416
    %v2476 = vadd.f32 %v2468, %v2457
    %v2477 = vadd.f32 %v2469, %v2459
    %v2478 = vadd.f32 %v2470, %v2418
    %v2479 = vadd.f32 %v2471, %v2420
    %v2480 = vadd.f32 %v2472, %v2461
    %v2481 = vadd.f32 %v2473, %v2463
    %v2482 = vld [vmem:[#allocation5] sm:$0xff]
    %v2483 = vld [vmem:[#allocation5 + $0x8] sm:$0xff]
    %v2484 = vxor.u32 %v2474, 2147483648
    %v2485 = vxor.u32 %v2478, 2147483648
    %v2486 = vmul.f32 %v2484, 1.442695
    %v2487 = vpow.pop %v2486
    %v2488 = vmul.f32 %v2485, 1.442695
    %v2489 = vpow.pop %v2488
    %v2490 = vadd.f32 %v2487, 1.0
    %v2491 = vadd.f32 %v2489, 1.0
    %v2492 = vrcp.pop %v2490
    %v2493 = vmul.f32 1.0, %v2492
    %v2494 = vrcp.pop %v2491
    %v2495 = vmul.f32 1.0, %v2494
    %v2496 = vxor.u32 %v2475, 2147483648
    %v2497 = vxor.u32 %v2479, 2147483648
    %v2498 = vmul.f32 %v2496, 1.442695
    %v2499 = vpow.pop %v2498
    %v2500 = vmul.f32 %v2497, 1.442695
    %v2501 = vpow.pop %v2500
    %v2502 = vadd.f32 %v2499, 1.0
    %v2503 = vadd.f32 %v2501, 1.0
    %v2504 = vrcp.pop %v2502
    %v2505 = vmul.f32 1.0, %v2504
    %v2506 = vrcp.pop %v2503
    %v2507 = vmul.f32 1.0, %v2506
    %v2508 = vtanh.pop %v2476
    %v2509 = vtanh.pop %v2480
    %v2510 = vxor.u32 %v2477, 2147483648
    %v2511 = vxor.u32 %v2481, 2147483648
    %v2512 = vmul.f32 %v2510, 1.442695
    %v2513 = vpow.pop %v2512
    %v2514 = vmul.f32 %v2511, 1.442695
    %v2515 = vpow.pop %v2514
    %v2516 = vadd.f32 %v2513, 1.0
    %v2517 = vadd.f32 %v2515, 1.0
    %v2518 = vrcp.pop %v2516
    %v2519 = vmul.f32 1.0, %v2518
    %v2520 = vrcp.pop %v2517
    %v2521 = vmul.f32 1.0, %v2520
    %v2522 = vmul.f32 %v2505, %v2482
    %v2523 = vmul.f32 %v2507, %v2483
    %v2524 = vmul.f32 %v2493, %v2508
    %v2525 = vmul.f32 %v2495, %v2509
    %v2526 = vadd.f32 %v2522, %v2524
    %v2527 = vadd.f32 %v2523, %v2525
    %v2528 = vtanh.pop %v2526
    %v2529 = vtanh.pop %v2527
    %v2530 = vmul.f32 %v2519, %v2528
    %v2531 = vmul.f32 %v2521, %v2529
    %vm2532 = vcmp.lt.f32.partialorder 2.0, %v229
    %vm2533 = vcmp.lt.f32.partialorder 2.0, %v230
    %v2534 = vsel %vm2532, 1, 0
    %v2535 = vsel %vm2533, 1, 0
    %2536 = vset.pattern.permute.xlu0 0
    %2537 = vperm.xlu0 %2536, %v2534
    %v2538 = vpop.permute.xlu0 %2537
    %2539 = vset.pattern.permute.xlu0 0
    %2540 = vperm.xlu0 %2539, %v2535
    %v2541 = vpop.permute.xlu0 %2540
    %vm2542 = vcmp.eq.s32.totalorder %v2538, 1
    %vm2543 = vcmp.eq.s32.totalorder %v2541, 1
    %v2544 = vsel %vm2542, %v2526, %v2482
    %v2545 = vsel %vm2543, %v2527, %v2483
    %2546 = vst [vmem:[#allocation5] sm:$0xff] %v2544
    %2547 = vst [vmem:[#allocation5 + $0x8] sm:$0xff] %v2545
    %v2548 = vld [vmem:[#allocation4] sm:$0xff]
    %v2549 = vld [vmem:[#allocation4 + $0x8] sm:$0xff]
    %v2550 = vsel %vm2542, %v2530, %v2548
    %v2551 = vsel %vm2543, %v2531, %v2549
    %2552 = vst [vmem:[#allocation4] sm:$0xff] %v2550
    %2553 = vst [vmem:[#allocation4 + $0x8] sm:$0xff] %v2551
    %v2554 = vld [vmem:[#allocation8] sm:$0xff]
    %v2555 = vld [vmem:[#allocation8 + $0x8] sm:$0xff]
    %v2556 = vsel %vm2542, %v2530, 0.0
    %v2557 = vsel %vm2543, %v2531, 0.0
    %v2558 = vmax.f32 %v2554, %v2556
    %v2559 = vmax.f32 %v2555, %v2557
    %2560 = vst [vmem:[#allocation8] sm:$0xff] %v2558
    %2561 = vst [vmem:[#allocation8 + $0x8] sm:$0xff] %v2559
    %v2562 = vld [vmem:[#allocation6] sm:$0xff]
    %v2563 = vld [vmem:[#allocation6 + $0x8] sm:$0xff]
    %v2564 = vpack.c.bf16 %v2563, %v2562
    %2565 = vmatprep.subr.bf16.mxu0 %v1758
    %2566 = vmatpush1.bf16.msra.mxu0 %v1757
    %2567 = vmatprep.subr.bf16.mxu0 %v1762
    %2568 = vmatpush1.bf16.msra.mxu0 %v1761
    %2569 = vmatprep.subr.bf16.mxu0 %v1766
    %2570 = vmatpush1.bf16.msra.mxu0 %v1765
    %2571 = vmatprep.subr.bf16.mxu0 %v1770
    %2572 = vmatpush1.bf16.msra.mxu0 %v1769
    %2573 = vmatprep.subr.bf16.mxu0 %v1774
    %2574 = vmatpush1.bf16.msra.mxu0 %v1773
    %2575 = vmatprep.subr.bf16.mxu0 %v1778
    %2576 = vmatpush1.bf16.msra.mxu0 %v1777
    %2577 = vmatprep.subr.bf16.mxu0 %v1782
    %2578 = vmatpush1.bf16.msra.mxu0 %v1781
    %2579 = vmatprep.subr.bf16.mxu0 %v1786
    %2580 = vmatpush1.bf16.msra.mxu0 %v1785
    %2581 = vmatprep.subr.bf16.mxu0 0
    %2582 = vmatpush1.bf16.msra.mxu0 0
    %2583 = vmatprep.subr.bf16.mxu0 0
    %2584 = vmatpush1.bf16.msra.mxu0 0
    %2585 = vmatprep.subr.bf16.mxu0 0
    %2586 = vmatpush1.bf16.msra.mxu0 0
    %2587 = vmatprep.subr.bf16.mxu0 0
    %2588 = vmatpush1.bf16.msra.mxu0 0
    %2589 = vmatprep.subr.bf16.mxu0 0
    %2590 = vmatpush1.bf16.msra.mxu0 0
    %2591 = vmatprep.subr.bf16.mxu0 0
    %2592 = vmatpush1.bf16.msra.mxu0 0
    %2593 = vmatprep.subr.bf16.mxu0 0
    %2594 = vmatpush1.bf16.msra.mxu0 0
    %2595 = vmatprep.subr.bf16.mxu0 0
    %2596 = vmatpush1.bf16.msra.mxu0 0
    %2597 = vmatprep.mubr.bf16.mxu0 0
    %2598 = vmatmul.mubr.bf16.gmra.mrb[0].mxu0 %v2564
    %v2599 = vpop.f32.mrb[0].mxu0
    %v2600 = vadd.f32 0.0, %v2599
    %v2601 = vpop.f32.mrb[0].mxu0
    %v2602 = vadd.f32 0.0, %v2601
    %v2603 = vpop.f32.mrb[0].mxu0
    %v2604 = vadd.f32 0.0, %v2603
    %v2605 = vpop.f32.mrb[0].mxu0
    %v2606 = vadd.f32 0.0, %v2605
    %2607 = vdwg.mxu0
    %2608 = vmatprep.subr.bf16.mxu0 %v1760
    %2609 = vmatpush1.bf16.msra.mxu0 %v1759
    %2610 = vmatprep.subr.bf16.mxu0 %v1764
    %2611 = vmatpush1.bf16.msra.mxu0 %v1763
    %2612 = vmatprep.subr.bf16.mxu0 %v1768
    %2613 = vmatpush1.bf16.msra.mxu0 %v1767
    %2614 = vmatprep.subr.bf16.mxu0 %v1772
    %2615 = vmatpush1.bf16.msra.mxu0 %v1771
    %2616 = vmatprep.subr.bf16.mxu0 %v1776
    %2617 = vmatpush1.bf16.msra.mxu0 %v1775
    %2618 = vmatprep.subr.bf16.mxu0 %v1780
    %2619 = vmatpush1.bf16.msra.mxu0 %v1779
    %2620 = vmatprep.subr.bf16.mxu0 %v1784
    %2621 = vmatpush1.bf16.msra.mxu0 %v1783
    %2622 = vmatprep.subr.bf16.mxu0 %v1788
    %2623 = vmatpush1.bf16.msra.mxu0 %v1787
    %2624 = vmatprep.subr.bf16.mxu0 0
    %2625 = vmatpush1.bf16.msra.mxu0 0
    %2626 = vmatprep.subr.bf16.mxu0 0
    %2627 = vmatpush1.bf16.msra.mxu0 0
    %2628 = vmatprep.subr.bf16.mxu0 0
    %2629 = vmatpush1.bf16.msra.mxu0 0
    %2630 = vmatprep.subr.bf16.mxu0 0
    %2631 = vmatpush1.bf16.msra.mxu0 0
    %2632 = vmatprep.subr.bf16.mxu0 0
    %2633 = vmatpush1.bf16.msra.mxu0 0
    %2634 = vmatprep.subr.bf16.mxu0 0
    %2635 = vmatpush1.bf16.msra.mxu0 0
    %2636 = vmatprep.subr.bf16.mxu0 0
    %2637 = vmatpush1.bf16.msra.mxu0 0
    %2638 = vmatprep.subr.bf16.mxu0 0
    %2639 = vmatpush1.bf16.msra.mxu0 0
    %2640 = vmatprep.mubr.bf16.mxu0 0
    %2641 = vmatmul.mubr.bf16.gmra.mrb[0].mxu0 %v2564
    %v2642 = vpop.f32.mrb[0].mxu0
    %v2643 = vadd.f32 0.0, %v2642
    %v2644 = vpop.f32.mrb[0].mxu0
    %v2645 = vadd.f32 0.0, %v2644
    %v2646 = vpop.f32.mrb[0].mxu0
    %v2647 = vadd.f32 0.0, %v2646
    %v2648 = vpop.f32.mrb[0].mxu0
    %v2649 = vadd.f32 0.0, %v2648
    %2650 = vdwg.mxu0
    %s2651 = scalar_lea.vmem [#allocation3], 320
    %v2652 = vld [vmem:[%s2651] sm:$0xff]
    %v2653 = vld [vmem:[%s2651 + $0x8] sm:$0xff]
    %v2654 = vld [vmem:[%s2651 + $0x10] sm:$0xff]
    %v2655 = vld [vmem:[%s2651 + $0x18] sm:$0xff]
    %v2656 = vld [vmem:[%s2651 + $0x20] sm:$0xff]
    %v2657 = vld [vmem:[%s2651 + $0x28] sm:$0xff]
    %v2658 = vld [vmem:[%s2651 + $0x30] sm:$0xff]
    %v2659 = vld [vmem:[%s2651 + $0x38] sm:$0xff]
    %v2660 = vadd.f32 %v2652, %v2600
    %v2661 = vadd.f32 %v2653, %v2602
    %v2662 = vadd.f32 %v2654, %v2643
    %v2663 = vadd.f32 %v2655, %v2645
    %v2664 = vadd.f32 %v2656, %v2604
    %v2665 = vadd.f32 %v2657, %v2606
    %v2666 = vadd.f32 %v2658, %v2647
    %v2667 = vadd.f32 %v2659, %v2649
    %v2668 = vld [vmem:[#allocation7] sm:$0xff]
    %v2669 = vld [vmem:[#allocation7 + $0x8] sm:$0xff]
    %v2670 = vxor.u32 %v2660, 2147483648
    %v2671 = vxor.u32 %v2664, 2147483648
    %v2672 = vmul.f32 %v2670, 1.442695
    %v2673 = vpow.pop %v2672
    %v2674 = vmul.f32 %v2671, 1.442695
    %v2675 = vpow.pop %v2674
    %v2676 = vadd.f32 %v2673, 1.0
    %v2677 = vadd.f32 %v2675, 1.0
    %v2678 = vrcp.pop %v2676
    %v2679 = vmul.f32 1.0, %v2678
    %v2680 = vrcp.pop %v2677
    %v2681 = vmul.f32 1.0, %v2680
    %v2682 = vxor.u32 %v2661, 2147483648
    %v2683 = vxor.u32 %v2665, 2147483648
    %v2684 = vmul.f32 %v2682, 1.442695
    %v2685 = vpow.pop %v2684
    %v2686 = vmul.f32 %v2683, 1.442695
    %v2687 = vpow.pop %v2686
    %v2688 = vadd.f32 %v2685, 1.0
    %v2689 = vadd.f32 %v2687, 1.0
    %v2690 = vrcp.pop %v2688
    %v2691 = vmul.f32 1.0, %v2690
    %v2692 = vrcp.pop %v2689
    %v2693 = vmul.f32 1.0, %v2692
    %v2694 = vtanh.pop %v2662
    %v2695 = vtanh.pop %v2666
    %v2696 = vxor.u32 %v2663, 2147483648
    %v2697 = vxor.u32 %v2667, 2147483648
    %v2698 = vmul.f32 %v2696, 1.442695
    %v2699 = vpow.pop %v2698
    %v2700 = vmul.f32 %v2697, 1.442695
    %v2701 = vpow.pop %v2700
    %v2702 = vadd.f32 %v2699, 1.0
    %v2703 = vadd.f32 %v2701, 1.0
    %v2704 = vrcp.pop %v2702
    %v2705 = vmul.f32 1.0, %v2704
    %v2706 = vrcp.pop %v2703
    %v2707 = vmul.f32 1.0, %v2706
    %v2708 = vmul.f32 %v2691, %v2668
    %v2709 = vmul.f32 %v2693, %v2669
    %v2710 = vmul.f32 %v2679, %v2694
    %v2711 = vmul.f32 %v2681, %v2695
    %v2712 = vadd.f32 %v2708, %v2710
    %v2713 = vadd.f32 %v2709, %v2711
    %v2714 = vtanh.pop %v2712
    %v2715 = vtanh.pop %v2713
    %v2716 = vmul.f32 %v2705, %v2714
    %v2717 = vmul.f32 %v2707, %v2715
    %vm2718 = vcmp.lt.f32.partialorder 5.0, %v229
    %vm2719 = vcmp.lt.f32.partialorder 5.0, %v230
    %v2720 = vsel %vm2718, 1, 0
    %v2721 = vsel %vm2719, 1, 0
    %2722 = vset.pattern.permute.xlu0 0
    %2723 = vperm.xlu0 %2722, %v2720
    %v2724 = vpop.permute.xlu0 %2723
    %2725 = vset.pattern.permute.xlu0 0
    %2726 = vperm.xlu0 %2725, %v2721
    %v2727 = vpop.permute.xlu0 %2726
    %vm2728 = vcmp.eq.s32.totalorder %v2724, 1
    %vm2729 = vcmp.eq.s32.totalorder %v2727, 1
    %v2730 = vsel %vm2728, %v2712, %v2668
    %v2731 = vsel %vm2729, %v2713, %v2669
    %2732 = vst [vmem:[#allocation7] sm:$0xff] %v2730
    %2733 = vst [vmem:[#allocation7 + $0x8] sm:$0xff] %v2731
    %v2734 = vld [vmem:[#allocation6] sm:$0xff]
    %v2735 = vld [vmem:[#allocation6 + $0x8] sm:$0xff]
    %v2736 = vsel %vm2728, %v2716, %v2734
    %v2737 = vsel %vm2729, %v2717, %v2735
    %2738 = vst [vmem:[#allocation6] sm:$0xff] %v2736
    %2739 = vst [vmem:[#allocation6 + $0x8] sm:$0xff] %v2737
    %v2740 = vld [vmem:[#allocation9] sm:$0xff]
    %v2741 = vld [vmem:[#allocation9 + $0x8] sm:$0xff]
    %v2742 = vsel %vm2728, %v2716, 0.0
    %v2743 = vsel %vm2729, %v2717, 0.0
    %v2744 = vmax.f32 %v2740, %v2742
    %v2745 = vmax.f32 %v2741, %v2743
    %2746 = vst [vmem:[#allocation9] sm:$0xff] %v2744
    %2747 = vst [vmem:[#allocation9 + $0x8] sm:$0xff] %v2745
    %v2748 = vld [vmem:[#allocation4] sm:$0xff]
    %v2749 = vld [vmem:[#allocation4 + $0x8] sm:$0xff]
    %v2750 = vpack.c.bf16 %v2749, %v2748
    %2751 = vmatprep.subr.bf16.mxu0 %v1413
    %2752 = vmatpush1.bf16.msra.mxu0 %v1412
    %2753 = vmatprep.subr.bf16.mxu0 %v1417
    %2754 = vmatpush1.bf16.msra.mxu0 %v1416
    %2755 = vmatprep.subr.bf16.mxu0 %v1421
    %2756 = vmatpush1.bf16.msra.mxu0 %v1420
    %2757 = vmatprep.subr.bf16.mxu0 %v1425
    %2758 = vmatpush1.bf16.msra.mxu0 %v1424
    %2759 = vmatprep.subr.bf16.mxu0 %v1429
    %2760 = vmatpush1.bf16.msra.mxu0 %v1428
    %2761 = vmatprep.subr.bf16.mxu0 %v1433
    %2762 = vmatpush1.bf16.msra.mxu0 %v1432
    %2763 = vmatprep.subr.bf16.mxu0 %v1437
    %2764 = vmatpush1.bf16.msra.mxu0 %v1436
    %2765 = vmatprep.subr.bf16.mxu0 %v1441
    %2766 = vmatpush1.bf16.msra.mxu0 %v1440
    %2767 = vmatprep.subr.bf16.mxu0 0
    %2768 = vmatpush1.bf16.msra.mxu0 0
    %2769 = vmatprep.subr.bf16.mxu0 0
    %2770 = vmatpush1.bf16.msra.mxu0 0
    %2771 = vmatprep.subr.bf16.mxu0 0
    %2772 = vmatpush1.bf16.msra.mxu0 0
    %2773 = vmatprep.subr.bf16.mxu0 0
    %2774 = vmatpush1.bf16.msra.mxu0 0
    %2775 = vmatprep.subr.bf16.mxu0 0
    %2776 = vmatpush1.bf16.msra.mxu0 0
    %2777 = vmatprep.subr.bf16.mxu0 0
    %2778 = vmatpush1.bf16.msra.mxu0 0
    %2779 = vmatprep.subr.bf16.mxu0 0
    %2780 = vmatpush1.bf16.msra.mxu0 0
    %2781 = vmatprep.subr.bf16.mxu0 0
    %2782 = vmatpush1.bf16.msra.mxu0 0
    %2783 = vmatprep.mubr.bf16.mxu0 0
    %2784 = vmatmul.mubr.bf16.gmra.mrb[0].mxu0 %v2750
    %v2785 = vpop.f32.mrb[0].mxu0
    %v2786 = vadd.f32 0.0, %v2785
    %v2787 = vpop.f32.mrb[0].mxu0
    %v2788 = vadd.f32 0.0, %v2787
    %v2789 = vpop.f32.mrb[0].mxu0
    %v2790 = vadd.f32 0.0, %v2789
    %v2791 = vpop.f32.mrb[0].mxu0
    %v2792 = vadd.f32 0.0, %v2791
    %2793 = vdwg.mxu0
    %2794 = vmatprep.subr.bf16.mxu0 %v1415
    %2795 = vmatpush1.bf16.msra.mxu0 %v1414
    %2796 = vmatprep.subr.bf16.mxu0 %v1419
    %2797 = vmatpush1.bf16.msra.mxu0 %v1418
    %2798 = vmatprep.subr.bf16.mxu0 %v1423
    %2799 = vmatpush1.bf16.msra.mxu0 %v1422
    %2800 = vmatprep.subr.bf16.mxu0 %v1427
    %2801 = vmatpush1.bf16.msra.mxu0 %v1426
    %2802 = vmatprep.subr.bf16.mxu0 %v1431
    %2803 = vmatpush1.bf16.msra.mxu0 %v1430
    %2804 = vmatprep.subr.bf16.mxu0 %v1435
    %2805 = vmatpush1.bf16.msra.mxu0 %v1434
    %2806 = vmatprep.subr.bf16.mxu0 %v1439
    %2807 = vmatpush1.bf16.msra.mxu0 %v1438
    %2808 = vmatprep.subr.bf16.mxu0 %v1443
    %2809 = vmatpush1.bf16.msra.mxu0 %v1442
    %2810 = vmatprep.subr.bf16.mxu0 0
    %2811 = vmatpush1.bf16.msra.mxu0 0
    %2812 = vmatprep.subr.bf16.mxu0 0
    %2813 = vmatpush1.bf16.msra.mxu0 0
    %2814 = vmatprep.subr.bf16.mxu0 0
    %2815 = vmatpush1.bf16.msra.mxu0 0
    %2816 = vmatprep.subr.bf16.mxu0 0
    %2817 = vmatpush1.bf16.msra.mxu0 0
    %2818 = vmatprep.subr.bf16.mxu0 0
    %2819 = vmatpush1.bf16.msra.mxu0 0
    %2820 = vmatprep.subr.bf16.mxu0 0
    %2821 = vmatpush1.bf16.msra.mxu0 0
    %2822 = vmatprep.subr.bf16.mxu0 0
    %2823 = vmatpush1.bf16.msra.mxu0 0
    %2824 = vmatprep.subr.bf16.mxu0 0
    %2825 = vmatpush1.bf16.msra.mxu0 0
    %2826 = vmatprep.mubr.bf16.mxu0 0
    %2827 = vmatmul.mubr.bf16.gmra.mrb[0].mxu0 %v2750
    %v2828 = vpop.f32.mrb[0].mxu0
    %v2829 = vadd.f32 0.0, %v2828
    %v2830 = vpop.f32.mrb[0].mxu0
    %v2831 = vadd.f32 0.0, %v2830
    %v2832 = vpop.f32.mrb[0].mxu0
    %v2833 = vadd.f32 0.0, %v2832
    %v2834 = vpop.f32.mrb[0].mxu0
    %v2835 = vadd.f32 0.0, %v2834
    %2836 = vdwg.mxu0
    %s2837 = scalar_lea.vmem [#allocation2], 192
    %v2838 = vld [vmem:[%s2837] sm:$0xff]
    %v2839 = vld [vmem:[%s2837 + $0x8] sm:$0xff]
    %v2840 = vld [vmem:[%s2837 + $0x10] sm:$0xff]
    %v2841 = vld [vmem:[%s2837 + $0x18] sm:$0xff]
    %v2842 = vld [vmem:[%s2837 + $0x20] sm:$0xff]
    %v2843 = vld [vmem:[%s2837 + $0x28] sm:$0xff]
    %v2844 = vld [vmem:[%s2837 + $0x30] sm:$0xff]
    %v2845 = vld [vmem:[%s2837 + $0x38] sm:$0xff]
    %v2846 = vadd.f32 %v2838, %v2786
    %v2847 = vadd.f32 %v2839, %v2788
    %v2848 = vadd.f32 %v2840, %v2829
    %v2849 = vadd.f32 %v2841, %v2831
    %v2850 = vadd.f32 %v2842, %v2790
    %v2851 = vadd.f32 %v2843, %v2792
    %v2852 = vadd.f32 %v2844, %v2833
    %v2853 = vadd.f32 %v2845, %v2835
    %v2854 = vld [vmem:[#allocation5] sm:$0xff]
    %v2855 = vld [vmem:[#allocation5 + $0x8] sm:$0xff]
    %v2856 = vxor.u32 %v2846, 2147483648
    %v2857 = vxor.u32 %v2850, 2147483648
    %v2858 = vmul.f32 %v2856, 1.442695
    %v2859 = vpow.pop %v2858
    %v2860 = vmul.f32 %v2857, 1.442695
    %v2861 = vpow.pop %v2860
    %v2862 = vadd.f32 %v2859, 1.0
    %v2863 = vadd.f32 %v2861, 1.0
    %v2864 = vrcp.pop %v2862
    %v2865 = vmul.f32 1.0, %v2864
    %v2866 = vrcp.pop %v2863
    %v2867 = vmul.f32 1.0, %v2866
    %v2868 = vxor.u32 %v2847, 2147483648
    %v2869 = vxor.u32 %v2851, 2147483648
    %v2870 = vmul.f32 %v2868, 1.442695
    %v2871 = vpow.pop %v2870
    %v2872 = vmul.f32 %v2869, 1.442695
    %v2873 = vpow.pop %v2872
    %v2874 = vadd.f32 %v2871, 1.0
    %v2875 = vadd.f32 %v2873, 1.0
    %v2876 = vrcp.pop %v2874
    %v2877 = vmul.f32 1.0, %v2876
    %v2878 = vrcp.pop %v2875
    %v2879 = vmul.f32 1.0, %v2878
    %v2880 = vtanh.pop %v2848
    %v2881 = vtanh.pop %v2852
    %v2882 = vxor.u32 %v2849, 2147483648
    %v2883 = vxor.u32 %v2853, 2147483648
    %v2884 = vmul.f32 %v2882, 1.442695
    %v2885 = vpow.pop %v2884
    %v2886 = vmul.f32 %v2883, 1.442695
    %v2887 = vpow.pop %v2886
    %v2888 = vadd.f32 %v2885, 1.0
    %v2889 = vadd.f32 %v2887, 1.0
    %v2890 = vrcp.pop %v2888
    %v2891 = vmul.f32 1.0, %v2890
    %v2892 = vrcp.pop %v2889
    %v2893 = vmul.f32 1.0, %v2892
    %v2894 = vmul.f32 %v2877, %v2854
    %v2895 = vmul.f32 %v2879, %v2855
    %v2896 = vmul.f32 %v2865, %v2880
    %v2897 = vmul.f32 %v2867, %v2881
    %v2898 = vadd.f32 %v2894, %v2896
    %v2899 = vadd.f32 %v2895, %v2897
    %v2900 = vtanh.pop %v2898
    %v2901 = vtanh.pop %v2899
    %v2902 = vmul.f32 %v2891, %v2900
    %v2903 = vmul.f32 %v2893, %v2901
    %vm2904 = vcmp.lt.f32.partialorder 3.0, %v229
    %vm2905 = vcmp.lt.f32.partialorder 3.0, %v230
    %v2906 = vsel %vm2904, 1, 0
    %v2907 = vsel %vm2905, 1, 0
    %2908 = vset.pattern.permute.xlu0 0
    %2909 = vperm.xlu0 %2908, %v2906
    %v2910 = vpop.permute.xlu0 %2909
    %2911 = vset.pattern.permute.xlu0 0
    %2912 = vperm.xlu0 %2911, %v2907
    %v2913 = vpop.permute.xlu0 %2912
    %vm2914 = vcmp.eq.s32.totalorder %v2910, 1
    %vm2915 = vcmp.eq.s32.totalorder %v2913, 1
    %v2916 = vsel %vm2914, %v2898, %v2854
    %v2917 = vsel %vm2915, %v2899, %v2855
    %2918 = vst [vmem:[#allocation5] sm:$0xff] %v2916
    %2919 = vst [vmem:[#allocation5 + $0x8] sm:$0xff] %v2917
    %v2920 = vld [vmem:[#allocation4] sm:$0xff]
    %v2921 = vld [vmem:[#allocation4 + $0x8] sm:$0xff]
    %v2922 = vsel %vm2914, %v2902, %v2920
    %v2923 = vsel %vm2915, %v2903, %v2921
    %2924 = vst [vmem:[#allocation4] sm:$0xff] %v2922
    %2925 = vst [vmem:[#allocation4 + $0x8] sm:$0xff] %v2923
    %v2926 = vld [vmem:[#allocation8] sm:$0xff]
    %v2927 = vld [vmem:[#allocation8 + $0x8] sm:$0xff]
    %v2928 = vsel %vm2914, %v2902, 0.0
    %v2929 = vsel %vm2915, %v2903, 0.0
    %v2930 = vmax.f32 %v2926, %v2928
    %v2931 = vmax.f32 %v2927, %v2929
    %2932 = vst [vmem:[#allocation8] sm:$0xff] %v2930
    %2933 = vst [vmem:[#allocation8 + $0x8] sm:$0xff] %v2931
    %v2934 = vld [vmem:[#allocation6] sm:$0xff]
    %v2935 = vld [vmem:[#allocation6 + $0x8] sm:$0xff]
    %v2936 = vpack.c.bf16 %v2935, %v2934
    %2937 = vmatprep.subr.bf16.mxu0 %v1758
    %2938 = vmatpush1.bf16.msra.mxu0 %v1757
    %2939 = vmatprep.subr.bf16.mxu0 %v1762
    %2940 = vmatpush1.bf16.msra.mxu0 %v1761
    %2941 = vmatprep.subr.bf16.mxu0 %v1766
    %2942 = vmatpush1.bf16.msra.mxu0 %v1765
    %2943 = vmatprep.subr.bf16.mxu0 %v1770
    %2944 = vmatpush1.bf16.msra.mxu0 %v1769
    %2945 = vmatprep.subr.bf16.mxu0 %v1774
    %2946 = vmatpush1.bf16.msra.mxu0 %v1773
    %2947 = vmatprep.subr.bf16.mxu0 %v1778
    %2948 = vmatpush1.bf16.msra.mxu0 %v1777
    %2949 = vmatprep.subr.bf16.mxu0 %v1782
    %2950 = vmatpush1.bf16.msra.mxu0 %v1781
    %2951 = vmatprep.subr.bf16.mxu0 %v1786
    %2952 = vmatpush1.bf16.msra.mxu0 %v1785
    %2953 = vmatprep.subr.bf16.mxu0 0
    %2954 = vmatpush1.bf16.msra.mxu0 0
    %2955 = vmatprep.subr.bf16.mxu0 0
    %2956 = vmatpush1.bf16.msra.mxu0 0
    %2957 = vmatprep.subr.bf16.mxu0 0
    %2958 = vmatpush1.bf16.msra.mxu0 0
    %2959 = vmatprep.subr.bf16.mxu0 0
    %2960 = vmatpush1.bf16.msra.mxu0 0
    %2961 = vmatprep.subr.bf16.mxu0 0
    %2962 = vmatpush1.bf16.msra.mxu0 0
    %2963 = vmatprep.subr.bf16.mxu0 0
    %2964 = vmatpush1.bf16.msra.mxu0 0
    %2965 = vmatprep.subr.bf16.mxu0 0
    %2966 = vmatpush1.bf16.msra.mxu0 0
    %2967 = vmatprep.subr.bf16.mxu0 0
    %2968 = vmatpush1.bf16.msra.mxu0 0
    %2969 = vmatprep.mubr.bf16.mxu0 0
    %2970 = vmatmul.mubr.bf16.gmra.mrb[0].mxu0 %v2936
    %v2971 = vpop.f32.mrb[0].mxu0
    %v2972 = vadd.f32 0.0, %v2971
    %v2973 = vpop.f32.mrb[0].mxu0
    %v2974 = vadd.f32 0.0, %v2973
    %v2975 = vpop.f32.mrb[0].mxu0
    %v2976 = vadd.f32 0.0, %v2975
    %v2977 = vpop.f32.mrb[0].mxu0
    %v2978 = vadd.f32 0.0, %v2977
    %2979 = vdwg.mxu0
    %2980 = vmatprep.subr.bf16.mxu0 %v1760
    %2981 = vmatpush1.bf16.msra.mxu0 %v1759
    %2982 = vmatprep.subr.bf16.mxu0 %v1764
    %2983 = vmatpush1.bf16.msra.mxu0 %v1763
    %2984 = vmatprep.subr.bf16.mxu0 %v1768
    %2985 = vmatpush1.bf16.msra.mxu0 %v1767
    %2986 = vmatprep.subr.bf16.mxu0 %v1772
    %2987 = vmatpush1.bf16.msra.mxu0 %v1771
    %2988 = vmatprep.subr.bf16.mxu0 %v1776
    %2989 = vmatpush1.bf16.msra.mxu0 %v1775
    %2990 = vmatprep.subr.bf16.mxu0 %v1780
    %2991 = vmatpush1.bf16.msra.mxu0 %v1779
    %2992 = vmatprep.subr.bf16.mxu0 %v1784
    %2993 = vmatpush1.bf16.msra.mxu0 %v1783
    %2994 = vmatprep.subr.bf16.mxu0 %v1788
    %2995 = vmatpush1.bf16.msra.mxu0 %v1787
    %2996 = vmatprep.subr.bf16.mxu0 0
    %2997 = vmatpush1.bf16.msra.mxu0 0
    %2998 = vmatprep.subr.bf16.mxu0 0
    %2999 = vmatpush1.bf16.msra.mxu0 0
    %3000 = vmatprep.subr.bf16.mxu0 0
    %3001 = vmatpush1.bf16.msra.mxu0 0
    %3002 = vmatprep.subr.bf16.mxu0 0
    %3003 = vmatpush1.bf16.msra.mxu0 0
    %3004 = vmatprep.subr.bf16.mxu0 0
    %3005 = vmatpush1.bf16.msra.mxu0 0
    %3006 = vmatprep.subr.bf16.mxu0 0
    %3007 = vmatpush1.bf16.msra.mxu0 0
    %3008 = vmatprep.subr.bf16.mxu0 0
    %3009 = vmatpush1.bf16.msra.mxu0 0
    %3010 = vmatprep.subr.bf16.mxu0 0
    %3011 = vmatpush1.bf16.msra.mxu0 0
    %3012 = vmatprep.mubr.bf16.mxu0 0
    %3013 = vmatmul.mubr.bf16.gmra.mrb[0].mxu0 %v2936
    %v3014 = vpop.f32.mrb[0].mxu0
    %v3015 = vadd.f32 0.0, %v3014
    %v3016 = vpop.f32.mrb[0].mxu0
    %v3017 = vadd.f32 0.0, %v3016
    %v3018 = vpop.f32.mrb[0].mxu0
    %v3019 = vadd.f32 0.0, %v3018
    %v3020 = vpop.f32.mrb[0].mxu0
    %v3021 = vadd.f32 0.0, %v3020
    %3022 = vdwg.mxu0
    %s3023 = scalar_lea.vmem [#allocation3], 256
    %v3024 = vld [vmem:[%s3023] sm:$0xff]
    %v3025 = vld [vmem:[%s3023 + $0x8] sm:$0xff]
    %v3026 = vld [vmem:[%s3023 + $0x10] sm:$0xff]
    %v3027 = vld [vmem:[%s3023 + $0x18] sm:$0xff]
    %v3028 = vld [vmem:[%s3023 + $0x20] sm:$0xff]
    %v3029 = vld [vmem:[%s3023 + $0x28] sm:$0xff]
    %v3030 = vld [vmem:[%s3023 + $0x30] sm:$0xff]
    %v3031 = vld [vmem:[%s3023 + $0x38] sm:$0xff]
    %v3032 = vadd.f32 %v3024, %v2972
    %v3033 = vadd.f32 %v3025, %v2974
    %v3034 = vadd.f32 %v3026, %v3015
    %v3035 = vadd.f32 %v3027, %v3017
    %v3036 = vadd.f32 %v3028, %v2976
    %v3037 = vadd.f32 %v3029, %v2978
    %v3038 = vadd.f32 %v3030, %v3019
    %v3039 = vadd.f32 %v3031, %v3021
    %v3040 = vld [vmem:[#allocation7] sm:$0xff]
    %v3041 = vld [vmem:[#allocation7 + $0x8] sm:$0xff]
    %v3042 = vxor.u32 %v3032, 2147483648
    %v3043 = vxor.u32 %v3036, 2147483648
    %v3044 = vmul.f32 %v3042, 1.442695
    %v3045 = vpow.pop %v3044
    %v3046 = vmul.f32 %v3043, 1.442695
    %v3047 = vpow.pop %v3046
    %v3048 = vadd.f32 %v3045, 1.0
    %v3049 = vadd.f32 %v3047, 1.0
    %v3050 = vrcp.pop %v3048
    %v3051 = vmul.f32 1.0, %v3050
    %v3052 = vrcp.pop %v3049
    %v3053 = vmul.f32 1.0, %v3052
    %v3054 = vxor.u32 %v3033, 2147483648
    %v3055 = vxor.u32 %v3037, 2147483648
    %v3056 = vmul.f32 %v3054, 1.442695
    %v3057 = vpow.pop %v3056
    %v3058 = vmul.f32 %v3055, 1.442695
    %v3059 = vpow.pop %v3058
    %v3060 = vadd.f32 %v3057, 1.0
    %v3061 = vadd.f32 %v3059, 1.0
    %v3062 = vrcp.pop %v3060
    %v3063 = vmul.f32 1.0, %v3062
    %v3064 = vrcp.pop %v3061
    %v3065 = vmul.f32 1.0, %v3064
    %v3066 = vtanh.pop %v3034
    %v3067 = vtanh.pop %v3038
    %v3068 = vxor.u32 %v3035, 2147483648
    %v3069 = vxor.u32 %v3039, 2147483648
    %v3070 = vmul.f32 %v3068, 1.442695
    %v3071 = vpow.pop %v3070
    %v3072 = vmul.f32 %v3069, 1.442695
    %v3073 = vpow.pop %v3072
    %v3074 = vadd.f32 %v3071, 1.0
    %v3075 = vadd.f32 %v3073, 1.0
    %v3076 = vrcp.pop %v3074
    %v3077 = vmul.f32 1.0, %v3076
    %v3078 = vrcp.pop %v3075
    %v3079 = vmul.f32 1.0, %v3078
    %v3080 = vmul.f32 %v3063, %v3040
    %v3081 = vmul.f32 %v3065, %v3041
    %v3082 = vmul.f32 %v3051, %v3066
    %v3083 = vmul.f32 %v3053, %v3067
    %v3084 = vadd.f32 %v3080, %v3082
    %v3085 = vadd.f32 %v3081, %v3083
    %v3086 = vtanh.pop %v3084
    %v3087 = vtanh.pop %v3085
    %v3088 = vmul.f32 %v3077, %v3086
    %v3089 = vmul.f32 %v3079, %v3087
    %vm3090 = vcmp.lt.f32.partialorder 4.0, %v229
    %vm3091 = vcmp.lt.f32.partialorder 4.0, %v230
    %v3092 = vsel %vm3090, 1, 0
    %v3093 = vsel %vm3091, 1, 0
    %3094 = vset.pattern.permute.xlu0 0
    %3095 = vperm.xlu0 %3094, %v3092
    %v3096 = vpop.permute.xlu0 %3095
    %3097 = vset.pattern.permute.xlu0 0
    %3098 = vperm.xlu0 %3097, %v3093
    %v3099 = vpop.permute.xlu0 %3098
    %vm3100 = vcmp.eq.s32.totalorder %v3096, 1
    %vm3101 = vcmp.eq.s32.totalorder %v3099, 1
    %v3102 = vsel %vm3100, %v3084, %v3040
    %v3103 = vsel %vm3101, %v3085, %v3041
    %3104 = vst [vmem:[#allocation7] sm:$0xff] %v3102
    %3105 = vst [vmem:[#allocation7 + $0x8] sm:$0xff] %v3103
    %v3106 = vld [vmem:[#allocation6] sm:$0xff]
    %v3107 = vld [vmem:[#allocation6 + $0x8] sm:$0xff]
    %v3108 = vsel %vm3100, %v3088, %v3106
    %v3109 = vsel %vm3101, %v3089, %v3107
    %3110 = vst [vmem:[#allocation6] sm:$0xff] %v3108
    %3111 = vst [vmem:[#allocation6 + $0x8] sm:$0xff] %v3109
    %v3112 = vld [vmem:[#allocation9] sm:$0xff]
    %v3113 = vld [vmem:[#allocation9 + $0x8] sm:$0xff]
    %v3114 = vsel %vm3100, %v3088, 0.0
    %v3115 = vsel %vm3101, %v3089, 0.0
    %v3116 = vmax.f32 %v3112, %v3114
    %v3117 = vmax.f32 %v3113, %v3115
    %3118 = vst [vmem:[#allocation9] sm:$0xff] %v3116
    %3119 = vst [vmem:[#allocation9 + $0x8] sm:$0xff] %v3117
    %v3120 = vld [vmem:[#allocation4] sm:$0xff]
    %v3121 = vld [vmem:[#allocation4 + $0x8] sm:$0xff]
    %v3122 = vpack.c.bf16 %v3121, %v3120
    %3123 = vmatprep.subr.bf16.mxu0 %v1413
    %3124 = vmatpush1.bf16.msra.mxu0 %v1412
    %3125 = vmatprep.subr.bf16.mxu0 %v1417
    %3126 = vmatpush1.bf16.msra.mxu0 %v1416
    %3127 = vmatprep.subr.bf16.mxu0 %v1421
    %3128 = vmatpush1.bf16.msra.mxu0 %v1420
    %3129 = vmatprep.subr.bf16.mxu0 %v1425
    %3130 = vmatpush1.bf16.msra.mxu0 %v1424
    %3131 = vmatprep.subr.bf16.mxu0 %v1429
    %3132 = vmatpush1.bf16.msra.mxu0 %v1428
    %3133 = vmatprep.subr.bf16.mxu0 %v1433
    %3134 = vmatpush1.bf16.msra.mxu0 %v1432
    %3135 = vmatprep.subr.bf16.mxu0 %v1437
    %3136 = vmatpush1.bf16.msra.mxu0 %v1436
    %3137 = vmatprep.subr.bf16.mxu0 %v1441
    %3138 = vmatpush1.bf16.msra.mxu0 %v1440
    %3139 = vmatprep.subr.bf16.mxu0 0
    %3140 = vmatpush1.bf16.msra.mxu0 0
    %3141 = vmatprep.subr.bf16.mxu0 0
    %3142 = vmatpush1.bf16.msra.mxu0 0
    %3143 = vmatprep.subr.bf16.mxu0 0
    %3144 = vmatpush1.bf16.msra.mxu0 0
    %3145 = vmatprep.subr.bf16.mxu0 0
    %3146 = vmatpush1.bf16.msra.mxu0 0
    %3147 = vmatprep.subr.bf16.mxu0 0
    %3148 = vmatpush1.bf16.msra.mxu0 0
    %3149 = vmatprep.subr.bf16.mxu0 0
    %3150 = vmatpush1.bf16.msra.mxu0 0
    %3151 = vmatprep.subr.bf16.mxu0 0
    %3152 = vmatpush1.bf16.msra.mxu0 0
    %3153 = vmatprep.subr.bf16.mxu0 0
    %3154 = vmatpush1.bf16.msra.mxu0 0
    %3155 = vmatprep.mubr.bf16.mxu0 0
    %3156 = vmatmul.mubr.bf16.gmra.mrb[0].mxu0 %v3122
    %v3157 = vpop.f32.mrb[0].mxu0
    %v3158 = vadd.f32 0.0, %v3157
    %v3159 = vpop.f32.mrb[0].mxu0
    %v3160 = vadd.f32 0.0, %v3159
    %v3161 = vpop.f32.mrb[0].mxu0
    %v3162 = vadd.f32 0.0, %v3161
    %v3163 = vpop.f32.mrb[0].mxu0
    %v3164 = vadd.f32 0.0, %v3163
    %3165 = vdwg.mxu0
    %3166 = vmatprep.subr.bf16.mxu0 %v1415
    %3167 = vmatpush1.bf16.msra.mxu0 %v1414
    %3168 = vmatprep.subr.bf16.mxu0 %v1419
    %3169 = vmatpush1.bf16.msra.mxu0 %v1418
    %3170 = vmatprep.subr.bf16.mxu0 %v1423
    %3171 = vmatpush1.bf16.msra.mxu0 %v1422
    %3172 = vmatprep.subr.bf16.mxu0 %v1427
    %3173 = vmatpush1.bf16.msra.mxu0 %v1426
    %3174 = vmatprep.subr.bf16.mxu0 %v1431
    %3175 = vmatpush1.bf16.msra.mxu0 %v1430
    %3176 = vmatprep.subr.bf16.mxu0 %v1435
    %3177 = vmatpush1.bf16.msra.mxu0 %v1434
    %3178 = vmatprep.subr.bf16.mxu0 %v1439
    %3179 = vmatpush1.bf16.msra.mxu0 %v1438
    %3180 = vmatprep.subr.bf16.mxu0 %v1443
    %3181 = vmatpush1.bf16.msra.mxu0 %v1442
    %3182 = vmatprep.subr.bf16.mxu0 0
    %3183 = vmatpush1.bf16.msra.mxu0 0
    %3184 = vmatprep.subr.bf16.mxu0 0
    %3185 = vmatpush1.bf16.msra.mxu0 0
    %3186 = vmatprep.subr.bf16.mxu0 0
    %3187 = vmatpush1.bf16.msra.mxu0 0
    %3188 = vmatprep.subr.bf16.mxu0 0
    %3189 = vmatpush1.bf16.msra.mxu0 0
    %3190 = vmatprep.subr.bf16.mxu0 0
    %3191 = vmatpush1.bf16.msra.mxu0 0
    %3192 = vmatprep.subr.bf16.mxu0 0
    %3193 = vmatpush1.bf16.msra.mxu0 0
    %3194 = vmatprep.subr.bf16.mxu0 0
    %3195 = vmatpush1.bf16.msra.mxu0 0
    %3196 = vmatprep.subr.bf16.mxu0 0
    %3197 = vmatpush1.bf16.msra.mxu0 0
    %3198 = vmatprep.mubr.bf16.mxu0 0
    %3199 = vmatmul.mubr.bf16.gmra.mrb[0].mxu0 %v3122
    %v3200 = vpop.f32.mrb[0].mxu0
    %v3201 = vadd.f32 0.0, %v3200
    %v3202 = vpop.f32.mrb[0].mxu0
    %v3203 = vadd.f32 0.0, %v3202
    %v3204 = vpop.f32.mrb[0].mxu0
    %v3205 = vadd.f32 0.0, %v3204
    %v3206 = vpop.f32.mrb[0].mxu0
    %v3207 = vadd.f32 0.0, %v3206
    %3208 = vdwg.mxu0
    %s3209 = scalar_lea.vmem [#allocation2], 256
    %v3210 = vld [vmem:[%s3209] sm:$0xff]
    %v3211 = vld [vmem:[%s3209 + $0x8] sm:$0xff]
    %v3212 = vld [vmem:[%s3209 + $0x10] sm:$0xff]
    %v3213 = vld [vmem:[%s3209 + $0x18] sm:$0xff]
    %v3214 = vld [vmem:[%s3209 + $0x20] sm:$0xff]
    %v3215 = vld [vmem:[%s3209 + $0x28] sm:$0xff]
    %v3216 = vld [vmem:[%s3209 + $0x30] sm:$0xff]
    %v3217 = vld [vmem:[%s3209 + $0x38] sm:$0xff]
    %v3218 = vadd.f32 %v3210, %v3158
    %v3219 = vadd.f32 %v3211, %v3160
    %v3220 = vadd.f32 %v3212, %v3201
    %v3221 = vadd.f32 %v3213, %v3203
    %v3222 = vadd.f32 %v3214, %v3162
    %v3223 = vadd.f32 %v3215, %v3164
    %v3224 = vadd.f32 %v3216, %v3205
    %v3225 = vadd.f32 %v3217, %v3207
    %v3226 = vld [vmem:[#allocation5] sm:$0xff]
    %v3227 = vld [vmem:[#allocation5 + $0x8] sm:$0xff]
    %v3228 = vxor.u32 %v3218, 2147483648
    %v3229 = vxor.u32 %v3222, 2147483648
    %v3230 = vmul.f32 %v3228, 1.442695
    %v3231 = vpow.pop %v3230
    %v3232 = vmul.f32 %v3229, 1.442695
    %v3233 = vpow.pop %v3232
    %v3234 = vadd.f32 %v3231, 1.0
    %v3235 = vadd.f32 %v3233, 1.0
    %v3236 = vrcp.pop %v3234
    %v3237 = vmul.f32 1.0, %v3236
    %v3238 = vrcp.pop %v3235
    %v3239 = vmul.f32 1.0, %v3238
    %v3240 = vxor.u32 %v3219, 2147483648
    %v3241 = vxor.u32 %v3223, 2147483648
    %v3242 = vmul.f32 %v3240, 1.442695
    %v3243 = vpow.pop %v3242
    %v3244 = vmul.f32 %v3241, 1.442695
    %v3245 = vpow.pop %v3244
    %v3246 = vadd.f32 %v3243, 1.0
    %v3247 = vadd.f32 %v3245, 1.0
    %v3248 = vrcp.pop %v3246
    %v3249 = vmul.f32 1.0, %v3248
    %v3250 = vrcp.pop %v3247
    %v3251 = vmul.f32 1.0, %v3250
    %v3252 = vtanh.pop %v3220
    %v3253 = vtanh.pop %v3224
    %v3254 = vxor.u32 %v3221, 2147483648
    %v3255 = vxor.u32 %v3225, 2147483648
    %v3256 = vmul.f32 %v3254, 1.442695
    %v3257 = vpow.pop %v3256
    %v3258 = vmul.f32 %v3255, 1.442695
    %v3259 = vpow.pop %v3258
    %v3260 = vadd.f32 %v3257, 1.0
    %v3261 = vadd.f32 %v3259, 1.0
    %v3262 = vrcp.pop %v3260
    %v3263 = vmul.f32 1.0, %v3262
    %v3264 = vrcp.pop %v3261
    %v3265 = vmul.f32 1.0, %v3264
    %v3266 = vmul.f32 %v3249, %v3226
    %v3267 = vmul.f32 %v3251, %v3227
    %v3268 = vmul.f32 %v3237, %v3252
    %v3269 = vmul.f32 %v3239, %v3253
    %v3270 = vadd.f32 %v3266, %v3268
    %v3271 = vadd.f32 %v3267, %v3269
    %v3272 = vtanh.pop %v3270
    %v3273 = vtanh.pop %v3271
    %v3274 = vmul.f32 %v3263, %v3272
    %v3275 = vmul.f32 %v3265, %v3273
    %v3276 = vsel %vm3100, %v3270, %v3226
    %v3277 = vsel %vm3101, %v3271, %v3227
    %3278 = vst [vmem:[#allocation5] sm:$0xff] %v3276
    %3279 = vst [vmem:[#allocation5 + $0x8] sm:$0xff] %v3277
    %v3280 = vld [vmem:[#allocation4] sm:$0xff]
    %v3281 = vld [vmem:[#allocation4 + $0x8] sm:$0xff]
    %v3282 = vsel %vm3100, %v3274, %v3280
    %v3283 = vsel %vm3101, %v3275, %v3281
    %3284 = vst [vmem:[#allocation4] sm:$0xff] %v3282
    %3285 = vst [vmem:[#allocation4 + $0x8] sm:$0xff] %v3283
    %v3286 = vld [vmem:[#allocation8] sm:$0xff]
    %v3287 = vld [vmem:[#allocation8 + $0x8] sm:$0xff]
    %v3288 = vsel %vm3100, %v3274, 0.0
    %v3289 = vsel %vm3101, %v3275, 0.0
    %v3290 = vmax.f32 %v3286, %v3288
    %v3291 = vmax.f32 %v3287, %v3289
    %3292 = vst [vmem:[#allocation8] sm:$0xff] %v3290
    %3293 = vst [vmem:[#allocation8 + $0x8] sm:$0xff] %v3291
    %v3294 = vld [vmem:[#allocation6] sm:$0xff]
    %v3295 = vld [vmem:[#allocation6 + $0x8] sm:$0xff]
    %v3296 = vpack.c.bf16 %v3295, %v3294
    %3297 = vmatprep.subr.bf16.mxu0 %v1758
    %3298 = vmatpush1.bf16.msra.mxu0 %v1757
    %3299 = vmatprep.subr.bf16.mxu0 %v1762
    %3300 = vmatpush1.bf16.msra.mxu0 %v1761
    %3301 = vmatprep.subr.bf16.mxu0 %v1766
    %3302 = vmatpush1.bf16.msra.mxu0 %v1765
    %3303 = vmatprep.subr.bf16.mxu0 %v1770
    %3304 = vmatpush1.bf16.msra.mxu0 %v1769
    %3305 = vmatprep.subr.bf16.mxu0 %v1774
    %3306 = vmatpush1.bf16.msra.mxu0 %v1773
    %3307 = vmatprep.subr.bf16.mxu0 %v1778
    %3308 = vmatpush1.bf16.msra.mxu0 %v1777
    %3309 = vmatprep.subr.bf16.mxu0 %v1782
    %3310 = vmatpush1.bf16.msra.mxu0 %v1781
    %3311 = vmatprep.subr.bf16.mxu0 %v1786
    %3312 = vmatpush1.bf16.msra.mxu0 %v1785
    %3313 = vmatprep.subr.bf16.mxu0 0
    %3314 = vmatpush1.bf16.msra.mxu0 0
    %3315 = vmatprep.subr.bf16.mxu0 0
    %3316 = vmatpush1.bf16.msra.mxu0 0
    %3317 = vmatprep.subr.bf16.mxu0 0
    %3318 = vmatpush1.bf16.msra.mxu0 0
    %3319 = vmatprep.subr.bf16.mxu0 0
    %3320 = vmatpush1.bf16.msra.mxu0 0
    %3321 = vmatprep.subr.bf16.mxu0 0
    %3322 = vmatpush1.bf16.msra.mxu0 0
    %3323 = vmatprep.subr.bf16.mxu0 0
    %3324 = vmatpush1.bf16.msra.mxu0 0
    %3325 = vmatprep.subr.bf16.mxu0 0
    %3326 = vmatpush1.bf16.msra.mxu0 0
    %3327 = vmatprep.subr.bf16.mxu0 0
    %3328 = vmatpush1.bf16.msra.mxu0 0
    %3329 = vmatprep.mubr.bf16.mxu0 0
    %3330 = vmatmul.mubr.bf16.gmra.mrb[0].mxu0 %v3296
    %v3331 = vpop.f32.mrb[0].mxu0
    %v3332 = vadd.f32 0.0, %v3331
    %v3333 = vpop.f32.mrb[0].mxu0
    %v3334 = vadd.f32 0.0, %v3333
    %v3335 = vpop.f32.mrb[0].mxu0
    %v3336 = vadd.f32 0.0, %v3335
    %v3337 = vpop.f32.mrb[0].mxu0
    %v3338 = vadd.f32 0.0, %v3337
    %3339 = vdwg.mxu0
    %3340 = vmatprep.subr.bf16.mxu0 %v1760
    %3341 = vmatpush1.bf16.msra.mxu0 %v1759
    %3342 = vmatprep.subr.bf16.mxu0 %v1764
    %3343 = vmatpush1.bf16.msra.mxu0 %v1763
    %3344 = vmatprep.subr.bf16.mxu0 %v1768
    %3345 = vmatpush1.bf16.msra.mxu0 %v1767
    %3346 = vmatprep.subr.bf16.mxu0 %v1772
    %3347 = vmatpush1.bf16.msra.mxu0 %v1771
    %3348 = vmatprep.subr.bf16.mxu0 %v1776
    %3349 = vmatpush1.bf16.msra.mxu0 %v1775
    %3350 = vmatprep.subr.bf16.mxu0 %v1780
    %3351 = vmatpush1.bf16.msra.mxu0 %v1779
    %3352 = vmatprep.subr.bf16.mxu0 %v1784
    %3353 = vmatpush1.bf16.msra.mxu0 %v1783
    %3354 = vmatprep.subr.bf16.mxu0 %v1788
    %3355 = vmatpush1.bf16.msra.mxu0 %v1787
    %3356 = vmatprep.subr.bf16.mxu0 0
    %3357 = vmatpush1.bf16.msra.mxu0 0
    %3358 = vmatprep.subr.bf16.mxu0 0
    %3359 = vmatpush1.bf16.msra.mxu0 0
    %3360 = vmatprep.subr.bf16.mxu0 0
    %3361 = vmatpush1.bf16.msra.mxu0 0
    %3362 = vmatprep.subr.bf16.mxu0 0
    %3363 = vmatpush1.bf16.msra.mxu0 0
    %3364 = vmatprep.subr.bf16.mxu0 0
    %3365 = vmatpush1.bf16.msra.mxu0 0
    %3366 = vmatprep.subr.bf16.mxu0 0
    %3367 = vmatpush1.bf16.msra.mxu0 0
    %3368 = vmatprep.subr.bf16.mxu0 0
    %3369 = vmatpush1.bf16.msra.mxu0 0
    %3370 = vmatprep.subr.bf16.mxu0 0
    %3371 = vmatpush1.bf16.msra.mxu0 0
    %3372 = vmatprep.mubr.bf16.mxu0 0
    %3373 = vmatmul.mubr.bf16.gmra.mrb[0].mxu0 %v3296
    %v3374 = vpop.f32.mrb[0].mxu0
    %v3375 = vadd.f32 0.0, %v3374
    %v3376 = vpop.f32.mrb[0].mxu0
    %v3377 = vadd.f32 0.0, %v3376
    %v3378 = vpop.f32.mrb[0].mxu0
    %v3379 = vadd.f32 0.0, %v3378
    %v3380 = vpop.f32.mrb[0].mxu0
    %v3381 = vadd.f32 0.0, %v3380
    %3382 = vdwg.mxu0
    %s3383 = scalar_lea.vmem [#allocation3], 192
    %v3384 = vld [vmem:[%s3383] sm:$0xff]
    %v3385 = vld [vmem:[%s3383 + $0x8] sm:$0xff]
    %v3386 = vld [vmem:[%s3383 + $0x10] sm:$0xff]
    %v3387 = vld [vmem:[%s3383 + $0x18] sm:$0xff]
    %v3388 = vld [vmem:[%s3383 + $0x20] sm:$0xff]
    %v3389 = vld [vmem:[%s3383 + $0x28] sm:$0xff]
    %v3390 = vld [vmem:[%s3383 + $0x30] sm:$0xff]
    %v3391 = vld [vmem:[%s3383 + $0x38] sm:$0xff]
    %v3392 = vadd.f32 %v3384, %v3332
    %v3393 = vadd.f32 %v3385, %v3334
    %v3394 = vadd.f32 %v3386, %v3375
    %v3395 = vadd.f32 %v3387, %v3377
    %v3396 = vadd.f32 %v3388, %v3336
    %v3397 = vadd.f32 %v3389, %v3338
    %v3398 = vadd.f32 %v3390, %v3379
    %v3399 = vadd.f32 %v3391, %v3381
    %v3400 = vld [vmem:[#allocation7] sm:$0xff]
    %v3401 = vld [vmem:[#allocation7 + $0x8] sm:$0xff]
    %v3402 = vxor.u32 %v3392, 2147483648
    %v3403 = vxor.u32 %v3396, 2147483648
    %v3404 = vmul.f32 %v3402, 1.442695
    %v3405 = vpow.pop %v3404
    %v3406 = vmul.f32 %v3403, 1.442695
    %v3407 = vpow.pop %v3406
    %v3408 = vadd.f32 %v3405, 1.0
    %v3409 = vadd.f32 %v3407, 1.0
    %v3410 = vrcp.pop %v3408
    %v3411 = vmul.f32 1.0, %v3410
    %v3412 = vrcp.pop %v3409
    %v3413 = vmul.f32 1.0, %v3412
    %v3414 = vxor.u32 %v3393, 2147483648
    %v3415 = vxor.u32 %v3397, 2147483648
    %v3416 = vmul.f32 %v3414, 1.442695
    %v3417 = vpow.pop %v3416
    %v3418 = vmul.f32 %v3415, 1.442695
    %v3419 = vpow.pop %v3418
    %v3420 = vadd.f32 %v3417, 1.0
    %v3421 = vadd.f32 %v3419, 1.0
    %v3422 = vrcp.pop %v3420
    %v3423 = vmul.f32 1.0, %v3422
    %v3424 = vrcp.pop %v3421
    %v3425 = vmul.f32 1.0, %v3424
    %v3426 = vtanh.pop %v3394
    %v3427 = vtanh.pop %v3398
    %v3428 = vxor.u32 %v3395, 2147483648
    %v3429 = vxor.u32 %v3399, 2147483648
    %v3430 = vmul.f32 %v3428, 1.442695
    %v3431 = vpow.pop %v3430
    %v3432 = vmul.f32 %v3429, 1.442695
    %v3433 = vpow.pop %v3432
    %v3434 = vadd.f32 %v3431, 1.0
    %v3435 = vadd.f32 %v3433, 1.0
    %v3436 = vrcp.pop %v3434
    %v3437 = vmul.f32 1.0, %v3436
    %v3438 = vrcp.pop %v3435
    %v3439 = vmul.f32 1.0, %v3438
    %v3440 = vmul.f32 %v3423, %v3400
    %v3441 = vmul.f32 %v3425, %v3401
    %v3442 = vmul.f32 %v3411, %v3426
    %v3443 = vmul.f32 %v3413, %v3427
    %v3444 = vadd.f32 %v3440, %v3442
    %v3445 = vadd.f32 %v3441, %v3443
    %v3446 = vtanh.pop %v3444
    %v3447 = vtanh.pop %v3445
    %v3448 = vmul.f32 %v3437, %v3446
    %v3449 = vmul.f32 %v3439, %v3447
    %v3450 = vsel %vm2914, %v3444, %v3400
    %v3451 = vsel %vm2915, %v3445, %v3401
    %3452 = vst [vmem:[#allocation7] sm:$0xff] %v3450
    %3453 = vst [vmem:[#allocation7 + $0x8] sm:$0xff] %v3451
    %v3454 = vld [vmem:[#allocation6] sm:$0xff]
    %v3455 = vld [vmem:[#allocation6 + $0x8] sm:$0xff]
    %v3456 = vsel %vm2914, %v3448, %v3454
    %v3457 = vsel %vm2915, %v3449, %v3455
    %3458 = vst [vmem:[#allocation6] sm:$0xff] %v3456
    %3459 = vst [vmem:[#allocation6 + $0x8] sm:$0xff] %v3457
    %v3460 = vld [vmem:[#allocation9] sm:$0xff]
    %v3461 = vld [vmem:[#allocation9 + $0x8] sm:$0xff]
    %v3462 = vsel %vm2914, %v3448, 0.0
    %v3463 = vsel %vm2915, %v3449, 0.0
    %v3464 = vmax.f32 %v3460, %v3462
    %v3465 = vmax.f32 %v3461, %v3463
    %3466 = vst [vmem:[#allocation9] sm:$0xff] %v3464
    %3467 = vst [vmem:[#allocation9 + $0x8] sm:$0xff] %v3465
    %v3468 = vld [vmem:[#allocation4] sm:$0xff]
    %v3469 = vld [vmem:[#allocation4 + $0x8] sm:$0xff]
    %v3470 = vpack.c.bf16 %v3469, %v3468
    %3471 = vmatprep.subr.bf16.mxu0 %v1413
    %3472 = vmatpush1.bf16.msra.mxu0 %v1412
    %3473 = vmatprep.subr.bf16.mxu0 %v1417
    %3474 = vmatpush1.bf16.msra.mxu0 %v1416
    %3475 = vmatprep.subr.bf16.mxu0 %v1421
    %3476 = vmatpush1.bf16.msra.mxu0 %v1420
    %3477 = vmatprep.subr.bf16.mxu0 %v1425
    %3478 = vmatpush1.bf16.msra.mxu0 %v1424
    %3479 = vmatprep.subr.bf16.mxu0 %v1429
    %3480 = vmatpush1.bf16.msra.mxu0 %v1428
    %3481 = vmatprep.subr.bf16.mxu0 %v1433
    %3482 = vmatpush1.bf16.msra.mxu0 %v1432
    %3483 = vmatprep.subr.bf16.mxu0 %v1437
    %3484 = vmatpush1.bf16.msra.mxu0 %v1436
    %3485 = vmatprep.subr.bf16.mxu0 %v1441
    %3486 = vmatpush1.bf16.msra.mxu0 %v1440
    %3487 = vmatprep.subr.bf16.mxu0 0
    %3488 = vmatpush1.bf16.msra.mxu0 0
    %3489 = vmatprep.subr.bf16.mxu0 0
    %3490 = vmatpush1.bf16.msra.mxu0 0
    %3491 = vmatprep.subr.bf16.mxu0 0
    %3492 = vmatpush1.bf16.msra.mxu0 0
    %3493 = vmatprep.subr.bf16.mxu0 0
    %3494 = vmatpush1.bf16.msra.mxu0 0
    %3495 = vmatprep.subr.bf16.mxu0 0
    %3496 = vmatpush1.bf16.msra.mxu0 0
    %3497 = vmatprep.subr.bf16.mxu0 0
    %3498 = vmatpush1.bf16.msra.mxu0 0
    %3499 = vmatprep.subr.bf16.mxu0 0
    %3500 = vmatpush1.bf16.msra.mxu0 0
    %3501 = vmatprep.subr.bf16.mxu0 0
    %3502 = vmatpush1.bf16.msra.mxu0 0
    %3503 = vmatprep.mubr.bf16.mxu0 0
    %3504 = vmatmul.mubr.bf16.gmra.mrb[0].mxu0 %v3470
    %v3505 = vpop.f32.mrb[0].mxu0
    %v3506 = vadd.f32 0.0, %v3505
    %v3507 = vpop.f32.mrb[0].mxu0
    %v3508 = vadd.f32 0.0, %v3507
    %v3509 = vpop.f32.mrb[0].mxu0
    %v3510 = vadd.f32 0.0, %v3509
    %v3511 = vpop.f32.mrb[0].mxu0
    %v3512 = vadd.f32 0.0, %v3511
    %3513 = vdwg.mxu0
    %3514 = vmatprep.subr.bf16.mxu0 %v1415
    %3515 = vmatpush1.bf16.msra.mxu0 %v1414
    %3516 = vmatprep.subr.bf16.mxu0 %v1419
    %3517 = vmatpush1.bf16.msra.mxu0 %v1418
    %3518 = vmatprep.subr.bf16.mxu0 %v1423
    %3519 = vmatpush1.bf16.msra.mxu0 %v1422
    %3520 = vmatprep.subr.bf16.mxu0 %v1427
    %3521 = vmatpush1.bf16.msra.mxu0 %v1426
    %3522 = vmatprep.subr.bf16.mxu0 %v1431
    %3523 = vmatpush1.bf16.msra.mxu0 %v1430
    %3524 = vmatprep.subr.bf16.mxu0 %v1435
    %3525 = vmatpush1.bf16.msra.mxu0 %v1434
    %3526 = vmatprep.subr.bf16.mxu0 %v1439
    %3527 = vmatpush1.bf16.msra.mxu0 %v1438
    %3528 = vmatprep.subr.bf16.mxu0 %v1443
    %3529 = vmatpush1.bf16.msra.mxu0 %v1442
    %3530 = vmatprep.subr.bf16.mxu0 0
    %3531 = vmatpush1.bf16.msra.mxu0 0
    %3532 = vmatprep.subr.bf16.mxu0 0
    %3533 = vmatpush1.bf16.msra.mxu0 0
    %3534 = vmatprep.subr.bf16.mxu0 0
    %3535 = vmatpush1.bf16.msra.mxu0 0
    %3536 = vmatprep.subr.bf16.mxu0 0
    %3537 = vmatpush1.bf16.msra.mxu0 0
    %3538 = vmatprep.subr.bf16.mxu0 0
    %3539 = vmatpush1.bf16.msra.mxu0 0
    %3540 = vmatprep.subr.bf16.mxu0 0
    %3541 = vmatpush1.bf16.msra.mxu0 0
    %3542 = vmatprep.subr.bf16.mxu0 0
    %3543 = vmatpush1.bf16.msra.mxu0 0
    %3544 = vmatprep.subr.bf16.mxu0 0
    %3545 = vmatpush1.bf16.msra.mxu0 0
    %3546 = vmatprep.mubr.bf16.mxu0 0
    %3547 = vmatmul.mubr.bf16.gmra.mrb[0].mxu0 %v3470
    %v3548 = vpop.f32.mrb[0].mxu0
    %v3549 = vadd.f32 0.0, %v3548
    %v3550 = vpop.f32.mrb[0].mxu0
    %v3551 = vadd.f32 0.0, %v3550
    %v3552 = vpop.f32.mrb[0].mxu0
    %v3553 = vadd.f32 0.0, %v3552
    %v3554 = vpop.f32.mrb[0].mxu0
    %v3555 = vadd.f32 0.0, %v3554
    %3556 = vdwg.mxu0
    %s3557 = scalar_lea.vmem [#allocation2], 320
    %v3558 = vld [vmem:[%s3557] sm:$0xff]
    %v3559 = vld [vmem:[%s3557 + $0x8] sm:$0xff]
    %v3560 = vld [vmem:[%s3557 + $0x10] sm:$0xff]
    %v3561 = vld [vmem:[%s3557 + $0x18] sm:$0xff]
    %v3562 = vld [vmem:[%s3557 + $0x20] sm:$0xff]
    %v3563 = vld [vmem:[%s3557 + $0x28] sm:$0xff]
    %v3564 = vld [vmem:[%s3557 + $0x30] sm:$0xff]
    %v3565 = vld [vmem:[%s3557 + $0x38] sm:$0xff]
    %v3566 = vadd.f32 %v3558, %v3506
    %v3567 = vadd.f32 %v3559, %v3508
    %v3568 = vadd.f32 %v3560, %v3549
    %v3569 = vadd.f32 %v3561, %v3551
    %v3570 = vadd.f32 %v3562, %v3510
    %v3571 = vadd.f32 %v3563, %v3512
    %v3572 = vadd.f32 %v3564, %v3553
    %v3573 = vadd.f32 %v3565, %v3555
    %v3574 = vld [vmem:[#allocation5] sm:$0xff]
    %v3575 = vld [vmem:[#allocation5 + $0x8] sm:$0xff]
    %v3576 = vxor.u32 %v3566, 2147483648
    %v3577 = vxor.u32 %v3570, 2147483648
    %v3578 = vmul.f32 %v3576, 1.442695
    %v3579 = vpow.pop %v3578
    %v3580 = vmul.f32 %v3577, 1.442695
    %v3581 = vpow.pop %v3580
    %v3582 = vadd.f32 %v3579, 1.0
    %v3583 = vadd.f32 %v3581, 1.0
    %v3584 = vrcp.pop %v3582
    %v3585 = vmul.f32 1.0, %v3584
    %v3586 = vrcp.pop %v3583
    %v3587 = vmul.f32 1.0, %v3586
    %v3588 = vxor.u32 %v3567, 2147483648
    %v3589 = vxor.u32 %v3571, 2147483648
    %v3590 = vmul.f32 %v3588, 1.442695
    %v3591 = vpow.pop %v3590
    %v3592 = vmul.f32 %v3589, 1.442695
    %v3593 = vpow.pop %v3592
    %v3594 = vadd.f32 %v3591, 1.0
    %v3595 = vadd.f32 %v3593, 1.0
    %v3596 = vrcp.pop %v3594
    %v3597 = vmul.f32 1.0, %v3596
    %v3598 = vrcp.pop %v3595
    %v3599 = vmul.f32 1.0, %v3598
    %v3600 = vtanh.pop %v3568
    %v3601 = vtanh.pop %v3572
    %v3602 = vxor.u32 %v3569, 2147483648
    %v3603 = vxor.u32 %v3573, 2147483648
    %v3604 = vmul.f32 %v3602, 1.442695
    %v3605 = vpow.pop %v3604
    %v3606 = vmul.f32 %v3603, 1.442695
    %v3607 = vpow.pop %v3606
    %v3608 = vadd.f32 %v3605, 1.0
    %v3609 = vadd.f32 %v3607, 1.0
    %v3610 = vrcp.pop %v3608
    %v3611 = vmul.f32 1.0, %v3610
    %v3612 = vrcp.pop %v3609
    %v3613 = vmul.f32 1.0, %v3612
    %v3614 = vmul.f32 %v3597, %v3574
    %v3615 = vmul.f32 %v3599, %v3575
    %v3616 = vmul.f32 %v3585, %v3600
    %v3617 = vmul.f32 %v3587, %v3601
    %v3618 = vadd.f32 %v3614, %v3616
    %v3619 = vadd.f32 %v3615, %v3617
    %v3620 = vtanh.pop %v3618
    %v3621 = vtanh.pop %v3619
    %v3622 = vmul.f32 %v3611, %v3620
    %v3623 = vmul.f32 %v3613, %v3621
    %v3624 = vsel %vm2728, %v3618, %v3574
    %v3625 = vsel %vm2729, %v3619, %v3575
    %3626 = vst [vmem:[#allocation5] sm:$0xff] %v3624
    %3627 = vst [vmem:[#allocation5 + $0x8] sm:$0xff] %v3625
    %v3628 = vld [vmem:[#allocation4] sm:$0xff]
    %v3629 = vld [vmem:[#allocation4 + $0x8] sm:$0xff]
    %v3630 = vsel %vm2728, %v3622, %v3628
    %v3631 = vsel %vm2729, %v3623, %v3629
    %3632 = vst [vmem:[#allocation4] sm:$0xff] %v3630
    %3633 = vst [vmem:[#allocation4 + $0x8] sm:$0xff] %v3631
    %v3634 = vld [vmem:[#allocation8] sm:$0xff]
    %v3635 = vld [vmem:[#allocation8 + $0x8] sm:$0xff]
    %v3636 = vsel %vm2728, %v3622, 0.0
    %v3637 = vsel %vm2729, %v3623, 0.0
    %v3638 = vmax.f32 %v3634, %v3636
    %v3639 = vmax.f32 %v3635, %v3637
    %3640 = vst [vmem:[#allocation8] sm:$0xff] %v3638
    %3641 = vst [vmem:[#allocation8 + $0x8] sm:$0xff] %v3639
    %v3642 = vld [vmem:[#allocation6] sm:$0xff]
    %v3643 = vld [vmem:[#allocation6 + $0x8] sm:$0xff]
    %v3644 = vpack.c.bf16 %v3643, %v3642
    %3645 = vmatprep.subr.bf16.mxu0 %v1758
    %3646 = vmatpush1.bf16.msra.mxu0 %v1757
    %3647 = vmatprep.subr.bf16.mxu0 %v1762
    %3648 = vmatpush1.bf16.msra.mxu0 %v1761
    %3649 = vmatprep.subr.bf16.mxu0 %v1766
    %3650 = vmatpush1.bf16.msra.mxu0 %v1765
    %3651 = vmatprep.subr.bf16.mxu0 %v1770
    %3652 = vmatpush1.bf16.msra.mxu0 %v1769
    %3653 = vmatprep.subr.bf16.mxu0 %v1774
    %3654 = vmatpush1.bf16.msra.mxu0 %v1773
    %3655 = vmatprep.subr.bf16.mxu0 %v1778
    %3656 = vmatpush1.bf16.msra.mxu0 %v1777
    %3657 = vmatprep.subr.bf16.mxu0 %v1782
    %3658 = vmatpush1.bf16.msra.mxu0 %v1781
    %3659 = vmatprep.subr.bf16.mxu0 %v1786
    %3660 = vmatpush1.bf16.msra.mxu0 %v1785
    %3661 = vmatprep.subr.bf16.mxu0 0
    %3662 = vmatpush1.bf16.msra.mxu0 0
    %3663 = vmatprep.subr.bf16.mxu0 0
    %3664 = vmatpush1.bf16.msra.mxu0 0
    %3665 = vmatprep.subr.bf16.mxu0 0
    %3666 = vmatpush1.bf16.msra.mxu0 0
    %3667 = vmatprep.subr.bf16.mxu0 0
    %3668 = vmatpush1.bf16.msra.mxu0 0
    %3669 = vmatprep.subr.bf16.mxu0 0
    %3670 = vmatpush1.bf16.msra.mxu0 0
    %3671 = vmatprep.subr.bf16.mxu0 0
    %3672 = vmatpush1.bf16.msra.mxu0 0
    %3673 = vmatprep.subr.bf16.mxu0 0
    %3674 = vmatpush1.bf16.msra.mxu0 0
    %3675 = vmatprep.subr.bf16.mxu0 0
    %3676 = vmatpush1.bf16.msra.mxu0 0
    %3677 = vmatprep.mubr.bf16.mxu0 0
    %3678 = vmatmul.mubr.bf16.gmra.mrb[0].mxu0 %v3644
    %v3679 = vpop.f32.mrb[0].mxu0
    %v3680 = vadd.f32 0.0, %v3679
    %v3681 = vpop.f32.mrb[0].mxu0
    %v3682 = vadd.f32 0.0, %v3681
    %v3683 = vpop.f32.mrb[0].mxu0
    %v3684 = vadd.f32 0.0, %v3683
    %v3685 = vpop.f32.mrb[0].mxu0
    %v3686 = vadd.f32 0.0, %v3685
    %3687 = vdwg.mxu0
    %3688 = vmatprep.subr.bf16.mxu0 %v1760
    %3689 = vmatpush1.bf16.msra.mxu0 %v1759
    %3690 = vmatprep.subr.bf16.mxu0 %v1764
    %3691 = vmatpush1.bf16.msra.mxu0 %v1763
    %3692 = vmatprep.subr.bf16.mxu0 %v1768
    %3693 = vmatpush1.bf16.msra.mxu0 %v1767
    %3694 = vmatprep.subr.bf16.mxu0 %v1772
    %3695 = vmatpush1.bf16.msra.mxu0 %v1771
    %3696 = vmatprep.subr.bf16.mxu0 %v1776
    %3697 = vmatpush1.bf16.msra.mxu0 %v1775
    %3698 = vmatprep.subr.bf16.mxu0 %v1780
    %3699 = vmatpush1.bf16.msra.mxu0 %v1779
    %3700 = vmatprep.subr.bf16.mxu0 %v1784
    %3701 = vmatpush1.bf16.msra.mxu0 %v1783
    %3702 = vmatprep.subr.bf16.mxu0 %v1788
    %3703 = vmatpush1.bf16.msra.mxu0 %v1787
    %3704 = vmatprep.subr.bf16.mxu0 0
    %3705 = vmatpush1.bf16.msra.mxu0 0
    %3706 = vmatprep.subr.bf16.mxu0 0
    %3707 = vmatpush1.bf16.msra.mxu0 0
    %3708 = vmatprep.subr.bf16.mxu0 0
    %3709 = vmatpush1.bf16.msra.mxu0 0
    %3710 = vmatprep.subr.bf16.mxu0 0
    %3711 = vmatpush1.bf16.msra.mxu0 0
    %3712 = vmatprep.subr.bf16.mxu0 0
    %3713 = vmatpush1.bf16.msra.mxu0 0
    %3714 = vmatprep.subr.bf16.mxu0 0
    %3715 = vmatpush1.bf16.msra.mxu0 0
    %3716 = vmatprep.subr.bf16.mxu0 0
    %3717 = vmatpush1.bf16.msra.mxu0 0
    %3718 = vmatprep.subr.bf16.mxu0 0
    %3719 = vmatpush1.bf16.msra.mxu0 0
    %3720 = vmatprep.mubr.bf16.mxu0 0
    %3721 = vmatmul.mubr.bf16.gmra.mrb[0].mxu0 %v3644
    %v3722 = vpop.f32.mrb[0].mxu0
    %v3723 = vadd.f32 0.0, %v3722
    %v3724 = vpop.f32.mrb[0].mxu0
    %v3725 = vadd.f32 0.0, %v3724
    %v3726 = vpop.f32.mrb[0].mxu0
    %v3727 = vadd.f32 0.0, %v3726
    %v3728 = vpop.f32.mrb[0].mxu0
    %v3729 = vadd.f32 0.0, %v3728
    %3730 = vdwg.mxu0
    %s3731 = scalar_lea.vmem [#allocation3], 128
    %v3732 = vld [vmem:[%s3731] sm:$0xff]
    %v3733 = vld [vmem:[%s3731 + $0x8] sm:$0xff]
    %v3734 = vld [vmem:[%s3731 + $0x10] sm:$0xff]
    %v3735 = vld [vmem:[%s3731 + $0x18] sm:$0xff]
    %v3736 = vld [vmem:[%s3731 + $0x20] sm:$0xff]
    %v3737 = vld [vmem:[%s3731 + $0x28] sm:$0xff]
    %v3738 = vld [vmem:[%s3731 + $0x30] sm:$0xff]
    %v3739 = vld [vmem:[%s3731 + $0x38] sm:$0xff]
    %v3740 = vadd.f32 %v3732, %v3680
    %v3741 = vadd.f32 %v3733, %v3682
    %v3742 = vadd.f32 %v3734, %v3723
    %v3743 = vadd.f32 %v3735, %v3725
    %v3744 = vadd.f32 %v3736, %v3684
    %v3745 = vadd.f32 %v3737, %v3686
    %v3746 = vadd.f32 %v3738, %v3727
    %v3747 = vadd.f32 %v3739, %v3729
    %v3748 = vld [vmem:[#allocation7] sm:$0xff]
    %v3749 = vld [vmem:[#allocation7 + $0x8] sm:$0xff]
    %v3750 = vxor.u32 %v3740, 2147483648
    %v3751 = vxor.u32 %v3744, 2147483648
    %v3752 = vmul.f32 %v3750, 1.442695
    %v3753 = vpow.pop %v3752
    %v3754 = vmul.f32 %v3751, 1.442695
    %v3755 = vpow.pop %v3754
    %v3756 = vadd.f32 %v3753, 1.0
    %v3757 = vadd.f32 %v3755, 1.0
    %v3758 = vrcp.pop %v3756
    %v3759 = vmul.f32 1.0, %v3758
    %v3760 = vrcp.pop %v3757
    %v3761 = vmul.f32 1.0, %v3760
    %v3762 = vxor.u32 %v3741, 2147483648
    %v3763 = vxor.u32 %v3745, 2147483648
    %v3764 = vmul.f32 %v3762, 1.442695
    %v3765 = vpow.pop %v3764
    %v3766 = vmul.f32 %v3763, 1.442695
    %v3767 = vpow.pop %v3766
    %v3768 = vadd.f32 %v3765, 1.0
    %v3769 = vadd.f32 %v3767, 1.0
    %v3770 = vrcp.pop %v3768
    %v3771 = vmul.f32 1.0, %v3770
    %v3772 = vrcp.pop %v3769
    %v3773 = vmul.f32 1.0, %v3772
    %v3774 = vtanh.pop %v3742
    %v3775 = vtanh.pop %v3746
    %v3776 = vxor.u32 %v3743, 2147483648
    %v3777 = vxor.u32 %v3747, 2147483648
    %v3778 = vmul.f32 %v3776, 1.442695
    %v3779 = vpow.pop %v3778
    %v3780 = vmul.f32 %v3777, 1.442695
    %v3781 = vpow.pop %v3780
    %v3782 = vadd.f32 %v3779, 1.0
    %v3783 = vadd.f32 %v3781, 1.0
    %v3784 = vrcp.pop %v3782
    %v3785 = vmul.f32 1.0, %v3784
    %v3786 = vrcp.pop %v3783
    %v3787 = vmul.f32 1.0, %v3786
    %v3788 = vmul.f32 %v3771, %v3748
    %v3789 = vmul.f32 %v3773, %v3749
    %v3790 = vmul.f32 %v3759, %v3774
    %v3791 = vmul.f32 %v3761, %v3775
    %v3792 = vadd.f32 %v3788, %v3790
    %v3793 = vadd.f32 %v3789, %v3791
    %v3794 = vtanh.pop %v3792
    %v3795 = vtanh.pop %v3793
    %v3796 = vmul.f32 %v3785, %v3794
    %v3797 = vmul.f32 %v3787, %v3795
    %v3798 = vsel %vm2542, %v3792, %v3748
    %v3799 = vsel %vm2543, %v3793, %v3749
    %3800 = vst [vmem:[#allocation7] sm:$0xff] %v3798
    %3801 = vst [vmem:[#allocation7 + $0x8] sm:$0xff] %v3799
    %v3802 = vld [vmem:[#allocation6] sm:$0xff]
    %v3803 = vld [vmem:[#allocation6 + $0x8] sm:$0xff]
    %v3804 = vsel %vm2542, %v3796, %v3802
    %v3805 = vsel %vm2543, %v3797, %v3803
    %3806 = vst [vmem:[#allocation6] sm:$0xff] %v3804
    %3807 = vst [vmem:[#allocation6 + $0x8] sm:$0xff] %v3805
    %v3808 = vld [vmem:[#allocation9] sm:$0xff]
    %v3809 = vld [vmem:[#allocation9 + $0x8] sm:$0xff]
    %v3810 = vsel %vm2542, %v3796, 0.0
    %v3811 = vsel %vm2543, %v3797, 0.0
    %v3812 = vmax.f32 %v3808, %v3810
    %v3813 = vmax.f32 %v3809, %v3811
    %3814 = vst [vmem:[#allocation9] sm:$0xff] %v3812
    %3815 = vst [vmem:[#allocation9 + $0x8] sm:$0xff] %v3813
    %v3816 = vld [vmem:[#allocation4] sm:$0xff]
    %v3817 = vld [vmem:[#allocation4 + $0x8] sm:$0xff]
    %v3818 = vpack.c.bf16 %v3817, %v3816
    %3819 = vmatprep.subr.bf16.mxu0 %v1413
    %3820 = vmatpush1.bf16.msra.mxu0 %v1412
    %3821 = vmatprep.subr.bf16.mxu0 %v1417
    %3822 = vmatpush1.bf16.msra.mxu0 %v1416
    %3823 = vmatprep.subr.bf16.mxu0 %v1421
    %3824 = vmatpush1.bf16.msra.mxu0 %v1420
    %3825 = vmatprep.subr.bf16.mxu0 %v1425
    %3826 = vmatpush1.bf16.msra.mxu0 %v1424
    %3827 = vmatprep.subr.bf16.mxu0 %v1429
    %3828 = vmatpush1.bf16.msra.mxu0 %v1428
    %3829 = vmatprep.subr.bf16.mxu0 %v1433
    %3830 = vmatpush1.bf16.msra.mxu0 %v1432
    %3831 = vmatprep.subr.bf16.mxu0 %v1437
    %3832 = vmatpush1.bf16.msra.mxu0 %v1436
    %3833 = vmatprep.subr.bf16.mxu0 %v1441
    %3834 = vmatpush1.bf16.msra.mxu0 %v1440
    %3835 = vmatprep.subr.bf16.mxu0 0
    %3836 = vmatpush1.bf16.msra.mxu0 0
    %3837 = vmatprep.subr.bf16.mxu0 0
    %3838 = vmatpush1.bf16.msra.mxu0 0
    %3839 = vmatprep.subr.bf16.mxu0 0
    %3840 = vmatpush1.bf16.msra.mxu0 0
    %3841 = vmatprep.subr.bf16.mxu0 0
    %3842 = vmatpush1.bf16.msra.mxu0 0
    %3843 = vmatprep.subr.bf16.mxu0 0
    %3844 = vmatpush1.bf16.msra.mxu0 0
    %3845 = vmatprep.subr.bf16.mxu0 0
    %3846 = vmatpush1.bf16.msra.mxu0 0
    %3847 = vmatprep.subr.bf16.mxu0 0
    %3848 = vmatpush1.bf16.msra.mxu0 0
    %3849 = vmatprep.subr.bf16.mxu0 0
    %3850 = vmatpush1.bf16.msra.mxu0 0
    %3851 = vmatprep.mubr.bf16.mxu0 0
    %3852 = vmatmul.mubr.bf16.gmra.mrb[0].mxu0 %v3818
    %v3853 = vpop.f32.mrb[0].mxu0
    %v3854 = vadd.f32 0.0, %v3853
    %v3855 = vpop.f32.mrb[0].mxu0
    %v3856 = vadd.f32 0.0, %v3855
    %v3857 = vpop.f32.mrb[0].mxu0
    %v3858 = vadd.f32 0.0, %v3857
    %v3859 = vpop.f32.mrb[0].mxu0
    %v3860 = vadd.f32 0.0, %v3859
    %3861 = vdwg.mxu0
    %3862 = vmatprep.subr.bf16.mxu0 %v1415
    %3863 = vmatpush1.bf16.msra.mxu0 %v1414
    %3864 = vmatprep.subr.bf16.mxu0 %v1419
    %3865 = vmatpush1.bf16.msra.mxu0 %v1418
    %3866 = vmatprep.subr.bf16.mxu0 %v1423
    %3867 = vmatpush1.bf16.msra.mxu0 %v1422
    %3868 = vmatprep.subr.bf16.mxu0 %v1427
    %3869 = vmatpush1.bf16.msra.mxu0 %v1426
    %3870 = vmatprep.subr.bf16.mxu0 %v1431
    %3871 = vmatpush1.bf16.msra.mxu0 %v1430
    %3872 = vmatprep.subr.bf16.mxu0 %v1435
    %3873 = vmatpush1.bf16.msra.mxu0 %v1434
    %3874 = vmatprep.subr.bf16.mxu0 %v1439
    %3875 = vmatpush1.bf16.msra.mxu0 %v1438
    %3876 = vmatprep.subr.bf16.mxu0 %v1443
    %3877 = vmatpush1.bf16.msra.mxu0 %v1442
    %3878 = vmatprep.subr.bf16.mxu0 0
    %3879 = vmatpush1.bf16.msra.mxu0 0
    %3880 = vmatprep.subr.bf16.mxu0 0
    %3881 = vmatpush1.bf16.msra.mxu0 0
    %3882 = vmatprep.subr.bf16.mxu0 0
    %3883 = vmatpush1.bf16.msra.mxu0 0
    %3884 = vmatprep.subr.bf16.mxu0 0
    %3885 = vmatpush1.bf16.msra.mxu0 0
    %3886 = vmatprep.subr.bf16.mxu0 0
    %3887 = vmatpush1.bf16.msra.mxu0 0
    %3888 = vmatprep.subr.bf16.mxu0 0
    %3889 = vmatpush1.bf16.msra.mxu0 0
    %3890 = vmatprep.subr.bf16.mxu0 0
    %3891 = vmatpush1.bf16.msra.mxu0 0
    %3892 = vmatprep.subr.bf16.mxu0 0
    %3893 = vmatpush1.bf16.msra.mxu0 0
    %3894 = vmatprep.mubr.bf16.mxu0 0
    %3895 = vmatmul.mubr.bf16.gmra.mrb[0].mxu0 %v3818
    %v3896 = vpop.f32.mrb[0].mxu0
    %v3897 = vadd.f32 0.0, %v3896
    %v3898 = vpop.f32.mrb[0].mxu0
    %v3899 = vadd.f32 0.0, %v3898
    %v3900 = vpop.f32.mrb[0].mxu0
    %v3901 = vadd.f32 0.0, %v3900
    %v3902 = vpop.f32.mrb[0].mxu0
    %v3903 = vadd.f32 0.0, %v3902
    %3904 = vdwg.mxu0
    %s3905 = scalar_lea.vmem [#allocation2], 384
    %v3906 = vld [vmem:[%s3905] sm:$0xff]
    %v3907 = vld [vmem:[%s3905 + $0x8] sm:$0xff]
    %v3908 = vld [vmem:[%s3905 + $0x10] sm:$0xff]
    %v3909 = vld [vmem:[%s3905 + $0x18] sm:$0xff]
    %v3910 = vld [vmem:[%s3905 + $0x20] sm:$0xff]
    %v3911 = vld [vmem:[%s3905 + $0x28] sm:$0xff]
    %v3912 = vld [vmem:[%s3905 + $0x30] sm:$0xff]
    %v3913 = vld [vmem:[%s3905 + $0x38] sm:$0xff]
    %v3914 = vadd.f32 %v3906, %v3854
    %v3915 = vadd.f32 %v3907, %v3856
    %v3916 = vadd.f32 %v3908, %v3897
    %v3917 = vadd.f32 %v3909, %v3899
    %v3918 = vadd.f32 %v3910, %v3858
    %v3919 = vadd.f32 %v3911, %v3860
    %v3920 = vadd.f32 %v3912, %v3901
    %v3921 = vadd.f32 %v3913, %v3903
    %v3922 = vld [vmem:[#allocation5] sm:$0xff]
    %v3923 = vld [vmem:[#allocation5 + $0x8] sm:$0xff]
    %v3924 = vxor.u32 %v3914, 2147483648
    %v3925 = vxor.u32 %v3918, 2147483648
    %v3926 = vmul.f32 %v3924, 1.442695
    %v3927 = vpow.pop %v3926
    %v3928 = vmul.f32 %v3925, 1.442695
    %v3929 = vpow.pop %v3928
    %v3930 = vadd.f32 %v3927, 1.0
    %v3931 = vadd.f32 %v3929, 1.0
    %v3932 = vrcp.pop %v3930
    %v3933 = vmul.f32 1.0, %v3932
    %v3934 = vrcp.pop %v3931
    %v3935 = vmul.f32 1.0, %v3934
    %v3936 = vxor.u32 %v3915, 2147483648
    %v3937 = vxor.u32 %v3919, 2147483648
    %v3938 = vmul.f32 %v3936, 1.442695
    %v3939 = vpow.pop %v3938
    %v3940 = vmul.f32 %v3937, 1.442695
    %v3941 = vpow.pop %v3940
    %v3942 = vadd.f32 %v3939, 1.0
    %v3943 = vadd.f32 %v3941, 1.0
    %v3944 = vrcp.pop %v3942
    %v3945 = vmul.f32 1.0, %v3944
    %v3946 = vrcp.pop %v3943
    %v3947 = vmul.f32 1.0, %v3946
    %v3948 = vtanh.pop %v3916
    %v3949 = vtanh.pop %v3920
    %v3950 = vxor.u32 %v3917, 2147483648
    %v3951 = vxor.u32 %v3921, 2147483648
    %v3952 = vmul.f32 %v3950, 1.442695
    %v3953 = vpow.pop %v3952
    %v3954 = vmul.f32 %v3951, 1.442695
    %v3955 = vpow.pop %v3954
    %v3956 = vadd.f32 %v3953, 1.0
    %v3957 = vadd.f32 %v3955, 1.0
    %v3958 = vrcp.pop %v3956
    %v3959 = vmul.f32 1.0, %v3958
    %v3960 = vrcp.pop %v3957
    %v3961 = vmul.f32 1.0, %v3960
    %v3962 = vmul.f32 %v3945, %v3922
    %v3963 = vmul.f32 %v3947, %v3923
    %v3964 = vmul.f32 %v3933, %v3948
    %v3965 = vmul.f32 %v3935, %v3949
    %v3966 = vadd.f32 %v3962, %v3964
    %v3967 = vadd.f32 %v3963, %v3965
    %v3968 = vtanh.pop %v3966
    %v3969 = vtanh.pop %v3967
    %v3970 = vmul.f32 %v3959, %v3968
    %v3971 = vmul.f32 %v3961, %v3969
    %v3972 = vsel %vm2356, %v3966, %v3922
    %v3973 = vsel %vm2357, %v3967, %v3923
    %3974 = vst [vmem:[#allocation5] sm:$0xff] %v3972
    %3975 = vst [vmem:[#allocation5 + $0x8] sm:$0xff] %v3973
    %v3976 = vld [vmem:[#allocation4] sm:$0xff]
    %v3977 = vld [vmem:[#allocation4 + $0x8] sm:$0xff]
    %v3978 = vsel %vm2356, %v3970, %v3976
    %v3979 = vsel %vm2357, %v3971, %v3977
    %3980 = vst [vmem:[#allocation4] sm:$0xff] %v3978
    %3981 = vst [vmem:[#allocation4 + $0x8] sm:$0xff] %v3979
    %v3982 = vld [vmem:[#allocation8] sm:$0xff]
    %v3983 = vld [vmem:[#allocation8 + $0x8] sm:$0xff]
    %v3984 = vsel %vm2356, %v3970, 0.0
    %v3985 = vsel %vm2357, %v3971, 0.0
    %v3986 = vmax.f32 %v3982, %v3984
    %v3987 = vmax.f32 %v3983, %v3985
    %3988 = vst [vmem:[#allocation8] sm:$0xff] %v3986
    %3989 = vst [vmem:[#allocation8 + $0x8] sm:$0xff] %v3987
    %v3990 = vld [vmem:[#allocation6] sm:$0xff]
    %v3991 = vld [vmem:[#allocation6 + $0x8] sm:$0xff]
    %v3992 = vpack.c.bf16 %v3991, %v3990
    %3993 = vmatprep.subr.bf16.mxu0 %v1758
    %3994 = vmatpush1.bf16.msra.mxu0 %v1757
    %3995 = vmatprep.subr.bf16.mxu0 %v1762
    %3996 = vmatpush1.bf16.msra.mxu0 %v1761
    %3997 = vmatprep.subr.bf16.mxu0 %v1766
    %3998 = vmatpush1.bf16.msra.mxu0 %v1765
    %3999 = vmatprep.subr.bf16.mxu0 %v1770
    %4000 = vmatpush1.bf16.msra.mxu0 %v1769
    %4001 = vmatprep.subr.bf16.mxu0 %v1774
    %4002 = vmatpush1.bf16.msra.mxu0 %v1773
    %4003 = vmatprep.subr.bf16.mxu0 %v1778
    %4004 = vmatpush1.bf16.msra.mxu0 %v1777
    %4005 = vmatprep.subr.bf16.mxu0 %v1782
    %4006 = vmatpush1.bf16.msra.mxu0 %v1781
    %4007 = vmatprep.subr.bf16.mxu0 %v1786
    %4008 = vmatpush1.bf16.msra.mxu0 %v1785
    %4009 = vmatprep.subr.bf16.mxu0 0
    %4010 = vmatpush1.bf16.msra.mxu0 0
    %4011 = vmatprep.subr.bf16.mxu0 0
    %4012 = vmatpush1.bf16.msra.mxu0 0
    %4013 = vmatprep.subr.bf16.mxu0 0
    %4014 = vmatpush1.bf16.msra.mxu0 0
    %4015 = vmatprep.subr.bf16.mxu0 0
    %4016 = vmatpush1.bf16.msra.mxu0 0
    %4017 = vmatprep.subr.bf16.mxu0 0
    %4018 = vmatpush1.bf16.msra.mxu0 0
    %4019 = vmatprep.subr.bf16.mxu0 0
    %4020 = vmatpush1.bf16.msra.mxu0 0
    %4021 = vmatprep.subr.bf16.mxu0 0
    %4022 = vmatpush1.bf16.msra.mxu0 0
    %4023 = vmatprep.subr.bf16.mxu0 0
    %4024 = vmatpush1.bf16.msra.mxu0 0
    %4025 = vmatprep.mubr.bf16.mxu0 0
    %4026 = vmatmul.mubr.bf16.gmra.mrb[0].mxu0 %v3992
    %v4027 = vpop.f32.mrb[0].mxu0
    %v4028 = vadd.f32 0.0, %v4027
    %v4029 = vpop.f32.mrb[0].mxu0
    %v4030 = vadd.f32 0.0, %v4029
    %v4031 = vpop.f32.mrb[0].mxu0
    %v4032 = vadd.f32 0.0, %v4031
    %v4033 = vpop.f32.mrb[0].mxu0
    %v4034 = vadd.f32 0.0, %v4033
    %4035 = vdwg.mxu0
    %4036 = vmatprep.subr.bf16.mxu0 %v1760
    %4037 = vmatpush1.bf16.msra.mxu0 %v1759
    %4038 = vmatprep.subr.bf16.mxu0 %v1764
    %4039 = vmatpush1.bf16.msra.mxu0 %v1763
    %4040 = vmatprep.subr.bf16.mxu0 %v1768
    %4041 = vmatpush1.bf16.msra.mxu0 %v1767
    %4042 = vmatprep.subr.bf16.mxu0 %v1772
    %4043 = vmatpush1.bf16.msra.mxu0 %v1771
    %4044 = vmatprep.subr.bf16.mxu0 %v1776
    %4045 = vmatpush1.bf16.msra.mxu0 %v1775
    %4046 = vmatprep.subr.bf16.mxu0 %v1780
    %4047 = vmatpush1.bf16.msra.mxu0 %v1779
    %4048 = vmatprep.subr.bf16.mxu0 %v1784
    %4049 = vmatpush1.bf16.msra.mxu0 %v1783
    %4050 = vmatprep.subr.bf16.mxu0 %v1788
    %4051 = vmatpush1.bf16.msra.mxu0 %v1787
    %4052 = vmatprep.subr.bf16.mxu0 0
    %4053 = vmatpush1.bf16.msra.mxu0 0
    %4054 = vmatprep.subr.bf16.mxu0 0
    %4055 = vmatpush1.bf16.msra.mxu0 0
    %4056 = vmatprep.subr.bf16.mxu0 0
    %4057 = vmatpush1.bf16.msra.mxu0 0
    %4058 = vmatprep.subr.bf16.mxu0 0
    %4059 = vmatpush1.bf16.msra.mxu0 0
    %4060 = vmatprep.subr.bf16.mxu0 0
    %4061 = vmatpush1.bf16.msra.mxu0 0
    %4062 = vmatprep.subr.bf16.mxu0 0
    %4063 = vmatpush1.bf16.msra.mxu0 0
    %4064 = vmatprep.subr.bf16.mxu0 0
    %4065 = vmatpush1.bf16.msra.mxu0 0
    %4066 = vmatprep.subr.bf16.mxu0 0
    %4067 = vmatpush1.bf16.msra.mxu0 0
    %4068 = vmatprep.mubr.bf16.mxu0 0
    %4069 = vmatmul.mubr.bf16.gmra.mrb[0].mxu0 %v3992
    %v4070 = vpop.f32.mrb[0].mxu0
    %v4071 = vadd.f32 0.0, %v4070
    %v4072 = vpop.f32.mrb[0].mxu0
    %v4073 = vadd.f32 0.0, %v4072
    %v4074 = vpop.f32.mrb[0].mxu0
    %v4075 = vadd.f32 0.0, %v4074
    %v4076 = vpop.f32.mrb[0].mxu0
    %v4077 = vadd.f32 0.0, %v4076
    %4078 = vdwg.mxu0
    %s4079 = scalar_lea.vmem [#allocation3], 64
    %v4080 = vld [vmem:[%s4079] sm:$0xff]
    %v4081 = vld [vmem:[%s4079 + $0x8] sm:$0xff]
    %v4082 = vld [vmem:[%s4079 + $0x10] sm:$0xff]
    %v4083 = vld [vmem:[%s4079 + $0x18] sm:$0xff]
    %v4084 = vld [vmem:[%s4079 + $0x20] sm:$0xff]
    %v4085 = vld [vmem:[%s4079 + $0x28] sm:$0xff]
    %v4086 = vld [vmem:[%s4079 + $0x30] sm:$0xff]
    %v4087 = vld [vmem:[%s4079 + $0x38] sm:$0xff]
    %v4088 = vadd.f32 %v4080, %v4028
    %v4089 = vadd.f32 %v4081, %v4030
    %v4090 = vadd.f32 %v4082, %v4071
    %v4091 = vadd.f32 %v4083, %v4073
    %v4092 = vadd.f32 %v4084, %v4032
    %v4093 = vadd.f32 %v4085, %v4034
    %v4094 = vadd.f32 %v4086, %v4075
    %v4095 = vadd.f32 %v4087, %v4077
    %v4096 = vld [vmem:[#allocation7] sm:$0xff]
    %v4097 = vld [vmem:[#allocation7 + $0x8] sm:$0xff]
    %v4098 = vxor.u32 %v4088, 2147483648
    %v4099 = vxor.u32 %v4092, 2147483648
    %v4100 = vmul.f32 %v4098, 1.442695
    %v4101 = vpow.pop %v4100
    %v4102 = vmul.f32 %v4099, 1.442695
    %v4103 = vpow.pop %v4102
    %v4104 = vadd.f32 %v4101, 1.0
    %v4105 = vadd.f32 %v4103, 1.0
    %v4106 = vrcp.pop %v4104
    %v4107 = vmul.f32 1.0, %v4106
    %v4108 = vrcp.pop %v4105
    %v4109 = vmul.f32 1.0, %v4108
    %v4110 = vxor.u32 %v4089, 2147483648
    %v4111 = vxor.u32 %v4093, 2147483648
    %v4112 = vmul.f32 %v4110, 1.442695
    %v4113 = vpow.pop %v4112
    %v4114 = vmul.f32 %v4111, 1.442695
    %v4115 = vpow.pop %v4114
    %v4116 = vadd.f32 %v4113, 1.0
    %v4117 = vadd.f32 %v4115, 1.0
    %v4118 = vrcp.pop %v4116
    %v4119 = vmul.f32 1.0, %v4118
    %v4120 = vrcp.pop %v4117
    %v4121 = vmul.f32 1.0, %v4120
    %v4122 = vtanh.pop %v4090
    %v4123 = vtanh.pop %v4094
    %v4124 = vxor.u32 %v4091, 2147483648
    %v4125 = vxor.u32 %v4095, 2147483648
    %v4126 = vmul.f32 %v4124, 1.442695
    %v4127 = vpow.pop %v4126
    %v4128 = vmul.f32 %v4125, 1.442695
    %v4129 = vpow.pop %v4128
    %v4130 = vadd.f32 %v4127, 1.0
    %v4131 = vadd.f32 %v4129, 1.0
    %v4132 = vrcp.pop %v4130
    %v4133 = vmul.f32 1.0, %v4132
    %v4134 = vrcp.pop %v4131
    %v4135 = vmul.f32 1.0, %v4134
    %v4136 = vmul.f32 %v4119, %v4096
    %v4137 = vmul.f32 %v4121, %v4097
    %v4138 = vmul.f32 %v4107, %v4122
    %v4139 = vmul.f32 %v4109, %v4123
    %v4140 = vadd.f32 %v4136, %v4138
    %v4141 = vadd.f32 %v4137, %v4139
    %v4142 = vtanh.pop %v4140
    %v4143 = vtanh.pop %v4141
    %v4144 = vmul.f32 %v4133, %v4142
    %v4145 = vmul.f32 %v4135, %v4143
    %v4146 = vsel %vm2170, %v4140, %v4096
    %v4147 = vsel %vm2171, %v4141, %v4097
    %4148 = vst [vmem:[#allocation7] sm:$0xff] %v4146
    %4149 = vst [vmem:[#allocation7 + $0x8] sm:$0xff] %v4147
    %v4150 = vld [vmem:[#allocation6] sm:$0xff]
    %v4151 = vld [vmem:[#allocation6 + $0x8] sm:$0xff]
    %v4152 = vsel %vm2170, %v4144, %v4150
    %v4153 = vsel %vm2171, %v4145, %v4151
    %4154 = vst [vmem:[#allocation6] sm:$0xff] %v4152
    %4155 = vst [vmem:[#allocation6 + $0x8] sm:$0xff] %v4153
    %v4156 = vld [vmem:[#allocation9] sm:$0xff]
    %v4157 = vld [vmem:[#allocation9 + $0x8] sm:$0xff]
    %v4158 = vsel %vm2170, %v4144, 0.0
    %v4159 = vsel %vm2171, %v4145, 0.0
    %v4160 = vmax.f32 %v4156, %v4158
    %v4161 = vmax.f32 %v4157, %v4159
    %4162 = vst [vmem:[#allocation9] sm:$0xff] %v4160
    %4163 = vst [vmem:[#allocation9 + $0x8] sm:$0xff] %v4161
    %v4164 = vld [vmem:[#allocation4] sm:$0xff]
    %v4165 = vld [vmem:[#allocation4 + $0x8] sm:$0xff]
    %v4166 = vpack.c.bf16 %v4165, %v4164
    %4167 = vmatprep.subr.bf16.mxu0 %v1413
    %4168 = vmatpush1.bf16.msra.mxu0 %v1412
    %4169 = vmatprep.subr.bf16.mxu0 %v1417
    %4170 = vmatpush1.bf16.msra.mxu0 %v1416
    %4171 = vmatprep.subr.bf16.mxu0 %v1421
    %4172 = vmatpush1.bf16.msra.mxu0 %v1420
    %4173 = vmatprep.subr.bf16.mxu0 %v1425
    %4174 = vmatpush1.bf16.msra.mxu0 %v1424
    %4175 = vmatprep.subr.bf16.mxu0 %v1429
    %4176 = vmatpush1.bf16.msra.mxu0 %v1428
    %4177 = vmatprep.subr.bf16.mxu0 %v1433
    %4178 = vmatpush1.bf16.msra.mxu0 %v1432
    %4179 = vmatprep.subr.bf16.mxu0 %v1437
    %4180 = vmatpush1.bf16.msra.mxu0 %v1436
    %4181 = vmatprep.subr.bf16.mxu0 %v1441
    %4182 = vmatpush1.bf16.msra.mxu0 %v1440
    %4183 = vmatprep.subr.bf16.mxu0 0
    %4184 = vmatpush1.bf16.msra.mxu0 0
    %4185 = vmatprep.subr.bf16.mxu0 0
    %4186 = vmatpush1.bf16.msra.mxu0 0
    %4187 = vmatprep.subr.bf16.mxu0 0
    %4188 = vmatpush1.bf16.msra.mxu0 0
    %4189 = vmatprep.subr.bf16.mxu0 0
    %4190 = vmatpush1.bf16.msra.mxu0 0
    %4191 = vmatprep.subr.bf16.mxu0 0
    %4192 = vmatpush1.bf16.msra.mxu0 0
    %4193 = vmatprep.subr.bf16.mxu0 0
    %4194 = vmatpush1.bf16.msra.mxu0 0
    %4195 = vmatprep.subr.bf16.mxu0 0
    %4196 = vmatpush1.bf16.msra.mxu0 0
    %4197 = vmatprep.subr.bf16.mxu0 0
    %4198 = vmatpush1.bf16.msra.mxu0 0
    %4199 = vmatprep.mubr.bf16.mxu0 0
    %4200 = vmatmul.mubr.bf16.gmra.mrb[0].mxu0 %v4166
    %v4201 = vpop.f32.mrb[0].mxu0
    %v4202 = vadd.f32 0.0, %v4201
    %v4203 = vpop.f32.mrb[0].mxu0
    %v4204 = vadd.f32 0.0, %v4203
    %v4205 = vpop.f32.mrb[0].mxu0
    %v4206 = vadd.f32 0.0, %v4205
    %v4207 = vpop.f32.mrb[0].mxu0
    %v4208 = vadd.f32 0.0, %v4207
    %4209 = vdwg.mxu0
    %4210 = vmatprep.subr.bf16.mxu0 %v1415
    %4211 = vmatpush1.bf16.msra.mxu0 %v1414
    %4212 = vmatprep.subr.bf16.mxu0 %v1419
    %4213 = vmatpush1.bf16.msra.mxu0 %v1418
    %4214 = vmatprep.subr.bf16.mxu0 %v1423
    %4215 = vmatpush1.bf16.msra.mxu0 %v1422
    %4216 = vmatprep.subr.bf16.mxu0 %v1427
    %4217 = vmatpush1.bf16.msra.mxu0 %v1426
    %4218 = vmatprep.subr.bf16.mxu0 %v1431
    %4219 = vmatpush1.bf16.msra.mxu0 %v1430
    %4220 = vmatprep.subr.bf16.mxu0 %v1435
    %4221 = vmatpush1.bf16.msra.mxu0 %v1434
    %4222 = vmatprep.subr.bf16.mxu0 %v1439
    %4223 = vmatpush1.bf16.msra.mxu0 %v1438
    %4224 = vmatprep.subr.bf16.mxu0 %v1443
    %4225 = vmatpush1.bf16.msra.mxu0 %v1442
    %4226 = vmatprep.subr.bf16.mxu0 0
    %4227 = vmatpush1.bf16.msra.mxu0 0
    %4228 = vmatprep.subr.bf16.mxu0 0
    %4229 = vmatpush1.bf16.msra.mxu0 0
    %4230 = vmatprep.subr.bf16.mxu0 0
    %4231 = vmatpush1.bf16.msra.mxu0 0
    %4232 = vmatprep.subr.bf16.mxu0 0
    %4233 = vmatpush1.bf16.msra.mxu0 0
    %4234 = vmatprep.subr.bf16.mxu0 0
    %4235 = vmatpush1.bf16.msra.mxu0 0
    %4236 = vmatprep.subr.bf16.mxu0 0
    %4237 = vmatpush1.bf16.msra.mxu0 0
    %4238 = vmatprep.subr.bf16.mxu0 0
    %4239 = vmatpush1.bf16.msra.mxu0 0
    %4240 = vmatprep.subr.bf16.mxu0 0
    %4241 = vmatpush1.bf16.msra.mxu0 0
    %4242 = vmatprep.mubr.bf16.mxu0 0
    %4243 = vmatmul.mubr.bf16.gmra.mrb[0].mxu0 %v4166
    %v4244 = vpop.f32.mrb[0].mxu0
    %v4245 = vadd.f32 0.0, %v4244
    %v4246 = vpop.f32.mrb[0].mxu0
    %v4247 = vadd.f32 0.0, %v4246
    %v4248 = vpop.f32.mrb[0].mxu0
    %v4249 = vadd.f32 0.0, %v4248
    %v4250 = vpop.f32.mrb[0].mxu0
    %v4251 = vadd.f32 0.0, %v4250
    %4252 = vdwg.mxu0
    %s4253 = scalar_lea.vmem [#allocation2], 448
    %v4254 = vld [vmem:[%s4253] sm:$0xff]
    %v4255 = vld [vmem:[%s4253 + $0x8] sm:$0xff]
    %v4256 = vld [vmem:[%s4253 + $0x10] sm:$0xff]
    %v4257 = vld [vmem:[%s4253 + $0x18] sm:$0xff]
    %v4258 = vld [vmem:[%s4253 + $0x20] sm:$0xff]
    %v4259 = vld [vmem:[%s4253 + $0x28] sm:$0xff]
    %v4260 = vld [vmem:[%s4253 + $0x30] sm:$0xff]
    %v4261 = vld [vmem:[%s4253 + $0x38] sm:$0xff]
    %v4262 = vadd.f32 %v4254, %v4202
    %v4263 = vadd.f32 %v4255, %v4204
    %v4264 = vadd.f32 %v4256, %v4245
    %v4265 = vadd.f32 %v4257, %v4247
    %v4266 = vadd.f32 %v4258, %v4206
    %v4267 = vadd.f32 %v4259, %v4208
    %v4268 = vadd.f32 %v4260, %v4249
    %v4269 = vadd.f32 %v4261, %v4251
    %v4270 = vld [vmem:[#allocation5] sm:$0xff]
    %v4271 = vld [vmem:[#allocation5 + $0x8] sm:$0xff]
    %v4272 = vxor.u32 %v4262, 2147483648
    %v4273 = vxor.u32 %v4266, 2147483648
    %v4274 = vmul.f32 %v4272, 1.442695
    %v4275 = vpow.pop %v4274
    %v4276 = vmul.f32 %v4273, 1.442695
    %v4277 = vpow.pop %v4276
    %v4278 = vadd.f32 %v4275, 1.0
    %v4279 = vadd.f32 %v4277, 1.0
    %v4280 = vrcp.pop %v4278
    %v4281 = vmul.f32 1.0, %v4280
    %v4282 = vrcp.pop %v4279
    %v4283 = vmul.f32 1.0, %v4282
    %v4284 = vxor.u32 %v4263, 2147483648
    %v4285 = vxor.u32 %v4267, 2147483648
    %v4286 = vmul.f32 %v4284, 1.442695
    %v4287 = vpow.pop %v4286
    %v4288 = vmul.f32 %v4285, 1.442695
    %v4289 = vpow.pop %v4288
    %v4290 = vadd.f32 %v4287, 1.0
    %v4291 = vadd.f32 %v4289, 1.0
    %v4292 = vrcp.pop %v4290
    %v4293 = vmul.f32 1.0, %v4292
    %v4294 = vrcp.pop %v4291
    %v4295 = vmul.f32 1.0, %v4294
    %v4296 = vtanh.pop %v4264
    %v4297 = vtanh.pop %v4268
    %v4298 = vxor.u32 %v4265, 2147483648
    %v4299 = vxor.u32 %v4269, 2147483648
    %v4300 = vmul.f32 %v4298, 1.442695
    %v4301 = vpow.pop %v4300
    %v4302 = vmul.f32 %v4299, 1.442695
    %v4303 = vpow.pop %v4302
    %v4304 = vadd.f32 %v4301, 1.0
    %v4305 = vadd.f32 %v4303, 1.0
    %v4306 = vrcp.pop %v4304
    %v4307 = vmul.f32 1.0, %v4306
    %v4308 = vrcp.pop %v4305
    %v4309 = vmul.f32 1.0, %v4308
    %v4310 = vmul.f32 %v4293, %v4270
    %v4311 = vmul.f32 %v4295, %v4271
    %v4312 = vmul.f32 %v4281, %v4296
    %v4313 = vmul.f32 %v4283, %v4297
    %v4314 = vadd.f32 %v4310, %v4312
    %v4315 = vadd.f32 %v4311, %v4313
    %v4316 = vtanh.pop %v4314
    %v4317 = vtanh.pop %v4315
    %v4318 = vmul.f32 %v4307, %v4316
    %v4319 = vmul.f32 %v4309, %v4317
    %v4320 = vsel %vm1984, %v4314, %v4270
    %v4321 = vsel %vm1985, %v4315, %v4271
    %4322 = vst [vmem:[#allocation5] sm:$0xff] %v4320
    %4323 = vst [vmem:[#allocation5 + $0x8] sm:$0xff] %v4321
    %v4324 = vld [vmem:[#allocation4] sm:$0xff]
    %v4325 = vld [vmem:[#allocation4 + $0x8] sm:$0xff]
    %v4326 = vsel %vm1984, %v4318, %v4324
    %v4327 = vsel %vm1985, %v4319, %v4325
    %4328 = vst [vmem:[#allocation4] sm:$0xff] %v4326
    %4329 = vst [vmem:[#allocation4 + $0x8] sm:$0xff] %v4327
    %v4330 = vld [vmem:[#allocation8] sm:$0xff]
    %v4331 = vld [vmem:[#allocation8 + $0x8] sm:$0xff]
    %v4332 = vsel %vm1984, %v4318, 0.0
    %v4333 = vsel %vm1985, %v4319, 0.0
    %v4334 = vmax.f32 %v4330, %v4332
    %v4335 = vmax.f32 %v4331, %v4333
    %4336 = vst [vmem:[#allocation8] sm:$0xff] %v4334
    %4337 = vst [vmem:[#allocation8 + $0x8] sm:$0xff] %v4335
    %v4338 = vld [vmem:[#allocation6] sm:$0xff]
    %v4339 = vld [vmem:[#allocation6 + $0x8] sm:$0xff]
    %v4340 = vpack.c.bf16 %v4339, %v4338
    %4341 = vmatprep.subr.bf16.mxu0 %v1758
    %4342 = vmatpush1.bf16.msra.mxu0 %v1757
    %4343 = vmatprep.subr.bf16.mxu0 %v1762
    %4344 = vmatpush1.bf16.msra.mxu0 %v1761
    %4345 = vmatprep.subr.bf16.mxu0 %v1766
    %4346 = vmatpush1.bf16.msra.mxu0 %v1765
    %4347 = vmatprep.subr.bf16.mxu0 %v1770
    %4348 = vmatpush1.bf16.msra.mxu0 %v1769
    %4349 = vmatprep.subr.bf16.mxu0 %v1774
    %4350 = vmatpush1.bf16.msra.mxu0 %v1773
    %4351 = vmatprep.subr.bf16.mxu0 %v1778
    %4352 = vmatpush1.bf16.msra.mxu0 %v1777
    %4353 = vmatprep.subr.bf16.mxu0 %v1782
    %4354 = vmatpush1.bf16.msra.mxu0 %v1781
    %4355 = vmatprep.subr.bf16.mxu0 %v1786
    %4356 = vmatpush1.bf16.msra.mxu0 %v1785
    %4357 = vmatprep.subr.bf16.mxu0 0
    %4358 = vmatpush1.bf16.msra.mxu0 0
    %4359 = vmatprep.subr.bf16.mxu0 0
    %4360 = vmatpush1.bf16.msra.mxu0 0
    %4361 = vmatprep.subr.bf16.mxu0 0
    %4362 = vmatpush1.bf16.msra.mxu0 0
    %4363 = vmatprep.subr.bf16.mxu0 0
    %4364 = vmatpush1.bf16.msra.mxu0 0
    %4365 = vmatprep.subr.bf16.mxu0 0
    %4366 = vmatpush1.bf16.msra.mxu0 0
    %4367 = vmatprep.subr.bf16.mxu0 0
    %4368 = vmatpush1.bf16.msra.mxu0 0
    %4369 = vmatprep.subr.bf16.mxu0 0
    %4370 = vmatpush1.bf16.msra.mxu0 0
    %4371 = vmatprep.subr.bf16.mxu0 0
    %4372 = vmatpush1.bf16.msra.mxu0 0
    %4373 = vmatprep.mubr.bf16.mxu0 0
    %4374 = vmatmul.mubr.bf16.gmra.mrb[0].mxu0 %v4340
    %v4375 = vpop.f32.mrb[0].mxu0
    %v4376 = vadd.f32 0.0, %v4375
    %v4377 = vpop.f32.mrb[0].mxu0
    %v4378 = vadd.f32 0.0, %v4377
    %v4379 = vpop.f32.mrb[0].mxu0
    %v4380 = vadd.f32 0.0, %v4379
    %v4381 = vpop.f32.mrb[0].mxu0
    %v4382 = vadd.f32 0.0, %v4381
    %4383 = vdwg.mxu0
    %4384 = vmatprep.subr.bf16.mxu0 %v1760
    %4385 = vmatpush1.bf16.msra.mxu0 %v1759
    %4386 = vmatprep.subr.bf16.mxu0 %v1764
    %4387 = vmatpush1.bf16.msra.mxu0 %v1763
    %4388 = vmatprep.subr.bf16.mxu0 %v1768
    %4389 = vmatpush1.bf16.msra.mxu0 %v1767
    %4390 = vmatprep.subr.bf16.mxu0 %v1772
    %4391 = vmatpush1.bf16.msra.mxu0 %v1771
    %4392 = vmatprep.subr.bf16.mxu0 %v1776
    %4393 = vmatpush1.bf16.msra.mxu0 %v1775
    %4394 = vmatprep.subr.bf16.mxu0 %v1780
    %4395 = vmatpush1.bf16.msra.mxu0 %v1779
    %4396 = vmatprep.subr.bf16.mxu0 %v1784
    %4397 = vmatpush1.bf16.msra.mxu0 %v1783
    %4398 = vmatprep.subr.bf16.mxu0 %v1788
    %4399 = vmatpush1.bf16.msra.mxu0 %v1787
    %4400 = vmatprep.subr.bf16.mxu0 0
    %4401 = vmatpush1.bf16.msra.mxu0 0
    %4402 = vmatprep.subr.bf16.mxu0 0
    %4403 = vmatpush1.bf16.msra.mxu0 0
    %4404 = vmatprep.subr.bf16.mxu0 0
    %4405 = vmatpush1.bf16.msra.mxu0 0
    %4406 = vmatprep.subr.bf16.mxu0 0
    %4407 = vmatpush1.bf16.msra.mxu0 0
    %4408 = vmatprep.subr.bf16.mxu0 0
    %4409 = vmatpush1.bf16.msra.mxu0 0
    %4410 = vmatprep.subr.bf16.mxu0 0
    %4411 = vmatpush1.bf16.msra.mxu0 0
    %4412 = vmatprep.subr.bf16.mxu0 0
    %4413 = vmatpush1.bf16.msra.mxu0 0
    %4414 = vmatprep.subr.bf16.mxu0 0
    %4415 = vmatpush1.bf16.msra.mxu0 0
    %4416 = vmatprep.mubr.bf16.mxu0 0
    %4417 = vmatmul.mubr.bf16.gmra.mrb[0].mxu0 %v4340
    %v4418 = vpop.f32.mrb[0].mxu0
    %v4419 = vadd.f32 0.0, %v4418
    %v4420 = vpop.f32.mrb[0].mxu0
    %v4421 = vadd.f32 0.0, %v4420
    %v4422 = vpop.f32.mrb[0].mxu0
    %v4423 = vadd.f32 0.0, %v4422
    %v4424 = vpop.f32.mrb[0].mxu0
    %v4425 = vadd.f32 0.0, %v4424
    %4426 = vdwg.mxu0
    %v4427 = vld [vmem:[#allocation3] sm:$0xff]
    %v4428 = vld [vmem:[#allocation3 + $0x8] sm:$0xff]
    %v4429 = vld [vmem:[#allocation3 + $0x10] sm:$0xff]
    %v4430 = vld [vmem:[#allocation3 + $0x18] sm:$0xff]
    %v4431 = vld [vmem:[#allocation3 + $0x20] sm:$0xff]
    %v4432 = vld [vmem:[#allocation3 + $0x28] sm:$0xff]
    %v4433 = vld [vmem:[#allocation3 + $0x30] sm:$0xff]
    %v4434 = vld [vmem:[#allocation3 + $0x38] sm:$0xff]
    %v4435 = vadd.f32 %v4427, %v4376
    %v4436 = vadd.f32 %v4428, %v4378
    %v4437 = vadd.f32 %v4429, %v4419
    %v4438 = vadd.f32 %v4430, %v4421
    %v4439 = vadd.f32 %v4431, %v4380
    %v4440 = vadd.f32 %v4432, %v4382
    %v4441 = vadd.f32 %v4433, %v4423
    %v4442 = vadd.f32 %v4434, %v4425
    %v4443 = vld [vmem:[#allocation7] sm:$0xff]
    %v4444 = vld [vmem:[#allocation7 + $0x8] sm:$0xff]
    %v4445 = vxor.u32 %v4435, 2147483648
    %v4446 = vxor.u32 %v4439, 2147483648
    %v4447 = vmul.f32 %v4445, 1.442695
    %v4448 = vpow.pop %v4447
    %v4449 = vmul.f32 %v4446, 1.442695
    %v4450 = vpow.pop %v4449
    %v4451 = vadd.f32 %v4448, 1.0
    %v4452 = vadd.f32 %v4450, 1.0
    %v4453 = vrcp.pop %v4451
    %v4454 = vmul.f32 1.0, %v4453
    %v4455 = vrcp.pop %v4452
    %v4456 = vmul.f32 1.0, %v4455
    %v4457 = vxor.u32 %v4436, 2147483648
    %v4458 = vxor.u32 %v4440, 2147483648
    %v4459 = vmul.f32 %v4457, 1.442695
    %v4460 = vpow.pop %v4459
    %v4461 = vmul.f32 %v4458, 1.442695
    %v4462 = vpow.pop %v4461
    %v4463 = vadd.f32 %v4460, 1.0
    %v4464 = vadd.f32 %v4462, 1.0
    %v4465 = vrcp.pop %v4463
    %v4466 = vmul.f32 1.0, %v4465
    %v4467 = vrcp.pop %v4464
    %v4468 = vmul.f32 1.0, %v4467
    %v4469 = vtanh.pop %v4437
    %v4470 = vtanh.pop %v4441
    %v4471 = vxor.u32 %v4438, 2147483648
    %v4472 = vxor.u32 %v4442, 2147483648
    %v4473 = vmul.f32 %v4471, 1.442695
    %v4474 = vpow.pop %v4473
    %v4475 = vmul.f32 %v4472, 1.442695
    %v4476 = vpow.pop %v4475
    %v4477 = vadd.f32 %v4474, 1.0
    %v4478 = vadd.f32 %v4476, 1.0
    %v4479 = vrcp.pop %v4477
    %v4480 = vmul.f32 1.0, %v4479
    %v4481 = vrcp.pop %v4478
    %v4482 = vmul.f32 1.0, %v4481
    %v4483 = vmul.f32 %v4466, %v4443
    %v4484 = vmul.f32 %v4468, %v4444
    %v4485 = vmul.f32 %v4454, %v4469
    %v4486 = vmul.f32 %v4456, %v4470
    %v4487 = vadd.f32 %v4483, %v4485
    %v4488 = vadd.f32 %v4484, %v4486
    %v4489 = vtanh.pop %v4487
    %v4490 = vtanh.pop %v4488
    %v4491 = vmul.f32 %v4480, %v4489
    %v4492 = vmul.f32 %v4482, %v4490
    %v4493 = vsel %vm1638, %v4487, %v4443
    %v4494 = vsel %vm1639, %v4488, %v4444
    %4495 = vst [vmem:[#allocation7] sm:$0xff] %v4493
    %4496 = vst [vmem:[#allocation7 + $0x8] sm:$0xff] %v4494
    %v4497 = vld [vmem:[#allocation6] sm:$0xff]
    %v4498 = vld [vmem:[#allocation6 + $0x8] sm:$0xff]
    %v4499 = vsel %vm1638, %v4491, %v4497
    %v4500 = vsel %vm1639, %v4492, %v4498
    %4501 = vst [vmem:[#allocation6] sm:$0xff] %v4499
    %4502 = vst [vmem:[#allocation6 + $0x8] sm:$0xff] %v4500
    %v4503 = vld [vmem:[#allocation9] sm:$0xff]
    %v4504 = vld [vmem:[#allocation9 + $0x8] sm:$0xff]
    %v4505 = vsel %vm1638, %v4491, 0.0
    %v4506 = vsel %vm1639, %v4492, 0.0
    %v4507 = vmax.f32 %v4503, %v4505
    %v4508 = vmax.f32 %v4504, %v4506
    %4509 = vst [vmem:[#allocation9] sm:$0xff] %v4507
    %4510 = vst [vmem:[#allocation9 + $0x8] sm:$0xff] %v4508
    %v4511 = vld [vmem:[#allocation8] sm:$0xff]
    %v4512 = vld [vmem:[#allocation8 + $0x8] sm:$0xff]
    %4513 = vst [vmem:[#allocation19] sm:$0xff] %v4511
    %4514 = vst [vmem:[#allocation19 + $0x10] sm:$0xff] %v4512
    %v4515 = vld [vmem:[#allocation9] sm:$0xff]
    %v4516 = vld [vmem:[#allocation9 + $0x8] sm:$0xff]
    %4517 = vst [vmem:[#allocation19 + $0x8] sm:$0xff] %v4515
    %4518 = vst [vmem:[#allocation19 + $0x18] sm:$0xff] %v4516
    // Predicated region
    $region54: #{tpu_custom_call.1} parent=1 // pred_check
      _
    $region55: #{tpu_custom_call.1} parent=1 // pred_check_branch
      %4520 = sbr.rel (0) target = $region57
    $region56: #{tpu_custom_call.1} parent=1 // pred_region
      %s4522 = ssub.s32 512, 512
      %4523 = vsyncadd [#allocation12], %s4522
      %s4524 = sshll.u32 [#allocation19], 4
      %s4525 = int_to_ptr.vmem [resolvable:$true] %s4524
      %4530 = dma.vmem_to_hbm [thread:$0]  %s4525, 512, %s8, [#allocation12], 256, 256, 16
    $region57: #{tpu_custom_call.1} parent=1 // pred_fallthru
      _
    // Predicated region
    $region58: #{tpu_custom_call.1} parent=1 // pred_check
      _
    $region59: #{tpu_custom_call.1} parent=1 // pred_check_branch
      %4532 = sbr.rel (0) target = $region61
    $region60: #{tpu_custom_call.1} parent=1 // pred_region
      %4533 = dma.done [#allocation12], 512
    $region61: #{tpu_custom_call.1} parent=1 // pred_fallthru
      _
    %4534 = vsyncpa [#allocation11], 1
    %4535 = vsyncpa [#allocation14], 1
    %4536 = vsyncpa [#allocation17], 1
    %4537 = vsyncpa [#allocation12], 1

</llo_original>
